<compile_context>
chip_gen: v7x
topology: tpu7x:2x2x1
jax: 0.10.0
libtpu: 0.0.40
codegen_flags: <defaults>
</compile_context>

<pallas_src>
import math

import jax
import jax.numpy as jnp
from jax import lax
from jax.experimental import pallas as pl
from jax.experimental.pallas import tpu as pltpu

# Filters hard-coded by the module's __init__
FILTERS = [(1, 128), (3, 256), (5, 384), (7, 512), (9, 512), (11, 512)]
LAST_DIM = sum(oc for _, oc in FILTERS)      # 2304
MAX_PAD = max(w // 2 for w, _ in FILTERS)    # 5
NTAPS = 2 * MAX_PAD + 1                      # 11
ONEHOT_DIM = 29 - 1                          # 28
LN_EPS = 1e-12


def _round_up(x, m):
    return (x + m - 1) // m * m


def _gelu(x):
    # exact GELU (matches torch.nn.GELU() default)
    return 0.5 * x * (1.0 + lax.erf(x * 0.7071067811865476))


# ---------------------------------------------------------------------------
# Kernel 1: all Conv1d filters + bias + GELU, concatenated along channels.
# ---------------------------------------------------------------------------
def _conv_gelu_kernel(x_ref, w_ref, b_ref, out_ref):
    # x_ref  : (1, Lt + 2*MAX_PAD, Cin) f32  (whole padded row; resident across l)
    # w_ref  : (NTAPS, Cin, LAST_DIM)   f32  (zero-padded stacked filter bank)
    # b_ref  : (1, LAST_DIM)            f32
    # out_ref: (1, tl, LAST_DIM)        bf16
    tl = out_ref.shape[1]
    base = pl.multiple_of(pl.program_id(1) * tl, 8)
    window = x_ref[0, pl.ds(base, tl + 2 * MAX_PAD), :]        # (tl + 10, Cin)
    acc = jnp.zeros((tl, LAST_DIM), jnp.float32)
    for t in range(NTAPS):                                     # static unroll
        acc = acc + jnp.dot(window[t:t + tl, :], w_ref[t],
                            preferred_element_type=jnp.float32)
    acc = acc + b_ref[...]
    out_ref[0] = _gelu(acc).astype(out_ref.dtype)


def conv_gelu(x_pad, w_stack, b_cat, Lt, tl):
    B, Lp, Cin = x_pad.shape                                   # Lp = Lt + 2*MAX_PAD
    grid = (B, Lt // tl)
    return pl.pallas_call(
        _conv_gelu_kernel,
        out_shape=jax.ShapeDtypeStruct((B, Lt, LAST_DIM), jnp.bfloat16),
        grid=grid,
        in_specs=[
            pl.BlockSpec((1, Lp, Cin), lambda b, l: (b, 0, 0)),
            pl.BlockSpec((NTAPS, Cin, LAST_DIM), lambda b, l: (0, 0, 0)),
            pl.BlockSpec((1, LAST_DIM), lambda b, l: (0, 0)),
        ],
        out_specs=pl.BlockSpec((1, tl, LAST_DIM), lambda b, l: (b, l, 0)),
        compiler_params=pltpu.CompilerParams(
            dimension_semantics=("parallel", "parallel")),
    )(x_pad, w_stack, b_cat)


def prepare_conv_weights(conv_w, conv_b, cin):
    """Pack per-filter (width, cin, oc) weights into a (NTAPS, cin, 2304) stack."""
    w = jnp.zeros((NTAPS, cin, LAST_DIM), jnp.float32)
    off = 0
    for (width, oc), wf in zip(FILTERS, conv_w):
        pad = width // 2
        for k in range(width):
            t = MAX_PAD - pad + k
            w = w.at[t, :, off:off + oc].set(wf[k])
        off += oc
    b = jnp.concatenate([bf.reshape(1, -1) for bf in conv_b], axis=-1)
    return w, b


# ---------------------------------------------------------------------------
# Kernel 2: Highway + projection + positional add + LayerNorm (all fused).
# ---------------------------------------------------------------------------
def _hw_proj_ln_kernel(x_ref, wp_ref, wg_ref, bp_ref, bg_ref,
                       wo_ref, bo_ref, pos_ref, gamma_ref, beta_ref,
                       out_ref, accp, accg, emb):
    n = pl.program_id(1)
    k = pl.program_id(2)
    n_last = pl.num_programs(1) - 1
    k_last = pl.num_programs(2) - 1
    tk = wp_ref.shape[0]
    tn = wp_ref.shape[1]

    @pl.when((n == 0) & (k == 0))
    def _():
        emb[...] = jnp.zeros_like(emb)

    @pl.when(k == 0)
    def _():
        accp[...] = jnp.zeros_like(accp)
        accg[...] = jnp.zeros_like(accg)

    # bf16 MXU matmuls, f32 accumulation.
    xk = x_ref[:, pl.ds(pl.multiple_of(k * tk, 128), tk)]      # (tm, tk) bf16
    accp[...] += jnp.dot(xk, wp_ref[...], preferred_element_type=jnp.float32)
    accg[...] += jnp.dot(xk, wg_ref[...], preferred_element_type=jnp.float32)

    @pl.when(k == k_last)
    def _():
        xn = x_ref[:, pl.ds(pl.multiple_of(n * tn, 128), tn)].astype(jnp.float32)
        p = _gelu(accp[...] + bp_ref[...])
        g = jax.nn.sigmoid(accg[...] + bg_ref[...])
        y = g * xn + (1.0 - g) * p                             # (tm, tn) f32
        # fold this highway tile straight into the projection accumulator
        emb[...] += jnp.dot(y, wo_ref[...], preferred_element_type=jnp.float32)

    @pl.when((n == n_last) & (k == k_last))
    def _():
        h = emb[...] + bo_ref[...] + pos_ref[...]
        mu = jnp.mean(h, axis=-1, keepdims=True)
        var = jnp.mean(jnp.square(h - mu), axis=-1, keepdims=True)
        out_ref[...] = ((h - mu) * lax.rsqrt(var + LN_EPS) * gamma_ref[...]
                        + beta_ref[...]).astype(out_ref.dtype)


def highway_proj_layernorm(feat2d, wp, wg, bp, bg, wo, bo, pos2d, gamma, beta,
                           *, tm, tn=768, tk=768):
    Mp, C = feat2d.shape
    E = wo.shape[1]
    assert Mp % tm == 0 and C % tn == 0 and C % tk == 0
    grid = (Mp // tm, C // tn, C // tk)
    return pl.pallas_call(
        _hw_proj_ln_kernel,
        out_shape=jax.ShapeDtypeStruct((Mp, E), jnp.float32),
        grid=grid,
        in_specs=[
            pl.BlockSpec((tm, C), lambda m, n, k: (m, 0)),     # full feature row
            pl.BlockSpec((tk, tn), lambda m, n, k: (k, n)),    # Wp tile (bf16)
            pl.BlockSpec((tk, tn), lambda m, n, k: (k, n)),    # Wg tile (bf16)
            pl.BlockSpec((1, tn), lambda m, n, k: (0, n)),     # bp
            pl.BlockSpec((1, tn), lambda m, n, k: (0, n)),     # bg
            pl.BlockSpec((tn, E), lambda m, n, k: (n, 0)),     # proj weight tile
            pl.BlockSpec((1, E), lambda m, n, k: (0, 0)),      # proj bias
            pl.BlockSpec((tm, E), lambda m, n, k: (m, 0)),     # positional emb
            pl.BlockSpec((1, E), lambda m, n, k: (0, 0)),      # ln gamma
            pl.BlockSpec((1, E), lambda m, n, k: (0, 0)),      # ln beta
        ],
        out_specs=pl.BlockSpec((tm, E), lambda m, n, k: (m, 0)),
        scratch_shapes=[pltpu.VMEM((tm, tn), jnp.float32),
                        pltpu.VMEM((tm, tn), jnp.float32),
                        pltpu.VMEM((tm, E), jnp.float32)],
        compiler_params=pltpu.CompilerParams(
            dimension_semantics=("parallel", "arbitrary", "arbitrary")),
    )(feat2d, wp, wg, bp, bg, wo, bo, pos2d, gamma, beta)


# ---------------------------------------------------------------------------
# Full forward (glue in plain JAX, hot paths in the two Pallas kernels above)
# ---------------------------------------------------------------------------
def bert_embedding_both(cont_seq, token_seq, params, pos):
    B, L, V = cont_seq.shape
    E = params["proj_w"].shape[1]
    cin = ONEHOT_DIM + V

    # frozen one-hot "embedding" (padding_idx=0 -> zero row; token t>=1 -> e_{t-1})
    char = jax.nn.one_hot(token_seq - 1, ONEHOT_DIM, dtype=jnp.float32)
    conv_in = jnp.concatenate([char, cont_seq], axis=-1)            # (B, L, cin)

    # --- conv bank ---
    tl = min(256, _round_up(L, 8))
    Lt = _round_up(L, tl)
    x_pad = jnp.pad(conv_in, ((0, 0), (MAX_PAD, MAX_PAD + Lt - L), (0, 0)))
    w_stack, b_cat = prepare_conv_weights(params["conv_w"], params["conv_b"], cin)
    feat = conv_gelu(x_pad, w_stack, b_cat, Lt, tl)                 # (B, Lt, 2304) bf16

    # --- highway + projection + pos + layernorm (fused, batch folded into M) ---
    M = B * Lt
    tm = min(256, _round_up(M, 8))
    Mp = _round_up(M, tm)
    feat2d = feat.reshape(M, LAST_DIM)
    pos2d = jnp.tile(jnp.pad(pos, ((0, Lt - L), (0, 0))), (B, 1))   # (M, E)
    if Mp > M:
        feat2d = jnp.pad(feat2d, ((0, Mp - M), (0, 0)))
        pos2d = jnp.pad(pos2d, ((0, Mp - M), (0, 0)))

    out2d = highway_proj_layernorm(
        feat2d,
        params["hw_wp"].astype(jnp.bfloat16),
        params["hw_wg"].astype(jnp.bfloat16),
        params["hw_bp"], params["hw_bg"],
        params["proj_w"],            # tiny weight: kept f32 for accuracy
        params["proj_b"], pos2d,
        params["ln_gamma"], params["ln_beta"],
        tm=tm)
    return out2d[:M].reshape(B, Lt, E)[:, :L, :]


def make_positional_embedding(max_len, d_model):
    position = jnp.arange(max_len, dtype=jnp.float32)[:, None]
    div_term = jnp.exp(jnp.arange(0, d_model, 2, dtype=jnp.float32)
                       * -(math.log(10000.0) / d_model))
    pe = jnp.zeros((max_len, d_model), jnp.float32)
    pe = pe.at[:, 0::2].set(jnp.sin(position * div_term))
    pe = pe.at[:, 1::2].set(jnp.cos(position * div_term))
    return pe


def reference(cont_seq, token_seq, params, pos):
    """Pure-JAX f32 reference matching the PyTorch forward."""
    B, L, V = cont_seq.shape
    char = jax.nn.one_hot(token_seq - 1, ONEHOT_DIM, dtype=jnp.float32)
    x = jnp.concatenate([char, cont_seq], axis=-1)
    x_t = jnp.transpose(x, (0, 2, 1))                               # (B, Cin, L)
    parts = []
    for (w, oc), wgt, bb in zip(FILTERS, params["conv_w"], params["conv_b"]):
        kernel = jnp.transpose(wgt, (2, 1, 0))                      # (oc, Cin, w)
        y = lax.conv_general_dilated(x_t, kernel, (1,), [(w // 2, w // 2)],
                                     dimension_numbers=("NCH", "OIH", "NCH"))
        y = y[:, :, :L]
        y = _gelu(y + bb[0][None, :, None])
        parts.append(y)
    feat = jnp.transpose(jnp.concatenate(parts, axis=1), (0, 2, 1)) # (B, L, 2304)
    proj = _gelu(feat @ params["hw_wp"] + params["hw_bp"])
    gate = jax.nn.sigmoid(feat @ params["hw_wg"] + params["hw_bg"])
    hw = gate * feat + (1.0 - gate) * proj
    emb = hw @ params["proj_w"] + params["proj_b"] + pos[None]
    mu = jnp.mean(emb, axis=-1, keepdims=True)
    var = jnp.mean(jnp.square(emb - mu), axis=-1, keepdims=True)
    return (emb - mu) * lax.rsqrt(var + LN_EPS) * params["ln_gamma"] + params["ln_beta"]


if __name__ == "__main__":
    B, L, V, E, MAX_LEN = 2, 16, 4, 32, 64    # vocab_size=4 -> conv_dim = 28 + 4 = 32
    CIN = ONEHOT_DIM + V

    key = jax.random.PRNGKey(0)
    keys = jax.random.split(key, 24)

    conv_w, conv_b = [], []
    for i, (w, oc) in enumerate(FILTERS):
        conv_w.append(0.1 * jax.random.normal(keys[i], (w, CIN, oc), jnp.float32))
        conv_b.append(0.05 * jax.random.normal(keys[6 + i], (1, oc), jnp.float32))

    s = 1.0 / math.sqrt(LAST_DIM)
    params = {
        "conv_w": conv_w,
        "conv_b": conv_b,
        "hw_wp": s * jax.random.normal(keys[12], (LAST_DIM, LAST_DIM), jnp.float32),
        "hw_wg": s * jax.random.normal(keys[13], (LAST_DIM, LAST_DIM), jnp.float32),
        "hw_bp": 0.05 * jax.random.normal(keys[14], (1, LAST_DIM), jnp.float32),
        "hw_bg": 0.05 * jax.random.normal(keys[15], (1, LAST_DIM), jnp.float32),
        "proj_w": s * jax.random.normal(keys[16], (LAST_DIM, E), jnp.float32),
        "proj_b": 0.05 * jax.random.normal(keys[17], (1, E), jnp.float32),
        "ln_gamma": jnp.ones((1, E), jnp.float32)
                    + 0.1 * jax.random.normal(keys[18], (1, E), jnp.float32),
        "ln_beta": 0.1 * jax.random.normal(keys[19], (1, E), jnp.float32),
    }

    cont_sequence = jax.random.normal(keys[20], (B, L, V), jnp.float32)
    token_sequence = jax.random.randint(keys[21], (B, L), 0, 29, dtype=jnp.int32)
    pos = make_positional_embedding(MAX_LEN, E)[:L]                  # (L, E)

    out = jax.block_until_ready(bert_embedding_both(cont_sequence, token_sequence,
                                                    params, pos))
    ref = jax.block_until_ready(reference(cont_sequence, token_sequence, params, pos))

    assert out.shape == (B, L, E), out.shape
    err = float(jnp.max(jnp.abs(out - ref)))
    # bf16 feature map + bf16 highway matmul operands (f32 accumulation) => loosened tol
    assert err < 5e-2, err

    print("KERNEL_OK")
</pallas_src>

<mosaic_0001>
module attributes {stable_mosaic.version = 11 : i64} {
  func.func @_conv_gelu_kernel(%arg0: i32, %arg1: i32, %arg2: memref<1x26x32xf32, #tpu.memory_space<vmem>>, %arg3: memref<11x32x2304xf32, #tpu.memory_space<vmem>>, %arg4: memref<1x2304xf32, #tpu.memory_space<vmem>>, %arg5: memref<1x16x2304xbf16, #tpu.memory_space<vmem>>) attributes {dimension_semantics = [#tpu.dimension_semantics<parallel>, #tpu.dimension_semantics<parallel>], iteration_bounds = array<i64: 2, 1>, scalar_prefetch = 0 : i64, scratch_operands = 0 : i64, tpu.core_type = #tpu.core_type<tc>, window_params = [{transform_indices = @transform_0, window_bounds = array<i64: 1, 26, 32>}, {pipeline_mode = #tpu.pipeline_mode<synchronous>, transform_indices = @transform_1, window_bounds = array<i64: 11, 32, 2304>}, {pipeline_mode = #tpu.pipeline_mode<synchronous>, transform_indices = @transform_2, window_bounds = array<i64: 1, 2304>}, {transform_indices = @transform_3, window_bounds = array<i64: 1, 16, 2304>}]} {
    %c16_i32 = arith.constant 16 : i32
    %0 = arith.muli %arg1, %c16_i32 : i32
    %1 = tpu.assume_multiple %0, 8 : i32
    %c0 = arith.constant 0 : index
    %2 = arith.index_cast %1 : i32 to index
    %c0_0 = arith.constant 0 : index
    %3 = vector.load %arg2[%c0, %2, %c0_0] : memref<1x26x32xf32, #tpu.memory_space<vmem>>, vector<1x26x32xf32>
    %4 = vector.shape_cast %3 : vector<1x26x32xf32> to vector<26x32xf32>
    %cst = arith.constant 0.000000e+00 : f32
    %5 = vector.broadcast %cst : f32 to vector<16x2304xf32>
    %6 = vector.extract_strided_slice %4 {offsets = [0, 0], sizes = [16, 32], strides = [1, 1]} : vector<26x32xf32> to vector<16x32xf32>
    %c0_1 = arith.constant 0 : index
    %c0_2 = arith.constant 0 : index
    %c0_3 = arith.constant 0 : index
    %7 = vector.load %arg3[%c0_1, %c0_2, %c0_3] : memref<11x32x2304xf32, #tpu.memory_space<vmem>>, vector<1x32x2304xf32>
    %8 = vector.shape_cast %7 : vector<1x32x2304xf32> to vector<32x2304xf32>
    %cst_4 = arith.constant dense<0.000000e+00> : vector<16x2304xf32>
    %9 = tpu.matmul %6, %8, %cst_4 {dimension_numbers = #tpu.dot_dimension_numbers<[1], [0], [0], [1], [0, 0, 1, 1], [], []>} : vector<16x32xf32>, vector<32x2304xf32>, vector<16x2304xf32> -> vector<16x2304xf32>
    %10 = arith.addf %5, %9 : vector<16x2304xf32>
    %11 = vector.extract_strided_slice %4 {offsets = [1, 0], sizes = [16, 32], strides = [1, 1]} : vector<26x32xf32> to vector<16x32xf32>
    %c1 = arith.constant 1 : index
    %c0_5 = arith.constant 0 : index
    %c0_6 = arith.constant 0 : index
    %12 = vector.load %arg3[%c1, %c0_5, %c0_6] : memref<11x32x2304xf32, #tpu.memory_space<vmem>>, vector<1x32x2304xf32>
    %13 = vector.shape_cast %12 : vector<1x32x2304xf32> to vector<32x2304xf32>
    %cst_7 = arith.constant dense<0.000000e+00> : vector<16x2304xf32>
    %14 = tpu.matmul %11, %13, %cst_7 {dimension_numbers = #tpu.dot_dimension_numbers<[1], [0], [0], [1], [0, 0, 1, 1], [], []>} : vector<16x32xf32>, vector<32x2304xf32>, vector<16x2304xf32> -> vector<16x2304xf32>
    %15 = arith.addf %10, %14 : vector<16x2304xf32>
    %16 = vector.extract_strided_slice %4 {offsets = [2, 0], sizes = [16, 32], strides = [1, 1]} : vector<26x32xf32> to vector<16x32xf32>
    %c2 = arith.constant 2 : index
    %c0_8 = arith.constant 0 : index
    %c0_9 = arith.constant 0 : index
    %17 = vector.load %arg3[%c2, %c0_8, %c0_9] : memref<11x32x2304xf32, #tpu.memory_space<vmem>>, vector<1x32x2304xf32>
    %18 = vector.shape_cast %17 : vector<1x32x2304xf32> to vector<32x2304xf32>
    %cst_10 = arith.constant dense<0.000000e+00> : vector<16x2304xf32>
    %19 = tpu.matmul %16, %18, %cst_10 {dimension_numbers = #tpu.dot_dimension_numbers<[1], [0], [0], [1], [0, 0, 1, 1], [], []>} : vector<16x32xf32>, vector<32x2304xf32>, vector<16x2304xf32> -> vector<16x2304xf32>
    %20 = arith.addf %15, %19 : vector<16x2304xf32>
    %21 = vector.extract_strided_slice %4 {offsets = [3, 0], sizes = [16, 32], strides = [1, 1]} : vector<26x32xf32> to vector<16x32xf32>
    %c3 = arith.constant 3 : index
    %c0_11 = arith.constant 0 : index
    %c0_12 = arith.constant 0 : index
    %22 = vector.load %arg3[%c3, %c0_11, %c0_12] : memref<11x32x2304xf32, #tpu.memory_space<vmem>>, vector<1x32x2304xf32>
    %23 = vector.shape_cast %22 : vector<1x32x2304xf32> to vector<32x2304xf32>
    %cst_13 = arith.constant dense<0.000000e+00> : vector<16x2304xf32>
    %24 = tpu.matmul %21, %23, %cst_13 {dimension_numbers = #tpu.dot_dimension_numbers<[1], [0], [0], [1], [0, 0, 1, 1], [], []>} : vector<16x32xf32>, vector<32x2304xf32>, vector<16x2304xf32> -> vector<16x2304xf32>
    %25 = arith.addf %20, %24 : vector<16x2304xf32>
    %26 = vector.extract_strided_slice %4 {offsets = [4, 0], sizes = [16, 32], strides = [1, 1]} : vector<26x32xf32> to vector<16x32xf32>
    %c4 = arith.constant 4 : index
    %c0_14 = arith.constant 0 : index
    %c0_15 = arith.constant 0 : index
    %27 = vector.load %arg3[%c4, %c0_14, %c0_15] : memref<11x32x2304xf32, #tpu.memory_space<vmem>>, vector<1x32x2304xf32>
    %28 = vector.shape_cast %27 : vector<1x32x2304xf32> to vector<32x2304xf32>
    %cst_16 = arith.constant dense<0.000000e+00> : vector<16x2304xf32>
    %29 = tpu.matmul %26, %28, %cst_16 {dimension_numbers = #tpu.dot_dimension_numbers<[1], [0], [0], [1], [0, 0, 1, 1], [], []>} : vector<16x32xf32>, vector<32x2304xf32>, vector<16x2304xf32> -> vector<16x2304xf32>
    %30 = arith.addf %25, %29 : vector<16x2304xf32>
    %31 = vector.extract_strided_slice %4 {offsets = [5, 0], sizes = [16, 32], strides = [1, 1]} : vector<26x32xf32> to vector<16x32xf32>
    %c5 = arith.constant 5 : index
    %c0_17 = arith.constant 0 : index
    %c0_18 = arith.constant 0 : index
    %32 = vector.load %arg3[%c5, %c0_17, %c0_18] : memref<11x32x2304xf32, #tpu.memory_space<vmem>>, vector<1x32x2304xf32>
    %33 = vector.shape_cast %32 : vector<1x32x2304xf32> to vector<32x2304xf32>
    %cst_19 = arith.constant dense<0.000000e+00> : vector<16x2304xf32>
    %34 = tpu.matmul %31, %33, %cst_19 {dimension_numbers = #tpu.dot_dimension_numbers<[1], [0], [0], [1], [0, 0, 1, 1], [], []>} : vector<16x32xf32>, vector<32x2304xf32>, vector<16x2304xf32> -> vector<16x2304xf32>
    %35 = arith.addf %30, %34 : vector<16x2304xf32>
    %36 = vector.extract_strided_slice %4 {offsets = [6, 0], sizes = [16, 32], strides = [1, 1]} : vector<26x32xf32> to vector<16x32xf32>
    %c6 = arith.constant 6 : index
    %c0_20 = arith.constant 0 : index
    %c0_21 = arith.constant 0 : index
    %37 = vector.load %arg3[%c6, %c0_20, %c0_21] : memref<11x32x2304xf32, #tpu.memory_space<vmem>>, vector<1x32x2304xf32>
    %38 = vector.shape_cast %37 : vector<1x32x2304xf32> to vector<32x2304xf32>
    %cst_22 = arith.constant dense<0.000000e+00> : vector<16x2304xf32>
    %39 = tpu.matmul %36, %38, %cst_22 {dimension_numbers = #tpu.dot_dimension_numbers<[1], [0], [0], [1], [0, 0, 1, 1], [], []>} : vector<16x32xf32>, vector<32x2304xf32>, vector<16x2304xf32> -> vector<16x2304xf32>
    %40 = arith.addf %35, %39 : vector<16x2304xf32>
    %41 = vector.extract_strided_slice %4 {offsets = [7, 0], sizes = [16, 32], strides = [1, 1]} : vector<26x32xf32> to vector<16x32xf32>
    %c7 = arith.constant 7 : index
    %c0_23 = arith.constant 0 : index
    %c0_24 = arith.constant 0 : index
    %42 = vector.load %arg3[%c7, %c0_23, %c0_24] : memref<11x32x2304xf32, #tpu.memory_space<vmem>>, vector<1x32x2304xf32>
    %43 = vector.shape_cast %42 : vector<1x32x2304xf32> to vector<32x2304xf32>
    %cst_25 = arith.constant dense<0.000000e+00> : vector<16x2304xf32>
    %44 = tpu.matmul %41, %43, %cst_25 {dimension_numbers = #tpu.dot_dimension_numbers<[1], [0], [0], [1], [0, 0, 1, 1], [], []>} : vector<16x32xf32>, vector<32x2304xf32>, vector<16x2304xf32> -> vector<16x2304xf32>
    %45 = arith.addf %40, %44 : vector<16x2304xf32>
    %46 = vector.extract_strided_slice %4 {offsets = [8, 0], sizes = [16, 32], strides = [1, 1]} : vector<26x32xf32> to vector<16x32xf32>
    %c8 = arith.constant 8 : index
    %c0_26 = arith.constant 0 : index
    %c0_27 = arith.constant 0 : index
    %47 = vector.load %arg3[%c8, %c0_26, %c0_27] : memref<11x32x2304xf32, #tpu.memory_space<vmem>>, vector<1x32x2304xf32>
    %48 = vector.shape_cast %47 : vector<1x32x2304xf32> to vector<32x2304xf32>
    %cst_28 = arith.constant dense<0.000000e+00> : vector<16x2304xf32>
    %49 = tpu.matmul %46, %48, %cst_28 {dimension_numbers = #tpu.dot_dimension_numbers<[1], [0], [0], [1], [0, 0, 1, 1], [], []>} : vector<16x32xf32>, vector<32x2304xf32>, vector<16x2304xf32> -> vector<16x2304xf32>
    %50 = arith.addf %45, %49 : vector<16x2304xf32>
    %51 = vector.extract_strided_slice %4 {offsets = [9, 0], sizes = [16, 32], strides = [1, 1]} : vector<26x32xf32> to vector<16x32xf32>
    %c9 = arith.constant 9 : index
    %c0_29 = arith.constant 0 : index
    %c0_30 = arith.constant 0 : index
    %52 = vector.load %arg3[%c9, %c0_29, %c0_30] : memref<11x32x2304xf32, #tpu.memory_space<vmem>>, vector<1x32x2304xf32>
    %53 = vector.shape_cast %52 : vector<1x32x2304xf32> to vector<32x2304xf32>
    %cst_31 = arith.constant dense<0.000000e+00> : vector<16x2304xf32>
    %54 = tpu.matmul %51, %53, %cst_31 {dimension_numbers = #tpu.dot_dimension_numbers<[1], [0], [0], [1], [0, 0, 1, 1], [], []>} : vector<16x32xf32>, vector<32x2304xf32>, vector<16x2304xf32> -> vector<16x2304xf32>
    %55 = arith.addf %50, %54 : vector<16x2304xf32>
    %56 = vector.extract_strided_slice %4 {offsets = [10, 0], sizes = [16, 32], strides = [1, 1]} : vector<26x32xf32> to vector<16x32xf32>
    %c10 = arith.constant 10 : index
    %c0_32 = arith.constant 0 : index
    %c0_33 = arith.constant 0 : index
    %57 = vector.load %arg3[%c10, %c0_32, %c0_33] : memref<11x32x2304xf32, #tpu.memory_space<vmem>>, vector<1x32x2304xf32>
    %58 = vector.shape_cast %57 : vector<1x32x2304xf32> to vector<32x2304xf32>
    %cst_34 = arith.constant dense<0.000000e+00> : vector<16x2304xf32>
    %59 = tpu.matmul %56, %58, %cst_34 {dimension_numbers = #tpu.dot_dimension_numbers<[1], [0], [0], [1], [0, 0, 1, 1], [], []>} : vector<16x32xf32>, vector<32x2304xf32>, vector<16x2304xf32> -> vector<16x2304xf32>
    %60 = arith.addf %55, %59 : vector<16x2304xf32>
    %c0_35 = arith.constant 0 : index
    %c0_36 = arith.constant 0 : index
    %61 = vector.load %arg4[%c0_35, %c0_36] : memref<1x2304xf32, #tpu.memory_space<vmem>>, vector<1x2304xf32>
    %62 = vector.broadcast %61 : vector<1x2304xf32> to vector<16x2304xf32>
    %63 = arith.addf %60, %62 : vector<16x2304xf32>
    %cst_37 = arith.constant 5.000000e-01 : f32
    %64 = vector.broadcast %cst_37 : f32 to vector<16x2304xf32>
    %65 = arith.mulf %64, %63 : vector<16x2304xf32>
    %cst_38 = arith.constant 0.707106769 : f32
    %66 = vector.broadcast %cst_38 : f32 to vector<16x2304xf32>
    %67 = arith.mulf %63, %66 : vector<16x2304xf32>
    %68 = math.erf %67 : vector<16x2304xf32>
    %cst_39 = arith.constant 1.000000e+00 : f32
    %69 = vector.broadcast %cst_39 : f32 to vector<16x2304xf32>
    %70 = arith.addf %69, %68 : vector<16x2304xf32>
    %71 = arith.mulf %65, %70 : vector<16x2304xf32>
    %72 = arith.truncf %71 : vector<16x2304xf32> to vector<16x2304xbf16>
    %c0_40 = arith.constant 0 : index
    %c0_41 = arith.constant 0 : index
    %c0_42 = arith.constant 0 : index
    %73 = vector.load %arg5[%c0_40, %c0_41, %c0_42] : memref<1x16x2304xbf16, #tpu.memory_space<vmem>>, vector<1x16x2304xbf16>
    %74 = vector.shape_cast %73 : vector<1x16x2304xbf16> to vector<16x2304xbf16>
    %75 = vector.shape_cast %72 : vector<16x2304xbf16> to vector<1x16x2304xbf16>
    tpu.vector_store %arg5[%c0_40, %c0_41, %c0_42], %75 {strides = array<i32>} : memref<1x16x2304xbf16, #tpu.memory_space<vmem>>, vector<1x16x2304xbf16>,
    return
  }
  func.func @transform_0(%arg0: i32, %arg1: i32) -> (i32, i32, i32) {
    %c0_i32 = arith.constant 0 : i32
    %c0_i32_0 = arith.constant 0 : i32
    %c0_i32_1 = arith.constant 0 : i32
    return %arg0, %c0_i32, %c0_i32_0 : i32, i32, i32
  }
  func.func @transform_1(%arg0: i32, %arg1: i32) -> (i32, i32, i32) {
    %c0_i32 = arith.constant 0 : i32
    %c0_i32_0 = arith.constant 0 : i32
    %c0_i32_1 = arith.constant 0 : i32
    %c0_i32_2 = arith.constant 0 : i32
    return %c0_i32, %c0_i32_0, %c0_i32_1 : i32, i32, i32
  }
  func.func @transform_2(%arg0: i32, %arg1: i32) -> (i32, i32) {
    %c0_i32 = arith.constant 0 : i32
    %c0_i32_0 = arith.constant 0 : i32
    %c0_i32_1 = arith.constant 0 : i32
    return %c0_i32, %c0_i32_0 : i32, i32
  }
  func.func @transform_3(%arg0: i32, %arg1: i32) -> (i32, i32, i32) {
    %c0_i32 = arith.constant 0 : i32
    %c0_i32_0 = arith.constant 0 : i32
    return %arg0, %arg1, %c0_i32 : i32, i32, i32
  }
}

</mosaic_0001>

<llo_original>
// kernel: tpu_custom_call.1
$region0: #{tpu_custom_call.1}
  #allocation0 [shape = 'u32[]', space=smem, size = 0x4, offset = 0x4, fixed_abs, tag = 'smem constant byte address 0x4 - core index']
  #allocation1 [shape = 'u32[144,128]{1,0:T(1,128)}', space=vmem, size = 0x12000, scoped, tag = 'internal scratch']
  %s0 = inlined_call_operand.vmem [shape: f32[2,26,32], index: 0, kind: input, shape index: {}]
  %s1 = inlined_call_operand.hbm [shape: f32[11,32,2304], index: 1, kind: input, shape index: {}]
  %s2 = inlined_call_operand.hbm [shape: f32[1,2304], index: 2, kind: input, shape index: {}]
  %s3 = inlined_call_operand.hbm [shape: bf16[2,16,2304], index: 3, kind: output, shape index: {}]
  %s4 = sld [smem:[#allocation0]]
  $region53: #{tpu_custom_call.1} parent=0
    _
  %s6 = ssub.s32 1, %s4
  %s7 = scalar_select 0, %s6, %s4
  $region1: #{tpu_custom_call.1} parent=0
    #allocation2 [shape = 'u8[3244032]{0}', space=vmem, size = 0x318000, scoped, tag = 'input window, operand 1, single buffered']
    #allocation3 [shape = 's32[2]{0}', space=sflag, size = 0x8, scoped, tag = 'scoped memory for tpu_custom_call.1']
    #allocation4 [shape = 's32[2]{0}', space=sflag, size = 0x8, scoped, tag = 'scoped memory for tpu_custom_call.1']
    #allocation5 [shape = 'u8[9216]{0}', space=vmem, size = 0x2400, scoped, tag = 'input window, operand 2, single buffered']
    #allocation6 [shape = 's32[1]{0}', space=sflag, size = 0x4, scoped, tag = 'scoped memory for tpu_custom_call.1']
    #allocation7 [shape = 'u8[147456]{0}', space=vmem, size = 0x24000, scoped, tag = 'output window, operand 0']
    %8 = vsyncpa [#allocation3], 0
    %9 = vsyncpa [#allocation6], 0
    %10 = vsyncpa [#allocation4], 0
    %s11 = scalar_lea.sflag [#allocation4], 1
    %12 = vsyncpa %s11, 0
    loop: start=0, step=1, limit=4
    $region2: #{tpu_custom_call.1} parent=1 // loop_pre_header
      _
    $region3: #{tpu_custom_call.1} parent=1 // loop_header
      %s14 = sphi 0, %s18
      %p15 = scmp.ge.s32.totalorder %s14, 4
      %s21 = sphi 0, %s33
      %s22 = sphi 0, %s29
      %s23 = sphi 0, %s21
      %s24 = sphi 0, %s22
      %s25 = sphi 0, %s23
      %s26 = sphi 0, %s24
      %s36 = sphi 0, %s38
      %s39 = sphi 0, %s36
      %s40 = sphi 0, %s39
      %s56 = sphi 0, %s40
      %s60 = sphi 0, %s60
      %s62 = sphi 0, %s60
      %s63 = sphi 0, %s62
      %s77 = sphi 0, %s63
      %s81 = sphi 0, %s81
      %s83 = sphi 0, %s81
      %s84 = sphi 0, %s83
      %s98 = sphi 0, %s84
      %s106 = sphi 0, %s108
      %s109 = sphi 0, %s106
      %s110 = sphi 0, %s109
      %s126 = sphi 0, %s110
    $region4: #{tpu_custom_call.1} parent=1 // loop_header_branch
      %17 = sbr.rel (%p15) target = $region8
    $region5: #{tpu_custom_call.1} parent=1 // loop_body
      %s19 = ssub.s32 %s14, 1
      %s20 = ssub.s32 %s14, 2
      %s27 = sadd.s32 1, %s22
      %p28 = scmp.ge.s32.totalorder %s27, 1
      %s29 = scalar_select %p28, 0, %s27
      %s30 = sadd.s32 1, %s21
      %s31 = scalar_select %p28, %s30, %s21
      %p32 = scmp.ge.s32.totalorder %s31, 2
      %s33 = scalar_select %p32, 0, %s31
      %s34 = ssub.s32 %s21, %s33
      %p35 = scmp.eq.s32.totalorder %s34, 0
      %s37 = sadd.s32 %s36, 1
      %s38 = scalar_select %p35, %s36, %s37
      %p41 = pneg %p35
      %p42 = scmp.eq.s32.totalorder %s14, 1
      %p43 = por %p41, %p42
      %p44 = scmp.ne.s32.totalorder %s36, %s39
      %p45 = scmp.eq.s32.totalorder %s14, 0
      %p46 = por %p44, %p45
      %p47 = scmp.ne.s32.totalorder %s36, %s39
      %p48 = scmp.eq.s32.totalorder %s19, 1
      %p49 = por %p47, %p48
      %p50 = scmp.ne.s32.totalorder %s39, %s40
      %p51 = scmp.eq.s32.totalorder %s19, 0
      %p52 = por %p50, %p51
      %p53 = scmp.ne.s32.totalorder %s39, %s40
      %p54 = scmp.eq.s32.totalorder %s20, 1
      %p55 = por %p53, %p54
      %p57 = scmp.ne.s32.totalorder %s40, %s56
      %p58 = scmp.eq.s32.totalorder %s20, 0
      %p59 = por %p57, %p58
      %s61 = sadd.s32 %s60, 1
      %p64 = scmp.eq.s32.totalorder %s14, 1
      %p65 = scmp.ne.s32.totalorder %s60, %s62
      %p66 = scmp.eq.s32.totalorder %s14, 0
      %p67 = por %p65, %p66
      %p68 = scmp.ne.s32.totalorder %s60, %s62
      %p69 = scmp.eq.s32.totalorder %s19, 1
      %p70 = por %p68, %p69
      %p71 = scmp.ne.s32.totalorder %s62, %s63
      %p72 = scmp.eq.s32.totalorder %s19, 0
      %p73 = por %p71, %p72
      %p74 = scmp.ne.s32.totalorder %s62, %s63
      %p75 = scmp.eq.s32.totalorder %s20, 1
      %p76 = por %p74, %p75
      %p78 = scmp.ne.s32.totalorder %s63, %s77
      %p79 = scmp.eq.s32.totalorder %s20, 0
      %p80 = por %p78, %p79
      %s82 = sadd.s32 %s81, 1
      %p85 = scmp.eq.s32.totalorder %s14, 1
      %p86 = scmp.ne.s32.totalorder %s81, %s83
      %p87 = scmp.eq.s32.totalorder %s14, 0
      %p88 = por %p86, %p87
      %p89 = scmp.ne.s32.totalorder %s81, %s83
      %p90 = scmp.eq.s32.totalorder %s19, 1
      %p91 = por %p89, %p90
      %p92 = scmp.ne.s32.totalorder %s83, %s84
      %p93 = scmp.eq.s32.totalorder %s19, 0
      %p94 = por %p92, %p93
      %p95 = scmp.ne.s32.totalorder %s83, %s84
      %p96 = scmp.eq.s32.totalorder %s20, 1
      %p97 = por %p95, %p96
      %p99 = scmp.ne.s32.totalorder %s84, %s98
      %p100 = scmp.eq.s32.totalorder %s20, 0
      %p101 = por %p99, %p100
      %s102 = ssub.s32 %s21, %s33
      %s103 = ssub.s32 %s22, %s29
      %s104 = sor.u32 %s102, %s103
      %p105 = scmp.eq.s32.totalorder %s104, 0
      %s107 = sadd.s32 %s106, 1
      %s108 = scalar_select %p105, %s106, %s107
      %p111 = pneg %p105
      %p112 = scmp.eq.s32.totalorder %s14, 1
      %p113 = por %p111, %p112
      %p114 = scmp.ne.s32.totalorder %s106, %s109
      %p115 = scmp.eq.s32.totalorder %s14, 0
      %p116 = por %p114, %p115
      %p117 = scmp.ne.s32.totalorder %s106, %s109
      %p118 = scmp.eq.s32.totalorder %s19, 1
      %p119 = por %p117, %p118
      %p120 = scmp.ne.s32.totalorder %s109, %s110
      %p121 = scmp.eq.s32.totalorder %s19, 0
      %p122 = por %p120, %p121
      %p123 = scmp.ne.s32.totalorder %s109, %s110
      %p124 = scmp.eq.s32.totalorder %s20, 1
      %p125 = por %p123, %p124
      %p127 = scmp.ne.s32.totalorder %s110, %s126
      %p128 = scmp.eq.s32.totalorder %s20, 0
      %p129 = por %p127, %p128
      %p130 = scmp.le.s32.totalorder 1, %s14
      %p131 = scmp.lt.s32.totalorder %s14, 3
      %p132 = pnand %p130, %p131
      %p133 = pneg %p132
      // Predicated region
      $region9: #{tpu_custom_call.1} parent=5 // pred_check
        _
      $region10: #{tpu_custom_call.1} parent=5 // pred_check_branch
        %135 = sbr.rel (%p132) target = $region12
      $region11: #{tpu_custom_call.1} parent=5 // pred_region
        %s136 = ssub.s32 %s14, 1
        // Predicated region
        $region13: #{tpu_custom_call.1} parent=11 // pred_check
          %p137 = pneg %p73
        $region14: #{tpu_custom_call.1} parent=11 // pred_check_branch
          %139 = sbr.rel (%p137) target = $region16
        $region15: #{tpu_custom_call.1} parent=11 // pred_region
          %s141 = ssub.s32 101376, 101376
          %142 = vsyncadd [#allocation3], %s141
          %s143 = sshll.u32 [#allocation2], 4
          %s144 = int_to_ptr.vmem [resolvable:$true] %s143
          %149 = dma.hbm_to_vmem [thread:$0]  %s1, 101376, %s144, [#allocation3], 2304, 2304, 144
        $region16: #{tpu_custom_call.1} parent=11 // pred_fallthru
          _
        // Predicated region
        $region17: #{tpu_custom_call.1} parent=11 // pred_check
          %p150 = pneg %p94
        $region18: #{tpu_custom_call.1} parent=11 // pred_check_branch
          %152 = sbr.rel (%p150) target = $region20
        $region19: #{tpu_custom_call.1} parent=11 // pred_region
          %s154 = ssub.s32 288, 288
          %155 = vsyncadd [#allocation6], %s154
          %s157 = sshll.u32 [#allocation5], 4
          %s158 = int_to_ptr.vmem [resolvable:$true] %s157
          %160 = dma.hbm_to_vmem [thread:$0]  %s2, 288, %s158, [#allocation6]
        $region20: #{tpu_custom_call.1} parent=11 // pred_fallthru
          _
      $region12: #{tpu_custom_call.1} parent=5 // pred_fallthru
        _
      %p161 = scmp.lt.s32.totalorder %s14, 2
      // Predicated region
      $region21: #{tpu_custom_call.1} parent=5 // pred_check
        %p162 = pneg %p161
      $region22: #{tpu_custom_call.1} parent=5 // pred_check_branch
        %164 = sbr.rel (%p162) target = $region24
      $region23: #{tpu_custom_call.1} parent=5 // pred_region
        // Predicated region
        $region25: #{tpu_custom_call.1} parent=23 // pred_check
          %p165 = pneg %p46
        $region26: #{tpu_custom_call.1} parent=23 // pred_check_branch
          %167 = sbr.rel (%p165) target = $region28
        $region27: #{tpu_custom_call.1} parent=23 // pred_region
          %p168 = scmp.lt.s32.totalorder %s21, 1
          %s169 = scalar_select %p168, %s21, 1
          %s170 = smul.addr %s169, 4
          %s171 = smul.addr %s170, 8
          %s172 = scalar_lea.vmem %s0, %s171
        $region28: #{tpu_custom_call.1} parent=23 // pred_fallthru
          _
      $region24: #{tpu_custom_call.1} parent=5 // pred_fallthru
        _
      %p173 = scmp.le.s32.totalorder 1, %s14
      %p174 = scmp.lt.s32.totalorder %s14, 3
      %p175 = pnand %p173, %p174
      %p176 = pneg %p175
      // Predicated region
      $region29: #{tpu_custom_call.1} parent=5 // pred_check
        _
      $region30: #{tpu_custom_call.1} parent=5 // pred_check_branch
        %178 = sbr.rel (%p175) target = $region32
      $region31: #{tpu_custom_call.1} parent=5 // pred_region
        %s179 = ssub.s32 %s14, 1
        // Predicated region
        $region33: #{tpu_custom_call.1} parent=31 // pred_check
          %p180 = pneg %p73
        $region34: #{tpu_custom_call.1} parent=31 // pred_check_branch
          %182 = sbr.rel (%p180) target = $region36
        $region35: #{tpu_custom_call.1} parent=31 // pred_region
          %183 = dma.done [#allocation3], 101376
        $region36: #{tpu_custom_call.1} parent=31 // pred_fallthru
          _
        // Predicated region
        $region37: #{tpu_custom_call.1} parent=31 // pred_check
          %p184 = pneg %p94
        $region38: #{tpu_custom_call.1} parent=31 // pred_check_branch
          %186 = sbr.rel (%p184) target = $region40
        $region39: #{tpu_custom_call.1} parent=31 // pred_region
          %187 = dma.done [#allocation6], 288
        $region40: #{tpu_custom_call.1} parent=31 // pred_fallthru
          _
        %p188 = scmp.lt.s32.totalorder %s23, 1
        %s189 = scalar_select %p188, %s23, 1
        %s190 = smul.addr %s189, 4
        %s191 = smul.addr %s190, 8
        %s192 = scalar_lea.vmem %s0, %s191
        %p193 = pneg %p52
        %p194 = pneg %p49
        %p195 = pneg %p73
        %p196 = pneg %p70
        %p197 = pneg %p94
        %p198 = pneg %p91
        %p199 = pneg %p122
        %p200 = pneg %p119
        %s201 = sand.u32 %s109, 1
        %s202 = scalar_lea.sflag [#allocation4], %s201
        %s203 = sand.u32 %s109, 1
        %s204 = smul.addr %s203, 144
        %s205 = scalar_lea.vmem [#allocation7], %s204
        %p206 = scmp.lt.s32.totalorder %s23, 1
        %s207 = scalar_select %p206, %s23, 1
        %s208 = smul.addr %s207, 4
        %s209 = smul.addr %s208, 8
        %s210 = scalar_lea.vmem %s0, %s209
        %s211 = smul.u32 2, %s24
        %s212 = smul.u32 %s24, 16
        %s213 = scalar_lea.vmem %s210, %s212
        %v214 = vld [vmem:[%s213] sm:$0xff]
        %v215 = vld [vmem:[%s213 + $0x8] sm:$0xff]
        %v216 = vld [vmem:[%s213 + $0x10] sm:$0xff]
        %v217 = vld [vmem:[%s213 + $0x18] sm:$0x3]
        %v218 = vld [vmem:[#allocation2] sm:$0xff]
        %v219 = vld [vmem:[#allocation2 + $0x8] sm:$0xff]
        %v220 = vld [vmem:[#allocation2 + $0x10] sm:$0xff]
        %v221 = vld [vmem:[#allocation2 + $0x18] sm:$0xff]
        %v222 = vld [vmem:[#allocation2 + $0x20] sm:$0xff]
        %v223 = vld [vmem:[#allocation2 + $0x28] sm:$0xff]
        %v224 = vld [vmem:[#allocation2 + $0x30] sm:$0xff]
        %v225 = vld [vmem:[#allocation2 + $0x38] sm:$0xff]
        %v226 = vld [vmem:[#allocation2 + $0x40] sm:$0xff]
        %v227 = vld [vmem:[#allocation2 + $0x48] sm:$0xff]
        %v228 = vld [vmem:[#allocation2 + $0x50] sm:$0xff]
        %v229 = vld [vmem:[#allocation2 + $0x58] sm:$0xff]
        %v230 = vld [vmem:[#allocation2 + $0x60] sm:$0xff]
        %v231 = vld [vmem:[#allocation2 + $0x68] sm:$0xff]
        %v232 = vld [vmem:[#allocation2 + $0x70] sm:$0xff]
        %v233 = vld [vmem:[#allocation2 + $0x78] sm:$0xff]
        %v234 = vld [vmem:[#allocation2 + $0x80] sm:$0xff]
        %v235 = vld [vmem:[#allocation2 + $0x88] sm:$0xff]
        %v236 = vld [vmem:[#allocation2 + $0x90] sm:$0xff]
        %v237 = vld [vmem:[#allocation2 + $0x98] sm:$0xff]
        %v238 = vld [vmem:[#allocation2 + $0xa0] sm:$0xff]
        %v239 = vld [vmem:[#allocation2 + $0xa8] sm:$0xff]
        %v240 = vld [vmem:[#allocation2 + $0xb0] sm:$0xff]
        %v241 = vld [vmem:[#allocation2 + $0xb8] sm:$0xff]
        %v242 = vld [vmem:[#allocation2 + $0xc0] sm:$0xff]
        %v243 = vld [vmem:[#allocation2 + $0xc8] sm:$0xff]
        %v244 = vld [vmem:[#allocation2 + $0xd0] sm:$0xff]
        %v245 = vld [vmem:[#allocation2 + $0xd8] sm:$0xff]
        %v246 = vld [vmem:[#allocation2 + $0xe0] sm:$0xff]
        %v247 = vld [vmem:[#allocation2 + $0xe8] sm:$0xff]
        %v248 = vld [vmem:[#allocation2 + $0xf0] sm:$0xff]
        %v249 = vld [vmem:[#allocation2 + $0xf8] sm:$0xff]
        %v250 = vld [vmem:[#allocation2 + $0x100] sm:$0xff]
        %v251 = vld [vmem:[#allocation2 + $0x108] sm:$0xff]
        %v252 = vld [vmem:[#allocation2 + $0x110] sm:$0xff]
        %v253 = vld [vmem:[#allocation2 + $0x118] sm:$0xff]
        %v254 = vld [vmem:[#allocation2 + $0x120] sm:$0xff]
        %v255 = vld [vmem:[#allocation2 + $0x128] sm:$0xff]
        %v256 = vld [vmem:[#allocation2 + $0x130] sm:$0xff]
        %v257 = vld [vmem:[#allocation2 + $0x138] sm:$0xff]
        %v258 = vld [vmem:[#allocation2 + $0x140] sm:$0xff]
        %v259 = vld [vmem:[#allocation2 + $0x148] sm:$0xff]
        %v260 = vld [vmem:[#allocation2 + $0x150] sm:$0xff]
        %v261 = vld [vmem:[#allocation2 + $0x158] sm:$0xff]
        %v262 = vld [vmem:[#allocation2 + $0x160] sm:$0xff]
        %v263 = vld [vmem:[#allocation2 + $0x168] sm:$0xff]
        %v264 = vld [vmem:[#allocation2 + $0x170] sm:$0xff]
        %v265 = vld [vmem:[#allocation2 + $0x178] sm:$0xff]
        %v266 = vld [vmem:[#allocation2 + $0x180] sm:$0xff]
        %v267 = vld [vmem:[#allocation2 + $0x188] sm:$0xff]
        %v268 = vld [vmem:[#allocation2 + $0x190] sm:$0xff]
        %v269 = vld [vmem:[#allocation2 + $0x198] sm:$0xff]
        %v270 = vld [vmem:[#allocation2 + $0x1a0] sm:$0xff]
        %v271 = vld [vmem:[#allocation2 + $0x1a8] sm:$0xff]
        %v272 = vld [vmem:[#allocation2 + $0x1b0] sm:$0xff]
        %v273 = vld [vmem:[#allocation2 + $0x1b8] sm:$0xff]
        %v274 = vld [vmem:[#allocation2 + $0x1c0] sm:$0xff]
        %v275 = vld [vmem:[#allocation2 + $0x1c8] sm:$0xff]
        %v276 = vld [vmem:[#allocation2 + $0x1d0] sm:$0xff]
        %v277 = vld [vmem:[#allocation2 + $0x1d8] sm:$0xff]
        %v278 = vld [vmem:[#allocation2 + $0x1e0] sm:$0xff]
        %v279 = vld [vmem:[#allocation2 + $0x1e8] sm:$0xff]
        %v280 = vld [vmem:[#allocation2 + $0x1f0] sm:$0xff]
        %v281 = vld [vmem:[#allocation2 + $0x1f8] sm:$0xff]
        %v282 = vld [vmem:[#allocation2 + $0x200] sm:$0xff]
        %v283 = vld [vmem:[#allocation2 + $0x208] sm:$0xff]
        %v284 = vld [vmem:[#allocation2 + $0x210] sm:$0xff]
        %v285 = vld [vmem:[#allocation2 + $0x218] sm:$0xff]
        %v286 = vld [vmem:[#allocation2 + $0x220] sm:$0xff]
        %v287 = vld [vmem:[#allocation2 + $0x228] sm:$0xff]
        %v288 = vld [vmem:[#allocation2 + $0x230] sm:$0xff]
        %v289 = vld [vmem:[#allocation2 + $0x238] sm:$0xff]
        %s290 = scalar_lea.vmem [#allocation2], 576
        %v291 = vld [vmem:[%s290] sm:$0xff]
        %v292 = vld [vmem:[%s290 + $0x8] sm:$0xff]
        %v293 = vld [vmem:[%s290 + $0x10] sm:$0xff]
        %v294 = vld [vmem:[%s290 + $0x18] sm:$0xff]
        %v295 = vld [vmem:[%s290 + $0x20] sm:$0xff]
        %v296 = vld [vmem:[%s290 + $0x28] sm:$0xff]
        %v297 = vld [vmem:[%s290 + $0x30] sm:$0xff]
        %v298 = vld [vmem:[%s290 + $0x38] sm:$0xff]
        %v299 = vld [vmem:[%s290 + $0x40] sm:$0xff]
        %v300 = vld [vmem:[%s290 + $0x48] sm:$0xff]
        %v301 = vld [vmem:[%s290 + $0x50] sm:$0xff]
        %v302 = vld [vmem:[%s290 + $0x58] sm:$0xff]
        %v303 = vld [vmem:[%s290 + $0x60] sm:$0xff]
        %v304 = vld [vmem:[%s290 + $0x68] sm:$0xff]
        %v305 = vld [vmem:[%s290 + $0x70] sm:$0xff]
        %v306 = vld [vmem:[%s290 + $0x78] sm:$0xff]
        %v307 = vld [vmem:[%s290 + $0x80] sm:$0xff]
        %v308 = vld [vmem:[%s290 + $0x88] sm:$0xff]
        %v309 = vld [vmem:[%s290 + $0x90] sm:$0xff]
        %v310 = vld [vmem:[%s290 + $0x98] sm:$0xff]
        %v311 = vld [vmem:[%s290 + $0xa0] sm:$0xff]
        %v312 = vld [vmem:[%s290 + $0xa8] sm:$0xff]
        %v313 = vld [vmem:[%s290 + $0xb0] sm:$0xff]
        %v314 = vld [vmem:[%s290 + $0xb8] sm:$0xff]
        %v315 = vld [vmem:[%s290 + $0xc0] sm:$0xff]
        %v316 = vld [vmem:[%s290 + $0xc8] sm:$0xff]
        %v317 = vld [vmem:[%s290 + $0xd0] sm:$0xff]
        %v318 = vld [vmem:[%s290 + $0xd8] sm:$0xff]
        %v319 = vld [vmem:[%s290 + $0xe0] sm:$0xff]
        %v320 = vld [vmem:[%s290 + $0xe8] sm:$0xff]
        %v321 = vld [vmem:[%s290 + $0xf0] sm:$0xff]
        %v322 = vld [vmem:[%s290 + $0xf8] sm:$0xff]
        %v323 = vld [vmem:[%s290 + $0x100] sm:$0xff]
        %v324 = vld [vmem:[%s290 + $0x108] sm:$0xff]
        %v325 = vld [vmem:[%s290 + $0x110] sm:$0xff]
        %v326 = vld [vmem:[%s290 + $0x118] sm:$0xff]
        %v327 = vld [vmem:[%s290 + $0x120] sm:$0xff]
        %v328 = vld [vmem:[%s290 + $0x128] sm:$0xff]
        %v329 = vld [vmem:[%s290 + $0x130] sm:$0xff]
        %v330 = vld [vmem:[%s290 + $0x138] sm:$0xff]
        %v331 = vld [vmem:[%s290 + $0x140] sm:$0xff]
        %v332 = vld [vmem:[%s290 + $0x148] sm:$0xff]
        %v333 = vld [vmem:[%s290 + $0x150] sm:$0xff]
        %v334 = vld [vmem:[%s290 + $0x158] sm:$0xff]
        %v335 = vld [vmem:[%s290 + $0x160] sm:$0xff]
        %v336 = vld [vmem:[%s290 + $0x168] sm:$0xff]
        %v337 = vld [vmem:[%s290 + $0x170] sm:$0xff]
        %v338 = vld [vmem:[%s290 + $0x178] sm:$0xff]
        %v339 = vld [vmem:[%s290 + $0x180] sm:$0xff]
        %v340 = vld [vmem:[%s290 + $0x188] sm:$0xff]
        %v341 = vld [vmem:[%s290 + $0x190] sm:$0xff]
        %v342 = vld [vmem:[%s290 + $0x198] sm:$0xff]
        %v343 = vld [vmem:[%s290 + $0x1a0] sm:$0xff]
        %v344 = vld [vmem:[%s290 + $0x1a8] sm:$0xff]
        %v345 = vld [vmem:[%s290 + $0x1b0] sm:$0xff]
        %v346 = vld [vmem:[%s290 + $0x1b8] sm:$0xff]
        %v347 = vld [vmem:[%s290 + $0x1c0] sm:$0xff]
        %v348 = vld [vmem:[%s290 + $0x1c8] sm:$0xff]
        %v349 = vld [vmem:[%s290 + $0x1d0] sm:$0xff]
        %v350 = vld [vmem:[%s290 + $0x1d8] sm:$0xff]
        %v351 = vld [vmem:[%s290 + $0x1e0] sm:$0xff]
        %v352 = vld [vmem:[%s290 + $0x1e8] sm:$0xff]
        %v353 = vld [vmem:[%s290 + $0x1f0] sm:$0xff]
        %v354 = vld [vmem:[%s290 + $0x1f8] sm:$0xff]
        %v355 = vld [vmem:[%s290 + $0x200] sm:$0xff]
        %v356 = vld [vmem:[%s290 + $0x208] sm:$0xff]
        %v357 = vld [vmem:[%s290 + $0x210] sm:$0xff]
        %v358 = vld [vmem:[%s290 + $0x218] sm:$0xff]
        %v359 = vld [vmem:[%s290 + $0x220] sm:$0xff]
        %v360 = vld [vmem:[%s290 + $0x228] sm:$0xff]
        %v361 = vld [vmem:[%s290 + $0x230] sm:$0xff]
        %v362 = vld [vmem:[%s290 + $0x238] sm:$0xff]
        %vm366 = vcmask 1046528
        %v367 = vrot.slane %v214, 1
        %v368 = vrot.slane %v215, 1
        %v369 = vsel %vm366, %v367, %v368
        %v370 = vrot.slane %v216, 1
        %v371 = vsel %vm366, %v368, %v370
        %vm372 = vcmask 261120
        %v373 = vsel %vm372, %v369, 0
        %v375 = vsel %vm372, %v371, 0
        %377 = vmatprep.subr.mxu0 %v292
        %378 = vmatpush1.msra.mxu0 %v291
        %379 = vmatprep.subr.mxu0 %v310
        %380 = vmatpush1.msra.mxu0 %v309
        %381 = vmatprep.subr.mxu0 %v328
        %382 = vmatpush1.msra.mxu0 %v327
        %383 = vmatprep.subr.mxu0 %v346
        %384 = vmatpush1.msra.mxu0 %v345
        %385 = vmatprep.subr.mxu0 0.0
        %386 = vmatpush1.msra.mxu0 0.0
        %387 = vmatprep.subr.mxu0 0.0
        %388 = vmatpush1.msra.mxu0 0.0
        %389 = vmatprep.subr.mxu0 0.0
        %390 = vmatpush1.msra.mxu0 0.0
        %391 = vmatprep.subr.mxu0 0.0
        %392 = vmatpush1.msra.mxu0 0.0
        %393 = vmatprep.subr.mxu0 0.0
        %394 = vmatpush1.msra.mxu0 0.0
        %395 = vmatprep.subr.mxu0 0.0
        %396 = vmatpush1.msra.mxu0 0.0
        %397 = vmatprep.subr.mxu0 0.0
        %398 = vmatpush1.msra.mxu0 0.0
        %399 = vmatprep.subr.mxu0 0.0
        %400 = vmatpush1.msra.mxu0 0.0
        %401 = vmatprep.subr.mxu0 0.0
        %402 = vmatpush1.msra.mxu0 0.0
        %403 = vmatprep.subr.mxu0 0.0
        %404 = vmatpush1.msra.mxu0 0.0
        %405 = vmatprep.subr.mxu0 0.0
        %406 = vmatpush1.msra.mxu0 0.0
        %407 = vmatprep.subr.mxu0 0.0
        %408 = vmatpush1.msra.mxu0 0.0
        %409 = vmatprep.subr.mxu0 0.0
        %410 = vmatpush1.msra.mxu0 0.0
        %411 = vmatprep.subr.mxu0 0.0
        %412 = vmatpush1.msra.mxu0 0.0
        %413 = vmatprep.subr.mxu0 0.0
        %414 = vmatpush1.msra.mxu0 0.0
        %415 = vmatprep.subr.mxu0 0.0
        %416 = vmatpush1.msra.mxu0 0.0
        %417 = vmatprep.subr.mxu0 0.0
        %418 = vmatpush1.msra.mxu0 0.0
        %419 = vmatprep.subr.mxu0 0.0
        %420 = vmatpush1.msra.mxu0 0.0
        %421 = vmatprep.subr.mxu0 0.0
        %422 = vmatpush1.msra.mxu0 0.0
        %423 = vmatprep.subr.mxu0 0.0
        %424 = vmatpush1.msra.mxu0 0.0
        %425 = vmatprep.subr.mxu0 0.0
        %426 = vmatpush1.msra.mxu0 0.0
        %427 = vmatprep.subr.mxu0 0.0
        %428 = vmatpush1.msra.mxu0 0.0
        %429 = vmatprep.subr.mxu0 0.0
        %430 = vmatpush1.msra.mxu0 0.0
        %431 = vmatprep.subr.mxu0 0.0
        %432 = vmatpush1.msra.mxu0 0.0
        %433 = vmatprep.subr.mxu0 0.0
        %434 = vmatpush1.msra.mxu0 0.0
        %435 = vmatprep.subr.mxu0 0.0
        %436 = vmatpush1.msra.mxu0 0.0
        %437 = vmatprep.subr.mxu0 0.0
        %438 = vmatpush1.msra.mxu0 0.0
        %439 = vmatprep.subr.mxu0 0.0
        %440 = vmatpush1.msra.mxu0 0.0
        %441 = vmatprep.mubr.f32.mxu0 0.0
        %442 = vmatmul.mubr.f32.gmra.mrb[0].mxu0 %v373
        %v443 = vpop.f32.mrb[0].mxu0
        %v444 = vadd.f32 0.0, %v443
        %v445 = vpop.f32.mrb[0].mxu0
        %v446 = vadd.f32 0.0, %v445
        %447 = vmatprep.mubr.f32.mxu0 0.0
        %448 = vmatmul.mubr.f32.gmra.mrb[0].mxu0 %v375
        %v449 = vpop.f32.mrb[0].mxu0
        %v450 = vadd.f32 0.0, %v449
        %v451 = vpop.f32.mrb[0].mxu0
        %v452 = vadd.f32 0.0, %v451
        %453 = vdwg.mxu0
        %454 = vmatprep.subr.mxu0 %v294
        %455 = vmatpush1.msra.mxu0 %v293
        %456 = vmatprep.subr.mxu0 %v312
        %457 = vmatpush1.msra.mxu0 %v311
        %458 = vmatprep.subr.mxu0 %v330
        %459 = vmatpush1.msra.mxu0 %v329
        %460 = vmatprep.subr.mxu0 %v348
        %461 = vmatpush1.msra.mxu0 %v347
        %462 = vmatprep.subr.mxu0 0.0
        %463 = vmatpush1.msra.mxu0 0.0
        %464 = vmatprep.subr.mxu0 0.0
        %465 = vmatpush1.msra.mxu0 0.0
        %466 = vmatprep.subr.mxu0 0.0
        %467 = vmatpush1.msra.mxu0 0.0
        %468 = vmatprep.subr.mxu0 0.0
        %469 = vmatpush1.msra.mxu0 0.0
        %470 = vmatprep.subr.mxu0 0.0
        %471 = vmatpush1.msra.mxu0 0.0
        %472 = vmatprep.subr.mxu0 0.0
        %473 = vmatpush1.msra.mxu0 0.0
        %474 = vmatprep.subr.mxu0 0.0
        %475 = vmatpush1.msra.mxu0 0.0
        %476 = vmatprep.subr.mxu0 0.0
        %477 = vmatpush1.msra.mxu0 0.0
        %478 = vmatprep.subr.mxu0 0.0
        %479 = vmatpush1.msra.mxu0 0.0
        %480 = vmatprep.subr.mxu0 0.0
        %481 = vmatpush1.msra.mxu0 0.0
        %482 = vmatprep.subr.mxu0 0.0
        %483 = vmatpush1.msra.mxu0 0.0
        %484 = vmatprep.subr.mxu0 0.0
        %485 = vmatpush1.msra.mxu0 0.0
        %486 = vmatprep.subr.mxu0 0.0
        %487 = vmatpush1.msra.mxu0 0.0
        %488 = vmatprep.subr.mxu0 0.0
        %489 = vmatpush1.msra.mxu0 0.0
        %490 = vmatprep.subr.mxu0 0.0
        %491 = vmatpush1.msra.mxu0 0.0
        %492 = vmatprep.subr.mxu0 0.0
        %493 = vmatpush1.msra.mxu0 0.0
        %494 = vmatprep.subr.mxu0 0.0
        %495 = vmatpush1.msra.mxu0 0.0
        %496 = vmatprep.subr.mxu0 0.0
        %497 = vmatpush1.msra.mxu0 0.0
        %498 = vmatprep.subr.mxu0 0.0
        %499 = vmatpush1.msra.mxu0 0.0
        %500 = vmatprep.subr.mxu0 0.0
        %501 = vmatpush1.msra.mxu0 0.0
        %502 = vmatprep.subr.mxu0 0.0
        %503 = vmatpush1.msra.mxu0 0.0
        %504 = vmatprep.subr.mxu0 0.0
        %505 = vmatpush1.msra.mxu0 0.0
        %506 = vmatprep.subr.mxu0 0.0
        %507 = vmatpush1.msra.mxu0 0.0
        %508 = vmatprep.subr.mxu0 0.0
        %509 = vmatpush1.msra.mxu0 0.0
        %510 = vmatprep.subr.mxu0 0.0
        %511 = vmatpush1.msra.mxu0 0.0
        %512 = vmatprep.subr.mxu0 0.0
        %513 = vmatpush1.msra.mxu0 0.0
        %514 = vmatprep.subr.mxu0 0.0
        %515 = vmatpush1.msra.mxu0 0.0
        %516 = vmatprep.subr.mxu0 0.0
        %517 = vmatpush1.msra.mxu0 0.0
        %518 = vmatprep.mubr.f32.mxu0 0.0
        %519 = vmatmul.mubr.f32.gmra.mrb[0].mxu0 %v373
        %v520 = vpop.f32.mrb[0].mxu0
        %v521 = vadd.f32 0.0, %v520
        %v522 = vpop.f32.mrb[0].mxu0
        %v523 = vadd.f32 0.0, %v522
        %524 = vmatprep.mubr.f32.mxu0 0.0
        %525 = vmatmul.mubr.f32.gmra.mrb[0].mxu0 %v375
        %v526 = vpop.f32.mrb[0].mxu0
        %v527 = vadd.f32 0.0, %v526
        %v528 = vpop.f32.mrb[0].mxu0
        %v529 = vadd.f32 0.0, %v528
        %530 = vdwg.mxu0
        %531 = vmatprep.subr.mxu0 %v296
        %532 = vmatpush1.msra.mxu0 %v295
        %533 = vmatprep.subr.mxu0 %v314
        %534 = vmatpush1.msra.mxu0 %v313
        %535 = vmatprep.subr.mxu0 %v332
        %536 = vmatpush1.msra.mxu0 %v331
        %537 = vmatprep.subr.mxu0 %v350
        %538 = vmatpush1.msra.mxu0 %v349
        %539 = vmatprep.subr.mxu0 0.0
        %540 = vmatpush1.msra.mxu0 0.0
        %541 = vmatprep.subr.mxu0 0.0
        %542 = vmatpush1.msra.mxu0 0.0
        %543 = vmatprep.subr.mxu0 0.0
        %544 = vmatpush1.msra.mxu0 0.0
        %545 = vmatprep.subr.mxu0 0.0
        %546 = vmatpush1.msra.mxu0 0.0
        %547 = vmatprep.subr.mxu0 0.0
        %548 = vmatpush1.msra.mxu0 0.0
        %549 = vmatprep.subr.mxu0 0.0
        %550 = vmatpush1.msra.mxu0 0.0
        %551 = vmatprep.subr.mxu0 0.0
        %552 = vmatpush1.msra.mxu0 0.0
        %553 = vmatprep.subr.mxu0 0.0
        %554 = vmatpush1.msra.mxu0 0.0
        %555 = vmatprep.subr.mxu0 0.0
        %556 = vmatpush1.msra.mxu0 0.0
        %557 = vmatprep.subr.mxu0 0.0
        %558 = vmatpush1.msra.mxu0 0.0
        %559 = vmatprep.subr.mxu0 0.0
        %560 = vmatpush1.msra.mxu0 0.0
        %561 = vmatprep.subr.mxu0 0.0
        %562 = vmatpush1.msra.mxu0 0.0
        %563 = vmatprep.subr.mxu0 0.0
        %564 = vmatpush1.msra.mxu0 0.0
        %565 = vmatprep.subr.mxu0 0.0
        %566 = vmatpush1.msra.mxu0 0.0
        %567 = vmatprep.subr.mxu0 0.0
        %568 = vmatpush1.msra.mxu0 0.0
        %569 = vmatprep.subr.mxu0 0.0
        %570 = vmatpush1.msra.mxu0 0.0
        %571 = vmatprep.subr.mxu0 0.0
        %572 = vmatpush1.msra.mxu0 0.0
        %573 = vmatprep.subr.mxu0 0.0
        %574 = vmatpush1.msra.mxu0 0.0
        %575 = vmatprep.subr.mxu0 0.0
        %576 = vmatpush1.msra.mxu0 0.0
        %577 = vmatprep.subr.mxu0 0.0
        %578 = vmatpush1.msra.mxu0 0.0
        %579 = vmatprep.subr.mxu0 0.0
        %580 = vmatpush1.msra.mxu0 0.0
        %581 = vmatprep.subr.mxu0 0.0
        %582 = vmatpush1.msra.mxu0 0.0
        %583 = vmatprep.subr.mxu0 0.0
        %584 = vmatpush1.msra.mxu0 0.0
        %585 = vmatprep.subr.mxu0 0.0
        %586 = vmatpush1.msra.mxu0 0.0
        %587 = vmatprep.subr.mxu0 0.0
        %588 = vmatpush1.msra.mxu0 0.0
        %589 = vmatprep.subr.mxu0 0.0
        %590 = vmatpush1.msra.mxu0 0.0
        %591 = vmatprep.subr.mxu0 0.0
        %592 = vmatpush1.msra.mxu0 0.0
        %593 = vmatprep.subr.mxu0 0.0
        %594 = vmatpush1.msra.mxu0 0.0
        %595 = vmatprep.mubr.f32.mxu0 0.0
        %596 = vmatmul.mubr.f32.gmra.mrb[0].mxu0 %v373
        %v597 = vpop.f32.mrb[0].mxu0
        %v598 = vadd.f32 0.0, %v597
        %v599 = vpop.f32.mrb[0].mxu0
        %v600 = vadd.f32 0.0, %v599
        %601 = vmatprep.mubr.f32.mxu0 0.0
        %602 = vmatmul.mubr.f32.gmra.mrb[0].mxu0 %v375
        %v603 = vpop.f32.mrb[0].mxu0
        %v604 = vadd.f32 0.0, %v603
        %v605 = vpop.f32.mrb[0].mxu0
        %v606 = vadd.f32 0.0, %v605
        %607 = vdwg.mxu0
        %608 = vmatprep.subr.mxu0 %v298
        %609 = vmatpush1.msra.mxu0 %v297
        %610 = vmatprep.subr.mxu0 %v316
        %611 = vmatpush1.msra.mxu0 %v315
        %612 = vmatprep.subr.mxu0 %v334
        %613 = vmatpush1.msra.mxu0 %v333
        %614 = vmatprep.subr.mxu0 %v352
        %615 = vmatpush1.msra.mxu0 %v351
        %616 = vmatprep.subr.mxu0 0.0
        %617 = vmatpush1.msra.mxu0 0.0
        %618 = vmatprep.subr.mxu0 0.0
        %619 = vmatpush1.msra.mxu0 0.0
        %620 = vmatprep.subr.mxu0 0.0
        %621 = vmatpush1.msra.mxu0 0.0
        %622 = vmatprep.subr.mxu0 0.0
        %623 = vmatpush1.msra.mxu0 0.0
        %624 = vmatprep.subr.mxu0 0.0
        %625 = vmatpush1.msra.mxu0 0.0
        %626 = vmatprep.subr.mxu0 0.0
        %627 = vmatpush1.msra.mxu0 0.0
        %628 = vmatprep.subr.mxu0 0.0
        %629 = vmatpush1.msra.mxu0 0.0
        %630 = vmatprep.subr.mxu0 0.0
        %631 = vmatpush1.msra.mxu0 0.0
        %632 = vmatprep.subr.mxu0 0.0
        %633 = vmatpush1.msra.mxu0 0.0
        %634 = vmatprep.subr.mxu0 0.0
        %635 = vmatpush1.msra.mxu0 0.0
        %636 = vmatprep.subr.mxu0 0.0
        %637 = vmatpush1.msra.mxu0 0.0
        %638 = vmatprep.subr.mxu0 0.0
        %639 = vmatpush1.msra.mxu0 0.0
        %640 = vmatprep.subr.mxu0 0.0
        %641 = vmatpush1.msra.mxu0 0.0
        %642 = vmatprep.subr.mxu0 0.0
        %643 = vmatpush1.msra.mxu0 0.0
        %644 = vmatprep.subr.mxu0 0.0
        %645 = vmatpush1.msra.mxu0 0.0
        %646 = vmatprep.subr.mxu0 0.0
        %647 = vmatpush1.msra.mxu0 0.0
        %648 = vmatprep.subr.mxu0 0.0
        %649 = vmatpush1.msra.mxu0 0.0
        %650 = vmatprep.subr.mxu0 0.0
        %651 = vmatpush1.msra.mxu0 0.0
        %652 = vmatprep.subr.mxu0 0.0
        %653 = vmatpush1.msra.mxu0 0.0
        %654 = vmatprep.subr.mxu0 0.0
        %655 = vmatpush1.msra.mxu0 0.0
        %656 = vmatprep.subr.mxu0 0.0
        %657 = vmatpush1.msra.mxu0 0.0
        %658 = vmatprep.subr.mxu0 0.0
        %659 = vmatpush1.msra.mxu0 0.0
        %660 = vmatprep.subr.mxu0 0.0
        %661 = vmatpush1.msra.mxu0 0.0
        %662 = vmatprep.subr.mxu0 0.0
        %663 = vmatpush1.msra.mxu0 0.0
        %664 = vmatprep.subr.mxu0 0.0
        %665 = vmatpush1.msra.mxu0 0.0
        %666 = vmatprep.subr.mxu0 0.0
        %667 = vmatpush1.msra.mxu0 0.0
        %668 = vmatprep.subr.mxu0 0.0
        %669 = vmatpush1.msra.mxu0 0.0
        %670 = vmatprep.subr.mxu0 0.0
        %671 = vmatpush1.msra.mxu0 0.0
        %672 = vmatprep.mubr.f32.mxu0 0.0
        %673 = vmatmul.mubr.f32.gmra.mrb[0].mxu0 %v373
        %v674 = vpop.f32.mrb[0].mxu0
        %v675 = vadd.f32 0.0, %v674
        %v676 = vpop.f32.mrb[0].mxu0
        %v677 = vadd.f32 0.0, %v676
        %678 = vmatprep.mubr.f32.mxu0 0.0
        %679 = vmatmul.mubr.f32.gmra.mrb[0].mxu0 %v375
        %v680 = vpop.f32.mrb[0].mxu0
        %v681 = vadd.f32 0.0, %v680
        %v682 = vpop.f32.mrb[0].mxu0
        %v683 = vadd.f32 0.0, %v682
        %684 = vdwg.mxu0
        %685 = vmatprep.subr.mxu0 %v300
        %686 = vmatpush1.msra.mxu0 %v299
        %687 = vmatprep.subr.mxu0 %v318
        %688 = vmatpush1.msra.mxu0 %v317
        %689 = vmatprep.subr.mxu0 %v336
        %690 = vmatpush1.msra.mxu0 %v335
        %691 = vmatprep.subr.mxu0 %v354
        %692 = vmatpush1.msra.mxu0 %v353
        %693 = vmatprep.subr.mxu0 0.0
        %694 = vmatpush1.msra.mxu0 0.0
        %695 = vmatprep.subr.mxu0 0.0
        %696 = vmatpush1.msra.mxu0 0.0
        %697 = vmatprep.subr.mxu0 0.0
        %698 = vmatpush1.msra.mxu0 0.0
        %699 = vmatprep.subr.mxu0 0.0
        %700 = vmatpush1.msra.mxu0 0.0
        %701 = vmatprep.subr.mxu0 0.0
        %702 = vmatpush1.msra.mxu0 0.0
        %703 = vmatprep.subr.mxu0 0.0
        %704 = vmatpush1.msra.mxu0 0.0
        %705 = vmatprep.subr.mxu0 0.0
        %706 = vmatpush1.msra.mxu0 0.0
        %707 = vmatprep.subr.mxu0 0.0
        %708 = vmatpush1.msra.mxu0 0.0
        %709 = vmatprep.subr.mxu0 0.0
        %710 = vmatpush1.msra.mxu0 0.0
        %711 = vmatprep.subr.mxu0 0.0
        %712 = vmatpush1.msra.mxu0 0.0
        %713 = vmatprep.subr.mxu0 0.0
        %714 = vmatpush1.msra.mxu0 0.0
        %715 = vmatprep.subr.mxu0 0.0
        %716 = vmatpush1.msra.mxu0 0.0
        %717 = vmatprep.subr.mxu0 0.0
        %718 = vmatpush1.msra.mxu0 0.0
        %719 = vmatprep.subr.mxu0 0.0
        %720 = vmatpush1.msra.mxu0 0.0
        %721 = vmatprep.subr.mxu0 0.0
        %722 = vmatpush1.msra.mxu0 0.0
        %723 = vmatprep.subr.mxu0 0.0
        %724 = vmatpush1.msra.mxu0 0.0
        %725 = vmatprep.subr.mxu0 0.0
        %726 = vmatpush1.msra.mxu0 0.0
        %727 = vmatprep.subr.mxu0 0.0
        %728 = vmatpush1.msra.mxu0 0.0
        %729 = vmatprep.subr.mxu0 0.0
        %730 = vmatpush1.msra.mxu0 0.0
        %731 = vmatprep.subr.mxu0 0.0
        %732 = vmatpush1.msra.mxu0 0.0
        %733 = vmatprep.subr.mxu0 0.0
        %734 = vmatpush1.msra.mxu0 0.0
        %735 = vmatprep.subr.mxu0 0.0
        %736 = vmatpush1.msra.mxu0 0.0
        %737 = vmatprep.subr.mxu0 0.0
        %738 = vmatpush1.msra.mxu0 0.0
        %739 = vmatprep.subr.mxu0 0.0
        %740 = vmatpush1.msra.mxu0 0.0
        %741 = vmatprep.subr.mxu0 0.0
        %742 = vmatpush1.msra.mxu0 0.0
        %743 = vmatprep.subr.mxu0 0.0
        %744 = vmatpush1.msra.mxu0 0.0
        %745 = vmatprep.subr.mxu0 0.0
        %746 = vmatpush1.msra.mxu0 0.0
        %747 = vmatprep.subr.mxu0 0.0
        %748 = vmatpush1.msra.mxu0 0.0
        %749 = vmatprep.mubr.f32.mxu0 0.0
        %750 = vmatmul.mubr.f32.gmra.mrb[0].mxu0 %v373
        %v751 = vpop.f32.mrb[0].mxu0
        %v752 = vadd.f32 0.0, %v751
        %v753 = vpop.f32.mrb[0].mxu0
        %v754 = vadd.f32 0.0, %v753
        %755 = vmatprep.mubr.f32.mxu0 0.0
        %756 = vmatmul.mubr.f32.gmra.mrb[0].mxu0 %v375
        %v757 = vpop.f32.mrb[0].mxu0
        %v758 = vadd.f32 0.0, %v757
        %v759 = vpop.f32.mrb[0].mxu0
        %v760 = vadd.f32 0.0, %v759
        %761 = vdwg.mxu0
        %762 = vmatprep.subr.mxu0 %v302
        %763 = vmatpush1.msra.mxu0 %v301
        %764 = vmatprep.subr.mxu0 %v320
        %765 = vmatpush1.msra.mxu0 %v319
        %766 = vmatprep.subr.mxu0 %v338
        %767 = vmatpush1.msra.mxu0 %v337
        %768 = vmatprep.subr.mxu0 %v356
        %769 = vmatpush1.msra.mxu0 %v355
        %770 = vmatprep.subr.mxu0 0.0
        %771 = vmatpush1.msra.mxu0 0.0
        %772 = vmatprep.subr.mxu0 0.0
        %773 = vmatpush1.msra.mxu0 0.0
        %774 = vmatprep.subr.mxu0 0.0
        %775 = vmatpush1.msra.mxu0 0.0
        %776 = vmatprep.subr.mxu0 0.0
        %777 = vmatpush1.msra.mxu0 0.0
        %778 = vmatprep.subr.mxu0 0.0
        %779 = vmatpush1.msra.mxu0 0.0
        %780 = vmatprep.subr.mxu0 0.0
        %781 = vmatpush1.msra.mxu0 0.0
        %782 = vmatprep.subr.mxu0 0.0
        %783 = vmatpush1.msra.mxu0 0.0
        %784 = vmatprep.subr.mxu0 0.0
        %785 = vmatpush1.msra.mxu0 0.0
        %786 = vmatprep.subr.mxu0 0.0
        %787 = vmatpush1.msra.mxu0 0.0
        %788 = vmatprep.subr.mxu0 0.0
        %789 = vmatpush1.msra.mxu0 0.0
        %790 = vmatprep.subr.mxu0 0.0
        %791 = vmatpush1.msra.mxu0 0.0
        %792 = vmatprep.subr.mxu0 0.0
        %793 = vmatpush1.msra.mxu0 0.0
        %794 = vmatprep.subr.mxu0 0.0
        %795 = vmatpush1.msra.mxu0 0.0
        %796 = vmatprep.subr.mxu0 0.0
        %797 = vmatpush1.msra.mxu0 0.0
        %798 = vmatprep.subr.mxu0 0.0
        %799 = vmatpush1.msra.mxu0 0.0
        %800 = vmatprep.subr.mxu0 0.0
        %801 = vmatpush1.msra.mxu0 0.0
        %802 = vmatprep.subr.mxu0 0.0
        %803 = vmatpush1.msra.mxu0 0.0
        %804 = vmatprep.subr.mxu0 0.0
        %805 = vmatpush1.msra.mxu0 0.0
        %806 = vmatprep.subr.mxu0 0.0
        %807 = vmatpush1.msra.mxu0 0.0
        %808 = vmatprep.subr.mxu0 0.0
        %809 = vmatpush1.msra.mxu0 0.0
        %810 = vmatprep.subr.mxu0 0.0
        %811 = vmatpush1.msra.mxu0 0.0
        %812 = vmatprep.subr.mxu0 0.0
        %813 = vmatpush1.msra.mxu0 0.0
        %814 = vmatprep.subr.mxu0 0.0
        %815 = vmatpush1.msra.mxu0 0.0
        %816 = vmatprep.subr.mxu0 0.0
        %817 = vmatpush1.msra.mxu0 0.0
        %818 = vmatprep.subr.mxu0 0.0
        %819 = vmatpush1.msra.mxu0 0.0
        %820 = vmatprep.subr.mxu0 0.0
        %821 = vmatpush1.msra.mxu0 0.0
        %822 = vmatprep.subr.mxu0 0.0
        %823 = vmatpush1.msra.mxu0 0.0
        %824 = vmatprep.subr.mxu0 0.0
        %825 = vmatpush1.msra.mxu0 0.0
        %826 = vmatprep.mubr.f32.mxu0 0.0
        %827 = vmatmul.mubr.f32.gmra.mrb[0].mxu0 %v373
        %v828 = vpop.f32.mrb[0].mxu0
        %v829 = vadd.f32 0.0, %v828
        %v830 = vpop.f32.mrb[0].mxu0
        %v831 = vadd.f32 0.0, %v830
        %832 = vmatprep.mubr.f32.mxu0 0.0
        %833 = vmatmul.mubr.f32.gmra.mrb[0].mxu0 %v375
        %v834 = vpop.f32.mrb[0].mxu0
        %v835 = vadd.f32 0.0, %v834
        %v836 = vpop.f32.mrb[0].mxu0
        %v837 = vadd.f32 0.0, %v836
        %838 = vdwg.mxu0
        %839 = vmatprep.subr.mxu0 %v304
        %840 = vmatpush1.msra.mxu0 %v303
        %841 = vmatprep.subr.mxu0 %v322
        %842 = vmatpush1.msra.mxu0 %v321
        %843 = vmatprep.subr.mxu0 %v340
        %844 = vmatpush1.msra.mxu0 %v339
        %845 = vmatprep.subr.mxu0 %v358
        %846 = vmatpush1.msra.mxu0 %v357
        %847 = vmatprep.subr.mxu0 0.0
        %848 = vmatpush1.msra.mxu0 0.0
        %849 = vmatprep.subr.mxu0 0.0
        %850 = vmatpush1.msra.mxu0 0.0
        %851 = vmatprep.subr.mxu0 0.0
        %852 = vmatpush1.msra.mxu0 0.0
        %853 = vmatprep.subr.mxu0 0.0
        %854 = vmatpush1.msra.mxu0 0.0
        %855 = vmatprep.subr.mxu0 0.0
        %856 = vmatpush1.msra.mxu0 0.0
        %857 = vmatprep.subr.mxu0 0.0
        %858 = vmatpush1.msra.mxu0 0.0
        %859 = vmatprep.subr.mxu0 0.0
        %860 = vmatpush1.msra.mxu0 0.0
        %861 = vmatprep.subr.mxu0 0.0
        %862 = vmatpush1.msra.mxu0 0.0
        %863 = vmatprep.subr.mxu0 0.0
        %864 = vmatpush1.msra.mxu0 0.0
        %865 = vmatprep.subr.mxu0 0.0
        %866 = vmatpush1.msra.mxu0 0.0
        %867 = vmatprep.subr.mxu0 0.0
        %868 = vmatpush1.msra.mxu0 0.0
        %869 = vmatprep.subr.mxu0 0.0
        %870 = vmatpush1.msra.mxu0 0.0
        %871 = vmatprep.subr.mxu0 0.0
        %872 = vmatpush1.msra.mxu0 0.0
        %873 = vmatprep.subr.mxu0 0.0
        %874 = vmatpush1.msra.mxu0 0.0
        %875 = vmatprep.subr.mxu0 0.0
        %876 = vmatpush1.msra.mxu0 0.0
        %877 = vmatprep.subr.mxu0 0.0
        %878 = vmatpush1.msra.mxu0 0.0
        %879 = vmatprep.subr.mxu0 0.0
        %880 = vmatpush1.msra.mxu0 0.0
        %881 = vmatprep.subr.mxu0 0.0
        %882 = vmatpush1.msra.mxu0 0.0
        %883 = vmatprep.subr.mxu0 0.0
        %884 = vmatpush1.msra.mxu0 0.0
        %885 = vmatprep.subr.mxu0 0.0
        %886 = vmatpush1.msra.mxu0 0.0
        %887 = vmatprep.subr.mxu0 0.0
        %888 = vmatpush1.msra.mxu0 0.0
        %889 = vmatprep.subr.mxu0 0.0
        %890 = vmatpush1.msra.mxu0 0.0
        %891 = vmatprep.subr.mxu0 0.0
        %892 = vmatpush1.msra.mxu0 0.0
        %893 = vmatprep.subr.mxu0 0.0
        %894 = vmatpush1.msra.mxu0 0.0
        %895 = vmatprep.subr.mxu0 0.0
        %896 = vmatpush1.msra.mxu0 0.0
        %897 = vmatprep.subr.mxu0 0.0
        %898 = vmatpush1.msra.mxu0 0.0
        %899 = vmatprep.subr.mxu0 0.0
        %900 = vmatpush1.msra.mxu0 0.0
        %901 = vmatprep.subr.mxu0 0.0
        %902 = vmatpush1.msra.mxu0 0.0
        %903 = vmatprep.mubr.f32.mxu0 0.0
        %904 = vmatmul.mubr.f32.gmra.mrb[0].mxu0 %v373
        %v905 = vpop.f32.mrb[0].mxu0
        %v906 = vadd.f32 0.0, %v905
        %v907 = vpop.f32.mrb[0].mxu0
        %v908 = vadd.f32 0.0, %v907
        %909 = vmatprep.mubr.f32.mxu0 0.0
        %910 = vmatmul.mubr.f32.gmra.mrb[0].mxu0 %v375
        %v911 = vpop.f32.mrb[0].mxu0
        %v912 = vadd.f32 0.0, %v911
        %v913 = vpop.f32.mrb[0].mxu0
        %v914 = vadd.f32 0.0, %v913
        %915 = vdwg.mxu0
        %916 = vmatprep.subr.mxu0 %v306
        %917 = vmatpush1.msra.mxu0 %v305
        %918 = vmatprep.subr.mxu0 %v324
        %919 = vmatpush1.msra.mxu0 %v323
        %920 = vmatprep.subr.mxu0 %v342
        %921 = vmatpush1.msra.mxu0 %v341
        %922 = vmatprep.subr.mxu0 %v360
        %923 = vmatpush1.msra.mxu0 %v359
        %924 = vmatprep.subr.mxu0 0.0
        %925 = vmatpush1.msra.mxu0 0.0
        %926 = vmatprep.subr.mxu0 0.0
        %927 = vmatpush1.msra.mxu0 0.0
        %928 = vmatprep.subr.mxu0 0.0
        %929 = vmatpush1.msra.mxu0 0.0
        %930 = vmatprep.subr.mxu0 0.0
        %931 = vmatpush1.msra.mxu0 0.0
        %932 = vmatprep.subr.mxu0 0.0
        %933 = vmatpush1.msra.mxu0 0.0
        %934 = vmatprep.subr.mxu0 0.0
        %935 = vmatpush1.msra.mxu0 0.0
        %936 = vmatprep.subr.mxu0 0.0
        %937 = vmatpush1.msra.mxu0 0.0
        %938 = vmatprep.subr.mxu0 0.0
        %939 = vmatpush1.msra.mxu0 0.0
        %940 = vmatprep.subr.mxu0 0.0
        %941 = vmatpush1.msra.mxu0 0.0
        %942 = vmatprep.subr.mxu0 0.0
        %943 = vmatpush1.msra.mxu0 0.0
        %944 = vmatprep.subr.mxu0 0.0
        %945 = vmatpush1.msra.mxu0 0.0
        %946 = vmatprep.subr.mxu0 0.0
        %947 = vmatpush1.msra.mxu0 0.0
        %948 = vmatprep.subr.mxu0 0.0
        %949 = vmatpush1.msra.mxu0 0.0
        %950 = vmatprep.subr.mxu0 0.0
        %951 = vmatpush1.msra.mxu0 0.0
        %952 = vmatprep.subr.mxu0 0.0
        %953 = vmatpush1.msra.mxu0 0.0
        %954 = vmatprep.subr.mxu0 0.0
        %955 = vmatpush1.msra.mxu0 0.0
        %956 = vmatprep.subr.mxu0 0.0
        %957 = vmatpush1.msra.mxu0 0.0
        %958 = vmatprep.subr.mxu0 0.0
        %959 = vmatpush1.msra.mxu0 0.0
        %960 = vmatprep.subr.mxu0 0.0
        %961 = vmatpush1.msra.mxu0 0.0
        %962 = vmatprep.subr.mxu0 0.0
        %963 = vmatpush1.msra.mxu0 0.0
        %964 = vmatprep.subr.mxu0 0.0
        %965 = vmatpush1.msra.mxu0 0.0
        %966 = vmatprep.subr.mxu0 0.0
        %967 = vmatpush1.msra.mxu0 0.0
        %968 = vmatprep.subr.mxu0 0.0
        %969 = vmatpush1.msra.mxu0 0.0
        %970 = vmatprep.subr.mxu0 0.0
        %971 = vmatpush1.msra.mxu0 0.0
        %972 = vmatprep.subr.mxu0 0.0
        %973 = vmatpush1.msra.mxu0 0.0
        %974 = vmatprep.subr.mxu0 0.0
        %975 = vmatpush1.msra.mxu0 0.0
        %976 = vmatprep.subr.mxu0 0.0
        %977 = vmatpush1.msra.mxu0 0.0
        %978 = vmatprep.subr.mxu0 0.0
        %979 = vmatpush1.msra.mxu0 0.0
        %980 = vmatprep.mubr.f32.mxu0 0.0
        %981 = vmatmul.mubr.f32.gmra.mrb[0].mxu0 %v373
        %v982 = vpop.f32.mrb[0].mxu0
        %v983 = vadd.f32 0.0, %v982
        %v984 = vpop.f32.mrb[0].mxu0
        %v985 = vadd.f32 0.0, %v984
        %986 = vmatprep.mubr.f32.mxu0 0.0
        %987 = vmatmul.mubr.f32.gmra.mrb[0].mxu0 %v375
        %v988 = vpop.f32.mrb[0].mxu0
        %v989 = vadd.f32 0.0, %v988
        %v990 = vpop.f32.mrb[0].mxu0
        %v991 = vadd.f32 0.0, %v990
        %992 = vdwg.mxu0
        %993 = vmatprep.subr.mxu0 %v308
        %994 = vmatpush1.msra.mxu0 %v307
        %995 = vmatprep.subr.mxu0 %v326
        %996 = vmatpush1.msra.mxu0 %v325
        %997 = vmatprep.subr.mxu0 %v344
        %998 = vmatpush1.msra.mxu0 %v343
        %999 = vmatprep.subr.mxu0 %v362
        %1000 = vmatpush1.msra.mxu0 %v361
        %1001 = vmatprep.subr.mxu0 0.0
        %1002 = vmatpush1.msra.mxu0 0.0
        %1003 = vmatprep.subr.mxu0 0.0
        %1004 = vmatpush1.msra.mxu0 0.0
        %1005 = vmatprep.subr.mxu0 0.0
        %1006 = vmatpush1.msra.mxu0 0.0
        %1007 = vmatprep.subr.mxu0 0.0
        %1008 = vmatpush1.msra.mxu0 0.0
        %1009 = vmatprep.subr.mxu0 0.0
        %1010 = vmatpush1.msra.mxu0 0.0
        %1011 = vmatprep.subr.mxu0 0.0
        %1012 = vmatpush1.msra.mxu0 0.0
        %1013 = vmatprep.subr.mxu0 0.0
        %1014 = vmatpush1.msra.mxu0 0.0
        %1015 = vmatprep.subr.mxu0 0.0
        %1016 = vmatpush1.msra.mxu0 0.0
        %1017 = vmatprep.subr.mxu0 0.0
        %1018 = vmatpush1.msra.mxu0 0.0
        %1019 = vmatprep.subr.mxu0 0.0
        %1020 = vmatpush1.msra.mxu0 0.0
        %1021 = vmatprep.subr.mxu0 0.0
        %1022 = vmatpush1.msra.mxu0 0.0
        %1023 = vmatprep.subr.mxu0 0.0
        %1024 = vmatpush1.msra.mxu0 0.0
        %1025 = vmatprep.subr.mxu0 0.0
        %1026 = vmatpush1.msra.mxu0 0.0
        %1027 = vmatprep.subr.mxu0 0.0
        %1028 = vmatpush1.msra.mxu0 0.0
        %1029 = vmatprep.subr.mxu0 0.0
        %1030 = vmatpush1.msra.mxu0 0.0
        %1031 = vmatprep.subr.mxu0 0.0
        %1032 = vmatpush1.msra.mxu0 0.0
        %1033 = vmatprep.subr.mxu0 0.0
        %1034 = vmatpush1.msra.mxu0 0.0
        %1035 = vmatprep.subr.mxu0 0.0
        %1036 = vmatpush1.msra.mxu0 0.0
        %1037 = vmatprep.subr.mxu0 0.0
        %1038 = vmatpush1.msra.mxu0 0.0
        %1039 = vmatprep.subr.mxu0 0.0
        %1040 = vmatpush1.msra.mxu0 0.0
        %1041 = vmatprep.subr.mxu0 0.0
        %1042 = vmatpush1.msra.mxu0 0.0
        %1043 = vmatprep.subr.mxu0 0.0
        %1044 = vmatpush1.msra.mxu0 0.0
        %1045 = vmatprep.subr.mxu0 0.0
        %1046 = vmatpush1.msra.mxu0 0.0
        %1047 = vmatprep.subr.mxu0 0.0
        %1048 = vmatpush1.msra.mxu0 0.0
        %1049 = vmatprep.subr.mxu0 0.0
        %1050 = vmatpush1.msra.mxu0 0.0
        %1051 = vmatprep.subr.mxu0 0.0
        %1052 = vmatpush1.msra.mxu0 0.0
        %1053 = vmatprep.subr.mxu0 0.0
        %1054 = vmatpush1.msra.mxu0 0.0
        %1055 = vmatprep.subr.mxu0 0.0
        %1056 = vmatpush1.msra.mxu0 0.0
        %1057 = vmatprep.mubr.f32.mxu0 0.0
        %1058 = vmatmul.mubr.f32.gmra.mrb[0].mxu0 %v373
        %v1059 = vpop.f32.mrb[0].mxu0
        %v1060 = vadd.f32 0.0, %v1059
        %v1061 = vpop.f32.mrb[0].mxu0
        %v1062 = vadd.f32 0.0, %v1061
        %1063 = vmatprep.mubr.f32.mxu0 0.0
        %1064 = vmatmul.mubr.f32.gmra.mrb[0].mxu0 %v375
        %v1065 = vpop.f32.mrb[0].mxu0
        %v1066 = vadd.f32 0.0, %v1065
        %v1067 = vpop.f32.mrb[0].mxu0
        %v1068 = vadd.f32 0.0, %v1067
        %1069 = vdwg.mxu0
        %v1070 = vsel %vm372, %v214, 0
        %v1072 = vsel %vm372, %v215, 0
        %1074 = vmatprep.subr.mxu0 %v219
        %1075 = vmatpush1.msra.mxu0 %v218
        %1076 = vmatprep.subr.mxu0 %v237
        %1077 = vmatpush1.msra.mxu0 %v236
        %1078 = vmatprep.subr.mxu0 %v255
        %1079 = vmatpush1.msra.mxu0 %v254
        %1080 = vmatprep.subr.mxu0 %v273
        %1081 = vmatpush1.msra.mxu0 %v272
        %1082 = vmatprep.subr.mxu0 0.0
        %1083 = vmatpush1.msra.mxu0 0.0
        %1084 = vmatprep.subr.mxu0 0.0
        %1085 = vmatpush1.msra.mxu0 0.0
        %1086 = vmatprep.subr.mxu0 0.0
        %1087 = vmatpush1.msra.mxu0 0.0
        %1088 = vmatprep.subr.mxu0 0.0
        %1089 = vmatpush1.msra.mxu0 0.0
        %1090 = vmatprep.subr.mxu0 0.0
        %1091 = vmatpush1.msra.mxu0 0.0
        %1092 = vmatprep.subr.mxu0 0.0
        %1093 = vmatpush1.msra.mxu0 0.0
        %1094 = vmatprep.subr.mxu0 0.0
        %1095 = vmatpush1.msra.mxu0 0.0
        %1096 = vmatprep.subr.mxu0 0.0
        %1097 = vmatpush1.msra.mxu0 0.0
        %1098 = vmatprep.subr.mxu0 0.0
        %1099 = vmatpush1.msra.mxu0 0.0
        %1100 = vmatprep.subr.mxu0 0.0
        %1101 = vmatpush1.msra.mxu0 0.0
        %1102 = vmatprep.subr.mxu0 0.0
        %1103 = vmatpush1.msra.mxu0 0.0
        %1104 = vmatprep.subr.mxu0 0.0
        %1105 = vmatpush1.msra.mxu0 0.0
        %1106 = vmatprep.subr.mxu0 0.0
        %1107 = vmatpush1.msra.mxu0 0.0
        %1108 = vmatprep.subr.mxu0 0.0
        %1109 = vmatpush1.msra.mxu0 0.0
        %1110 = vmatprep.subr.mxu0 0.0
        %1111 = vmatpush1.msra.mxu0 0.0
        %1112 = vmatprep.subr.mxu0 0.0
        %1113 = vmatpush1.msra.mxu0 0.0
        %1114 = vmatprep.subr.mxu0 0.0
        %1115 = vmatpush1.msra.mxu0 0.0
        %1116 = vmatprep.subr.mxu0 0.0
        %1117 = vmatpush1.msra.mxu0 0.0
        %1118 = vmatprep.subr.mxu0 0.0
        %1119 = vmatpush1.msra.mxu0 0.0
        %1120 = vmatprep.subr.mxu0 0.0
        %1121 = vmatpush1.msra.mxu0 0.0
        %1122 = vmatprep.subr.mxu0 0.0
        %1123 = vmatpush1.msra.mxu0 0.0
        %1124 = vmatprep.subr.mxu0 0.0
        %1125 = vmatpush1.msra.mxu0 0.0
        %1126 = vmatprep.subr.mxu0 0.0
        %1127 = vmatpush1.msra.mxu0 0.0
        %1128 = vmatprep.subr.mxu0 0.0
        %1129 = vmatpush1.msra.mxu0 0.0
        %1130 = vmatprep.subr.mxu0 0.0
        %1131 = vmatpush1.msra.mxu0 0.0
        %1132 = vmatprep.subr.mxu0 0.0
        %1133 = vmatpush1.msra.mxu0 0.0
        %1134 = vmatprep.subr.mxu0 0.0
        %1135 = vmatpush1.msra.mxu0 0.0
        %1136 = vmatprep.subr.mxu0 0.0
        %1137 = vmatpush1.msra.mxu0 0.0
        %1138 = vmatprep.mubr.f32.mxu0 0.0
        %1139 = vmatmul.mubr.f32.gmra.mrb[0].mxu0 %v1070
        %v1140 = vpop.f32.mrb[0].mxu0
        %v1141 = vadd.f32 %v444, %v1140
        %v1142 = vpop.f32.mrb[0].mxu0
        %v1143 = vadd.f32 %v446, %v1142
        %1144 = vmatprep.mubr.f32.mxu0 0.0
        %1145 = vmatmul.mubr.f32.gmra.mrb[0].mxu0 %v1072
        %v1146 = vpop.f32.mrb[0].mxu0
        %v1147 = vadd.f32 %v450, %v1146
        %v1148 = vpop.f32.mrb[0].mxu0
        %v1149 = vadd.f32 %v452, %v1148
        %1150 = vdwg.mxu0
        %1151 = vmatprep.subr.mxu0 %v221
        %1152 = vmatpush1.msra.mxu0 %v220
        %1153 = vmatprep.subr.mxu0 %v239
        %1154 = vmatpush1.msra.mxu0 %v238
        %1155 = vmatprep.subr.mxu0 %v257
        %1156 = vmatpush1.msra.mxu0 %v256
        %1157 = vmatprep.subr.mxu0 %v275
        %1158 = vmatpush1.msra.mxu0 %v274
        %1159 = vmatprep.subr.mxu0 0.0
        %1160 = vmatpush1.msra.mxu0 0.0
        %1161 = vmatprep.subr.mxu0 0.0
        %1162 = vmatpush1.msra.mxu0 0.0
        %1163 = vmatprep.subr.mxu0 0.0
        %1164 = vmatpush1.msra.mxu0 0.0
        %1165 = vmatprep.subr.mxu0 0.0
        %1166 = vmatpush1.msra.mxu0 0.0
        %1167 = vmatprep.subr.mxu0 0.0
        %1168 = vmatpush1.msra.mxu0 0.0
        %1169 = vmatprep.subr.mxu0 0.0
        %1170 = vmatpush1.msra.mxu0 0.0
        %1171 = vmatprep.subr.mxu0 0.0
        %1172 = vmatpush1.msra.mxu0 0.0
        %1173 = vmatprep.subr.mxu0 0.0
        %1174 = vmatpush1.msra.mxu0 0.0
        %1175 = vmatprep.subr.mxu0 0.0
        %1176 = vmatpush1.msra.mxu0 0.0
        %1177 = vmatprep.subr.mxu0 0.0
        %1178 = vmatpush1.msra.mxu0 0.0
        %1179 = vmatprep.subr.mxu0 0.0
        %1180 = vmatpush1.msra.mxu0 0.0
        %1181 = vmatprep.subr.mxu0 0.0
        %1182 = vmatpush1.msra.mxu0 0.0
        %1183 = vmatprep.subr.mxu0 0.0
        %1184 = vmatpush1.msra.mxu0 0.0
        %1185 = vmatprep.subr.mxu0 0.0
        %1186 = vmatpush1.msra.mxu0 0.0
        %1187 = vmatprep.subr.mxu0 0.0
        %1188 = vmatpush1.msra.mxu0 0.0
        %1189 = vmatprep.subr.mxu0 0.0
        %1190 = vmatpush1.msra.mxu0 0.0
        %1191 = vmatprep.subr.mxu0 0.0
        %1192 = vmatpush1.msra.mxu0 0.0
        %1193 = vmatprep.subr.mxu0 0.0
        %1194 = vmatpush1.msra.mxu0 0.0
        %1195 = vmatprep.subr.mxu0 0.0
        %1196 = vmatpush1.msra.mxu0 0.0
        %1197 = vmatprep.subr.mxu0 0.0
        %1198 = vmatpush1.msra.mxu0 0.0
        %1199 = vmatprep.subr.mxu0 0.0
        %1200 = vmatpush1.msra.mxu0 0.0
        %1201 = vmatprep.subr.mxu0 0.0
        %1202 = vmatpush1.msra.mxu0 0.0
        %1203 = vmatprep.subr.mxu0 0.0
        %1204 = vmatpush1.msra.mxu0 0.0
        %1205 = vmatprep.subr.mxu0 0.0
        %1206 = vmatpush1.msra.mxu0 0.0
        %1207 = vmatprep.subr.mxu0 0.0
        %1208 = vmatpush1.msra.mxu0 0.0
        %1209 = vmatprep.subr.mxu0 0.0
        %1210 = vmatpush1.msra.mxu0 0.0
        %1211 = vmatprep.subr.mxu0 0.0
        %1212 = vmatpush1.msra.mxu0 0.0
        %1213 = vmatprep.subr.mxu0 0.0
        %1214 = vmatpush1.msra.mxu0 0.0
        %1215 = vmatprep.mubr.f32.mxu0 0.0
        %1216 = vmatmul.mubr.f32.gmra.mrb[0].mxu0 %v1070
        %v1217 = vpop.f32.mrb[0].mxu0
        %v1218 = vadd.f32 %v521, %v1217
        %v1219 = vpop.f32.mrb[0].mxu0
        %v1220 = vadd.f32 %v523, %v1219
        %1221 = vmatprep.mubr.f32.mxu0 0.0
        %1222 = vmatmul.mubr.f32.gmra.mrb[0].mxu0 %v1072
        %v1223 = vpop.f32.mrb[0].mxu0
        %v1224 = vadd.f32 %v527, %v1223
        %v1225 = vpop.f32.mrb[0].mxu0
        %v1226 = vadd.f32 %v529, %v1225
        %1227 = vdwg.mxu0
        %1228 = vmatprep.subr.mxu0 %v223
        %1229 = vmatpush1.msra.mxu0 %v222
        %1230 = vmatprep.subr.mxu0 %v241
        %1231 = vmatpush1.msra.mxu0 %v240
        %1232 = vmatprep.subr.mxu0 %v259
        %1233 = vmatpush1.msra.mxu0 %v258
        %1234 = vmatprep.subr.mxu0 %v277
        %1235 = vmatpush1.msra.mxu0 %v276
        %1236 = vmatprep.subr.mxu0 0.0
        %1237 = vmatpush1.msra.mxu0 0.0
        %1238 = vmatprep.subr.mxu0 0.0
        %1239 = vmatpush1.msra.mxu0 0.0
        %1240 = vmatprep.subr.mxu0 0.0
        %1241 = vmatpush1.msra.mxu0 0.0
        %1242 = vmatprep.subr.mxu0 0.0
        %1243 = vmatpush1.msra.mxu0 0.0
        %1244 = vmatprep.subr.mxu0 0.0
        %1245 = vmatpush1.msra.mxu0 0.0
        %1246 = vmatprep.subr.mxu0 0.0
        %1247 = vmatpush1.msra.mxu0 0.0
        %1248 = vmatprep.subr.mxu0 0.0
        %1249 = vmatpush1.msra.mxu0 0.0
        %1250 = vmatprep.subr.mxu0 0.0
        %1251 = vmatpush1.msra.mxu0 0.0
        %1252 = vmatprep.subr.mxu0 0.0
        %1253 = vmatpush1.msra.mxu0 0.0
        %1254 = vmatprep.subr.mxu0 0.0
        %1255 = vmatpush1.msra.mxu0 0.0
        %1256 = vmatprep.subr.mxu0 0.0
        %1257 = vmatpush1.msra.mxu0 0.0
        %1258 = vmatprep.subr.mxu0 0.0
        %1259 = vmatpush1.msra.mxu0 0.0
        %1260 = vmatprep.subr.mxu0 0.0
        %1261 = vmatpush1.msra.mxu0 0.0
        %1262 = vmatprep.subr.mxu0 0.0
        %1263 = vmatpush1.msra.mxu0 0.0
        %1264 = vmatprep.subr.mxu0 0.0
        %1265 = vmatpush1.msra.mxu0 0.0
        %1266 = vmatprep.subr.mxu0 0.0
        %1267 = vmatpush1.msra.mxu0 0.0
        %1268 = vmatprep.subr.mxu0 0.0
        %1269 = vmatpush1.msra.mxu0 0.0
        %1270 = vmatprep.subr.mxu0 0.0
        %1271 = vmatpush1.msra.mxu0 0.0
        %1272 = vmatprep.subr.mxu0 0.0
        %1273 = vmatpush1.msra.mxu0 0.0
        %1274 = vmatprep.subr.mxu0 0.0
        %1275 = vmatpush1.msra.mxu0 0.0
        %1276 = vmatprep.subr.mxu0 0.0
        %1277 = vmatpush1.msra.mxu0 0.0
        %1278 = vmatprep.subr.mxu0 0.0
        %1279 = vmatpush1.msra.mxu0 0.0
        %1280 = vmatprep.subr.mxu0 0.0
        %1281 = vmatpush1.msra.mxu0 0.0
        %1282 = vmatprep.subr.mxu0 0.0
        %1283 = vmatpush1.msra.mxu0 0.0
        %1284 = vmatprep.subr.mxu0 0.0
        %1285 = vmatpush1.msra.mxu0 0.0
        %1286 = vmatprep.subr.mxu0 0.0
        %1287 = vmatpush1.msra.mxu0 0.0
        %1288 = vmatprep.subr.mxu0 0.0
        %1289 = vmatpush1.msra.mxu0 0.0
        %1290 = vmatprep.subr.mxu0 0.0
        %1291 = vmatpush1.msra.mxu0 0.0
        %1292 = vmatprep.mubr.f32.mxu0 0.0
        %1293 = vmatmul.mubr.f32.gmra.mrb[0].mxu0 %v1070
        %v1294 = vpop.f32.mrb[0].mxu0
        %v1295 = vadd.f32 %v598, %v1294
        %v1296 = vpop.f32.mrb[0].mxu0
        %v1297 = vadd.f32 %v600, %v1296
        %1298 = vmatprep.mubr.f32.mxu0 0.0
        %1299 = vmatmul.mubr.f32.gmra.mrb[0].mxu0 %v1072
        %v1300 = vpop.f32.mrb[0].mxu0
        %v1301 = vadd.f32 %v604, %v1300
        %v1302 = vpop.f32.mrb[0].mxu0
        %v1303 = vadd.f32 %v606, %v1302
        %1304 = vdwg.mxu0
        %1305 = vmatprep.subr.mxu0 %v225
        %1306 = vmatpush1.msra.mxu0 %v224
        %1307 = vmatprep.subr.mxu0 %v243
        %1308 = vmatpush1.msra.mxu0 %v242
        %1309 = vmatprep.subr.mxu0 %v261
        %1310 = vmatpush1.msra.mxu0 %v260
        %1311 = vmatprep.subr.mxu0 %v279
        %1312 = vmatpush1.msra.mxu0 %v278
        %1313 = vmatprep.subr.mxu0 0.0
        %1314 = vmatpush1.msra.mxu0 0.0
        %1315 = vmatprep.subr.mxu0 0.0
        %1316 = vmatpush1.msra.mxu0 0.0
        %1317 = vmatprep.subr.mxu0 0.0
        %1318 = vmatpush1.msra.mxu0 0.0
        %1319 = vmatprep.subr.mxu0 0.0
        %1320 = vmatpush1.msra.mxu0 0.0
        %1321 = vmatprep.subr.mxu0 0.0
        %1322 = vmatpush1.msra.mxu0 0.0
        %1323 = vmatprep.subr.mxu0 0.0
        %1324 = vmatpush1.msra.mxu0 0.0
        %1325 = vmatprep.subr.mxu0 0.0
        %1326 = vmatpush1.msra.mxu0 0.0
        %1327 = vmatprep.subr.mxu0 0.0
        %1328 = vmatpush1.msra.mxu0 0.0
        %1329 = vmatprep.subr.mxu0 0.0
        %1330 = vmatpush1.msra.mxu0 0.0
        %1331 = vmatprep.subr.mxu0 0.0
        %1332 = vmatpush1.msra.mxu0 0.0
        %1333 = vmatprep.subr.mxu0 0.0
        %1334 = vmatpush1.msra.mxu0 0.0
        %1335 = vmatprep.subr.mxu0 0.0
        %1336 = vmatpush1.msra.mxu0 0.0
        %1337 = vmatprep.subr.mxu0 0.0
        %1338 = vmatpush1.msra.mxu0 0.0
        %1339 = vmatprep.subr.mxu0 0.0
        %1340 = vmatpush1.msra.mxu0 0.0
        %1341 = vmatprep.subr.mxu0 0.0
        %1342 = vmatpush1.msra.mxu0 0.0
        %1343 = vmatprep.subr.mxu0 0.0
        %1344 = vmatpush1.msra.mxu0 0.0
        %1345 = vmatprep.subr.mxu0 0.0
        %1346 = vmatpush1.msra.mxu0 0.0
        %1347 = vmatprep.subr.mxu0 0.0
        %1348 = vmatpush1.msra.mxu0 0.0
        %1349 = vmatprep.subr.mxu0 0.0
        %1350 = vmatpush1.msra.mxu0 0.0
        %1351 = vmatprep.subr.mxu0 0.0
        %1352 = vmatpush1.msra.mxu0 0.0
        %1353 = vmatprep.subr.mxu0 0.0
        %1354 = vmatpush1.msra.mxu0 0.0
        %1355 = vmatprep.subr.mxu0 0.0
        %1356 = vmatpush1.msra.mxu0 0.0
        %1357 = vmatprep.subr.mxu0 0.0
        %1358 = vmatpush1.msra.mxu0 0.0
        %1359 = vmatprep.subr.mxu0 0.0
        %1360 = vmatpush1.msra.mxu0 0.0
        %1361 = vmatprep.subr.mxu0 0.0
        %1362 = vmatpush1.msra.mxu0 0.0
        %1363 = vmatprep.subr.mxu0 0.0
        %1364 = vmatpush1.msra.mxu0 0.0
        %1365 = vmatprep.subr.mxu0 0.0
        %1366 = vmatpush1.msra.mxu0 0.0
        %1367 = vmatprep.subr.mxu0 0.0
        %1368 = vmatpush1.msra.mxu0 0.0
        %1369 = vmatprep.mubr.f32.mxu0 0.0
        %1370 = vmatmul.mubr.f32.gmra.mrb[0].mxu0 %v1070
        %v1371 = vpop.f32.mrb[0].mxu0
        %v1372 = vadd.f32 %v675, %v1371
        %v1373 = vpop.f32.mrb[0].mxu0
        %v1374 = vadd.f32 %v677, %v1373
        %1375 = vmatprep.mubr.f32.mxu0 0.0
        %1376 = vmatmul.mubr.f32.gmra.mrb[0].mxu0 %v1072
        %v1377 = vpop.f32.mrb[0].mxu0
        %v1378 = vadd.f32 %v681, %v1377
        %v1379 = vpop.f32.mrb[0].mxu0
        %v1380 = vadd.f32 %v683, %v1379
        %1381 = vdwg.mxu0
        %1382 = vmatprep.subr.mxu0 %v227
        %1383 = vmatpush1.msra.mxu0 %v226
        %1384 = vmatprep.subr.mxu0 %v245
        %1385 = vmatpush1.msra.mxu0 %v244
        %1386 = vmatprep.subr.mxu0 %v263
        %1387 = vmatpush1.msra.mxu0 %v262
        %1388 = vmatprep.subr.mxu0 %v281
        %1389 = vmatpush1.msra.mxu0 %v280
        %1390 = vmatprep.subr.mxu0 0.0
        %1391 = vmatpush1.msra.mxu0 0.0
        %1392 = vmatprep.subr.mxu0 0.0
        %1393 = vmatpush1.msra.mxu0 0.0
        %1394 = vmatprep.subr.mxu0 0.0
        %1395 = vmatpush1.msra.mxu0 0.0
        %1396 = vmatprep.subr.mxu0 0.0
        %1397 = vmatpush1.msra.mxu0 0.0
        %1398 = vmatprep.subr.mxu0 0.0
        %1399 = vmatpush1.msra.mxu0 0.0
        %1400 = vmatprep.subr.mxu0 0.0
        %1401 = vmatpush1.msra.mxu0 0.0
        %1402 = vmatprep.subr.mxu0 0.0
        %1403 = vmatpush1.msra.mxu0 0.0
        %1404 = vmatprep.subr.mxu0 0.0
        %1405 = vmatpush1.msra.mxu0 0.0
        %1406 = vmatprep.subr.mxu0 0.0
        %1407 = vmatpush1.msra.mxu0 0.0
        %1408 = vmatprep.subr.mxu0 0.0
        %1409 = vmatpush1.msra.mxu0 0.0
        %1410 = vmatprep.subr.mxu0 0.0
        %1411 = vmatpush1.msra.mxu0 0.0
        %1412 = vmatprep.subr.mxu0 0.0
        %1413 = vmatpush1.msra.mxu0 0.0
        %1414 = vmatprep.subr.mxu0 0.0
        %1415 = vmatpush1.msra.mxu0 0.0
        %1416 = vmatprep.subr.mxu0 0.0
        %1417 = vmatpush1.msra.mxu0 0.0
        %1418 = vmatprep.subr.mxu0 0.0
        %1419 = vmatpush1.msra.mxu0 0.0
        %1420 = vmatprep.subr.mxu0 0.0
        %1421 = vmatpush1.msra.mxu0 0.0
        %1422 = vmatprep.subr.mxu0 0.0
        %1423 = vmatpush1.msra.mxu0 0.0
        %1424 = vmatprep.subr.mxu0 0.0
        %1425 = vmatpush1.msra.mxu0 0.0
        %1426 = vmatprep.subr.mxu0 0.0
        %1427 = vmatpush1.msra.mxu0 0.0
        %1428 = vmatprep.subr.mxu0 0.0
        %1429 = vmatpush1.msra.mxu0 0.0
        %1430 = vmatprep.subr.mxu0 0.0
        %1431 = vmatpush1.msra.mxu0 0.0
        %1432 = vmatprep.subr.mxu0 0.0
        %1433 = vmatpush1.msra.mxu0 0.0
        %1434 = vmatprep.subr.mxu0 0.0
        %1435 = vmatpush1.msra.mxu0 0.0
        %1436 = vmatprep.subr.mxu0 0.0
        %1437 = vmatpush1.msra.mxu0 0.0
        %1438 = vmatprep.subr.mxu0 0.0
        %1439 = vmatpush1.msra.mxu0 0.0
        %1440 = vmatprep.subr.mxu0 0.0
        %1441 = vmatpush1.msra.mxu0 0.0
        %1442 = vmatprep.subr.mxu0 0.0
        %1443 = vmatpush1.msra.mxu0 0.0
        %1444 = vmatprep.subr.mxu0 0.0
        %1445 = vmatpush1.msra.mxu0 0.0
        %1446 = vmatprep.mubr.f32.mxu0 0.0
        %1447 = vmatmul.mubr.f32.gmra.mrb[0].mxu0 %v1070
        %v1448 = vpop.f32.mrb[0].mxu0
        %v1449 = vadd.f32 %v752, %v1448
        %v1450 = vpop.f32.mrb[0].mxu0
        %v1451 = vadd.f32 %v754, %v1450
        %1452 = vmatprep.mubr.f32.mxu0 0.0
        %1453 = vmatmul.mubr.f32.gmra.mrb[0].mxu0 %v1072
        %v1454 = vpop.f32.mrb[0].mxu0
        %v1455 = vadd.f32 %v758, %v1454
        %v1456 = vpop.f32.mrb[0].mxu0
        %v1457 = vadd.f32 %v760, %v1456
        %1458 = vdwg.mxu0
        %1459 = vmatprep.subr.mxu0 %v229
        %1460 = vmatpush1.msra.mxu0 %v228
        %1461 = vmatprep.subr.mxu0 %v247
        %1462 = vmatpush1.msra.mxu0 %v246
        %1463 = vmatprep.subr.mxu0 %v265
        %1464 = vmatpush1.msra.mxu0 %v264
        %1465 = vmatprep.subr.mxu0 %v283
        %1466 = vmatpush1.msra.mxu0 %v282
        %1467 = vmatprep.subr.mxu0 0.0
        %1468 = vmatpush1.msra.mxu0 0.0
        %1469 = vmatprep.subr.mxu0 0.0
        %1470 = vmatpush1.msra.mxu0 0.0
        %1471 = vmatprep.subr.mxu0 0.0
        %1472 = vmatpush1.msra.mxu0 0.0
        %1473 = vmatprep.subr.mxu0 0.0
        %1474 = vmatpush1.msra.mxu0 0.0
        %1475 = vmatprep.subr.mxu0 0.0
        %1476 = vmatpush1.msra.mxu0 0.0
        %1477 = vmatprep.subr.mxu0 0.0
        %1478 = vmatpush1.msra.mxu0 0.0
        %1479 = vmatprep.subr.mxu0 0.0
        %1480 = vmatpush1.msra.mxu0 0.0
        %1481 = vmatprep.subr.mxu0 0.0
        %1482 = vmatpush1.msra.mxu0 0.0
        %1483 = vmatprep.subr.mxu0 0.0
        %1484 = vmatpush1.msra.mxu0 0.0
        %1485 = vmatprep.subr.mxu0 0.0
        %1486 = vmatpush1.msra.mxu0 0.0
        %1487 = vmatprep.subr.mxu0 0.0
        %1488 = vmatpush1.msra.mxu0 0.0
        %1489 = vmatprep.subr.mxu0 0.0
        %1490 = vmatpush1.msra.mxu0 0.0
        %1491 = vmatprep.subr.mxu0 0.0
        %1492 = vmatpush1.msra.mxu0 0.0
        %1493 = vmatprep.subr.mxu0 0.0
        %1494 = vmatpush1.msra.mxu0 0.0
        %1495 = vmatprep.subr.mxu0 0.0
        %1496 = vmatpush1.msra.mxu0 0.0
        %1497 = vmatprep.subr.mxu0 0.0
        %1498 = vmatpush1.msra.mxu0 0.0
        %1499 = vmatprep.subr.mxu0 0.0
        %1500 = vmatpush1.msra.mxu0 0.0
        %1501 = vmatprep.subr.mxu0 0.0
        %1502 = vmatpush1.msra.mxu0 0.0
        %1503 = vmatprep.subr.mxu0 0.0
        %1504 = vmatpush1.msra.mxu0 0.0
        %1505 = vmatprep.subr.mxu0 0.0
        %1506 = vmatpush1.msra.mxu0 0.0
        %1507 = vmatprep.subr.mxu0 0.0
        %1508 = vmatpush1.msra.mxu0 0.0
        %1509 = vmatprep.subr.mxu0 0.0
        %1510 = vmatpush1.msra.mxu0 0.0
        %1511 = vmatprep.subr.mxu0 0.0
        %1512 = vmatpush1.msra.mxu0 0.0
        %1513 = vmatprep.subr.mxu0 0.0
        %1514 = vmatpush1.msra.mxu0 0.0
        %1515 = vmatprep.subr.mxu0 0.0
        %1516 = vmatpush1.msra.mxu0 0.0
        %1517 = vmatprep.subr.mxu0 0.0
        %1518 = vmatpush1.msra.mxu0 0.0
        %1519 = vmatprep.subr.mxu0 0.0
        %1520 = vmatpush1.msra.mxu0 0.0
        %1521 = vmatprep.subr.mxu0 0.0
        %1522 = vmatpush1.msra.mxu0 0.0
        %1523 = vmatprep.mubr.f32.mxu0 0.0
        %1524 = vmatmul.mubr.f32.gmra.mrb[0].mxu0 %v1070
        %v1525 = vpop.f32.mrb[0].mxu0
        %v1526 = vadd.f32 %v829, %v1525
        %v1527 = vpop.f32.mrb[0].mxu0
        %v1528 = vadd.f32 %v831, %v1527
        %1529 = vmatprep.mubr.f32.mxu0 0.0
        %1530 = vmatmul.mubr.f32.gmra.mrb[0].mxu0 %v1072
        %v1531 = vpop.f32.mrb[0].mxu0
        %v1532 = vadd.f32 %v835, %v1531
        %v1533 = vpop.f32.mrb[0].mxu0
        %v1534 = vadd.f32 %v837, %v1533
        %1535 = vdwg.mxu0
        %1536 = vmatprep.subr.mxu0 %v231
        %1537 = vmatpush1.msra.mxu0 %v230
        %1538 = vmatprep.subr.mxu0 %v249
        %1539 = vmatpush1.msra.mxu0 %v248
        %1540 = vmatprep.subr.mxu0 %v267
        %1541 = vmatpush1.msra.mxu0 %v266
        %1542 = vmatprep.subr.mxu0 %v285
        %1543 = vmatpush1.msra.mxu0 %v284
        %1544 = vmatprep.subr.mxu0 0.0
        %1545 = vmatpush1.msra.mxu0 0.0
        %1546 = vmatprep.subr.mxu0 0.0
        %1547 = vmatpush1.msra.mxu0 0.0
        %1548 = vmatprep.subr.mxu0 0.0
        %1549 = vmatpush1.msra.mxu0 0.0
        %1550 = vmatprep.subr.mxu0 0.0
        %1551 = vmatpush1.msra.mxu0 0.0
        %1552 = vmatprep.subr.mxu0 0.0
        %1553 = vmatpush1.msra.mxu0 0.0
        %1554 = vmatprep.subr.mxu0 0.0
        %1555 = vmatpush1.msra.mxu0 0.0
        %1556 = vmatprep.subr.mxu0 0.0
        %1557 = vmatpush1.msra.mxu0 0.0
        %1558 = vmatprep.subr.mxu0 0.0
        %1559 = vmatpush1.msra.mxu0 0.0
        %1560 = vmatprep.subr.mxu0 0.0
        %1561 = vmatpush1.msra.mxu0 0.0
        %1562 = vmatprep.subr.mxu0 0.0
        %1563 = vmatpush1.msra.mxu0 0.0
        %1564 = vmatprep.subr.mxu0 0.0
        %1565 = vmatpush1.msra.mxu0 0.0
        %1566 = vmatprep.subr.mxu0 0.0
        %1567 = vmatpush1.msra.mxu0 0.0
        %1568 = vmatprep.subr.mxu0 0.0
        %1569 = vmatpush1.msra.mxu0 0.0
        %1570 = vmatprep.subr.mxu0 0.0
        %1571 = vmatpush1.msra.mxu0 0.0
        %1572 = vmatprep.subr.mxu0 0.0
        %1573 = vmatpush1.msra.mxu0 0.0
        %1574 = vmatprep.subr.mxu0 0.0
        %1575 = vmatpush1.msra.mxu0 0.0
        %1576 = vmatprep.subr.mxu0 0.0
        %1577 = vmatpush1.msra.mxu0 0.0
        %1578 = vmatprep.subr.mxu0 0.0
        %1579 = vmatpush1.msra.mxu0 0.0
        %1580 = vmatprep.subr.mxu0 0.0
        %1581 = vmatpush1.msra.mxu0 0.0
        %1582 = vmatprep.subr.mxu0 0.0
        %1583 = vmatpush1.msra.mxu0 0.0
        %1584 = vmatprep.subr.mxu0 0.0
        %1585 = vmatpush1.msra.mxu0 0.0
        %1586 = vmatprep.subr.mxu0 0.0
        %1587 = vmatpush1.msra.mxu0 0.0
        %1588 = vmatprep.subr.mxu0 0.0
        %1589 = vmatpush1.msra.mxu0 0.0
        %1590 = vmatprep.subr.mxu0 0.0
        %1591 = vmatpush1.msra.mxu0 0.0
        %1592 = vmatprep.subr.mxu0 0.0
        %1593 = vmatpush1.msra.mxu0 0.0
        %1594 = vmatprep.subr.mxu0 0.0
        %1595 = vmatpush1.msra.mxu0 0.0
        %1596 = vmatprep.subr.mxu0 0.0
        %1597 = vmatpush1.msra.mxu0 0.0
        %1598 = vmatprep.subr.mxu0 0.0
        %1599 = vmatpush1.msra.mxu0 0.0
        %1600 = vmatprep.mubr.f32.mxu0 0.0
        %1601 = vmatmul.mubr.f32.gmra.mrb[0].mxu0 %v1070
        %v1602 = vpop.f32.mrb[0].mxu0
        %v1603 = vadd.f32 %v906, %v1602
        %v1604 = vpop.f32.mrb[0].mxu0
        %v1605 = vadd.f32 %v908, %v1604
        %1606 = vmatprep.mubr.f32.mxu0 0.0
        %1607 = vmatmul.mubr.f32.gmra.mrb[0].mxu0 %v1072
        %v1608 = vpop.f32.mrb[0].mxu0
        %v1609 = vadd.f32 %v912, %v1608
        %v1610 = vpop.f32.mrb[0].mxu0
        %v1611 = vadd.f32 %v914, %v1610
        %1612 = vdwg.mxu0
        %1613 = vmatprep.subr.mxu0 %v233
        %1614 = vmatpush1.msra.mxu0 %v232
        %1615 = vmatprep.subr.mxu0 %v251
        %1616 = vmatpush1.msra.mxu0 %v250
        %1617 = vmatprep.subr.mxu0 %v269
        %1618 = vmatpush1.msra.mxu0 %v268
        %1619 = vmatprep.subr.mxu0 %v287
        %1620 = vmatpush1.msra.mxu0 %v286
        %1621 = vmatprep.subr.mxu0 0.0
        %1622 = vmatpush1.msra.mxu0 0.0
        %1623 = vmatprep.subr.mxu0 0.0
        %1624 = vmatpush1.msra.mxu0 0.0
        %1625 = vmatprep.subr.mxu0 0.0
        %1626 = vmatpush1.msra.mxu0 0.0
        %1627 = vmatprep.subr.mxu0 0.0
        %1628 = vmatpush1.msra.mxu0 0.0
        %1629 = vmatprep.subr.mxu0 0.0
        %1630 = vmatpush1.msra.mxu0 0.0
        %1631 = vmatprep.subr.mxu0 0.0
        %1632 = vmatpush1.msra.mxu0 0.0
        %1633 = vmatprep.subr.mxu0 0.0
        %1634 = vmatpush1.msra.mxu0 0.0
        %1635 = vmatprep.subr.mxu0 0.0
        %1636 = vmatpush1.msra.mxu0 0.0
        %1637 = vmatprep.subr.mxu0 0.0
        %1638 = vmatpush1.msra.mxu0 0.0
        %1639 = vmatprep.subr.mxu0 0.0
        %1640 = vmatpush1.msra.mxu0 0.0
        %1641 = vmatprep.subr.mxu0 0.0
        %1642 = vmatpush1.msra.mxu0 0.0
        %1643 = vmatprep.subr.mxu0 0.0
        %1644 = vmatpush1.msra.mxu0 0.0
        %1645 = vmatprep.subr.mxu0 0.0
        %1646 = vmatpush1.msra.mxu0 0.0
        %1647 = vmatprep.subr.mxu0 0.0
        %1648 = vmatpush1.msra.mxu0 0.0
        %1649 = vmatprep.subr.mxu0 0.0
        %1650 = vmatpush1.msra.mxu0 0.0
        %1651 = vmatprep.subr.mxu0 0.0
        %1652 = vmatpush1.msra.mxu0 0.0
        %1653 = vmatprep.subr.mxu0 0.0
        %1654 = vmatpush1.msra.mxu0 0.0
        %1655 = vmatprep.subr.mxu0 0.0
        %1656 = vmatpush1.msra.mxu0 0.0
        %1657 = vmatprep.subr.mxu0 0.0
        %1658 = vmatpush1.msra.mxu0 0.0
        %1659 = vmatprep.subr.mxu0 0.0
        %1660 = vmatpush1.msra.mxu0 0.0
        %1661 = vmatprep.subr.mxu0 0.0
        %1662 = vmatpush1.msra.mxu0 0.0
        %1663 = vmatprep.subr.mxu0 0.0
        %1664 = vmatpush1.msra.mxu0 0.0
        %1665 = vmatprep.subr.mxu0 0.0
        %1666 = vmatpush1.msra.mxu0 0.0
        %1667 = vmatprep.subr.mxu0 0.0
        %1668 = vmatpush1.msra.mxu0 0.0
        %1669 = vmatprep.subr.mxu0 0.0
        %1670 = vmatpush1.msra.mxu0 0.0
        %1671 = vmatprep.subr.mxu0 0.0
        %1672 = vmatpush1.msra.mxu0 0.0
        %1673 = vmatprep.subr.mxu0 0.0
        %1674 = vmatpush1.msra.mxu0 0.0
        %1675 = vmatprep.subr.mxu0 0.0
        %1676 = vmatpush1.msra.mxu0 0.0
        %1677 = vmatprep.mubr.f32.mxu0 0.0
        %1678 = vmatmul.mubr.f32.gmra.mrb[0].mxu0 %v1070
        %v1679 = vpop.f32.mrb[0].mxu0
        %v1680 = vadd.f32 %v983, %v1679
        %v1681 = vpop.f32.mrb[0].mxu0
        %v1682 = vadd.f32 %v985, %v1681
        %1683 = vmatprep.mubr.f32.mxu0 0.0
        %1684 = vmatmul.mubr.f32.gmra.mrb[0].mxu0 %v1072
        %v1685 = vpop.f32.mrb[0].mxu0
        %v1686 = vadd.f32 %v989, %v1685
        %v1687 = vpop.f32.mrb[0].mxu0
        %v1688 = vadd.f32 %v991, %v1687
        %1689 = vdwg.mxu0
        %1690 = vmatprep.subr.mxu0 %v235
        %1691 = vmatpush1.msra.mxu0 %v234
        %1692 = vmatprep.subr.mxu0 %v253
        %1693 = vmatpush1.msra.mxu0 %v252
        %1694 = vmatprep.subr.mxu0 %v271
        %1695 = vmatpush1.msra.mxu0 %v270
        %1696 = vmatprep.subr.mxu0 %v289
        %1697 = vmatpush1.msra.mxu0 %v288
        %1698 = vmatprep.subr.mxu0 0.0
        %1699 = vmatpush1.msra.mxu0 0.0
        %1700 = vmatprep.subr.mxu0 0.0
        %1701 = vmatpush1.msra.mxu0 0.0
        %1702 = vmatprep.subr.mxu0 0.0
        %1703 = vmatpush1.msra.mxu0 0.0
        %1704 = vmatprep.subr.mxu0 0.0
        %1705 = vmatpush1.msra.mxu0 0.0
        %1706 = vmatprep.subr.mxu0 0.0
        %1707 = vmatpush1.msra.mxu0 0.0
        %1708 = vmatprep.subr.mxu0 0.0
        %1709 = vmatpush1.msra.mxu0 0.0
        %1710 = vmatprep.subr.mxu0 0.0
        %1711 = vmatpush1.msra.mxu0 0.0
        %1712 = vmatprep.subr.mxu0 0.0
        %1713 = vmatpush1.msra.mxu0 0.0
        %1714 = vmatprep.subr.mxu0 0.0
        %1715 = vmatpush1.msra.mxu0 0.0
        %1716 = vmatprep.subr.mxu0 0.0
        %1717 = vmatpush1.msra.mxu0 0.0
        %1718 = vmatprep.subr.mxu0 0.0
        %1719 = vmatpush1.msra.mxu0 0.0
        %1720 = vmatprep.subr.mxu0 0.0
        %1721 = vmatpush1.msra.mxu0 0.0
        %1722 = vmatprep.subr.mxu0 0.0
        %1723 = vmatpush1.msra.mxu0 0.0
        %1724 = vmatprep.subr.mxu0 0.0
        %1725 = vmatpush1.msra.mxu0 0.0
        %1726 = vmatprep.subr.mxu0 0.0
        %1727 = vmatpush1.msra.mxu0 0.0
        %1728 = vmatprep.subr.mxu0 0.0
        %1729 = vmatpush1.msra.mxu0 0.0
        %1730 = vmatprep.subr.mxu0 0.0
        %1731 = vmatpush1.msra.mxu0 0.0
        %1732 = vmatprep.subr.mxu0 0.0
        %1733 = vmatpush1.msra.mxu0 0.0
        %1734 = vmatprep.subr.mxu0 0.0
        %1735 = vmatpush1.msra.mxu0 0.0
        %1736 = vmatprep.subr.mxu0 0.0
        %1737 = vmatpush1.msra.mxu0 0.0
        %1738 = vmatprep.subr.mxu0 0.0
        %1739 = vmatpush1.msra.mxu0 0.0
        %1740 = vmatprep.subr.mxu0 0.0
        %1741 = vmatpush1.msra.mxu0 0.0
        %1742 = vmatprep.subr.mxu0 0.0
        %1743 = vmatpush1.msra.mxu0 0.0
        %1744 = vmatprep.subr.mxu0 0.0
        %1745 = vmatpush1.msra.mxu0 0.0
        %1746 = vmatprep.subr.mxu0 0.0
        %1747 = vmatpush1.msra.mxu0 0.0
        %1748 = vmatprep.subr.mxu0 0.0
        %1749 = vmatpush1.msra.mxu0 0.0
        %1750 = vmatprep.subr.mxu0 0.0
        %1751 = vmatpush1.msra.mxu0 0.0
        %1752 = vmatprep.subr.mxu0 0.0
        %1753 = vmatpush1.msra.mxu0 0.0
        %1754 = vmatprep.mubr.f32.mxu0 0.0
        %1755 = vmatmul.mubr.f32.gmra.mrb[0].mxu0 %v1070
        %v1756 = vpop.f32.mrb[0].mxu0
        %v1757 = vadd.f32 %v1060, %v1756
        %v1758 = vpop.f32.mrb[0].mxu0
        %v1759 = vadd.f32 %v1062, %v1758
        %1760 = vmatprep.mubr.f32.mxu0 0.0
        %1761 = vmatmul.mubr.f32.gmra.mrb[0].mxu0 %v1072
        %v1762 = vpop.f32.mrb[0].mxu0
        %v1763 = vadd.f32 %v1066, %v1762
        %v1764 = vpop.f32.mrb[0].mxu0
        %v1765 = vadd.f32 %v1068, %v1764
        %1766 = vdwg.mxu0
        %s1767 = scalar_lea.vmem [#allocation2], 1152
        %v1768 = vld [vmem:[%s1767] sm:$0xff]
        %v1769 = vld [vmem:[%s1767 + $0x8] sm:$0xff]
        %v1770 = vld [vmem:[%s1767 + $0x10] sm:$0xff]
        %v1771 = vld [vmem:[%s1767 + $0x18] sm:$0xff]
        %v1772 = vld [vmem:[%s1767 + $0x20] sm:$0xff]
        %v1773 = vld [vmem:[%s1767 + $0x28] sm:$0xff]
        %v1774 = vld [vmem:[%s1767 + $0x30] sm:$0xff]
        %v1775 = vld [vmem:[%s1767 + $0x38] sm:$0xff]
        %v1776 = vld [vmem:[%s1767 + $0x40] sm:$0xff]
        %v1777 = vld [vmem:[%s1767 + $0x48] sm:$0xff]
        %v1778 = vld [vmem:[%s1767 + $0x50] sm:$0xff]
        %v1779 = vld [vmem:[%s1767 + $0x58] sm:$0xff]
        %v1780 = vld [vmem:[%s1767 + $0x60] sm:$0xff]
        %v1781 = vld [vmem:[%s1767 + $0x68] sm:$0xff]
        %v1782 = vld [vmem:[%s1767 + $0x70] sm:$0xff]
        %v1783 = vld [vmem:[%s1767 + $0x78] sm:$0xff]
        %v1784 = vld [vmem:[%s1767 + $0x80] sm:$0xff]
        %v1785 = vld [vmem:[%s1767 + $0x88] sm:$0xff]
        %v1786 = vld [vmem:[%s1767 + $0x90] sm:$0xff]
        %v1787 = vld [vmem:[%s1767 + $0x98] sm:$0xff]
        %v1788 = vld [vmem:[%s1767 + $0xa0] sm:$0xff]
        %v1789 = vld [vmem:[%s1767 + $0xa8] sm:$0xff]
        %v1790 = vld [vmem:[%s1767 + $0xb0] sm:$0xff]
        %v1791 = vld [vmem:[%s1767 + $0xb8] sm:$0xff]
        %v1792 = vld [vmem:[%s1767 + $0xc0] sm:$0xff]
        %v1793 = vld [vmem:[%s1767 + $0xc8] sm:$0xff]
        %v1794 = vld [vmem:[%s1767 + $0xd0] sm:$0xff]
        %v1795 = vld [vmem:[%s1767 + $0xd8] sm:$0xff]
        %v1796 = vld [vmem:[%s1767 + $0xe0] sm:$0xff]
        %v1797 = vld [vmem:[%s1767 + $0xe8] sm:$0xff]
        %v1798 = vld [vmem:[%s1767 + $0xf0] sm:$0xff]
        %v1799 = vld [vmem:[%s1767 + $0xf8] sm:$0xff]
        %v1800 = vld [vmem:[%s1767 + $0x100] sm:$0xff]
        %v1801 = vld [vmem:[%s1767 + $0x108] sm:$0xff]
        %v1802 = vld [vmem:[%s1767 + $0x110] sm:$0xff]
        %v1803 = vld [vmem:[%s1767 + $0x118] sm:$0xff]
        %v1804 = vld [vmem:[%s1767 + $0x120] sm:$0xff]
        %v1805 = vld [vmem:[%s1767 + $0x128] sm:$0xff]
        %v1806 = vld [vmem:[%s1767 + $0x130] sm:$0xff]
        %v1807 = vld [vmem:[%s1767 + $0x138] sm:$0xff]
        %v1808 = vld [vmem:[%s1767 + $0x140] sm:$0xff]
        %v1809 = vld [vmem:[%s1767 + $0x148] sm:$0xff]
        %v1810 = vld [vmem:[%s1767 + $0x150] sm:$0xff]
        %v1811 = vld [vmem:[%s1767 + $0x158] sm:$0xff]
        %v1812 = vld [vmem:[%s1767 + $0x160] sm:$0xff]
        %v1813 = vld [vmem:[%s1767 + $0x168] sm:$0xff]
        %v1814 = vld [vmem:[%s1767 + $0x170] sm:$0xff]
        %v1815 = vld [vmem:[%s1767 + $0x178] sm:$0xff]
        %v1816 = vld [vmem:[%s1767 + $0x180] sm:$0xff]
        %v1817 = vld [vmem:[%s1767 + $0x188] sm:$0xff]
        %v1818 = vld [vmem:[%s1767 + $0x190] sm:$0xff]
        %v1819 = vld [vmem:[%s1767 + $0x198] sm:$0xff]
        %v1820 = vld [vmem:[%s1767 + $0x1a0] sm:$0xff]
        %v1821 = vld [vmem:[%s1767 + $0x1a8] sm:$0xff]
        %v1822 = vld [vmem:[%s1767 + $0x1b0] sm:$0xff]
        %v1823 = vld [vmem:[%s1767 + $0x1b8] sm:$0xff]
        %v1824 = vld [vmem:[%s1767 + $0x1c0] sm:$0xff]
        %v1825 = vld [vmem:[%s1767 + $0x1c8] sm:$0xff]
        %v1826 = vld [vmem:[%s1767 + $0x1d0] sm:$0xff]
        %v1827 = vld [vmem:[%s1767 + $0x1d8] sm:$0xff]
        %v1828 = vld [vmem:[%s1767 + $0x1e0] sm:$0xff]
        %v1829 = vld [vmem:[%s1767 + $0x1e8] sm:$0xff]
        %v1830 = vld [vmem:[%s1767 + $0x1f0] sm:$0xff]
        %v1831 = vld [vmem:[%s1767 + $0x1f8] sm:$0xff]
        %v1832 = vld [vmem:[%s1767 + $0x200] sm:$0xff]
        %v1833 = vld [vmem:[%s1767 + $0x208] sm:$0xff]
        %v1834 = vld [vmem:[%s1767 + $0x210] sm:$0xff]
        %v1835 = vld [vmem:[%s1767 + $0x218] sm:$0xff]
        %v1836 = vld [vmem:[%s1767 + $0x220] sm:$0xff]
        %v1837 = vld [vmem:[%s1767 + $0x228] sm:$0xff]
        %v1838 = vld [vmem:[%s1767 + $0x230] sm:$0xff]
        %v1839 = vld [vmem:[%s1767 + $0x238] sm:$0xff]
        %vm1840 = vcmask 1045504
        %v1841 = vrot.slane %v214, 2
        %v1842 = vrot.slane %v215, 2
        %v1843 = vsel %vm1840, %v1841, %v1842
        %v1844 = vrot.slane %v216, 2
        %v1845 = vsel %vm1840, %v1842, %v1844
        %v1846 = vsel %vm372, %v1843, 0
        %v1848 = vsel %vm372, %v1845, 0
        %1850 = vmatprep.subr.mxu0 %v1769
        %1851 = vmatpush1.msra.mxu0 %v1768
        %1852 = vmatprep.subr.mxu0 %v1787
        %1853 = vmatpush1.msra.mxu0 %v1786
        %1854 = vmatprep.subr.mxu0 %v1805
        %1855 = vmatpush1.msra.mxu0 %v1804
        %1856 = vmatprep.subr.mxu0 %v1823
        %1857 = vmatpush1.msra.mxu0 %v1822
        %1858 = vmatprep.subr.mxu0 0.0
        %1859 = vmatpush1.msra.mxu0 0.0
        %1860 = vmatprep.subr.mxu0 0.0
        %1861 = vmatpush1.msra.mxu0 0.0
        %1862 = vmatprep.subr.mxu0 0.0
        %1863 = vmatpush1.msra.mxu0 0.0
        %1864 = vmatprep.subr.mxu0 0.0
        %1865 = vmatpush1.msra.mxu0 0.0
        %1866 = vmatprep.subr.mxu0 0.0
        %1867 = vmatpush1.msra.mxu0 0.0
        %1868 = vmatprep.subr.mxu0 0.0
        %1869 = vmatpush1.msra.mxu0 0.0
        %1870 = vmatprep.subr.mxu0 0.0
        %1871 = vmatpush1.msra.mxu0 0.0
        %1872 = vmatprep.subr.mxu0 0.0
        %1873 = vmatpush1.msra.mxu0 0.0
        %1874 = vmatprep.subr.mxu0 0.0
        %1875 = vmatpush1.msra.mxu0 0.0
        %1876 = vmatprep.subr.mxu0 0.0
        %1877 = vmatpush1.msra.mxu0 0.0
        %1878 = vmatprep.subr.mxu0 0.0
        %1879 = vmatpush1.msra.mxu0 0.0
        %1880 = vmatprep.subr.mxu0 0.0
        %1881 = vmatpush1.msra.mxu0 0.0
        %1882 = vmatprep.subr.mxu0 0.0
        %1883 = vmatpush1.msra.mxu0 0.0
        %1884 = vmatprep.subr.mxu0 0.0
        %1885 = vmatpush1.msra.mxu0 0.0
        %1886 = vmatprep.subr.mxu0 0.0
        %1887 = vmatpush1.msra.mxu0 0.0
        %1888 = vmatprep.subr.mxu0 0.0
        %1889 = vmatpush1.msra.mxu0 0.0
        %1890 = vmatprep.subr.mxu0 0.0
        %1891 = vmatpush1.msra.mxu0 0.0
        %1892 = vmatprep.subr.mxu0 0.0
        %1893 = vmatpush1.msra.mxu0 0.0
        %1894 = vmatprep.subr.mxu0 0.0
        %1895 = vmatpush1.msra.mxu0 0.0
        %1896 = vmatprep.subr.mxu0 0.0
        %1897 = vmatpush1.msra.mxu0 0.0
        %1898 = vmatprep.subr.mxu0 0.0
        %1899 = vmatpush1.msra.mxu0 0.0
        %1900 = vmatprep.subr.mxu0 0.0
        %1901 = vmatpush1.msra.mxu0 0.0
        %1902 = vmatprep.subr.mxu0 0.0
        %1903 = vmatpush1.msra.mxu0 0.0
        %1904 = vmatprep.subr.mxu0 0.0
        %1905 = vmatpush1.msra.mxu0 0.0
        %1906 = vmatprep.subr.mxu0 0.0
        %1907 = vmatpush1.msra.mxu0 0.0
        %1908 = vmatprep.subr.mxu0 0.0
        %1909 = vmatpush1.msra.mxu0 0.0
        %1910 = vmatprep.subr.mxu0 0.0
        %1911 = vmatpush1.msra.mxu0 0.0
        %1912 = vmatprep.subr.mxu0 0.0
        %1913 = vmatpush1.msra.mxu0 0.0
        %1914 = vmatprep.mubr.f32.mxu0 0.0
        %1915 = vmatmul.mubr.f32.gmra.mrb[0].mxu0 %v1846
        %v1916 = vpop.f32.mrb[0].mxu0
        %v1917 = vadd.f32 0.0, %v1916
        %v1918 = vpop.f32.mrb[0].mxu0
        %v1919 = vadd.f32 0.0, %v1918
        %1920 = vmatprep.mubr.f32.mxu0 0.0
        %1921 = vmatmul.mubr.f32.gmra.mrb[0].mxu0 %v1848
        %v1922 = vpop.f32.mrb[0].mxu0
        %v1923 = vadd.f32 0.0, %v1922
        %v1924 = vpop.f32.mrb[0].mxu0
        %v1925 = vadd.f32 0.0, %v1924
        %1926 = vdwg.mxu0
        %1927 = vmatprep.subr.mxu0 %v1771
        %1928 = vmatpush1.msra.mxu0 %v1770
        %1929 = vmatprep.subr.mxu0 %v1789
        %1930 = vmatpush1.msra.mxu0 %v1788
        %1931 = vmatprep.subr.mxu0 %v1807
        %1932 = vmatpush1.msra.mxu0 %v1806
        %1933 = vmatprep.subr.mxu0 %v1825
        %1934 = vmatpush1.msra.mxu0 %v1824
        %1935 = vmatprep.subr.mxu0 0.0
        %1936 = vmatpush1.msra.mxu0 0.0
        %1937 = vmatprep.subr.mxu0 0.0
        %1938 = vmatpush1.msra.mxu0 0.0
        %1939 = vmatprep.subr.mxu0 0.0
        %1940 = vmatpush1.msra.mxu0 0.0
        %1941 = vmatprep.subr.mxu0 0.0
        %1942 = vmatpush1.msra.mxu0 0.0
        %1943 = vmatprep.subr.mxu0 0.0
        %1944 = vmatpush1.msra.mxu0 0.0
        %1945 = vmatprep.subr.mxu0 0.0
        %1946 = vmatpush1.msra.mxu0 0.0
        %1947 = vmatprep.subr.mxu0 0.0
        %1948 = vmatpush1.msra.mxu0 0.0
        %1949 = vmatprep.subr.mxu0 0.0
        %1950 = vmatpush1.msra.mxu0 0.0
        %1951 = vmatprep.subr.mxu0 0.0
        %1952 = vmatpush1.msra.mxu0 0.0
        %1953 = vmatprep.subr.mxu0 0.0
        %1954 = vmatpush1.msra.mxu0 0.0
        %1955 = vmatprep.subr.mxu0 0.0
        %1956 = vmatpush1.msra.mxu0 0.0
        %1957 = vmatprep.subr.mxu0 0.0
        %1958 = vmatpush1.msra.mxu0 0.0
        %1959 = vmatprep.subr.mxu0 0.0
        %1960 = vmatpush1.msra.mxu0 0.0
        %1961 = vmatprep.subr.mxu0 0.0
        %1962 = vmatpush1.msra.mxu0 0.0
        %1963 = vmatprep.subr.mxu0 0.0
        %1964 = vmatpush1.msra.mxu0 0.0
        %1965 = vmatprep.subr.mxu0 0.0
        %1966 = vmatpush1.msra.mxu0 0.0
        %1967 = vmatprep.subr.mxu0 0.0
        %1968 = vmatpush1.msra.mxu0 0.0
        %1969 = vmatprep.subr.mxu0 0.0
        %1970 = vmatpush1.msra.mxu0 0.0
        %1971 = vmatprep.subr.mxu0 0.0
        %1972 = vmatpush1.msra.mxu0 0.0
        %1973 = vmatprep.subr.mxu0 0.0
        %1974 = vmatpush1.msra.mxu0 0.0
        %1975 = vmatprep.subr.mxu0 0.0
        %1976 = vmatpush1.msra.mxu0 0.0
        %1977 = vmatprep.subr.mxu0 0.0
        %1978 = vmatpush1.msra.mxu0 0.0
        %1979 = vmatprep.subr.mxu0 0.0
        %1980 = vmatpush1.msra.mxu0 0.0
        %1981 = vmatprep.subr.mxu0 0.0
        %1982 = vmatpush1.msra.mxu0 0.0
        %1983 = vmatprep.subr.mxu0 0.0
        %1984 = vmatpush1.msra.mxu0 0.0
        %1985 = vmatprep.subr.mxu0 0.0
        %1986 = vmatpush1.msra.mxu0 0.0
        %1987 = vmatprep.subr.mxu0 0.0
        %1988 = vmatpush1.msra.mxu0 0.0
        %1989 = vmatprep.subr.mxu0 0.0
        %1990 = vmatpush1.msra.mxu0 0.0
        %1991 = vmatprep.mubr.f32.mxu0 0.0
        %1992 = vmatmul.mubr.f32.gmra.mrb[0].mxu0 %v1846
        %v1993 = vpop.f32.mrb[0].mxu0
        %v1994 = vadd.f32 0.0, %v1993
        %v1995 = vpop.f32.mrb[0].mxu0
        %v1996 = vadd.f32 0.0, %v1995
        %1997 = vmatprep.mubr.f32.mxu0 0.0
        %1998 = vmatmul.mubr.f32.gmra.mrb[0].mxu0 %v1848
        %v1999 = vpop.f32.mrb[0].mxu0
        %v2000 = vadd.f32 0.0, %v1999
        %v2001 = vpop.f32.mrb[0].mxu0
        %v2002 = vadd.f32 0.0, %v2001
        %2003 = vdwg.mxu0
        %2004 = vmatprep.subr.mxu0 %v1773
        %2005 = vmatpush1.msra.mxu0 %v1772
        %2006 = vmatprep.subr.mxu0 %v1791
        %2007 = vmatpush1.msra.mxu0 %v1790
        %2008 = vmatprep.subr.mxu0 %v1809
        %2009 = vmatpush1.msra.mxu0 %v1808
        %2010 = vmatprep.subr.mxu0 %v1827
        %2011 = vmatpush1.msra.mxu0 %v1826
        %2012 = vmatprep.subr.mxu0 0.0
        %2013 = vmatpush1.msra.mxu0 0.0
        %2014 = vmatprep.subr.mxu0 0.0
        %2015 = vmatpush1.msra.mxu0 0.0
        %2016 = vmatprep.subr.mxu0 0.0
        %2017 = vmatpush1.msra.mxu0 0.0
        %2018 = vmatprep.subr.mxu0 0.0
        %2019 = vmatpush1.msra.mxu0 0.0
        %2020 = vmatprep.subr.mxu0 0.0
        %2021 = vmatpush1.msra.mxu0 0.0
        %2022 = vmatprep.subr.mxu0 0.0
        %2023 = vmatpush1.msra.mxu0 0.0
        %2024 = vmatprep.subr.mxu0 0.0
        %2025 = vmatpush1.msra.mxu0 0.0
        %2026 = vmatprep.subr.mxu0 0.0
        %2027 = vmatpush1.msra.mxu0 0.0
        %2028 = vmatprep.subr.mxu0 0.0
        %2029 = vmatpush1.msra.mxu0 0.0
        %2030 = vmatprep.subr.mxu0 0.0
        %2031 = vmatpush1.msra.mxu0 0.0
        %2032 = vmatprep.subr.mxu0 0.0
        %2033 = vmatpush1.msra.mxu0 0.0
        %2034 = vmatprep.subr.mxu0 0.0
        %2035 = vmatpush1.msra.mxu0 0.0
        %2036 = vmatprep.subr.mxu0 0.0
        %2037 = vmatpush1.msra.mxu0 0.0
        %2038 = vmatprep.subr.mxu0 0.0
        %2039 = vmatpush1.msra.mxu0 0.0
        %2040 = vmatprep.subr.mxu0 0.0
        %2041 = vmatpush1.msra.mxu0 0.0
        %2042 = vmatprep.subr.mxu0 0.0
        %2043 = vmatpush1.msra.mxu0 0.0
        %2044 = vmatprep.subr.mxu0 0.0
        %2045 = vmatpush1.msra.mxu0 0.0
        %2046 = vmatprep.subr.mxu0 0.0
        %2047 = vmatpush1.msra.mxu0 0.0
        %2048 = vmatprep.subr.mxu0 0.0
        %2049 = vmatpush1.msra.mxu0 0.0
        %2050 = vmatprep.subr.mxu0 0.0
        %2051 = vmatpush1.msra.mxu0 0.0
        %2052 = vmatprep.subr.mxu0 0.0
        %2053 = vmatpush1.msra.mxu0 0.0
        %2054 = vmatprep.subr.mxu0 0.0
        %2055 = vmatpush1.msra.mxu0 0.0
        %2056 = vmatprep.subr.mxu0 0.0
        %2057 = vmatpush1.msra.mxu0 0.0
        %2058 = vmatprep.subr.mxu0 0.0
        %2059 = vmatpush1.msra.mxu0 0.0
        %2060 = vmatprep.subr.mxu0 0.0
        %2061 = vmatpush1.msra.mxu0 0.0
        %2062 = vmatprep.subr.mxu0 0.0
        %2063 = vmatpush1.msra.mxu0 0.0
        %2064 = vmatprep.subr.mxu0 0.0
        %2065 = vmatpush1.msra.mxu0 0.0
        %2066 = vmatprep.subr.mxu0 0.0
        %2067 = vmatpush1.msra.mxu0 0.0
        %2068 = vmatprep.mubr.f32.mxu0 0.0
        %2069 = vmatmul.mubr.f32.gmra.mrb[0].mxu0 %v1846
        %v2070 = vpop.f32.mrb[0].mxu0
        %v2071 = vadd.f32 0.0, %v2070
        %v2072 = vpop.f32.mrb[0].mxu0
        %v2073 = vadd.f32 0.0, %v2072
        %2074 = vmatprep.mubr.f32.mxu0 0.0
        %2075 = vmatmul.mubr.f32.gmra.mrb[0].mxu0 %v1848
        %v2076 = vpop.f32.mrb[0].mxu0
        %v2077 = vadd.f32 0.0, %v2076
        %v2078 = vpop.f32.mrb[0].mxu0
        %v2079 = vadd.f32 0.0, %v2078
        %2080 = vdwg.mxu0
        %2081 = vmatprep.subr.mxu0 %v1775
        %2082 = vmatpush1.msra.mxu0 %v1774
        %2083 = vmatprep.subr.mxu0 %v1793
        %2084 = vmatpush1.msra.mxu0 %v1792
        %2085 = vmatprep.subr.mxu0 %v1811
        %2086 = vmatpush1.msra.mxu0 %v1810
        %2087 = vmatprep.subr.mxu0 %v1829
        %2088 = vmatpush1.msra.mxu0 %v1828
        %2089 = vmatprep.subr.mxu0 0.0
        %2090 = vmatpush1.msra.mxu0 0.0
        %2091 = vmatprep.subr.mxu0 0.0
        %2092 = vmatpush1.msra.mxu0 0.0
        %2093 = vmatprep.subr.mxu0 0.0
        %2094 = vmatpush1.msra.mxu0 0.0
        %2095 = vmatprep.subr.mxu0 0.0
        %2096 = vmatpush1.msra.mxu0 0.0
        %2097 = vmatprep.subr.mxu0 0.0
        %2098 = vmatpush1.msra.mxu0 0.0
        %2099 = vmatprep.subr.mxu0 0.0
        %2100 = vmatpush1.msra.mxu0 0.0
        %2101 = vmatprep.subr.mxu0 0.0
        %2102 = vmatpush1.msra.mxu0 0.0
        %2103 = vmatprep.subr.mxu0 0.0
        %2104 = vmatpush1.msra.mxu0 0.0
        %2105 = vmatprep.subr.mxu0 0.0
        %2106 = vmatpush1.msra.mxu0 0.0
        %2107 = vmatprep.subr.mxu0 0.0
        %2108 = vmatpush1.msra.mxu0 0.0
        %2109 = vmatprep.subr.mxu0 0.0
        %2110 = vmatpush1.msra.mxu0 0.0
        %2111 = vmatprep.subr.mxu0 0.0
        %2112 = vmatpush1.msra.mxu0 0.0
        %2113 = vmatprep.subr.mxu0 0.0
        %2114 = vmatpush1.msra.mxu0 0.0
        %2115 = vmatprep.subr.mxu0 0.0
        %2116 = vmatpush1.msra.mxu0 0.0
        %2117 = vmatprep.subr.mxu0 0.0
        %2118 = vmatpush1.msra.mxu0 0.0
        %2119 = vmatprep.subr.mxu0 0.0
        %2120 = vmatpush1.msra.mxu0 0.0
        %2121 = vmatprep.subr.mxu0 0.0
        %2122 = vmatpush1.msra.mxu0 0.0
        %2123 = vmatprep.subr.mxu0 0.0
        %2124 = vmatpush1.msra.mxu0 0.0
        %2125 = vmatprep.subr.mxu0 0.0
        %2126 = vmatpush1.msra.mxu0 0.0
        %2127 = vmatprep.subr.mxu0 0.0
        %2128 = vmatpush1.msra.mxu0 0.0
        %2129 = vmatprep.subr.mxu0 0.0
        %2130 = vmatpush1.msra.mxu0 0.0
        %2131 = vmatprep.subr.mxu0 0.0
        %2132 = vmatpush1.msra.mxu0 0.0
        %2133 = vmatprep.subr.mxu0 0.0
        %2134 = vmatpush1.msra.mxu0 0.0
        %2135 = vmatprep.subr.mxu0 0.0
        %2136 = vmatpush1.msra.mxu0 0.0
        %2137 = vmatprep.subr.mxu0 0.0
        %2138 = vmatpush1.msra.mxu0 0.0
        %2139 = vmatprep.subr.mxu0 0.0
        %2140 = vmatpush1.msra.mxu0 0.0
        %2141 = vmatprep.subr.mxu0 0.0
        %2142 = vmatpush1.msra.mxu0 0.0
        %2143 = vmatprep.subr.mxu0 0.0
        %2144 = vmatpush1.msra.mxu0 0.0
        %2145 = vmatprep.mubr.f32.mxu0 0.0
        %2146 = vmatmul.mubr.f32.gmra.mrb[0].mxu0 %v1846
        %v2147 = vpop.f32.mrb[0].mxu0
        %v2148 = vadd.f32 0.0, %v2147
        %v2149 = vpop.f32.mrb[0].mxu0
        %v2150 = vadd.f32 0.0, %v2149
        %2151 = vmatprep.mubr.f32.mxu0 0.0
        %2152 = vmatmul.mubr.f32.gmra.mrb[0].mxu0 %v1848
        %v2153 = vpop.f32.mrb[0].mxu0
        %v2154 = vadd.f32 0.0, %v2153
        %v2155 = vpop.f32.mrb[0].mxu0
        %v2156 = vadd.f32 0.0, %v2155
        %2157 = vdwg.mxu0
        %2158 = vmatprep.subr.mxu0 %v1777
        %2159 = vmatpush1.msra.mxu0 %v1776
        %2160 = vmatprep.subr.mxu0 %v1795
        %2161 = vmatpush1.msra.mxu0 %v1794
        %2162 = vmatprep.subr.mxu0 %v1813
        %2163 = vmatpush1.msra.mxu0 %v1812
        %2164 = vmatprep.subr.mxu0 %v1831
        %2165 = vmatpush1.msra.mxu0 %v1830
        %2166 = vmatprep.subr.mxu0 0.0
        %2167 = vmatpush1.msra.mxu0 0.0
        %2168 = vmatprep.subr.mxu0 0.0
        %2169 = vmatpush1.msra.mxu0 0.0
        %2170 = vmatprep.subr.mxu0 0.0
        %2171 = vmatpush1.msra.mxu0 0.0
        %2172 = vmatprep.subr.mxu0 0.0
        %2173 = vmatpush1.msra.mxu0 0.0
        %2174 = vmatprep.subr.mxu0 0.0
        %2175 = vmatpush1.msra.mxu0 0.0
        %2176 = vmatprep.subr.mxu0 0.0
        %2177 = vmatpush1.msra.mxu0 0.0
        %2178 = vmatprep.subr.mxu0 0.0
        %2179 = vmatpush1.msra.mxu0 0.0
        %2180 = vmatprep.subr.mxu0 0.0
        %2181 = vmatpush1.msra.mxu0 0.0
        %2182 = vmatprep.subr.mxu0 0.0
        %2183 = vmatpush1.msra.mxu0 0.0
        %2184 = vmatprep.subr.mxu0 0.0
        %2185 = vmatpush1.msra.mxu0 0.0
        %2186 = vmatprep.subr.mxu0 0.0
        %2187 = vmatpush1.msra.mxu0 0.0
        %2188 = vmatprep.subr.mxu0 0.0
        %2189 = vmatpush1.msra.mxu0 0.0
        %2190 = vmatprep.subr.mxu0 0.0
        %2191 = vmatpush1.msra.mxu0 0.0
        %2192 = vmatprep.subr.mxu0 0.0
        %2193 = vmatpush1.msra.mxu0 0.0
        %2194 = vmatprep.subr.mxu0 0.0
        %2195 = vmatpush1.msra.mxu0 0.0
        %2196 = vmatprep.subr.mxu0 0.0
        %2197 = vmatpush1.msra.mxu0 0.0
        %2198 = vmatprep.subr.mxu0 0.0
        %2199 = vmatpush1.msra.mxu0 0.0
        %2200 = vmatprep.subr.mxu0 0.0
        %2201 = vmatpush1.msra.mxu0 0.0
        %2202 = vmatprep.subr.mxu0 0.0
        %2203 = vmatpush1.msra.mxu0 0.0
        %2204 = vmatprep.subr.mxu0 0.0
        %2205 = vmatpush1.msra.mxu0 0.0
        %2206 = vmatprep.subr.mxu0 0.0
        %2207 = vmatpush1.msra.mxu0 0.0
        %2208 = vmatprep.subr.mxu0 0.0
        %2209 = vmatpush1.msra.mxu0 0.0
        %2210 = vmatprep.subr.mxu0 0.0
        %2211 = vmatpush1.msra.mxu0 0.0
        %2212 = vmatprep.subr.mxu0 0.0
        %2213 = vmatpush1.msra.mxu0 0.0
        %2214 = vmatprep.subr.mxu0 0.0
        %2215 = vmatpush1.msra.mxu0 0.0
        %2216 = vmatprep.subr.mxu0 0.0
        %2217 = vmatpush1.msra.mxu0 0.0
        %2218 = vmatprep.subr.mxu0 0.0
        %2219 = vmatpush1.msra.mxu0 0.0
        %2220 = vmatprep.subr.mxu0 0.0
        %2221 = vmatpush1.msra.mxu0 0.0
        %2222 = vmatprep.mubr.f32.mxu0 0.0
        %2223 = vmatmul.mubr.f32.gmra.mrb[0].mxu0 %v1846
        %v2224 = vpop.f32.mrb[0].mxu0
        %v2225 = vadd.f32 0.0, %v2224
        %v2226 = vpop.f32.mrb[0].mxu0
        %v2227 = vadd.f32 0.0, %v2226
        %2228 = vmatprep.mubr.f32.mxu0 0.0
        %2229 = vmatmul.mubr.f32.gmra.mrb[0].mxu0 %v1848
        %v2230 = vpop.f32.mrb[0].mxu0
        %v2231 = vadd.f32 0.0, %v2230
        %v2232 = vpop.f32.mrb[0].mxu0
        %v2233 = vadd.f32 0.0, %v2232
        %2234 = vdwg.mxu0
        %2235 = vmatprep.subr.mxu0 %v1779
        %2236 = vmatpush1.msra.mxu0 %v1778
        %2237 = vmatprep.subr.mxu0 %v1797
        %2238 = vmatpush1.msra.mxu0 %v1796
        %2239 = vmatprep.subr.mxu0 %v1815
        %2240 = vmatpush1.msra.mxu0 %v1814
        %2241 = vmatprep.subr.mxu0 %v1833
        %2242 = vmatpush1.msra.mxu0 %v1832
        %2243 = vmatprep.subr.mxu0 0.0
        %2244 = vmatpush1.msra.mxu0 0.0
        %2245 = vmatprep.subr.mxu0 0.0
        %2246 = vmatpush1.msra.mxu0 0.0
        %2247 = vmatprep.subr.mxu0 0.0
        %2248 = vmatpush1.msra.mxu0 0.0
        %2249 = vmatprep.subr.mxu0 0.0
        %2250 = vmatpush1.msra.mxu0 0.0
        %2251 = vmatprep.subr.mxu0 0.0
        %2252 = vmatpush1.msra.mxu0 0.0
        %2253 = vmatprep.subr.mxu0 0.0
        %2254 = vmatpush1.msra.mxu0 0.0
        %2255 = vmatprep.subr.mxu0 0.0
        %2256 = vmatpush1.msra.mxu0 0.0
        %2257 = vmatprep.subr.mxu0 0.0
        %2258 = vmatpush1.msra.mxu0 0.0
        %2259 = vmatprep.subr.mxu0 0.0
        %2260 = vmatpush1.msra.mxu0 0.0
        %2261 = vmatprep.subr.mxu0 0.0
        %2262 = vmatpush1.msra.mxu0 0.0
        %2263 = vmatprep.subr.mxu0 0.0
        %2264 = vmatpush1.msra.mxu0 0.0
        %2265 = vmatprep.subr.mxu0 0.0
        %2266 = vmatpush1.msra.mxu0 0.0
        %2267 = vmatprep.subr.mxu0 0.0
        %2268 = vmatpush1.msra.mxu0 0.0
        %2269 = vmatprep.subr.mxu0 0.0
        %2270 = vmatpush1.msra.mxu0 0.0
        %2271 = vmatprep.subr.mxu0 0.0
        %2272 = vmatpush1.msra.mxu0 0.0
        %2273 = vmatprep.subr.mxu0 0.0
        %2274 = vmatpush1.msra.mxu0 0.0
        %2275 = vmatprep.subr.mxu0 0.0
        %2276 = vmatpush1.msra.mxu0 0.0
        %2277 = vmatprep.subr.mxu0 0.0
        %2278 = vmatpush1.msra.mxu0 0.0
        %2279 = vmatprep.subr.mxu0 0.0
        %2280 = vmatpush1.msra.mxu0 0.0
        %2281 = vmatprep.subr.mxu0 0.0
        %2282 = vmatpush1.msra.mxu0 0.0
        %2283 = vmatprep.subr.mxu0 0.0
        %2284 = vmatpush1.msra.mxu0 0.0
        %2285 = vmatprep.subr.mxu0 0.0
        %2286 = vmatpush1.msra.mxu0 0.0
        %2287 = vmatprep.subr.mxu0 0.0
        %2288 = vmatpush1.msra.mxu0 0.0
        %2289 = vmatprep.subr.mxu0 0.0
        %2290 = vmatpush1.msra.mxu0 0.0
        %2291 = vmatprep.subr.mxu0 0.0
        %2292 = vmatpush1.msra.mxu0 0.0
        %2293 = vmatprep.subr.mxu0 0.0
        %2294 = vmatpush1.msra.mxu0 0.0
        %2295 = vmatprep.subr.mxu0 0.0
        %2296 = vmatpush1.msra.mxu0 0.0
        %2297 = vmatprep.subr.mxu0 0.0
        %2298 = vmatpush1.msra.mxu0 0.0
        %2299 = vmatprep.mubr.f32.mxu0 0.0
        %2300 = vmatmul.mubr.f32.gmra.mrb[0].mxu0 %v1846
        %v2301 = vpop.f32.mrb[0].mxu0
        %v2302 = vadd.f32 0.0, %v2301
        %v2303 = vpop.f32.mrb[0].mxu0
        %v2304 = vadd.f32 0.0, %v2303
        %2305 = vmatprep.mubr.f32.mxu0 0.0
        %2306 = vmatmul.mubr.f32.gmra.mrb[0].mxu0 %v1848
        %v2307 = vpop.f32.mrb[0].mxu0
        %v2308 = vadd.f32 0.0, %v2307
        %v2309 = vpop.f32.mrb[0].mxu0
        %v2310 = vadd.f32 0.0, %v2309
        %2311 = vdwg.mxu0
        %2312 = vmatprep.subr.mxu0 %v1781
        %2313 = vmatpush1.msra.mxu0 %v1780
        %2314 = vmatprep.subr.mxu0 %v1799
        %2315 = vmatpush1.msra.mxu0 %v1798
        %2316 = vmatprep.subr.mxu0 %v1817
        %2317 = vmatpush1.msra.mxu0 %v1816
        %2318 = vmatprep.subr.mxu0 %v1835
        %2319 = vmatpush1.msra.mxu0 %v1834
        %2320 = vmatprep.subr.mxu0 0.0
        %2321 = vmatpush1.msra.mxu0 0.0
        %2322 = vmatprep.subr.mxu0 0.0
        %2323 = vmatpush1.msra.mxu0 0.0
        %2324 = vmatprep.subr.mxu0 0.0
        %2325 = vmatpush1.msra.mxu0 0.0
        %2326 = vmatprep.subr.mxu0 0.0
        %2327 = vmatpush1.msra.mxu0 0.0
        %2328 = vmatprep.subr.mxu0 0.0
        %2329 = vmatpush1.msra.mxu0 0.0
        %2330 = vmatprep.subr.mxu0 0.0
        %2331 = vmatpush1.msra.mxu0 0.0
        %2332 = vmatprep.subr.mxu0 0.0
        %2333 = vmatpush1.msra.mxu0 0.0
        %2334 = vmatprep.subr.mxu0 0.0
        %2335 = vmatpush1.msra.mxu0 0.0
        %2336 = vmatprep.subr.mxu0 0.0
        %2337 = vmatpush1.msra.mxu0 0.0
        %2338 = vmatprep.subr.mxu0 0.0
        %2339 = vmatpush1.msra.mxu0 0.0
        %2340 = vmatprep.subr.mxu0 0.0
        %2341 = vmatpush1.msra.mxu0 0.0
        %2342 = vmatprep.subr.mxu0 0.0
        %2343 = vmatpush1.msra.mxu0 0.0
        %2344 = vmatprep.subr.mxu0 0.0
        %2345 = vmatpush1.msra.mxu0 0.0
        %2346 = vmatprep.subr.mxu0 0.0
        %2347 = vmatpush1.msra.mxu0 0.0
        %2348 = vmatprep.subr.mxu0 0.0
        %2349 = vmatpush1.msra.mxu0 0.0
        %2350 = vmatprep.subr.mxu0 0.0
        %2351 = vmatpush1.msra.mxu0 0.0
        %2352 = vmatprep.subr.mxu0 0.0
        %2353 = vmatpush1.msra.mxu0 0.0
        %2354 = vmatprep.subr.mxu0 0.0
        %2355 = vmatpush1.msra.mxu0 0.0
        %2356 = vmatprep.subr.mxu0 0.0
        %2357 = vmatpush1.msra.mxu0 0.0
        %2358 = vmatprep.subr.mxu0 0.0
        %2359 = vmatpush1.msra.mxu0 0.0
        %2360 = vmatprep.subr.mxu0 0.0
        %2361 = vmatpush1.msra.mxu0 0.0
        %2362 = vmatprep.subr.mxu0 0.0
        %2363 = vmatpush1.msra.mxu0 0.0
        %2364 = vmatprep.subr.mxu0 0.0
        %2365 = vmatpush1.msra.mxu0 0.0
        %2366 = vmatprep.subr.mxu0 0.0
        %2367 = vmatpush1.msra.mxu0 0.0
        %2368 = vmatprep.subr.mxu0 0.0
        %2369 = vmatpush1.msra.mxu0 0.0
        %2370 = vmatprep.subr.mxu0 0.0
        %2371 = vmatpush1.msra.mxu0 0.0
        %2372 = vmatprep.subr.mxu0 0.0
        %2373 = vmatpush1.msra.mxu0 0.0
        %2374 = vmatprep.subr.mxu0 0.0
        %2375 = vmatpush1.msra.mxu0 0.0
        %2376 = vmatprep.mubr.f32.mxu0 0.0
        %2377 = vmatmul.mubr.f32.gmra.mrb[0].mxu0 %v1846
        %v2378 = vpop.f32.mrb[0].mxu0
        %v2379 = vadd.f32 0.0, %v2378
        %v2380 = vpop.f32.mrb[0].mxu0
        %v2381 = vadd.f32 0.0, %v2380
        %2382 = vmatprep.mubr.f32.mxu0 0.0
        %2383 = vmatmul.mubr.f32.gmra.mrb[0].mxu0 %v1848
        %v2384 = vpop.f32.mrb[0].mxu0
        %v2385 = vadd.f32 0.0, %v2384
        %v2386 = vpop.f32.mrb[0].mxu0
        %v2387 = vadd.f32 0.0, %v2386
        %2388 = vdwg.mxu0
        %2389 = vmatprep.subr.mxu0 %v1783
        %2390 = vmatpush1.msra.mxu0 %v1782
        %2391 = vmatprep.subr.mxu0 %v1801
        %2392 = vmatpush1.msra.mxu0 %v1800
        %2393 = vmatprep.subr.mxu0 %v1819
        %2394 = vmatpush1.msra.mxu0 %v1818
        %2395 = vmatprep.subr.mxu0 %v1837
        %2396 = vmatpush1.msra.mxu0 %v1836
        %2397 = vmatprep.subr.mxu0 0.0
        %2398 = vmatpush1.msra.mxu0 0.0
        %2399 = vmatprep.subr.mxu0 0.0
        %2400 = vmatpush1.msra.mxu0 0.0
        %2401 = vmatprep.subr.mxu0 0.0
        %2402 = vmatpush1.msra.mxu0 0.0
        %2403 = vmatprep.subr.mxu0 0.0
        %2404 = vmatpush1.msra.mxu0 0.0
        %2405 = vmatprep.subr.mxu0 0.0
        %2406 = vmatpush1.msra.mxu0 0.0
        %2407 = vmatprep.subr.mxu0 0.0
        %2408 = vmatpush1.msra.mxu0 0.0
        %2409 = vmatprep.subr.mxu0 0.0
        %2410 = vmatpush1.msra.mxu0 0.0
        %2411 = vmatprep.subr.mxu0 0.0
        %2412 = vmatpush1.msra.mxu0 0.0
        %2413 = vmatprep.subr.mxu0 0.0
        %2414 = vmatpush1.msra.mxu0 0.0
        %2415 = vmatprep.subr.mxu0 0.0
        %2416 = vmatpush1.msra.mxu0 0.0
        %2417 = vmatprep.subr.mxu0 0.0
        %2418 = vmatpush1.msra.mxu0 0.0
        %2419 = vmatprep.subr.mxu0 0.0
        %2420 = vmatpush1.msra.mxu0 0.0
        %2421 = vmatprep.subr.mxu0 0.0
        %2422 = vmatpush1.msra.mxu0 0.0
        %2423 = vmatprep.subr.mxu0 0.0
        %2424 = vmatpush1.msra.mxu0 0.0
        %2425 = vmatprep.subr.mxu0 0.0
        %2426 = vmatpush1.msra.mxu0 0.0
        %2427 = vmatprep.subr.mxu0 0.0
        %2428 = vmatpush1.msra.mxu0 0.0
        %2429 = vmatprep.subr.mxu0 0.0
        %2430 = vmatpush1.msra.mxu0 0.0
        %2431 = vmatprep.subr.mxu0 0.0
        %2432 = vmatpush1.msra.mxu0 0.0
        %2433 = vmatprep.subr.mxu0 0.0
        %2434 = vmatpush1.msra.mxu0 0.0
        %2435 = vmatprep.subr.mxu0 0.0
        %2436 = vmatpush1.msra.mxu0 0.0
        %2437 = vmatprep.subr.mxu0 0.0
        %2438 = vmatpush1.msra.mxu0 0.0
        %2439 = vmatprep.subr.mxu0 0.0
        %2440 = vmatpush1.msra.mxu0 0.0
        %2441 = vmatprep.subr.mxu0 0.0
        %2442 = vmatpush1.msra.mxu0 0.0
        %2443 = vmatprep.subr.mxu0 0.0
        %2444 = vmatpush1.msra.mxu0 0.0
        %2445 = vmatprep.subr.mxu0 0.0
        %2446 = vmatpush1.msra.mxu0 0.0
        %2447 = vmatprep.subr.mxu0 0.0
        %2448 = vmatpush1.msra.mxu0 0.0
        %2449 = vmatprep.subr.mxu0 0.0
        %2450 = vmatpush1.msra.mxu0 0.0
        %2451 = vmatprep.subr.mxu0 0.0
        %2452 = vmatpush1.msra.mxu0 0.0
        %2453 = vmatprep.mubr.f32.mxu0 0.0
        %2454 = vmatmul.mubr.f32.gmra.mrb[0].mxu0 %v1846
        %v2455 = vpop.f32.mrb[0].mxu0
        %v2456 = vadd.f32 0.0, %v2455
        %v2457 = vpop.f32.mrb[0].mxu0
        %v2458 = vadd.f32 0.0, %v2457
        %2459 = vmatprep.mubr.f32.mxu0 0.0
        %2460 = vmatmul.mubr.f32.gmra.mrb[0].mxu0 %v1848
        %v2461 = vpop.f32.mrb[0].mxu0
        %v2462 = vadd.f32 0.0, %v2461
        %v2463 = vpop.f32.mrb[0].mxu0
        %v2464 = vadd.f32 0.0, %v2463
        %2465 = vdwg.mxu0
        %2466 = vmatprep.subr.mxu0 %v1785
        %2467 = vmatpush1.msra.mxu0 %v1784
        %2468 = vmatprep.subr.mxu0 %v1803
        %2469 = vmatpush1.msra.mxu0 %v1802
        %2470 = vmatprep.subr.mxu0 %v1821
        %2471 = vmatpush1.msra.mxu0 %v1820
        %2472 = vmatprep.subr.mxu0 %v1839
        %2473 = vmatpush1.msra.mxu0 %v1838
        %2474 = vmatprep.subr.mxu0 0.0
        %2475 = vmatpush1.msra.mxu0 0.0
        %2476 = vmatprep.subr.mxu0 0.0
        %2477 = vmatpush1.msra.mxu0 0.0
        %2478 = vmatprep.subr.mxu0 0.0
        %2479 = vmatpush1.msra.mxu0 0.0
        %2480 = vmatprep.subr.mxu0 0.0
        %2481 = vmatpush1.msra.mxu0 0.0
        %2482 = vmatprep.subr.mxu0 0.0
        %2483 = vmatpush1.msra.mxu0 0.0
        %2484 = vmatprep.subr.mxu0 0.0
        %2485 = vmatpush1.msra.mxu0 0.0
        %2486 = vmatprep.subr.mxu0 0.0
        %2487 = vmatpush1.msra.mxu0 0.0
        %2488 = vmatprep.subr.mxu0 0.0
        %2489 = vmatpush1.msra.mxu0 0.0
        %2490 = vmatprep.subr.mxu0 0.0
        %2491 = vmatpush1.msra.mxu0 0.0
        %2492 = vmatprep.subr.mxu0 0.0
        %2493 = vmatpush1.msra.mxu0 0.0
        %2494 = vmatprep.subr.mxu0 0.0
        %2495 = vmatpush1.msra.mxu0 0.0
        %2496 = vmatprep.subr.mxu0 0.0
        %2497 = vmatpush1.msra.mxu0 0.0
        %2498 = vmatprep.subr.mxu0 0.0
        %2499 = vmatpush1.msra.mxu0 0.0
        %2500 = vmatprep.subr.mxu0 0.0
        %2501 = vmatpush1.msra.mxu0 0.0
        %2502 = vmatprep.subr.mxu0 0.0
        %2503 = vmatpush1.msra.mxu0 0.0
        %2504 = vmatprep.subr.mxu0 0.0
        %2505 = vmatpush1.msra.mxu0 0.0
        %2506 = vmatprep.subr.mxu0 0.0
        %2507 = vmatpush1.msra.mxu0 0.0
        %2508 = vmatprep.subr.mxu0 0.0
        %2509 = vmatpush1.msra.mxu0 0.0
        %2510 = vmatprep.subr.mxu0 0.0
        %2511 = vmatpush1.msra.mxu0 0.0
        %2512 = vmatprep.subr.mxu0 0.0
        %2513 = vmatpush1.msra.mxu0 0.0
        %2514 = vmatprep.subr.mxu0 0.0
        %2515 = vmatpush1.msra.mxu0 0.0
        %2516 = vmatprep.subr.mxu0 0.0
        %2517 = vmatpush1.msra.mxu0 0.0
        %2518 = vmatprep.subr.mxu0 0.0
        %2519 = vmatpush1.msra.mxu0 0.0
        %2520 = vmatprep.subr.mxu0 0.0
        %2521 = vmatpush1.msra.mxu0 0.0
        %2522 = vmatprep.subr.mxu0 0.0
        %2523 = vmatpush1.msra.mxu0 0.0
        %2524 = vmatprep.subr.mxu0 0.0
        %2525 = vmatpush1.msra.mxu0 0.0
        %2526 = vmatprep.subr.mxu0 0.0
        %2527 = vmatpush1.msra.mxu0 0.0
        %2528 = vmatprep.subr.mxu0 0.0
        %2529 = vmatpush1.msra.mxu0 0.0
        %2530 = vmatprep.mubr.f32.mxu0 0.0
        %2531 = vmatmul.mubr.f32.gmra.mrb[0].mxu0 %v1846
        %v2532 = vpop.f32.mrb[0].mxu0
        %v2533 = vadd.f32 0.0, %v2532
        %v2534 = vpop.f32.mrb[0].mxu0
        %v2535 = vadd.f32 0.0, %v2534
        %2536 = vmatprep.mubr.f32.mxu0 0.0
        %2537 = vmatmul.mubr.f32.gmra.mrb[0].mxu0 %v1848
        %v2538 = vpop.f32.mrb[0].mxu0
        %v2539 = vadd.f32 0.0, %v2538
        %v2540 = vpop.f32.mrb[0].mxu0
        %v2541 = vadd.f32 0.0, %v2540
        %2542 = vdwg.mxu0
        %v2543 = vadd.f32 %v1141, %v1917
        %v2544 = vadd.f32 %v1143, %v1919
        %v2545 = vadd.f32 %v1218, %v1994
        %v2546 = vadd.f32 %v1220, %v1996
        %v2547 = vadd.f32 %v1295, %v2071
        %v2548 = vadd.f32 %v1297, %v2073
        %v2549 = vadd.f32 %v1372, %v2148
        %v2550 = vadd.f32 %v1374, %v2150
        %v2551 = vadd.f32 %v1449, %v2225
        %v2552 = vadd.f32 %v1451, %v2227
        %v2553 = vadd.f32 %v1526, %v2302
        %v2554 = vadd.f32 %v1528, %v2304
        %v2555 = vadd.f32 %v1603, %v2379
        %v2556 = vadd.f32 %v1605, %v2381
        %v2557 = vadd.f32 %v1680, %v2456
        %v2558 = vadd.f32 %v1682, %v2458
        %v2559 = vadd.f32 %v1757, %v2533
        %v2560 = vadd.f32 %v1759, %v2535
        %v2561 = vadd.f32 %v1147, %v1923
        %v2562 = vadd.f32 %v1149, %v1925
        %v2563 = vadd.f32 %v1224, %v2000
        %v2564 = vadd.f32 %v1226, %v2002
        %v2565 = vadd.f32 %v1301, %v2077
        %v2566 = vadd.f32 %v1303, %v2079
        %v2567 = vadd.f32 %v1378, %v2154
        %v2568 = vadd.f32 %v1380, %v2156
        %v2569 = vadd.f32 %v1455, %v2231
        %v2570 = vadd.f32 %v1457, %v2233
        %v2571 = vadd.f32 %v1532, %v2308
        %v2572 = vadd.f32 %v1534, %v2310
        %v2573 = vadd.f32 %v1609, %v2385
        %v2574 = vadd.f32 %v1611, %v2387
        %v2575 = vadd.f32 %v1686, %v2462
        %v2576 = vadd.f32 %v1688, %v2464
        %v2577 = vadd.f32 %v1763, %v2539
        %v2578 = vadd.f32 %v1765, %v2541
        %s2579 = scalar_lea.vmem [#allocation2], 1728
        %v2580 = vld [vmem:[%s2579] sm:$0xff]
        %v2581 = vld [vmem:[%s2579 + $0x8] sm:$0xff]
        %v2582 = vld [vmem:[%s2579 + $0x10] sm:$0xff]
        %v2583 = vld [vmem:[%s2579 + $0x18] sm:$0xff]
        %v2584 = vld [vmem:[%s2579 + $0x20] sm:$0xff]
        %v2585 = vld [vmem:[%s2579 + $0x28] sm:$0xff]
        %v2586 = vld [vmem:[%s2579 + $0x30] sm:$0xff]
        %v2587 = vld [vmem:[%s2579 + $0x38] sm:$0xff]
        %v2588 = vld [vmem:[%s2579 + $0x40] sm:$0xff]
        %v2589 = vld [vmem:[%s2579 + $0x48] sm:$0xff]
        %v2590 = vld [vmem:[%s2579 + $0x50] sm:$0xff]
        %v2591 = vld [vmem:[%s2579 + $0x58] sm:$0xff]
        %v2592 = vld [vmem:[%s2579 + $0x60] sm:$0xff]
        %v2593 = vld [vmem:[%s2579 + $0x68] sm:$0xff]
        %v2594 = vld [vmem:[%s2579 + $0x70] sm:$0xff]
        %v2595 = vld [vmem:[%s2579 + $0x78] sm:$0xff]
        %v2596 = vld [vmem:[%s2579 + $0x80] sm:$0xff]
        %v2597 = vld [vmem:[%s2579 + $0x88] sm:$0xff]
        %v2598 = vld [vmem:[%s2579 + $0x90] sm:$0xff]
        %v2599 = vld [vmem:[%s2579 + $0x98] sm:$0xff]
        %v2600 = vld [vmem:[%s2579 + $0xa0] sm:$0xff]
        %v2601 = vld [vmem:[%s2579 + $0xa8] sm:$0xff]
        %v2602 = vld [vmem:[%s2579 + $0xb0] sm:$0xff]
        %v2603 = vld [vmem:[%s2579 + $0xb8] sm:$0xff]
        %v2604 = vld [vmem:[%s2579 + $0xc0] sm:$0xff]
        %v2605 = vld [vmem:[%s2579 + $0xc8] sm:$0xff]
        %v2606 = vld [vmem:[%s2579 + $0xd0] sm:$0xff]
        %v2607 = vld [vmem:[%s2579 + $0xd8] sm:$0xff]
        %v2608 = vld [vmem:[%s2579 + $0xe0] sm:$0xff]
        %v2609 = vld [vmem:[%s2579 + $0xe8] sm:$0xff]
        %v2610 = vld [vmem:[%s2579 + $0xf0] sm:$0xff]
        %v2611 = vld [vmem:[%s2579 + $0xf8] sm:$0xff]
        %v2612 = vld [vmem:[%s2579 + $0x100] sm:$0xff]
        %v2613 = vld [vmem:[%s2579 + $0x108] sm:$0xff]
        %v2614 = vld [vmem:[%s2579 + $0x110] sm:$0xff]
        %v2615 = vld [vmem:[%s2579 + $0x118] sm:$0xff]
        %v2616 = vld [vmem:[%s2579 + $0x120] sm:$0xff]
        %v2617 = vld [vmem:[%s2579 + $0x128] sm:$0xff]
        %v2618 = vld [vmem:[%s2579 + $0x130] sm:$0xff]
        %v2619 = vld [vmem:[%s2579 + $0x138] sm:$0xff]
        %v2620 = vld [vmem:[%s2579 + $0x140] sm:$0xff]
        %v2621 = vld [vmem:[%s2579 + $0x148] sm:$0xff]
        %v2622 = vld [vmem:[%s2579 + $0x150] sm:$0xff]
        %v2623 = vld [vmem:[%s2579 + $0x158] sm:$0xff]
        %v2624 = vld [vmem:[%s2579 + $0x160] sm:$0xff]
        %v2625 = vld [vmem:[%s2579 + $0x168] sm:$0xff]
        %v2626 = vld [vmem:[%s2579 + $0x170] sm:$0xff]
        %v2627 = vld [vmem:[%s2579 + $0x178] sm:$0xff]
        %v2628 = vld [vmem:[%s2579 + $0x180] sm:$0xff]
        %v2629 = vld [vmem:[%s2579 + $0x188] sm:$0xff]
        %v2630 = vld [vmem:[%s2579 + $0x190] sm:$0xff]
        %v2631 = vld [vmem:[%s2579 + $0x198] sm:$0xff]
        %v2632 = vld [vmem:[%s2579 + $0x1a0] sm:$0xff]
        %v2633 = vld [vmem:[%s2579 + $0x1a8] sm:$0xff]
        %v2634 = vld [vmem:[%s2579 + $0x1b0] sm:$0xff]
        %v2635 = vld [vmem:[%s2579 + $0x1b8] sm:$0xff]
        %v2636 = vld [vmem:[%s2579 + $0x1c0] sm:$0xff]
        %v2637 = vld [vmem:[%s2579 + $0x1c8] sm:$0xff]
        %v2638 = vld [vmem:[%s2579 + $0x1d0] sm:$0xff]
        %v2639 = vld [vmem:[%s2579 + $0x1d8] sm:$0xff]
        %v2640 = vld [vmem:[%s2579 + $0x1e0] sm:$0xff]
        %v2641 = vld [vmem:[%s2579 + $0x1e8] sm:$0xff]
        %v2642 = vld [vmem:[%s2579 + $0x1f0] sm:$0xff]
        %v2643 = vld [vmem:[%s2579 + $0x1f8] sm:$0xff]
        %v2644 = vld [vmem:[%s2579 + $0x200] sm:$0xff]
        %v2645 = vld [vmem:[%s2579 + $0x208] sm:$0xff]
        %v2646 = vld [vmem:[%s2579 + $0x210] sm:$0xff]
        %v2647 = vld [vmem:[%s2579 + $0x218] sm:$0xff]
        %v2648 = vld [vmem:[%s2579 + $0x220] sm:$0xff]
        %v2649 = vld [vmem:[%s2579 + $0x228] sm:$0xff]
        %v2650 = vld [vmem:[%s2579 + $0x230] sm:$0xff]
        %v2651 = vld [vmem:[%s2579 + $0x238] sm:$0xff]
        %vm2652 = vcmask 1044480
        %v2653 = vrot.slane %v214, 3
        %v2654 = vrot.slane %v215, 3
        %v2655 = vsel %vm2652, %v2653, %v2654
        %v2656 = vrot.slane %v216, 3
        %v2657 = vsel %vm2652, %v2654, %v2656
        %v2658 = vsel %vm372, %v2655, 0
        %v2660 = vsel %vm372, %v2657, 0
        %2662 = vmatprep.subr.mxu0 %v2581
        %2663 = vmatpush1.msra.mxu0 %v2580
        %2664 = vmatprep.subr.mxu0 %v2599
        %2665 = vmatpush1.msra.mxu0 %v2598
        %2666 = vmatprep.subr.mxu0 %v2617
        %2667 = vmatpush1.msra.mxu0 %v2616
        %2668 = vmatprep.subr.mxu0 %v2635
        %2669 = vmatpush1.msra.mxu0 %v2634
        %2670 = vmatprep.subr.mxu0 0.0
        %2671 = vmatpush1.msra.mxu0 0.0
        %2672 = vmatprep.subr.mxu0 0.0
        %2673 = vmatpush1.msra.mxu0 0.0
        %2674 = vmatprep.subr.mxu0 0.0
        %2675 = vmatpush1.msra.mxu0 0.0
        %2676 = vmatprep.subr.mxu0 0.0
        %2677 = vmatpush1.msra.mxu0 0.0
        %2678 = vmatprep.subr.mxu0 0.0
        %2679 = vmatpush1.msra.mxu0 0.0
        %2680 = vmatprep.subr.mxu0 0.0
        %2681 = vmatpush1.msra.mxu0 0.0
        %2682 = vmatprep.subr.mxu0 0.0
        %2683 = vmatpush1.msra.mxu0 0.0
        %2684 = vmatprep.subr.mxu0 0.0
        %2685 = vmatpush1.msra.mxu0 0.0
        %2686 = vmatprep.subr.mxu0 0.0
        %2687 = vmatpush1.msra.mxu0 0.0
        %2688 = vmatprep.subr.mxu0 0.0
        %2689 = vmatpush1.msra.mxu0 0.0
        %2690 = vmatprep.subr.mxu0 0.0
        %2691 = vmatpush1.msra.mxu0 0.0
        %2692 = vmatprep.subr.mxu0 0.0
        %2693 = vmatpush1.msra.mxu0 0.0
        %2694 = vmatprep.subr.mxu0 0.0
        %2695 = vmatpush1.msra.mxu0 0.0
        %2696 = vmatprep.subr.mxu0 0.0
        %2697 = vmatpush1.msra.mxu0 0.0
        %2698 = vmatprep.subr.mxu0 0.0
        %2699 = vmatpush1.msra.mxu0 0.0
        %2700 = vmatprep.subr.mxu0 0.0
        %2701 = vmatpush1.msra.mxu0 0.0
        %2702 = vmatprep.subr.mxu0 0.0
        %2703 = vmatpush1.msra.mxu0 0.0
        %2704 = vmatprep.subr.mxu0 0.0
        %2705 = vmatpush1.msra.mxu0 0.0
        %2706 = vmatprep.subr.mxu0 0.0
        %2707 = vmatpush1.msra.mxu0 0.0
        %2708 = vmatprep.subr.mxu0 0.0
        %2709 = vmatpush1.msra.mxu0 0.0
        %2710 = vmatprep.subr.mxu0 0.0
        %2711 = vmatpush1.msra.mxu0 0.0
        %2712 = vmatprep.subr.mxu0 0.0
        %2713 = vmatpush1.msra.mxu0 0.0
        %2714 = vmatprep.subr.mxu0 0.0
        %2715 = vmatpush1.msra.mxu0 0.0
        %2716 = vmatprep.subr.mxu0 0.0
        %2717 = vmatpush1.msra.mxu0 0.0
        %2718 = vmatprep.subr.mxu0 0.0
        %2719 = vmatpush1.msra.mxu0 0.0
        %2720 = vmatprep.subr.mxu0 0.0
        %2721 = vmatpush1.msra.mxu0 0.0
        %2722 = vmatprep.subr.mxu0 0.0
        %2723 = vmatpush1.msra.mxu0 0.0
        %2724 = vmatprep.subr.mxu0 0.0
        %2725 = vmatpush1.msra.mxu0 0.0
        %2726 = vmatprep.mubr.f32.mxu0 0.0
        %2727 = vmatmul.mubr.f32.gmra.mrb[0].mxu0 %v2658
        %v2728 = vpop.f32.mrb[0].mxu0
        %v2729 = vadd.f32 0.0, %v2728
        %v2730 = vpop.f32.mrb[0].mxu0
        %v2731 = vadd.f32 0.0, %v2730
        %2732 = vmatprep.mubr.f32.mxu0 0.0
        %2733 = vmatmul.mubr.f32.gmra.mrb[0].mxu0 %v2660
        %v2734 = vpop.f32.mrb[0].mxu0
        %v2735 = vadd.f32 0.0, %v2734
        %v2736 = vpop.f32.mrb[0].mxu0
        %v2737 = vadd.f32 0.0, %v2736
        %2738 = vdwg.mxu0
        %2739 = vmatprep.subr.mxu0 %v2583
        %2740 = vmatpush1.msra.mxu0 %v2582
        %2741 = vmatprep.subr.mxu0 %v2601
        %2742 = vmatpush1.msra.mxu0 %v2600
        %2743 = vmatprep.subr.mxu0 %v2619
        %2744 = vmatpush1.msra.mxu0 %v2618
        %2745 = vmatprep.subr.mxu0 %v2637
        %2746 = vmatpush1.msra.mxu0 %v2636
        %2747 = vmatprep.subr.mxu0 0.0
        %2748 = vmatpush1.msra.mxu0 0.0
        %2749 = vmatprep.subr.mxu0 0.0
        %2750 = vmatpush1.msra.mxu0 0.0
        %2751 = vmatprep.subr.mxu0 0.0
        %2752 = vmatpush1.msra.mxu0 0.0
        %2753 = vmatprep.subr.mxu0 0.0
        %2754 = vmatpush1.msra.mxu0 0.0
        %2755 = vmatprep.subr.mxu0 0.0
        %2756 = vmatpush1.msra.mxu0 0.0
        %2757 = vmatprep.subr.mxu0 0.0
        %2758 = vmatpush1.msra.mxu0 0.0
        %2759 = vmatprep.subr.mxu0 0.0
        %2760 = vmatpush1.msra.mxu0 0.0
        %2761 = vmatprep.subr.mxu0 0.0
        %2762 = vmatpush1.msra.mxu0 0.0
        %2763 = vmatprep.subr.mxu0 0.0
        %2764 = vmatpush1.msra.mxu0 0.0
        %2765 = vmatprep.subr.mxu0 0.0
        %2766 = vmatpush1.msra.mxu0 0.0
        %2767 = vmatprep.subr.mxu0 0.0
        %2768 = vmatpush1.msra.mxu0 0.0
        %2769 = vmatprep.subr.mxu0 0.0
        %2770 = vmatpush1.msra.mxu0 0.0
        %2771 = vmatprep.subr.mxu0 0.0
        %2772 = vmatpush1.msra.mxu0 0.0
        %2773 = vmatprep.subr.mxu0 0.0
        %2774 = vmatpush1.msra.mxu0 0.0
        %2775 = vmatprep.subr.mxu0 0.0
        %2776 = vmatpush1.msra.mxu0 0.0
        %2777 = vmatprep.subr.mxu0 0.0
        %2778 = vmatpush1.msra.mxu0 0.0
        %2779 = vmatprep.subr.mxu0 0.0
        %2780 = vmatpush1.msra.mxu0 0.0
        %2781 = vmatprep.subr.mxu0 0.0
        %2782 = vmatpush1.msra.mxu0 0.0
        %2783 = vmatprep.subr.mxu0 0.0
        %2784 = vmatpush1.msra.mxu0 0.0
        %2785 = vmatprep.subr.mxu0 0.0
        %2786 = vmatpush1.msra.mxu0 0.0
        %2787 = vmatprep.subr.mxu0 0.0
        %2788 = vmatpush1.msra.mxu0 0.0
        %2789 = vmatprep.subr.mxu0 0.0
        %2790 = vmatpush1.msra.mxu0 0.0
        %2791 = vmatprep.subr.mxu0 0.0
        %2792 = vmatpush1.msra.mxu0 0.0
        %2793 = vmatprep.subr.mxu0 0.0
        %2794 = vmatpush1.msra.mxu0 0.0
        %2795 = vmatprep.subr.mxu0 0.0
        %2796 = vmatpush1.msra.mxu0 0.0
        %2797 = vmatprep.subr.mxu0 0.0
        %2798 = vmatpush1.msra.mxu0 0.0
        %2799 = vmatprep.subr.mxu0 0.0
        %2800 = vmatpush1.msra.mxu0 0.0
        %2801 = vmatprep.subr.mxu0 0.0
        %2802 = vmatpush1.msra.mxu0 0.0
        %2803 = vmatprep.mubr.f32.mxu0 0.0
        %2804 = vmatmul.mubr.f32.gmra.mrb[0].mxu0 %v2658
        %v2805 = vpop.f32.mrb[0].mxu0
        %v2806 = vadd.f32 0.0, %v2805
        %v2807 = vpop.f32.mrb[0].mxu0
        %v2808 = vadd.f32 0.0, %v2807
        %2809 = vmatprep.mubr.f32.mxu0 0.0
        %2810 = vmatmul.mubr.f32.gmra.mrb[0].mxu0 %v2660
        %v2811 = vpop.f32.mrb[0].mxu0
        %v2812 = vadd.f32 0.0, %v2811
        %v2813 = vpop.f32.mrb[0].mxu0
        %v2814 = vadd.f32 0.0, %v2813
        %2815 = vdwg.mxu0
        %2816 = vmatprep.subr.mxu0 %v2585
        %2817 = vmatpush1.msra.mxu0 %v2584
        %2818 = vmatprep.subr.mxu0 %v2603
        %2819 = vmatpush1.msra.mxu0 %v2602
        %2820 = vmatprep.subr.mxu0 %v2621
        %2821 = vmatpush1.msra.mxu0 %v2620
        %2822 = vmatprep.subr.mxu0 %v2639
        %2823 = vmatpush1.msra.mxu0 %v2638
        %2824 = vmatprep.subr.mxu0 0.0
        %2825 = vmatpush1.msra.mxu0 0.0
        %2826 = vmatprep.subr.mxu0 0.0
        %2827 = vmatpush1.msra.mxu0 0.0
        %2828 = vmatprep.subr.mxu0 0.0
        %2829 = vmatpush1.msra.mxu0 0.0
        %2830 = vmatprep.subr.mxu0 0.0
        %2831 = vmatpush1.msra.mxu0 0.0
        %2832 = vmatprep.subr.mxu0 0.0
        %2833 = vmatpush1.msra.mxu0 0.0
        %2834 = vmatprep.subr.mxu0 0.0
        %2835 = vmatpush1.msra.mxu0 0.0
        %2836 = vmatprep.subr.mxu0 0.0
        %2837 = vmatpush1.msra.mxu0 0.0
        %2838 = vmatprep.subr.mxu0 0.0
        %2839 = vmatpush1.msra.mxu0 0.0
        %2840 = vmatprep.subr.mxu0 0.0
        %2841 = vmatpush1.msra.mxu0 0.0
        %2842 = vmatprep.subr.mxu0 0.0
        %2843 = vmatpush1.msra.mxu0 0.0
        %2844 = vmatprep.subr.mxu0 0.0
        %2845 = vmatpush1.msra.mxu0 0.0
        %2846 = vmatprep.subr.mxu0 0.0
        %2847 = vmatpush1.msra.mxu0 0.0
        %2848 = vmatprep.subr.mxu0 0.0
        %2849 = vmatpush1.msra.mxu0 0.0
        %2850 = vmatprep.subr.mxu0 0.0
        %2851 = vmatpush1.msra.mxu0 0.0
        %2852 = vmatprep.subr.mxu0 0.0
        %2853 = vmatpush1.msra.mxu0 0.0
        %2854 = vmatprep.subr.mxu0 0.0
        %2855 = vmatpush1.msra.mxu0 0.0
        %2856 = vmatprep.subr.mxu0 0.0
        %2857 = vmatpush1.msra.mxu0 0.0
        %2858 = vmatprep.subr.mxu0 0.0
        %2859 = vmatpush1.msra.mxu0 0.0
        %2860 = vmatprep.subr.mxu0 0.0
        %2861 = vmatpush1.msra.mxu0 0.0
        %2862 = vmatprep.subr.mxu0 0.0
        %2863 = vmatpush1.msra.mxu0 0.0
        %2864 = vmatprep.subr.mxu0 0.0
        %2865 = vmatpush1.msra.mxu0 0.0
        %2866 = vmatprep.subr.mxu0 0.0
        %2867 = vmatpush1.msra.mxu0 0.0
        %2868 = vmatprep.subr.mxu0 0.0
        %2869 = vmatpush1.msra.mxu0 0.0
        %2870 = vmatprep.subr.mxu0 0.0
        %2871 = vmatpush1.msra.mxu0 0.0
        %2872 = vmatprep.subr.mxu0 0.0
        %2873 = vmatpush1.msra.mxu0 0.0
        %2874 = vmatprep.subr.mxu0 0.0
        %2875 = vmatpush1.msra.mxu0 0.0
        %2876 = vmatprep.subr.mxu0 0.0
        %2877 = vmatpush1.msra.mxu0 0.0
        %2878 = vmatprep.subr.mxu0 0.0
        %2879 = vmatpush1.msra.mxu0 0.0
        %2880 = vmatprep.mubr.f32.mxu0 0.0
        %2881 = vmatmul.mubr.f32.gmra.mrb[0].mxu0 %v2658
        %v2882 = vpop.f32.mrb[0].mxu0
        %v2883 = vadd.f32 0.0, %v2882
        %v2884 = vpop.f32.mrb[0].mxu0
        %v2885 = vadd.f32 0.0, %v2884
        %2886 = vmatprep.mubr.f32.mxu0 0.0
        %2887 = vmatmul.mubr.f32.gmra.mrb[0].mxu0 %v2660
        %v2888 = vpop.f32.mrb[0].mxu0
        %v2889 = vadd.f32 0.0, %v2888
        %v2890 = vpop.f32.mrb[0].mxu0
        %v2891 = vadd.f32 0.0, %v2890
        %2892 = vdwg.mxu0
        %2893 = vmatprep.subr.mxu0 %v2587
        %2894 = vmatpush1.msra.mxu0 %v2586
        %2895 = vmatprep.subr.mxu0 %v2605
        %2896 = vmatpush1.msra.mxu0 %v2604
        %2897 = vmatprep.subr.mxu0 %v2623
        %2898 = vmatpush1.msra.mxu0 %v2622
        %2899 = vmatprep.subr.mxu0 %v2641
        %2900 = vmatpush1.msra.mxu0 %v2640
        %2901 = vmatprep.subr.mxu0 0.0
        %2902 = vmatpush1.msra.mxu0 0.0
        %2903 = vmatprep.subr.mxu0 0.0
        %2904 = vmatpush1.msra.mxu0 0.0
        %2905 = vmatprep.subr.mxu0 0.0
        %2906 = vmatpush1.msra.mxu0 0.0
        %2907 = vmatprep.subr.mxu0 0.0
        %2908 = vmatpush1.msra.mxu0 0.0
        %2909 = vmatprep.subr.mxu0 0.0
        %2910 = vmatpush1.msra.mxu0 0.0
        %2911 = vmatprep.subr.mxu0 0.0
        %2912 = vmatpush1.msra.mxu0 0.0
        %2913 = vmatprep.subr.mxu0 0.0
        %2914 = vmatpush1.msra.mxu0 0.0
        %2915 = vmatprep.subr.mxu0 0.0
        %2916 = vmatpush1.msra.mxu0 0.0
        %2917 = vmatprep.subr.mxu0 0.0
        %2918 = vmatpush1.msra.mxu0 0.0
        %2919 = vmatprep.subr.mxu0 0.0
        %2920 = vmatpush1.msra.mxu0 0.0
        %2921 = vmatprep.subr.mxu0 0.0
        %2922 = vmatpush1.msra.mxu0 0.0
        %2923 = vmatprep.subr.mxu0 0.0
        %2924 = vmatpush1.msra.mxu0 0.0
        %2925 = vmatprep.subr.mxu0 0.0
        %2926 = vmatpush1.msra.mxu0 0.0
        %2927 = vmatprep.subr.mxu0 0.0
        %2928 = vmatpush1.msra.mxu0 0.0
        %2929 = vmatprep.subr.mxu0 0.0
        %2930 = vmatpush1.msra.mxu0 0.0
        %2931 = vmatprep.subr.mxu0 0.0
        %2932 = vmatpush1.msra.mxu0 0.0
        %2933 = vmatprep.subr.mxu0 0.0
        %2934 = vmatpush1.msra.mxu0 0.0
        %2935 = vmatprep.subr.mxu0 0.0
        %2936 = vmatpush1.msra.mxu0 0.0
        %2937 = vmatprep.subr.mxu0 0.0
        %2938 = vmatpush1.msra.mxu0 0.0
        %2939 = vmatprep.subr.mxu0 0.0
        %2940 = vmatpush1.msra.mxu0 0.0
        %2941 = vmatprep.subr.mxu0 0.0
        %2942 = vmatpush1.msra.mxu0 0.0
        %2943 = vmatprep.subr.mxu0 0.0
        %2944 = vmatpush1.msra.mxu0 0.0
        %2945 = vmatprep.subr.mxu0 0.0
        %2946 = vmatpush1.msra.mxu0 0.0
        %2947 = vmatprep.subr.mxu0 0.0
        %2948 = vmatpush1.msra.mxu0 0.0
        %2949 = vmatprep.subr.mxu0 0.0
        %2950 = vmatpush1.msra.mxu0 0.0
        %2951 = vmatprep.subr.mxu0 0.0
        %2952 = vmatpush1.msra.mxu0 0.0
        %2953 = vmatprep.subr.mxu0 0.0
        %2954 = vmatpush1.msra.mxu0 0.0
        %2955 = vmatprep.subr.mxu0 0.0
        %2956 = vmatpush1.msra.mxu0 0.0
        %2957 = vmatprep.mubr.f32.mxu0 0.0
        %2958 = vmatmul.mubr.f32.gmra.mrb[0].mxu0 %v2658
        %v2959 = vpop.f32.mrb[0].mxu0
        %v2960 = vadd.f32 0.0, %v2959
        %v2961 = vpop.f32.mrb[0].mxu0
        %v2962 = vadd.f32 0.0, %v2961
        %2963 = vmatprep.mubr.f32.mxu0 0.0
        %2964 = vmatmul.mubr.f32.gmra.mrb[0].mxu0 %v2660
        %v2965 = vpop.f32.mrb[0].mxu0
        %v2966 = vadd.f32 0.0, %v2965
        %v2967 = vpop.f32.mrb[0].mxu0
        %v2968 = vadd.f32 0.0, %v2967
        %2969 = vdwg.mxu0
        %2970 = vmatprep.subr.mxu0 %v2589
        %2971 = vmatpush1.msra.mxu0 %v2588
        %2972 = vmatprep.subr.mxu0 %v2607
        %2973 = vmatpush1.msra.mxu0 %v2606
        %2974 = vmatprep.subr.mxu0 %v2625
        %2975 = vmatpush1.msra.mxu0 %v2624
        %2976 = vmatprep.subr.mxu0 %v2643
        %2977 = vmatpush1.msra.mxu0 %v2642
        %2978 = vmatprep.subr.mxu0 0.0
        %2979 = vmatpush1.msra.mxu0 0.0
        %2980 = vmatprep.subr.mxu0 0.0
        %2981 = vmatpush1.msra.mxu0 0.0
        %2982 = vmatprep.subr.mxu0 0.0
        %2983 = vmatpush1.msra.mxu0 0.0
        %2984 = vmatprep.subr.mxu0 0.0
        %2985 = vmatpush1.msra.mxu0 0.0
        %2986 = vmatprep.subr.mxu0 0.0
        %2987 = vmatpush1.msra.mxu0 0.0
        %2988 = vmatprep.subr.mxu0 0.0
        %2989 = vmatpush1.msra.mxu0 0.0
        %2990 = vmatprep.subr.mxu0 0.0
        %2991 = vmatpush1.msra.mxu0 0.0
        %2992 = vmatprep.subr.mxu0 0.0
        %2993 = vmatpush1.msra.mxu0 0.0
        %2994 = vmatprep.subr.mxu0 0.0
        %2995 = vmatpush1.msra.mxu0 0.0
        %2996 = vmatprep.subr.mxu0 0.0
        %2997 = vmatpush1.msra.mxu0 0.0
        %2998 = vmatprep.subr.mxu0 0.0
        %2999 = vmatpush1.msra.mxu0 0.0
        %3000 = vmatprep.subr.mxu0 0.0
        %3001 = vmatpush1.msra.mxu0 0.0
        %3002 = vmatprep.subr.mxu0 0.0
        %3003 = vmatpush1.msra.mxu0 0.0
        %3004 = vmatprep.subr.mxu0 0.0
        %3005 = vmatpush1.msra.mxu0 0.0
        %3006 = vmatprep.subr.mxu0 0.0
        %3007 = vmatpush1.msra.mxu0 0.0
        %3008 = vmatprep.subr.mxu0 0.0
        %3009 = vmatpush1.msra.mxu0 0.0
        %3010 = vmatprep.subr.mxu0 0.0
        %3011 = vmatpush1.msra.mxu0 0.0
        %3012 = vmatprep.subr.mxu0 0.0
        %3013 = vmatpush1.msra.mxu0 0.0
        %3014 = vmatprep.subr.mxu0 0.0
        %3015 = vmatpush1.msra.mxu0 0.0
        %3016 = vmatprep.subr.mxu0 0.0
        %3017 = vmatpush1.msra.mxu0 0.0
        %3018 = vmatprep.subr.mxu0 0.0
        %3019 = vmatpush1.msra.mxu0 0.0
        %3020 = vmatprep.subr.mxu0 0.0
        %3021 = vmatpush1.msra.mxu0 0.0
        %3022 = vmatprep.subr.mxu0 0.0
        %3023 = vmatpush1.msra.mxu0 0.0
        %3024 = vmatprep.subr.mxu0 0.0
        %3025 = vmatpush1.msra.mxu0 0.0
        %3026 = vmatprep.subr.mxu0 0.0
        %3027 = vmatpush1.msra.mxu0 0.0
        %3028 = vmatprep.subr.mxu0 0.0
        %3029 = vmatpush1.msra.mxu0 0.0
        %3030 = vmatprep.subr.mxu0 0.0
        %3031 = vmatpush1.msra.mxu0 0.0
        %3032 = vmatprep.subr.mxu0 0.0
        %3033 = vmatpush1.msra.mxu0 0.0
        %3034 = vmatprep.mubr.f32.mxu0 0.0
        %3035 = vmatmul.mubr.f32.gmra.mrb[0].mxu0 %v2658
        %v3036 = vpop.f32.mrb[0].mxu0
        %v3037 = vadd.f32 0.0, %v3036
        %v3038 = vpop.f32.mrb[0].mxu0
        %v3039 = vadd.f32 0.0, %v3038
        %3040 = vmatprep.mubr.f32.mxu0 0.0
        %3041 = vmatmul.mubr.f32.gmra.mrb[0].mxu0 %v2660
        %v3042 = vpop.f32.mrb[0].mxu0
        %v3043 = vadd.f32 0.0, %v3042
        %v3044 = vpop.f32.mrb[0].mxu0
        %v3045 = vadd.f32 0.0, %v3044
        %3046 = vdwg.mxu0
        %3047 = vmatprep.subr.mxu0 %v2591
        %3048 = vmatpush1.msra.mxu0 %v2590
        %3049 = vmatprep.subr.mxu0 %v2609
        %3050 = vmatpush1.msra.mxu0 %v2608
        %3051 = vmatprep.subr.mxu0 %v2627
        %3052 = vmatpush1.msra.mxu0 %v2626
        %3053 = vmatprep.subr.mxu0 %v2645
        %3054 = vmatpush1.msra.mxu0 %v2644
        %3055 = vmatprep.subr.mxu0 0.0
        %3056 = vmatpush1.msra.mxu0 0.0
        %3057 = vmatprep.subr.mxu0 0.0
        %3058 = vmatpush1.msra.mxu0 0.0
        %3059 = vmatprep.subr.mxu0 0.0
        %3060 = vmatpush1.msra.mxu0 0.0
        %3061 = vmatprep.subr.mxu0 0.0
        %3062 = vmatpush1.msra.mxu0 0.0
        %3063 = vmatprep.subr.mxu0 0.0
        %3064 = vmatpush1.msra.mxu0 0.0
        %3065 = vmatprep.subr.mxu0 0.0
        %3066 = vmatpush1.msra.mxu0 0.0
        %3067 = vmatprep.subr.mxu0 0.0
        %3068 = vmatpush1.msra.mxu0 0.0
        %3069 = vmatprep.subr.mxu0 0.0
        %3070 = vmatpush1.msra.mxu0 0.0
        %3071 = vmatprep.subr.mxu0 0.0
        %3072 = vmatpush1.msra.mxu0 0.0
        %3073 = vmatprep.subr.mxu0 0.0
        %3074 = vmatpush1.msra.mxu0 0.0
        %3075 = vmatprep.subr.mxu0 0.0
        %3076 = vmatpush1.msra.mxu0 0.0
        %3077 = vmatprep.subr.mxu0 0.0
        %3078 = vmatpush1.msra.mxu0 0.0
        %3079 = vmatprep.subr.mxu0 0.0
        %3080 = vmatpush1.msra.mxu0 0.0
        %3081 = vmatprep.subr.mxu0 0.0
        %3082 = vmatpush1.msra.mxu0 0.0
        %3083 = vmatprep.subr.mxu0 0.0
        %3084 = vmatpush1.msra.mxu0 0.0
        %3085 = vmatprep.subr.mxu0 0.0
        %3086 = vmatpush1.msra.mxu0 0.0
        %3087 = vmatprep.subr.mxu0 0.0
        %3088 = vmatpush1.msra.mxu0 0.0
        %3089 = vmatprep.subr.mxu0 0.0
        %3090 = vmatpush1.msra.mxu0 0.0
        %3091 = vmatprep.subr.mxu0 0.0
        %3092 = vmatpush1.msra.mxu0 0.0
        %3093 = vmatprep.subr.mxu0 0.0
        %3094 = vmatpush1.msra.mxu0 0.0
        %3095 = vmatprep.subr.mxu0 0.0
        %3096 = vmatpush1.msra.mxu0 0.0
        %3097 = vmatprep.subr.mxu0 0.0
        %3098 = vmatpush1.msra.mxu0 0.0
        %3099 = vmatprep.subr.mxu0 0.0
        %3100 = vmatpush1.msra.mxu0 0.0
        %3101 = vmatprep.subr.mxu0 0.0
        %3102 = vmatpush1.msra.mxu0 0.0
        %3103 = vmatprep.subr.mxu0 0.0
        %3104 = vmatpush1.msra.mxu0 0.0
        %3105 = vmatprep.subr.mxu0 0.0
        %3106 = vmatpush1.msra.mxu0 0.0
        %3107 = vmatprep.subr.mxu0 0.0
        %3108 = vmatpush1.msra.mxu0 0.0
        %3109 = vmatprep.subr.mxu0 0.0
        %3110 = vmatpush1.msra.mxu0 0.0
        %3111 = vmatprep.mubr.f32.mxu0 0.0
        %3112 = vmatmul.mubr.f32.gmra.mrb[0].mxu0 %v2658
        %v3113 = vpop.f32.mrb[0].mxu0
        %v3114 = vadd.f32 0.0, %v3113
        %v3115 = vpop.f32.mrb[0].mxu0
        %v3116 = vadd.f32 0.0, %v3115
        %3117 = vmatprep.mubr.f32.mxu0 0.0
        %3118 = vmatmul.mubr.f32.gmra.mrb[0].mxu0 %v2660
        %v3119 = vpop.f32.mrb[0].mxu0
        %v3120 = vadd.f32 0.0, %v3119
        %v3121 = vpop.f32.mrb[0].mxu0
        %v3122 = vadd.f32 0.0, %v3121
        %3123 = vdwg.mxu0
        %3124 = vmatprep.subr.mxu0 %v2593
        %3125 = vmatpush1.msra.mxu0 %v2592
        %3126 = vmatprep.subr.mxu0 %v2611
        %3127 = vmatpush1.msra.mxu0 %v2610
        %3128 = vmatprep.subr.mxu0 %v2629
        %3129 = vmatpush1.msra.mxu0 %v2628
        %3130 = vmatprep.subr.mxu0 %v2647
        %3131 = vmatpush1.msra.mxu0 %v2646
        %3132 = vmatprep.subr.mxu0 0.0
        %3133 = vmatpush1.msra.mxu0 0.0
        %3134 = vmatprep.subr.mxu0 0.0
        %3135 = vmatpush1.msra.mxu0 0.0
        %3136 = vmatprep.subr.mxu0 0.0
        %3137 = vmatpush1.msra.mxu0 0.0
        %3138 = vmatprep.subr.mxu0 0.0
        %3139 = vmatpush1.msra.mxu0 0.0
        %3140 = vmatprep.subr.mxu0 0.0
        %3141 = vmatpush1.msra.mxu0 0.0
        %3142 = vmatprep.subr.mxu0 0.0
        %3143 = vmatpush1.msra.mxu0 0.0
        %3144 = vmatprep.subr.mxu0 0.0
        %3145 = vmatpush1.msra.mxu0 0.0
        %3146 = vmatprep.subr.mxu0 0.0
        %3147 = vmatpush1.msra.mxu0 0.0
        %3148 = vmatprep.subr.mxu0 0.0
        %3149 = vmatpush1.msra.mxu0 0.0
        %3150 = vmatprep.subr.mxu0 0.0
        %3151 = vmatpush1.msra.mxu0 0.0
        %3152 = vmatprep.subr.mxu0 0.0
        %3153 = vmatpush1.msra.mxu0 0.0
        %3154 = vmatprep.subr.mxu0 0.0
        %3155 = vmatpush1.msra.mxu0 0.0
        %3156 = vmatprep.subr.mxu0 0.0
        %3157 = vmatpush1.msra.mxu0 0.0
        %3158 = vmatprep.subr.mxu0 0.0
        %3159 = vmatpush1.msra.mxu0 0.0
        %3160 = vmatprep.subr.mxu0 0.0
        %3161 = vmatpush1.msra.mxu0 0.0
        %3162 = vmatprep.subr.mxu0 0.0
        %3163 = vmatpush1.msra.mxu0 0.0
        %3164 = vmatprep.subr.mxu0 0.0
        %3165 = vmatpush1.msra.mxu0 0.0
        %3166 = vmatprep.subr.mxu0 0.0
        %3167 = vmatpush1.msra.mxu0 0.0
        %3168 = vmatprep.subr.mxu0 0.0
        %3169 = vmatpush1.msra.mxu0 0.0
        %3170 = vmatprep.subr.mxu0 0.0
        %3171 = vmatpush1.msra.mxu0 0.0
        %3172 = vmatprep.subr.mxu0 0.0
        %3173 = vmatpush1.msra.mxu0 0.0
        %3174 = vmatprep.subr.mxu0 0.0
        %3175 = vmatpush1.msra.mxu0 0.0
        %3176 = vmatprep.subr.mxu0 0.0
        %3177 = vmatpush1.msra.mxu0 0.0
        %3178 = vmatprep.subr.mxu0 0.0
        %3179 = vmatpush1.msra.mxu0 0.0
        %3180 = vmatprep.subr.mxu0 0.0
        %3181 = vmatpush1.msra.mxu0 0.0
        %3182 = vmatprep.subr.mxu0 0.0
        %3183 = vmatpush1.msra.mxu0 0.0
        %3184 = vmatprep.subr.mxu0 0.0
        %3185 = vmatpush1.msra.mxu0 0.0
        %3186 = vmatprep.subr.mxu0 0.0
        %3187 = vmatpush1.msra.mxu0 0.0
        %3188 = vmatprep.mubr.f32.mxu0 0.0
        %3189 = vmatmul.mubr.f32.gmra.mrb[0].mxu0 %v2658
        %v3190 = vpop.f32.mrb[0].mxu0
        %v3191 = vadd.f32 0.0, %v3190
        %v3192 = vpop.f32.mrb[0].mxu0
        %v3193 = vadd.f32 0.0, %v3192
        %3194 = vmatprep.mubr.f32.mxu0 0.0
        %3195 = vmatmul.mubr.f32.gmra.mrb[0].mxu0 %v2660
        %v3196 = vpop.f32.mrb[0].mxu0
        %v3197 = vadd.f32 0.0, %v3196
        %v3198 = vpop.f32.mrb[0].mxu0
        %v3199 = vadd.f32 0.0, %v3198
        %3200 = vdwg.mxu0
        %3201 = vmatprep.subr.mxu0 %v2595
        %3202 = vmatpush1.msra.mxu0 %v2594
        %3203 = vmatprep.subr.mxu0 %v2613
        %3204 = vmatpush1.msra.mxu0 %v2612
        %3205 = vmatprep.subr.mxu0 %v2631
        %3206 = vmatpush1.msra.mxu0 %v2630
        %3207 = vmatprep.subr.mxu0 %v2649
        %3208 = vmatpush1.msra.mxu0 %v2648
        %3209 = vmatprep.subr.mxu0 0.0
        %3210 = vmatpush1.msra.mxu0 0.0
        %3211 = vmatprep.subr.mxu0 0.0
        %3212 = vmatpush1.msra.mxu0 0.0
        %3213 = vmatprep.subr.mxu0 0.0
        %3214 = vmatpush1.msra.mxu0 0.0
        %3215 = vmatprep.subr.mxu0 0.0
        %3216 = vmatpush1.msra.mxu0 0.0
        %3217 = vmatprep.subr.mxu0 0.0
        %3218 = vmatpush1.msra.mxu0 0.0
        %3219 = vmatprep.subr.mxu0 0.0
        %3220 = vmatpush1.msra.mxu0 0.0
        %3221 = vmatprep.subr.mxu0 0.0
        %3222 = vmatpush1.msra.mxu0 0.0
        %3223 = vmatprep.subr.mxu0 0.0
        %3224 = vmatpush1.msra.mxu0 0.0
        %3225 = vmatprep.subr.mxu0 0.0
        %3226 = vmatpush1.msra.mxu0 0.0
        %3227 = vmatprep.subr.mxu0 0.0
        %3228 = vmatpush1.msra.mxu0 0.0
        %3229 = vmatprep.subr.mxu0 0.0
        %3230 = vmatpush1.msra.mxu0 0.0
        %3231 = vmatprep.subr.mxu0 0.0
        %3232 = vmatpush1.msra.mxu0 0.0
        %3233 = vmatprep.subr.mxu0 0.0
        %3234 = vmatpush1.msra.mxu0 0.0
        %3235 = vmatprep.subr.mxu0 0.0
        %3236 = vmatpush1.msra.mxu0 0.0
        %3237 = vmatprep.subr.mxu0 0.0
        %3238 = vmatpush1.msra.mxu0 0.0
        %3239 = vmatprep.subr.mxu0 0.0
        %3240 = vmatpush1.msra.mxu0 0.0
        %3241 = vmatprep.subr.mxu0 0.0
        %3242 = vmatpush1.msra.mxu0 0.0
        %3243 = vmatprep.subr.mxu0 0.0
        %3244 = vmatpush1.msra.mxu0 0.0
        %3245 = vmatprep.subr.mxu0 0.0
        %3246 = vmatpush1.msra.mxu0 0.0
        %3247 = vmatprep.subr.mxu0 0.0
        %3248 = vmatpush1.msra.mxu0 0.0
        %3249 = vmatprep.subr.mxu0 0.0
        %3250 = vmatpush1.msra.mxu0 0.0
        %3251 = vmatprep.subr.mxu0 0.0
        %3252 = vmatpush1.msra.mxu0 0.0
        %3253 = vmatprep.subr.mxu0 0.0
        %3254 = vmatpush1.msra.mxu0 0.0
        %3255 = vmatprep.subr.mxu0 0.0
        %3256 = vmatpush1.msra.mxu0 0.0
        %3257 = vmatprep.subr.mxu0 0.0
        %3258 = vmatpush1.msra.mxu0 0.0
        %3259 = vmatprep.subr.mxu0 0.0
        %3260 = vmatpush1.msra.mxu0 0.0
        %3261 = vmatprep.subr.mxu0 0.0
        %3262 = vmatpush1.msra.mxu0 0.0
        %3263 = vmatprep.subr.mxu0 0.0
        %3264 = vmatpush1.msra.mxu0 0.0
        %3265 = vmatprep.mubr.f32.mxu0 0.0
        %3266 = vmatmul.mubr.f32.gmra.mrb[0].mxu0 %v2658
        %v3267 = vpop.f32.mrb[0].mxu0
        %v3268 = vadd.f32 0.0, %v3267
        %v3269 = vpop.f32.mrb[0].mxu0
        %v3270 = vadd.f32 0.0, %v3269
        %3271 = vmatprep.mubr.f32.mxu0 0.0
        %3272 = vmatmul.mubr.f32.gmra.mrb[0].mxu0 %v2660
        %v3273 = vpop.f32.mrb[0].mxu0
        %v3274 = vadd.f32 0.0, %v3273
        %v3275 = vpop.f32.mrb[0].mxu0
        %v3276 = vadd.f32 0.0, %v3275
        %3277 = vdwg.mxu0
        %3278 = vmatprep.subr.mxu0 %v2597
        %3279 = vmatpush1.msra.mxu0 %v2596
        %3280 = vmatprep.subr.mxu0 %v2615
        %3281 = vmatpush1.msra.mxu0 %v2614
        %3282 = vmatprep.subr.mxu0 %v2633
        %3283 = vmatpush1.msra.mxu0 %v2632
        %3284 = vmatprep.subr.mxu0 %v2651
        %3285 = vmatpush1.msra.mxu0 %v2650
        %3286 = vmatprep.subr.mxu0 0.0
        %3287 = vmatpush1.msra.mxu0 0.0
        %3288 = vmatprep.subr.mxu0 0.0
        %3289 = vmatpush1.msra.mxu0 0.0
        %3290 = vmatprep.subr.mxu0 0.0
        %3291 = vmatpush1.msra.mxu0 0.0
        %3292 = vmatprep.subr.mxu0 0.0
        %3293 = vmatpush1.msra.mxu0 0.0
        %3294 = vmatprep.subr.mxu0 0.0
        %3295 = vmatpush1.msra.mxu0 0.0
        %3296 = vmatprep.subr.mxu0 0.0
        %3297 = vmatpush1.msra.mxu0 0.0
        %3298 = vmatprep.subr.mxu0 0.0
        %3299 = vmatpush1.msra.mxu0 0.0
        %3300 = vmatprep.subr.mxu0 0.0
        %3301 = vmatpush1.msra.mxu0 0.0
        %3302 = vmatprep.subr.mxu0 0.0
        %3303 = vmatpush1.msra.mxu0 0.0
        %3304 = vmatprep.subr.mxu0 0.0
        %3305 = vmatpush1.msra.mxu0 0.0
        %3306 = vmatprep.subr.mxu0 0.0
        %3307 = vmatpush1.msra.mxu0 0.0
        %3308 = vmatprep.subr.mxu0 0.0
        %3309 = vmatpush1.msra.mxu0 0.0
        %3310 = vmatprep.subr.mxu0 0.0
        %3311 = vmatpush1.msra.mxu0 0.0
        %3312 = vmatprep.subr.mxu0 0.0
        %3313 = vmatpush1.msra.mxu0 0.0
        %3314 = vmatprep.subr.mxu0 0.0
        %3315 = vmatpush1.msra.mxu0 0.0
        %3316 = vmatprep.subr.mxu0 0.0
        %3317 = vmatpush1.msra.mxu0 0.0
        %3318 = vmatprep.subr.mxu0 0.0
        %3319 = vmatpush1.msra.mxu0 0.0
        %3320 = vmatprep.subr.mxu0 0.0
        %3321 = vmatpush1.msra.mxu0 0.0
        %3322 = vmatprep.subr.mxu0 0.0
        %3323 = vmatpush1.msra.mxu0 0.0
        %3324 = vmatprep.subr.mxu0 0.0
        %3325 = vmatpush1.msra.mxu0 0.0
        %3326 = vmatprep.subr.mxu0 0.0
        %3327 = vmatpush1.msra.mxu0 0.0
        %3328 = vmatprep.subr.mxu0 0.0
        %3329 = vmatpush1.msra.mxu0 0.0
        %3330 = vmatprep.subr.mxu0 0.0
        %3331 = vmatpush1.msra.mxu0 0.0
        %3332 = vmatprep.subr.mxu0 0.0
        %3333 = vmatpush1.msra.mxu0 0.0
        %3334 = vmatprep.subr.mxu0 0.0
        %3335 = vmatpush1.msra.mxu0 0.0
        %3336 = vmatprep.subr.mxu0 0.0
        %3337 = vmatpush1.msra.mxu0 0.0
        %3338 = vmatprep.subr.mxu0 0.0
        %3339 = vmatpush1.msra.mxu0 0.0
        %3340 = vmatprep.subr.mxu0 0.0
        %3341 = vmatpush1.msra.mxu0 0.0
        %3342 = vmatprep.mubr.f32.mxu0 0.0
        %3343 = vmatmul.mubr.f32.gmra.mrb[0].mxu0 %v2658
        %v3344 = vpop.f32.mrb[0].mxu0
        %v3345 = vadd.f32 0.0, %v3344
        %v3346 = vpop.f32.mrb[0].mxu0
        %v3347 = vadd.f32 0.0, %v3346
        %3348 = vmatprep.mubr.f32.mxu0 0.0
        %3349 = vmatmul.mubr.f32.gmra.mrb[0].mxu0 %v2660
        %v3350 = vpop.f32.mrb[0].mxu0
        %v3351 = vadd.f32 0.0, %v3350
        %v3352 = vpop.f32.mrb[0].mxu0
        %v3353 = vadd.f32 0.0, %v3352
        %3354 = vdwg.mxu0
        %v3355 = vadd.f32 %v2543, %v2729
        %v3356 = vadd.f32 %v2544, %v2731
        %v3357 = vadd.f32 %v2545, %v2806
        %v3358 = vadd.f32 %v2546, %v2808
        %v3359 = vadd.f32 %v2547, %v2883
        %v3360 = vadd.f32 %v2548, %v2885
        %v3361 = vadd.f32 %v2549, %v2960
        %v3362 = vadd.f32 %v2550, %v2962
        %v3363 = vadd.f32 %v2551, %v3037
        %v3364 = vadd.f32 %v2552, %v3039
        %v3365 = vadd.f32 %v2553, %v3114
        %v3366 = vadd.f32 %v2554, %v3116
        %v3367 = vadd.f32 %v2555, %v3191
        %v3368 = vadd.f32 %v2556, %v3193
        %v3369 = vadd.f32 %v2557, %v3268
        %v3370 = vadd.f32 %v2558, %v3270
        %v3371 = vadd.f32 %v2559, %v3345
        %v3372 = vadd.f32 %v2560, %v3347
        %v3373 = vadd.f32 %v2561, %v2735
        %v3374 = vadd.f32 %v2562, %v2737
        %v3375 = vadd.f32 %v2563, %v2812
        %v3376 = vadd.f32 %v2564, %v2814
        %v3377 = vadd.f32 %v2565, %v2889
        %v3378 = vadd.f32 %v2566, %v2891
        %v3379 = vadd.f32 %v2567, %v2966
        %v3380 = vadd.f32 %v2568, %v2968
        %v3381 = vadd.f32 %v2569, %v3043
        %v3382 = vadd.f32 %v2570, %v3045
        %v3383 = vadd.f32 %v2571, %v3120
        %v3384 = vadd.f32 %v2572, %v3122
        %v3385 = vadd.f32 %v2573, %v3197
        %v3386 = vadd.f32 %v2574, %v3199
        %v3387 = vadd.f32 %v2575, %v3274
        %v3388 = vadd.f32 %v2576, %v3276
        %v3389 = vadd.f32 %v2577, %v3351
        %v3390 = vadd.f32 %v2578, %v3353
        %s3391 = scalar_lea.vmem [#allocation2], 2304
        %v3392 = vld [vmem:[%s3391] sm:$0xff]
        %v3393 = vld [vmem:[%s3391 + $0x8] sm:$0xff]
        %v3394 = vld [vmem:[%s3391 + $0x10] sm:$0xff]
        %v3395 = vld [vmem:[%s3391 + $0x18] sm:$0xff]
        %v3396 = vld [vmem:[%s3391 + $0x20] sm:$0xff]
        %v3397 = vld [vmem:[%s3391 + $0x28] sm:$0xff]
        %v3398 = vld [vmem:[%s3391 + $0x30] sm:$0xff]
        %v3399 = vld [vmem:[%s3391 + $0x38] sm:$0xff]
        %v3400 = vld [vmem:[%s3391 + $0x40] sm:$0xff]
        %v3401 = vld [vmem:[%s3391 + $0x48] sm:$0xff]
        %v3402 = vld [vmem:[%s3391 + $0x50] sm:$0xff]
        %v3403 = vld [vmem:[%s3391 + $0x58] sm:$0xff]
        %v3404 = vld [vmem:[%s3391 + $0x60] sm:$0xff]
        %v3405 = vld [vmem:[%s3391 + $0x68] sm:$0xff]
        %v3406 = vld [vmem:[%s3391 + $0x70] sm:$0xff]
        %v3407 = vld [vmem:[%s3391 + $0x78] sm:$0xff]
        %v3408 = vld [vmem:[%s3391 + $0x80] sm:$0xff]
        %v3409 = vld [vmem:[%s3391 + $0x88] sm:$0xff]
        %v3410 = vld [vmem:[%s3391 + $0x90] sm:$0xff]
        %v3411 = vld [vmem:[%s3391 + $0x98] sm:$0xff]
        %v3412 = vld [vmem:[%s3391 + $0xa0] sm:$0xff]
        %v3413 = vld [vmem:[%s3391 + $0xa8] sm:$0xff]
        %v3414 = vld [vmem:[%s3391 + $0xb0] sm:$0xff]
        %v3415 = vld [vmem:[%s3391 + $0xb8] sm:$0xff]
        %v3416 = vld [vmem:[%s3391 + $0xc0] sm:$0xff]
        %v3417 = vld [vmem:[%s3391 + $0xc8] sm:$0xff]
        %v3418 = vld [vmem:[%s3391 + $0xd0] sm:$0xff]
        %v3419 = vld [vmem:[%s3391 + $0xd8] sm:$0xff]
        %v3420 = vld [vmem:[%s3391 + $0xe0] sm:$0xff]
        %v3421 = vld [vmem:[%s3391 + $0xe8] sm:$0xff]
        %v3422 = vld [vmem:[%s3391 + $0xf0] sm:$0xff]
        %v3423 = vld [vmem:[%s3391 + $0xf8] sm:$0xff]
        %v3424 = vld [vmem:[%s3391 + $0x100] sm:$0xff]
        %v3425 = vld [vmem:[%s3391 + $0x108] sm:$0xff]
        %v3426 = vld [vmem:[%s3391 + $0x110] sm:$0xff]
        %v3427 = vld [vmem:[%s3391 + $0x118] sm:$0xff]
        %v3428 = vld [vmem:[%s3391 + $0x120] sm:$0xff]
        %v3429 = vld [vmem:[%s3391 + $0x128] sm:$0xff]
        %v3430 = vld [vmem:[%s3391 + $0x130] sm:$0xff]
        %v3431 = vld [vmem:[%s3391 + $0x138] sm:$0xff]
        %v3432 = vld [vmem:[%s3391 + $0x140] sm:$0xff]
        %v3433 = vld [vmem:[%s3391 + $0x148] sm:$0xff]
        %v3434 = vld [vmem:[%s3391 + $0x150] sm:$0xff]
        %v3435 = vld [vmem:[%s3391 + $0x158] sm:$0xff]
        %v3436 = vld [vmem:[%s3391 + $0x160] sm:$0xff]
        %v3437 = vld [vmem:[%s3391 + $0x168] sm:$0xff]
        %v3438 = vld [vmem:[%s3391 + $0x170] sm:$0xff]
        %v3439 = vld [vmem:[%s3391 + $0x178] sm:$0xff]
        %v3440 = vld [vmem:[%s3391 + $0x180] sm:$0xff]
        %v3441 = vld [vmem:[%s3391 + $0x188] sm:$0xff]
        %v3442 = vld [vmem:[%s3391 + $0x190] sm:$0xff]
        %v3443 = vld [vmem:[%s3391 + $0x198] sm:$0xff]
        %v3444 = vld [vmem:[%s3391 + $0x1a0] sm:$0xff]
        %v3445 = vld [vmem:[%s3391 + $0x1a8] sm:$0xff]
        %v3446 = vld [vmem:[%s3391 + $0x1b0] sm:$0xff]
        %v3447 = vld [vmem:[%s3391 + $0x1b8] sm:$0xff]
        %v3448 = vld [vmem:[%s3391 + $0x1c0] sm:$0xff]
        %v3449 = vld [vmem:[%s3391 + $0x1c8] sm:$0xff]
        %v3450 = vld [vmem:[%s3391 + $0x1d0] sm:$0xff]
        %v3451 = vld [vmem:[%s3391 + $0x1d8] sm:$0xff]
        %v3452 = vld [vmem:[%s3391 + $0x1e0] sm:$0xff]
        %v3453 = vld [vmem:[%s3391 + $0x1e8] sm:$0xff]
        %v3454 = vld [vmem:[%s3391 + $0x1f0] sm:$0xff]
        %v3455 = vld [vmem:[%s3391 + $0x1f8] sm:$0xff]
        %v3456 = vld [vmem:[%s3391 + $0x200] sm:$0xff]
        %v3457 = vld [vmem:[%s3391 + $0x208] sm:$0xff]
        %v3458 = vld [vmem:[%s3391 + $0x210] sm:$0xff]
        %v3459 = vld [vmem:[%s3391 + $0x218] sm:$0xff]
        %v3460 = vld [vmem:[%s3391 + $0x220] sm:$0xff]
        %v3461 = vld [vmem:[%s3391 + $0x228] sm:$0xff]
        %v3462 = vld [vmem:[%s3391 + $0x230] sm:$0xff]
        %v3463 = vld [vmem:[%s3391 + $0x238] sm:$0xff]
        %vm3464 = vcmask 1043456
        %v3465 = vrot.slane %v214, 4
        %v3466 = vrot.slane %v215, 4
        %v3467 = vsel %vm3464, %v3465, %v3466
        %v3468 = vrot.slane %v216, 4
        %v3469 = vsel %vm3464, %v3466, %v3468
        %v3470 = vsel %vm372, %v3467, 0
        %v3472 = vsel %vm372, %v3469, 0
        %3474 = vmatprep.subr.mxu0 %v3393
        %3475 = vmatpush1.msra.mxu0 %v3392
        %3476 = vmatprep.subr.mxu0 %v3411
        %3477 = vmatpush1.msra.mxu0 %v3410
        %3478 = vmatprep.subr.mxu0 %v3429
        %3479 = vmatpush1.msra.mxu0 %v3428
        %3480 = vmatprep.subr.mxu0 %v3447
        %3481 = vmatpush1.msra.mxu0 %v3446
        %3482 = vmatprep.subr.mxu0 0.0
        %3483 = vmatpush1.msra.mxu0 0.0
        %3484 = vmatprep.subr.mxu0 0.0
        %3485 = vmatpush1.msra.mxu0 0.0
        %3486 = vmatprep.subr.mxu0 0.0
        %3487 = vmatpush1.msra.mxu0 0.0
        %3488 = vmatprep.subr.mxu0 0.0
        %3489 = vmatpush1.msra.mxu0 0.0
        %3490 = vmatprep.subr.mxu0 0.0
        %3491 = vmatpush1.msra.mxu0 0.0
        %3492 = vmatprep.subr.mxu0 0.0
        %3493 = vmatpush1.msra.mxu0 0.0
        %3494 = vmatprep.subr.mxu0 0.0
        %3495 = vmatpush1.msra.mxu0 0.0
        %3496 = vmatprep.subr.mxu0 0.0
        %3497 = vmatpush1.msra.mxu0 0.0
        %3498 = vmatprep.subr.mxu0 0.0
        %3499 = vmatpush1.msra.mxu0 0.0
        %3500 = vmatprep.subr.mxu0 0.0
        %3501 = vmatpush1.msra.mxu0 0.0
        %3502 = vmatprep.subr.mxu0 0.0
        %3503 = vmatpush1.msra.mxu0 0.0
        %3504 = vmatprep.subr.mxu0 0.0
        %3505 = vmatpush1.msra.mxu0 0.0
        %3506 = vmatprep.subr.mxu0 0.0
        %3507 = vmatpush1.msra.mxu0 0.0
        %3508 = vmatprep.subr.mxu0 0.0
        %3509 = vmatpush1.msra.mxu0 0.0
        %3510 = vmatprep.subr.mxu0 0.0
        %3511 = vmatpush1.msra.mxu0 0.0
        %3512 = vmatprep.subr.mxu0 0.0
        %3513 = vmatpush1.msra.mxu0 0.0
        %3514 = vmatprep.subr.mxu0 0.0
        %3515 = vmatpush1.msra.mxu0 0.0
        %3516 = vmatprep.subr.mxu0 0.0
        %3517 = vmatpush1.msra.mxu0 0.0
        %3518 = vmatprep.subr.mxu0 0.0
        %3519 = vmatpush1.msra.mxu0 0.0
        %3520 = vmatprep.subr.mxu0 0.0
        %3521 = vmatpush1.msra.mxu0 0.0
        %3522 = vmatprep.subr.mxu0 0.0
        %3523 = vmatpush1.msra.mxu0 0.0
        %3524 = vmatprep.subr.mxu0 0.0
        %3525 = vmatpush1.msra.mxu0 0.0
        %3526 = vmatprep.subr.mxu0 0.0
        %3527 = vmatpush1.msra.mxu0 0.0
        %3528 = vmatprep.subr.mxu0 0.0
        %3529 = vmatpush1.msra.mxu0 0.0
        %3530 = vmatprep.subr.mxu0 0.0
        %3531 = vmatpush1.msra.mxu0 0.0
        %3532 = vmatprep.subr.mxu0 0.0
        %3533 = vmatpush1.msra.mxu0 0.0
        %3534 = vmatprep.subr.mxu0 0.0
        %3535 = vmatpush1.msra.mxu0 0.0
        %3536 = vmatprep.subr.mxu0 0.0
        %3537 = vmatpush1.msra.mxu0 0.0
        %3538 = vmatprep.mubr.f32.mxu0 0.0
        %3539 = vmatmul.mubr.f32.gmra.mrb[0].mxu0 %v3470
        %v3540 = vpop.f32.mrb[0].mxu0
        %v3541 = vadd.f32 0.0, %v3540
        %v3542 = vpop.f32.mrb[0].mxu0
        %v3543 = vadd.f32 0.0, %v3542
        %3544 = vmatprep.mubr.f32.mxu0 0.0
        %3545 = vmatmul.mubr.f32.gmra.mrb[0].mxu0 %v3472
        %v3546 = vpop.f32.mrb[0].mxu0
        %v3547 = vadd.f32 0.0, %v3546
        %v3548 = vpop.f32.mrb[0].mxu0
        %v3549 = vadd.f32 0.0, %v3548
        %3550 = vdwg.mxu0
        %3551 = vmatprep.subr.mxu0 %v3395
        %3552 = vmatpush1.msra.mxu0 %v3394
        %3553 = vmatprep.subr.mxu0 %v3413
        %3554 = vmatpush1.msra.mxu0 %v3412
        %3555 = vmatprep.subr.mxu0 %v3431
        %3556 = vmatpush1.msra.mxu0 %v3430
        %3557 = vmatprep.subr.mxu0 %v3449
        %3558 = vmatpush1.msra.mxu0 %v3448
        %3559 = vmatprep.subr.mxu0 0.0
        %3560 = vmatpush1.msra.mxu0 0.0
        %3561 = vmatprep.subr.mxu0 0.0
        %3562 = vmatpush1.msra.mxu0 0.0
        %3563 = vmatprep.subr.mxu0 0.0
        %3564 = vmatpush1.msra.mxu0 0.0
        %3565 = vmatprep.subr.mxu0 0.0
        %3566 = vmatpush1.msra.mxu0 0.0
        %3567 = vmatprep.subr.mxu0 0.0
        %3568 = vmatpush1.msra.mxu0 0.0
        %3569 = vmatprep.subr.mxu0 0.0
        %3570 = vmatpush1.msra.mxu0 0.0
        %3571 = vmatprep.subr.mxu0 0.0
        %3572 = vmatpush1.msra.mxu0 0.0
        %3573 = vmatprep.subr.mxu0 0.0
        %3574 = vmatpush1.msra.mxu0 0.0
        %3575 = vmatprep.subr.mxu0 0.0
        %3576 = vmatpush1.msra.mxu0 0.0
        %3577 = vmatprep.subr.mxu0 0.0
        %3578 = vmatpush1.msra.mxu0 0.0
        %3579 = vmatprep.subr.mxu0 0.0
        %3580 = vmatpush1.msra.mxu0 0.0
        %3581 = vmatprep.subr.mxu0 0.0
        %3582 = vmatpush1.msra.mxu0 0.0
        %3583 = vmatprep.subr.mxu0 0.0
        %3584 = vmatpush1.msra.mxu0 0.0
        %3585 = vmatprep.subr.mxu0 0.0
        %3586 = vmatpush1.msra.mxu0 0.0
        %3587 = vmatprep.subr.mxu0 0.0
        %3588 = vmatpush1.msra.mxu0 0.0
        %3589 = vmatprep.subr.mxu0 0.0
        %3590 = vmatpush1.msra.mxu0 0.0
        %3591 = vmatprep.subr.mxu0 0.0
        %3592 = vmatpush1.msra.mxu0 0.0
        %3593 = vmatprep.subr.mxu0 0.0
        %3594 = vmatpush1.msra.mxu0 0.0
        %3595 = vmatprep.subr.mxu0 0.0
        %3596 = vmatpush1.msra.mxu0 0.0
        %3597 = vmatprep.subr.mxu0 0.0
        %3598 = vmatpush1.msra.mxu0 0.0
        %3599 = vmatprep.subr.mxu0 0.0
        %3600 = vmatpush1.msra.mxu0 0.0
        %3601 = vmatprep.subr.mxu0 0.0
        %3602 = vmatpush1.msra.mxu0 0.0
        %3603 = vmatprep.subr.mxu0 0.0
        %3604 = vmatpush1.msra.mxu0 0.0
        %3605 = vmatprep.subr.mxu0 0.0
        %3606 = vmatpush1.msra.mxu0 0.0
        %3607 = vmatprep.subr.mxu0 0.0
        %3608 = vmatpush1.msra.mxu0 0.0
        %3609 = vmatprep.subr.mxu0 0.0
        %3610 = vmatpush1.msra.mxu0 0.0
        %3611 = vmatprep.subr.mxu0 0.0
        %3612 = vmatpush1.msra.mxu0 0.0
        %3613 = vmatprep.subr.mxu0 0.0
        %3614 = vmatpush1.msra.mxu0 0.0
        %3615 = vmatprep.mubr.f32.mxu0 0.0
        %3616 = vmatmul.mubr.f32.gmra.mrb[0].mxu0 %v3470
        %v3617 = vpop.f32.mrb[0].mxu0
        %v3618 = vadd.f32 0.0, %v3617
        %v3619 = vpop.f32.mrb[0].mxu0
        %v3620 = vadd.f32 0.0, %v3619
        %3621 = vmatprep.mubr.f32.mxu0 0.0
        %3622 = vmatmul.mubr.f32.gmra.mrb[0].mxu0 %v3472
        %v3623 = vpop.f32.mrb[0].mxu0
        %v3624 = vadd.f32 0.0, %v3623
        %v3625 = vpop.f32.mrb[0].mxu0
        %v3626 = vadd.f32 0.0, %v3625
        %3627 = vdwg.mxu0
        %3628 = vmatprep.subr.mxu0 %v3397
        %3629 = vmatpush1.msra.mxu0 %v3396
        %3630 = vmatprep.subr.mxu0 %v3415
        %3631 = vmatpush1.msra.mxu0 %v3414
        %3632 = vmatprep.subr.mxu0 %v3433
        %3633 = vmatpush1.msra.mxu0 %v3432
        %3634 = vmatprep.subr.mxu0 %v3451
        %3635 = vmatpush1.msra.mxu0 %v3450
        %3636 = vmatprep.subr.mxu0 0.0
        %3637 = vmatpush1.msra.mxu0 0.0
        %3638 = vmatprep.subr.mxu0 0.0
        %3639 = vmatpush1.msra.mxu0 0.0
        %3640 = vmatprep.subr.mxu0 0.0
        %3641 = vmatpush1.msra.mxu0 0.0
        %3642 = vmatprep.subr.mxu0 0.0
        %3643 = vmatpush1.msra.mxu0 0.0
        %3644 = vmatprep.subr.mxu0 0.0
        %3645 = vmatpush1.msra.mxu0 0.0
        %3646 = vmatprep.subr.mxu0 0.0
        %3647 = vmatpush1.msra.mxu0 0.0
        %3648 = vmatprep.subr.mxu0 0.0
        %3649 = vmatpush1.msra.mxu0 0.0
        %3650 = vmatprep.subr.mxu0 0.0
        %3651 = vmatpush1.msra.mxu0 0.0
        %3652 = vmatprep.subr.mxu0 0.0
        %3653 = vmatpush1.msra.mxu0 0.0
        %3654 = vmatprep.subr.mxu0 0.0
        %3655 = vmatpush1.msra.mxu0 0.0
        %3656 = vmatprep.subr.mxu0 0.0
        %3657 = vmatpush1.msra.mxu0 0.0
        %3658 = vmatprep.subr.mxu0 0.0
        %3659 = vmatpush1.msra.mxu0 0.0
        %3660 = vmatprep.subr.mxu0 0.0
        %3661 = vmatpush1.msra.mxu0 0.0
        %3662 = vmatprep.subr.mxu0 0.0
        %3663 = vmatpush1.msra.mxu0 0.0
        %3664 = vmatprep.subr.mxu0 0.0
        %3665 = vmatpush1.msra.mxu0 0.0
        %3666 = vmatprep.subr.mxu0 0.0
        %3667 = vmatpush1.msra.mxu0 0.0
        %3668 = vmatprep.subr.mxu0 0.0
        %3669 = vmatpush1.msra.mxu0 0.0
        %3670 = vmatprep.subr.mxu0 0.0
        %3671 = vmatpush1.msra.mxu0 0.0
        %3672 = vmatprep.subr.mxu0 0.0
        %3673 = vmatpush1.msra.mxu0 0.0
        %3674 = vmatprep.subr.mxu0 0.0
        %3675 = vmatpush1.msra.mxu0 0.0
        %3676 = vmatprep.subr.mxu0 0.0
        %3677 = vmatpush1.msra.mxu0 0.0
        %3678 = vmatprep.subr.mxu0 0.0
        %3679 = vmatpush1.msra.mxu0 0.0
        %3680 = vmatprep.subr.mxu0 0.0
        %3681 = vmatpush1.msra.mxu0 0.0
        %3682 = vmatprep.subr.mxu0 0.0
        %3683 = vmatpush1.msra.mxu0 0.0
        %3684 = vmatprep.subr.mxu0 0.0
        %3685 = vmatpush1.msra.mxu0 0.0
        %3686 = vmatprep.subr.mxu0 0.0
        %3687 = vmatpush1.msra.mxu0 0.0
        %3688 = vmatprep.subr.mxu0 0.0
        %3689 = vmatpush1.msra.mxu0 0.0
        %3690 = vmatprep.subr.mxu0 0.0
        %3691 = vmatpush1.msra.mxu0 0.0
        %3692 = vmatprep.mubr.f32.mxu0 0.0
        %3693 = vmatmul.mubr.f32.gmra.mrb[0].mxu0 %v3470
        %v3694 = vpop.f32.mrb[0].mxu0
        %v3695 = vadd.f32 0.0, %v3694
        %v3696 = vpop.f32.mrb[0].mxu0
        %v3697 = vadd.f32 0.0, %v3696
        %3698 = vmatprep.mubr.f32.mxu0 0.0
        %3699 = vmatmul.mubr.f32.gmra.mrb[0].mxu0 %v3472
        %v3700 = vpop.f32.mrb[0].mxu0
        %v3701 = vadd.f32 0.0, %v3700
        %v3702 = vpop.f32.mrb[0].mxu0
        %v3703 = vadd.f32 0.0, %v3702
        %3704 = vdwg.mxu0
        %3705 = vmatprep.subr.mxu0 %v3399
        %3706 = vmatpush1.msra.mxu0 %v3398
        %3707 = vmatprep.subr.mxu0 %v3417
        %3708 = vmatpush1.msra.mxu0 %v3416
        %3709 = vmatprep.subr.mxu0 %v3435
        %3710 = vmatpush1.msra.mxu0 %v3434
        %3711 = vmatprep.subr.mxu0 %v3453
        %3712 = vmatpush1.msra.mxu0 %v3452
        %3713 = vmatprep.subr.mxu0 0.0
        %3714 = vmatpush1.msra.mxu0 0.0
        %3715 = vmatprep.subr.mxu0 0.0
        %3716 = vmatpush1.msra.mxu0 0.0
        %3717 = vmatprep.subr.mxu0 0.0
        %3718 = vmatpush1.msra.mxu0 0.0
        %3719 = vmatprep.subr.mxu0 0.0
        %3720 = vmatpush1.msra.mxu0 0.0
        %3721 = vmatprep.subr.mxu0 0.0
        %3722 = vmatpush1.msra.mxu0 0.0
        %3723 = vmatprep.subr.mxu0 0.0
        %3724 = vmatpush1.msra.mxu0 0.0
        %3725 = vmatprep.subr.mxu0 0.0
        %3726 = vmatpush1.msra.mxu0 0.0
        %3727 = vmatprep.subr.mxu0 0.0
        %3728 = vmatpush1.msra.mxu0 0.0
        %3729 = vmatprep.subr.mxu0 0.0
        %3730 = vmatpush1.msra.mxu0 0.0
        %3731 = vmatprep.subr.mxu0 0.0
        %3732 = vmatpush1.msra.mxu0 0.0
        %3733 = vmatprep.subr.mxu0 0.0
        %3734 = vmatpush1.msra.mxu0 0.0
        %3735 = vmatprep.subr.mxu0 0.0
        %3736 = vmatpush1.msra.mxu0 0.0
        %3737 = vmatprep.subr.mxu0 0.0
        %3738 = vmatpush1.msra.mxu0 0.0
        %3739 = vmatprep.subr.mxu0 0.0
        %3740 = vmatpush1.msra.mxu0 0.0
        %3741 = vmatprep.subr.mxu0 0.0
        %3742 = vmatpush1.msra.mxu0 0.0
        %3743 = vmatprep.subr.mxu0 0.0
        %3744 = vmatpush1.msra.mxu0 0.0
        %3745 = vmatprep.subr.mxu0 0.0
        %3746 = vmatpush1.msra.mxu0 0.0
        %3747 = vmatprep.subr.mxu0 0.0
        %3748 = vmatpush1.msra.mxu0 0.0
        %3749 = vmatprep.subr.mxu0 0.0
        %3750 = vmatpush1.msra.mxu0 0.0
        %3751 = vmatprep.subr.mxu0 0.0
        %3752 = vmatpush1.msra.mxu0 0.0
        %3753 = vmatprep.subr.mxu0 0.0
        %3754 = vmatpush1.msra.mxu0 0.0
        %3755 = vmatprep.subr.mxu0 0.0
        %3756 = vmatpush1.msra.mxu0 0.0
        %3757 = vmatprep.subr.mxu0 0.0
        %3758 = vmatpush1.msra.mxu0 0.0
        %3759 = vmatprep.subr.mxu0 0.0
        %3760 = vmatpush1.msra.mxu0 0.0
        %3761 = vmatprep.subr.mxu0 0.0
        %3762 = vmatpush1.msra.mxu0 0.0
        %3763 = vmatprep.subr.mxu0 0.0
        %3764 = vmatpush1.msra.mxu0 0.0
        %3765 = vmatprep.subr.mxu0 0.0
        %3766 = vmatpush1.msra.mxu0 0.0
        %3767 = vmatprep.subr.mxu0 0.0
        %3768 = vmatpush1.msra.mxu0 0.0
        %3769 = vmatprep.mubr.f32.mxu0 0.0
        %3770 = vmatmul.mubr.f32.gmra.mrb[0].mxu0 %v3470
        %v3771 = vpop.f32.mrb[0].mxu0
        %v3772 = vadd.f32 0.0, %v3771
        %v3773 = vpop.f32.mrb[0].mxu0
        %v3774 = vadd.f32 0.0, %v3773
        %3775 = vmatprep.mubr.f32.mxu0 0.0
        %3776 = vmatmul.mubr.f32.gmra.mrb[0].mxu0 %v3472
        %v3777 = vpop.f32.mrb[0].mxu0
        %v3778 = vadd.f32 0.0, %v3777
        %v3779 = vpop.f32.mrb[0].mxu0
        %v3780 = vadd.f32 0.0, %v3779
        %3781 = vdwg.mxu0
        %3782 = vmatprep.subr.mxu0 %v3401
        %3783 = vmatpush1.msra.mxu0 %v3400
        %3784 = vmatprep.subr.mxu0 %v3419
        %3785 = vmatpush1.msra.mxu0 %v3418
        %3786 = vmatprep.subr.mxu0 %v3437
        %3787 = vmatpush1.msra.mxu0 %v3436
        %3788 = vmatprep.subr.mxu0 %v3455
        %3789 = vmatpush1.msra.mxu0 %v3454
        %3790 = vmatprep.subr.mxu0 0.0
        %3791 = vmatpush1.msra.mxu0 0.0
        %3792 = vmatprep.subr.mxu0 0.0
        %3793 = vmatpush1.msra.mxu0 0.0
        %3794 = vmatprep.subr.mxu0 0.0
        %3795 = vmatpush1.msra.mxu0 0.0
        %3796 = vmatprep.subr.mxu0 0.0
        %3797 = vmatpush1.msra.mxu0 0.0
        %3798 = vmatprep.subr.mxu0 0.0
        %3799 = vmatpush1.msra.mxu0 0.0
        %3800 = vmatprep.subr.mxu0 0.0
        %3801 = vmatpush1.msra.mxu0 0.0
        %3802 = vmatprep.subr.mxu0 0.0
        %3803 = vmatpush1.msra.mxu0 0.0
        %3804 = vmatprep.subr.mxu0 0.0
        %3805 = vmatpush1.msra.mxu0 0.0
        %3806 = vmatprep.subr.mxu0 0.0
        %3807 = vmatpush1.msra.mxu0 0.0
        %3808 = vmatprep.subr.mxu0 0.0
        %3809 = vmatpush1.msra.mxu0 0.0
        %3810 = vmatprep.subr.mxu0 0.0
        %3811 = vmatpush1.msra.mxu0 0.0
        %3812 = vmatprep.subr.mxu0 0.0
        %3813 = vmatpush1.msra.mxu0 0.0
        %3814 = vmatprep.subr.mxu0 0.0
        %3815 = vmatpush1.msra.mxu0 0.0
        %3816 = vmatprep.subr.mxu0 0.0
        %3817 = vmatpush1.msra.mxu0 0.0
        %3818 = vmatprep.subr.mxu0 0.0
        %3819 = vmatpush1.msra.mxu0 0.0
        %3820 = vmatprep.subr.mxu0 0.0
        %3821 = vmatpush1.msra.mxu0 0.0
        %3822 = vmatprep.subr.mxu0 0.0
        %3823 = vmatpush1.msra.mxu0 0.0
        %3824 = vmatprep.subr.mxu0 0.0
        %3825 = vmatpush1.msra.mxu0 0.0
        %3826 = vmatprep.subr.mxu0 0.0
        %3827 = vmatpush1.msra.mxu0 0.0
        %3828 = vmatprep.subr.mxu0 0.0
        %3829 = vmatpush1.msra.mxu0 0.0
        %3830 = vmatprep.subr.mxu0 0.0
        %3831 = vmatpush1.msra.mxu0 0.0
        %3832 = vmatprep.subr.mxu0 0.0
        %3833 = vmatpush1.msra.mxu0 0.0
        %3834 = vmatprep.subr.mxu0 0.0
        %3835 = vmatpush1.msra.mxu0 0.0
        %3836 = vmatprep.subr.mxu0 0.0
        %3837 = vmatpush1.msra.mxu0 0.0
        %3838 = vmatprep.subr.mxu0 0.0
        %3839 = vmatpush1.msra.mxu0 0.0
        %3840 = vmatprep.subr.mxu0 0.0
        %3841 = vmatpush1.msra.mxu0 0.0
        %3842 = vmatprep.subr.mxu0 0.0
        %3843 = vmatpush1.msra.mxu0 0.0
        %3844 = vmatprep.subr.mxu0 0.0
        %3845 = vmatpush1.msra.mxu0 0.0
        %3846 = vmatprep.mubr.f32.mxu0 0.0
        %3847 = vmatmul.mubr.f32.gmra.mrb[0].mxu0 %v3470
        %v3848 = vpop.f32.mrb[0].mxu0
        %v3849 = vadd.f32 0.0, %v3848
        %v3850 = vpop.f32.mrb[0].mxu0
        %v3851 = vadd.f32 0.0, %v3850
        %3852 = vmatprep.mubr.f32.mxu0 0.0
        %3853 = vmatmul.mubr.f32.gmra.mrb[0].mxu0 %v3472
        %v3854 = vpop.f32.mrb[0].mxu0
        %v3855 = vadd.f32 0.0, %v3854
        %v3856 = vpop.f32.mrb[0].mxu0
        %v3857 = vadd.f32 0.0, %v3856
        %3858 = vdwg.mxu0
        %3859 = vmatprep.subr.mxu0 %v3403
        %3860 = vmatpush1.msra.mxu0 %v3402
        %3861 = vmatprep.subr.mxu0 %v3421
        %3862 = vmatpush1.msra.mxu0 %v3420
        %3863 = vmatprep.subr.mxu0 %v3439
        %3864 = vmatpush1.msra.mxu0 %v3438
        %3865 = vmatprep.subr.mxu0 %v3457
        %3866 = vmatpush1.msra.mxu0 %v3456
        %3867 = vmatprep.subr.mxu0 0.0
        %3868 = vmatpush1.msra.mxu0 0.0
        %3869 = vmatprep.subr.mxu0 0.0
        %3870 = vmatpush1.msra.mxu0 0.0
        %3871 = vmatprep.subr.mxu0 0.0
        %3872 = vmatpush1.msra.mxu0 0.0
        %3873 = vmatprep.subr.mxu0 0.0
        %3874 = vmatpush1.msra.mxu0 0.0
        %3875 = vmatprep.subr.mxu0 0.0
        %3876 = vmatpush1.msra.mxu0 0.0
        %3877 = vmatprep.subr.mxu0 0.0
        %3878 = vmatpush1.msra.mxu0 0.0
        %3879 = vmatprep.subr.mxu0 0.0
        %3880 = vmatpush1.msra.mxu0 0.0
        %3881 = vmatprep.subr.mxu0 0.0
        %3882 = vmatpush1.msra.mxu0 0.0
        %3883 = vmatprep.subr.mxu0 0.0
        %3884 = vmatpush1.msra.mxu0 0.0
        %3885 = vmatprep.subr.mxu0 0.0
        %3886 = vmatpush1.msra.mxu0 0.0
        %3887 = vmatprep.subr.mxu0 0.0
        %3888 = vmatpush1.msra.mxu0 0.0
        %3889 = vmatprep.subr.mxu0 0.0
        %3890 = vmatpush1.msra.mxu0 0.0
        %3891 = vmatprep.subr.mxu0 0.0
        %3892 = vmatpush1.msra.mxu0 0.0
        %3893 = vmatprep.subr.mxu0 0.0
        %3894 = vmatpush1.msra.mxu0 0.0
        %3895 = vmatprep.subr.mxu0 0.0
        %3896 = vmatpush1.msra.mxu0 0.0
        %3897 = vmatprep.subr.mxu0 0.0
        %3898 = vmatpush1.msra.mxu0 0.0
        %3899 = vmatprep.subr.mxu0 0.0
        %3900 = vmatpush1.msra.mxu0 0.0
        %3901 = vmatprep.subr.mxu0 0.0
        %3902 = vmatpush1.msra.mxu0 0.0
        %3903 = vmatprep.subr.mxu0 0.0
        %3904 = vmatpush1.msra.mxu0 0.0
        %3905 = vmatprep.subr.mxu0 0.0
        %3906 = vmatpush1.msra.mxu0 0.0
        %3907 = vmatprep.subr.mxu0 0.0
        %3908 = vmatpush1.msra.mxu0 0.0
        %3909 = vmatprep.subr.mxu0 0.0
        %3910 = vmatpush1.msra.mxu0 0.0
        %3911 = vmatprep.subr.mxu0 0.0
        %3912 = vmatpush1.msra.mxu0 0.0
        %3913 = vmatprep.subr.mxu0 0.0
        %3914 = vmatpush1.msra.mxu0 0.0
        %3915 = vmatprep.subr.mxu0 0.0
        %3916 = vmatpush1.msra.mxu0 0.0
        %3917 = vmatprep.subr.mxu0 0.0
        %3918 = vmatpush1.msra.mxu0 0.0
        %3919 = vmatprep.subr.mxu0 0.0
        %3920 = vmatpush1.msra.mxu0 0.0
        %3921 = vmatprep.subr.mxu0 0.0
        %3922 = vmatpush1.msra.mxu0 0.0
        %3923 = vmatprep.mubr.f32.mxu0 0.0
        %3924 = vmatmul.mubr.f32.gmra.mrb[0].mxu0 %v3470
        %v3925 = vpop.f32.mrb[0].mxu0
        %v3926 = vadd.f32 0.0, %v3925
        %v3927 = vpop.f32.mrb[0].mxu0
        %v3928 = vadd.f32 0.0, %v3927
        %3929 = vmatprep.mubr.f32.mxu0 0.0
        %3930 = vmatmul.mubr.f32.gmra.mrb[0].mxu0 %v3472
        %v3931 = vpop.f32.mrb[0].mxu0
        %v3932 = vadd.f32 0.0, %v3931
        %v3933 = vpop.f32.mrb[0].mxu0
        %v3934 = vadd.f32 0.0, %v3933
        %3935 = vdwg.mxu0
        %3936 = vmatprep.subr.mxu0 %v3405
        %3937 = vmatpush1.msra.mxu0 %v3404
        %3938 = vmatprep.subr.mxu0 %v3423
        %3939 = vmatpush1.msra.mxu0 %v3422
        %3940 = vmatprep.subr.mxu0 %v3441
        %3941 = vmatpush1.msra.mxu0 %v3440
        %3942 = vmatprep.subr.mxu0 %v3459
        %3943 = vmatpush1.msra.mxu0 %v3458
        %3944 = vmatprep.subr.mxu0 0.0
        %3945 = vmatpush1.msra.mxu0 0.0
        %3946 = vmatprep.subr.mxu0 0.0
        %3947 = vmatpush1.msra.mxu0 0.0
        %3948 = vmatprep.subr.mxu0 0.0
        %3949 = vmatpush1.msra.mxu0 0.0
        %3950 = vmatprep.subr.mxu0 0.0
        %3951 = vmatpush1.msra.mxu0 0.0
        %3952 = vmatprep.subr.mxu0 0.0
        %3953 = vmatpush1.msra.mxu0 0.0
        %3954 = vmatprep.subr.mxu0 0.0
        %3955 = vmatpush1.msra.mxu0 0.0
        %3956 = vmatprep.subr.mxu0 0.0
        %3957 = vmatpush1.msra.mxu0 0.0
        %3958 = vmatprep.subr.mxu0 0.0
        %3959 = vmatpush1.msra.mxu0 0.0
        %3960 = vmatprep.subr.mxu0 0.0
        %3961 = vmatpush1.msra.mxu0 0.0
        %3962 = vmatprep.subr.mxu0 0.0
        %3963 = vmatpush1.msra.mxu0 0.0
        %3964 = vmatprep.subr.mxu0 0.0
        %3965 = vmatpush1.msra.mxu0 0.0
        %3966 = vmatprep.subr.mxu0 0.0
        %3967 = vmatpush1.msra.mxu0 0.0
        %3968 = vmatprep.subr.mxu0 0.0
        %3969 = vmatpush1.msra.mxu0 0.0
        %3970 = vmatprep.subr.mxu0 0.0
        %3971 = vmatpush1.msra.mxu0 0.0
        %3972 = vmatprep.subr.mxu0 0.0
        %3973 = vmatpush1.msra.mxu0 0.0
        %3974 = vmatprep.subr.mxu0 0.0
        %3975 = vmatpush1.msra.mxu0 0.0
        %3976 = vmatprep.subr.mxu0 0.0
        %3977 = vmatpush1.msra.mxu0 0.0
        %3978 = vmatprep.subr.mxu0 0.0
        %3979 = vmatpush1.msra.mxu0 0.0
        %3980 = vmatprep.subr.mxu0 0.0
        %3981 = vmatpush1.msra.mxu0 0.0
        %3982 = vmatprep.subr.mxu0 0.0
        %3983 = vmatpush1.msra.mxu0 0.0
        %3984 = vmatprep.subr.mxu0 0.0
        %3985 = vmatpush1.msra.mxu0 0.0
        %3986 = vmatprep.subr.mxu0 0.0
        %3987 = vmatpush1.msra.mxu0 0.0
        %3988 = vmatprep.subr.mxu0 0.0
        %3989 = vmatpush1.msra.mxu0 0.0
        %3990 = vmatprep.subr.mxu0 0.0
        %3991 = vmatpush1.msra.mxu0 0.0
        %3992 = vmatprep.subr.mxu0 0.0
        %3993 = vmatpush1.msra.mxu0 0.0
        %3994 = vmatprep.subr.mxu0 0.0
        %3995 = vmatpush1.msra.mxu0 0.0
        %3996 = vmatprep.subr.mxu0 0.0
        %3997 = vmatpush1.msra.mxu0 0.0
        %3998 = vmatprep.subr.mxu0 0.0
        %3999 = vmatpush1.msra.mxu0 0.0
        %4000 = vmatprep.mubr.f32.mxu0 0.0
        %4001 = vmatmul.mubr.f32.gmra.mrb[0].mxu0 %v3470
        %v4002 = vpop.f32.mrb[0].mxu0
        %v4003 = vadd.f32 0.0, %v4002
        %v4004 = vpop.f32.mrb[0].mxu0
        %v4005 = vadd.f32 0.0, %v4004
        %4006 = vmatprep.mubr.f32.mxu0 0.0
        %4007 = vmatmul.mubr.f32.gmra.mrb[0].mxu0 %v3472
        %v4008 = vpop.f32.mrb[0].mxu0
        %v4009 = vadd.f32 0.0, %v4008
        %v4010 = vpop.f32.mrb[0].mxu0
        %v4011 = vadd.f32 0.0, %v4010
        %4012 = vdwg.mxu0
        %4013 = vmatprep.subr.mxu0 %v3407
        %4014 = vmatpush1.msra.mxu0 %v3406
        %4015 = vmatprep.subr.mxu0 %v3425
        %4016 = vmatpush1.msra.mxu0 %v3424
        %4017 = vmatprep.subr.mxu0 %v3443
        %4018 = vmatpush1.msra.mxu0 %v3442
        %4019 = vmatprep.subr.mxu0 %v3461
        %4020 = vmatpush1.msra.mxu0 %v3460
        %4021 = vmatprep.subr.mxu0 0.0
        %4022 = vmatpush1.msra.mxu0 0.0
        %4023 = vmatprep.subr.mxu0 0.0
        %4024 = vmatpush1.msra.mxu0 0.0
        %4025 = vmatprep.subr.mxu0 0.0
        %4026 = vmatpush1.msra.mxu0 0.0
        %4027 = vmatprep.subr.mxu0 0.0
        %4028 = vmatpush1.msra.mxu0 0.0
        %4029 = vmatprep.subr.mxu0 0.0
        %4030 = vmatpush1.msra.mxu0 0.0
        %4031 = vmatprep.subr.mxu0 0.0
        %4032 = vmatpush1.msra.mxu0 0.0
        %4033 = vmatprep.subr.mxu0 0.0
        %4034 = vmatpush1.msra.mxu0 0.0
        %4035 = vmatprep.subr.mxu0 0.0
        %4036 = vmatpush1.msra.mxu0 0.0
        %4037 = vmatprep.subr.mxu0 0.0
        %4038 = vmatpush1.msra.mxu0 0.0
        %4039 = vmatprep.subr.mxu0 0.0
        %4040 = vmatpush1.msra.mxu0 0.0
        %4041 = vmatprep.subr.mxu0 0.0
        %4042 = vmatpush1.msra.mxu0 0.0
        %4043 = vmatprep.subr.mxu0 0.0
        %4044 = vmatpush1.msra.mxu0 0.0
        %4045 = vmatprep.subr.mxu0 0.0
        %4046 = vmatpush1.msra.mxu0 0.0
        %4047 = vmatprep.subr.mxu0 0.0
        %4048 = vmatpush1.msra.mxu0 0.0
        %4049 = vmatprep.subr.mxu0 0.0
        %4050 = vmatpush1.msra.mxu0 0.0
        %4051 = vmatprep.subr.mxu0 0.0
        %4052 = vmatpush1.msra.mxu0 0.0
        %4053 = vmatprep.subr.mxu0 0.0
        %4054 = vmatpush1.msra.mxu0 0.0
        %4055 = vmatprep.subr.mxu0 0.0
        %4056 = vmatpush1.msra.mxu0 0.0
        %4057 = vmatprep.subr.mxu0 0.0
        %4058 = vmatpush1.msra.mxu0 0.0
        %4059 = vmatprep.subr.mxu0 0.0
        %4060 = vmatpush1.msra.mxu0 0.0
        %4061 = vmatprep.subr.mxu0 0.0
        %4062 = vmatpush1.msra.mxu0 0.0
        %4063 = vmatprep.subr.mxu0 0.0
        %4064 = vmatpush1.msra.mxu0 0.0
        %4065 = vmatprep.subr.mxu0 0.0
        %4066 = vmatpush1.msra.mxu0 0.0
        %4067 = vmatprep.subr.mxu0 0.0
        %4068 = vmatpush1.msra.mxu0 0.0
        %4069 = vmatprep.subr.mxu0 0.0
        %4070 = vmatpush1.msra.mxu0 0.0
        %4071 = vmatprep.subr.mxu0 0.0
        %4072 = vmatpush1.msra.mxu0 0.0
        %4073 = vmatprep.subr.mxu0 0.0
        %4074 = vmatpush1.msra.mxu0 0.0
        %4075 = vmatprep.subr.mxu0 0.0
        %4076 = vmatpush1.msra.mxu0 0.0
        %4077 = vmatprep.mubr.f32.mxu0 0.0
        %4078 = vmatmul.mubr.f32.gmra.mrb[0].mxu0 %v3470
        %v4079 = vpop.f32.mrb[0].mxu0
        %v4080 = vadd.f32 0.0, %v4079
        %v4081 = vpop.f32.mrb[0].mxu0
        %v4082 = vadd.f32 0.0, %v4081
        %4083 = vmatprep.mubr.f32.mxu0 0.0
        %4084 = vmatmul.mubr.f32.gmra.mrb[0].mxu0 %v3472
        %v4085 = vpop.f32.mrb[0].mxu0
        %v4086 = vadd.f32 0.0, %v4085
        %v4087 = vpop.f32.mrb[0].mxu0
        %v4088 = vadd.f32 0.0, %v4087
        %4089 = vdwg.mxu0
        %4090 = vmatprep.subr.mxu0 %v3409
        %4091 = vmatpush1.msra.mxu0 %v3408
        %4092 = vmatprep.subr.mxu0 %v3427
        %4093 = vmatpush1.msra.mxu0 %v3426
        %4094 = vmatprep.subr.mxu0 %v3445
        %4095 = vmatpush1.msra.mxu0 %v3444
        %4096 = vmatprep.subr.mxu0 %v3463
        %4097 = vmatpush1.msra.mxu0 %v3462
        %4098 = vmatprep.subr.mxu0 0.0
        %4099 = vmatpush1.msra.mxu0 0.0
        %4100 = vmatprep.subr.mxu0 0.0
        %4101 = vmatpush1.msra.mxu0 0.0
        %4102 = vmatprep.subr.mxu0 0.0
        %4103 = vmatpush1.msra.mxu0 0.0
        %4104 = vmatprep.subr.mxu0 0.0
        %4105 = vmatpush1.msra.mxu0 0.0
        %4106 = vmatprep.subr.mxu0 0.0
        %4107 = vmatpush1.msra.mxu0 0.0
        %4108 = vmatprep.subr.mxu0 0.0
        %4109 = vmatpush1.msra.mxu0 0.0
        %4110 = vmatprep.subr.mxu0 0.0
        %4111 = vmatpush1.msra.mxu0 0.0
        %4112 = vmatprep.subr.mxu0 0.0
        %4113 = vmatpush1.msra.mxu0 0.0
        %4114 = vmatprep.subr.mxu0 0.0
        %4115 = vmatpush1.msra.mxu0 0.0
        %4116 = vmatprep.subr.mxu0 0.0
        %4117 = vmatpush1.msra.mxu0 0.0
        %4118 = vmatprep.subr.mxu0 0.0
        %4119 = vmatpush1.msra.mxu0 0.0
        %4120 = vmatprep.subr.mxu0 0.0
        %4121 = vmatpush1.msra.mxu0 0.0
        %4122 = vmatprep.subr.mxu0 0.0
        %4123 = vmatpush1.msra.mxu0 0.0
        %4124 = vmatprep.subr.mxu0 0.0
        %4125 = vmatpush1.msra.mxu0 0.0
        %4126 = vmatprep.subr.mxu0 0.0
        %4127 = vmatpush1.msra.mxu0 0.0
        %4128 = vmatprep.subr.mxu0 0.0
        %4129 = vmatpush1.msra.mxu0 0.0
        %4130 = vmatprep.subr.mxu0 0.0
        %4131 = vmatpush1.msra.mxu0 0.0
        %4132 = vmatprep.subr.mxu0 0.0
        %4133 = vmatpush1.msra.mxu0 0.0
        %4134 = vmatprep.subr.mxu0 0.0
        %4135 = vmatpush1.msra.mxu0 0.0
        %4136 = vmatprep.subr.mxu0 0.0
        %4137 = vmatpush1.msra.mxu0 0.0
        %4138 = vmatprep.subr.mxu0 0.0
        %4139 = vmatpush1.msra.mxu0 0.0
        %4140 = vmatprep.subr.mxu0 0.0
        %4141 = vmatpush1.msra.mxu0 0.0
        %4142 = vmatprep.subr.mxu0 0.0
        %4143 = vmatpush1.msra.mxu0 0.0
        %4144 = vmatprep.subr.mxu0 0.0
        %4145 = vmatpush1.msra.mxu0 0.0
        %4146 = vmatprep.subr.mxu0 0.0
        %4147 = vmatpush1.msra.mxu0 0.0
        %4148 = vmatprep.subr.mxu0 0.0
        %4149 = vmatpush1.msra.mxu0 0.0
        %4150 = vmatprep.subr.mxu0 0.0
        %4151 = vmatpush1.msra.mxu0 0.0
        %4152 = vmatprep.subr.mxu0 0.0
        %4153 = vmatpush1.msra.mxu0 0.0
        %4154 = vmatprep.mubr.f32.mxu0 0.0
        %4155 = vmatmul.mubr.f32.gmra.mrb[0].mxu0 %v3470
        %v4156 = vpop.f32.mrb[0].mxu0
        %v4157 = vadd.f32 0.0, %v4156
        %v4158 = vpop.f32.mrb[0].mxu0
        %v4159 = vadd.f32 0.0, %v4158
        %4160 = vmatprep.mubr.f32.mxu0 0.0
        %4161 = vmatmul.mubr.f32.gmra.mrb[0].mxu0 %v3472
        %v4162 = vpop.f32.mrb[0].mxu0
        %v4163 = vadd.f32 0.0, %v4162
        %v4164 = vpop.f32.mrb[0].mxu0
        %v4165 = vadd.f32 0.0, %v4164
        %4166 = vdwg.mxu0
        %v4167 = vadd.f32 %v3355, %v3541
        %v4168 = vadd.f32 %v3356, %v3543
        %v4169 = vadd.f32 %v3357, %v3618
        %v4170 = vadd.f32 %v3358, %v3620
        %v4171 = vadd.f32 %v3359, %v3695
        %v4172 = vadd.f32 %v3360, %v3697
        %v4173 = vadd.f32 %v3361, %v3772
        %v4174 = vadd.f32 %v3362, %v3774
        %v4175 = vadd.f32 %v3363, %v3849
        %v4176 = vadd.f32 %v3364, %v3851
        %v4177 = vadd.f32 %v3365, %v3926
        %v4178 = vadd.f32 %v3366, %v3928
        %v4179 = vadd.f32 %v3367, %v4003
        %v4180 = vadd.f32 %v3368, %v4005
        %v4181 = vadd.f32 %v3369, %v4080
        %v4182 = vadd.f32 %v3370, %v4082
        %v4183 = vadd.f32 %v3371, %v4157
        %v4184 = vadd.f32 %v3372, %v4159
        %v4185 = vadd.f32 %v3373, %v3547
        %v4186 = vadd.f32 %v3374, %v3549
        %v4187 = vadd.f32 %v3375, %v3624
        %v4188 = vadd.f32 %v3376, %v3626
        %v4189 = vadd.f32 %v3377, %v3701
        %v4190 = vadd.f32 %v3378, %v3703
        %v4191 = vadd.f32 %v3379, %v3778
        %v4192 = vadd.f32 %v3380, %v3780
        %v4193 = vadd.f32 %v3381, %v3855
        %v4194 = vadd.f32 %v3382, %v3857
        %v4195 = vadd.f32 %v3383, %v3932
        %v4196 = vadd.f32 %v3384, %v3934
        %v4197 = vadd.f32 %v3385, %v4009
        %v4198 = vadd.f32 %v3386, %v4011
        %v4199 = vadd.f32 %v3387, %v4086
        %v4200 = vadd.f32 %v3388, %v4088
        %v4201 = vadd.f32 %v3389, %v4163
        %v4202 = vadd.f32 %v3390, %v4165
        %s4203 = scalar_lea.vmem [#allocation2], 2880
        %v4204 = vld [vmem:[%s4203] sm:$0xff]
        %v4205 = vld [vmem:[%s4203 + $0x8] sm:$0xff]
        %v4206 = vld [vmem:[%s4203 + $0x10] sm:$0xff]
        %v4207 = vld [vmem:[%s4203 + $0x18] sm:$0xff]
        %v4208 = vld [vmem:[%s4203 + $0x20] sm:$0xff]
        %v4209 = vld [vmem:[%s4203 + $0x28] sm:$0xff]
        %v4210 = vld [vmem:[%s4203 + $0x30] sm:$0xff]
        %v4211 = vld [vmem:[%s4203 + $0x38] sm:$0xff]
        %v4212 = vld [vmem:[%s4203 + $0x40] sm:$0xff]
        %v4213 = vld [vmem:[%s4203 + $0x48] sm:$0xff]
        %v4214 = vld [vmem:[%s4203 + $0x50] sm:$0xff]
        %v4215 = vld [vmem:[%s4203 + $0x58] sm:$0xff]
        %v4216 = vld [vmem:[%s4203 + $0x60] sm:$0xff]
        %v4217 = vld [vmem:[%s4203 + $0x68] sm:$0xff]
        %v4218 = vld [vmem:[%s4203 + $0x70] sm:$0xff]
        %v4219 = vld [vmem:[%s4203 + $0x78] sm:$0xff]
        %v4220 = vld [vmem:[%s4203 + $0x80] sm:$0xff]
        %v4221 = vld [vmem:[%s4203 + $0x88] sm:$0xff]
        %v4222 = vld [vmem:[%s4203 + $0x90] sm:$0xff]
        %v4223 = vld [vmem:[%s4203 + $0x98] sm:$0xff]
        %v4224 = vld [vmem:[%s4203 + $0xa0] sm:$0xff]
        %v4225 = vld [vmem:[%s4203 + $0xa8] sm:$0xff]
        %v4226 = vld [vmem:[%s4203 + $0xb0] sm:$0xff]
        %v4227 = vld [vmem:[%s4203 + $0xb8] sm:$0xff]
        %v4228 = vld [vmem:[%s4203 + $0xc0] sm:$0xff]
        %v4229 = vld [vmem:[%s4203 + $0xc8] sm:$0xff]
        %v4230 = vld [vmem:[%s4203 + $0xd0] sm:$0xff]
        %v4231 = vld [vmem:[%s4203 + $0xd8] sm:$0xff]
        %v4232 = vld [vmem:[%s4203 + $0xe0] sm:$0xff]
        %v4233 = vld [vmem:[%s4203 + $0xe8] sm:$0xff]
        %v4234 = vld [vmem:[%s4203 + $0xf0] sm:$0xff]
        %v4235 = vld [vmem:[%s4203 + $0xf8] sm:$0xff]
        %v4236 = vld [vmem:[%s4203 + $0x100] sm:$0xff]
        %v4237 = vld [vmem:[%s4203 + $0x108] sm:$0xff]
        %v4238 = vld [vmem:[%s4203 + $0x110] sm:$0xff]
        %v4239 = vld [vmem:[%s4203 + $0x118] sm:$0xff]
        %v4240 = vld [vmem:[%s4203 + $0x120] sm:$0xff]
        %v4241 = vld [vmem:[%s4203 + $0x128] sm:$0xff]
        %v4242 = vld [vmem:[%s4203 + $0x130] sm:$0xff]
        %v4243 = vld [vmem:[%s4203 + $0x138] sm:$0xff]
        %v4244 = vld [vmem:[%s4203 + $0x140] sm:$0xff]
        %v4245 = vld [vmem:[%s4203 + $0x148] sm:$0xff]
        %v4246 = vld [vmem:[%s4203 + $0x150] sm:$0xff]
        %v4247 = vld [vmem:[%s4203 + $0x158] sm:$0xff]
        %v4248 = vld [vmem:[%s4203 + $0x160] sm:$0xff]
        %v4249 = vld [vmem:[%s4203 + $0x168] sm:$0xff]
        %v4250 = vld [vmem:[%s4203 + $0x170] sm:$0xff]
        %v4251 = vld [vmem:[%s4203 + $0x178] sm:$0xff]
        %v4252 = vld [vmem:[%s4203 + $0x180] sm:$0xff]
        %v4253 = vld [vmem:[%s4203 + $0x188] sm:$0xff]
        %v4254 = vld [vmem:[%s4203 + $0x190] sm:$0xff]
        %v4255 = vld [vmem:[%s4203 + $0x198] sm:$0xff]
        %v4256 = vld [vmem:[%s4203 + $0x1a0] sm:$0xff]
        %v4257 = vld [vmem:[%s4203 + $0x1a8] sm:$0xff]
        %v4258 = vld [vmem:[%s4203 + $0x1b0] sm:$0xff]
        %v4259 = vld [vmem:[%s4203 + $0x1b8] sm:$0xff]
        %v4260 = vld [vmem:[%s4203 + $0x1c0] sm:$0xff]
        %v4261 = vld [vmem:[%s4203 + $0x1c8] sm:$0xff]
        %v4262 = vld [vmem:[%s4203 + $0x1d0] sm:$0xff]
        %v4263 = vld [vmem:[%s4203 + $0x1d8] sm:$0xff]
        %v4264 = vld [vmem:[%s4203 + $0x1e0] sm:$0xff]
        %v4265 = vld [vmem:[%s4203 + $0x1e8] sm:$0xff]
        %v4266 = vld [vmem:[%s4203 + $0x1f0] sm:$0xff]
        %v4267 = vld [vmem:[%s4203 + $0x1f8] sm:$0xff]
        %v4268 = vld [vmem:[%s4203 + $0x200] sm:$0xff]
        %v4269 = vld [vmem:[%s4203 + $0x208] sm:$0xff]
        %v4270 = vld [vmem:[%s4203 + $0x210] sm:$0xff]
        %v4271 = vld [vmem:[%s4203 + $0x218] sm:$0xff]
        %v4272 = vld [vmem:[%s4203 + $0x220] sm:$0xff]
        %v4273 = vld [vmem:[%s4203 + $0x228] sm:$0xff]
        %v4274 = vld [vmem:[%s4203 + $0x230] sm:$0xff]
        %v4275 = vld [vmem:[%s4203 + $0x238] sm:$0xff]
        %vm4276 = vcmask 1042432
        %v4277 = vrot.slane %v214, 5
        %v4278 = vrot.slane %v215, 5
        %v4279 = vsel %vm4276, %v4277, %v4278
        %v4280 = vrot.slane %v216, 5
        %v4281 = vsel %vm4276, %v4278, %v4280
        %v4282 = vsel %vm372, %v4279, 0
        %v4284 = vsel %vm372, %v4281, 0
        %4286 = vmatprep.subr.mxu0 %v4205
        %4287 = vmatpush1.msra.mxu0 %v4204
        %4288 = vmatprep.subr.mxu0 %v4223
        %4289 = vmatpush1.msra.mxu0 %v4222
        %4290 = vmatprep.subr.mxu0 %v4241
        %4291 = vmatpush1.msra.mxu0 %v4240
        %4292 = vmatprep.subr.mxu0 %v4259
        %4293 = vmatpush1.msra.mxu0 %v4258
        %4294 = vmatprep.subr.mxu0 0.0
        %4295 = vmatpush1.msra.mxu0 0.0
        %4296 = vmatprep.subr.mxu0 0.0
        %4297 = vmatpush1.msra.mxu0 0.0
        %4298 = vmatprep.subr.mxu0 0.0
        %4299 = vmatpush1.msra.mxu0 0.0
        %4300 = vmatprep.subr.mxu0 0.0
        %4301 = vmatpush1.msra.mxu0 0.0
        %4302 = vmatprep.subr.mxu0 0.0
        %4303 = vmatpush1.msra.mxu0 0.0
        %4304 = vmatprep.subr.mxu0 0.0
        %4305 = vmatpush1.msra.mxu0 0.0
        %4306 = vmatprep.subr.mxu0 0.0
        %4307 = vmatpush1.msra.mxu0 0.0
        %4308 = vmatprep.subr.mxu0 0.0
        %4309 = vmatpush1.msra.mxu0 0.0
        %4310 = vmatprep.subr.mxu0 0.0
        %4311 = vmatpush1.msra.mxu0 0.0
        %4312 = vmatprep.subr.mxu0 0.0
        %4313 = vmatpush1.msra.mxu0 0.0
        %4314 = vmatprep.subr.mxu0 0.0
        %4315 = vmatpush1.msra.mxu0 0.0
        %4316 = vmatprep.subr.mxu0 0.0
        %4317 = vmatpush1.msra.mxu0 0.0
        %4318 = vmatprep.subr.mxu0 0.0
        %4319 = vmatpush1.msra.mxu0 0.0
        %4320 = vmatprep.subr.mxu0 0.0
        %4321 = vmatpush1.msra.mxu0 0.0
        %4322 = vmatprep.subr.mxu0 0.0
        %4323 = vmatpush1.msra.mxu0 0.0
        %4324 = vmatprep.subr.mxu0 0.0
        %4325 = vmatpush1.msra.mxu0 0.0
        %4326 = vmatprep.subr.mxu0 0.0
        %4327 = vmatpush1.msra.mxu0 0.0
        %4328 = vmatprep.subr.mxu0 0.0
        %4329 = vmatpush1.msra.mxu0 0.0
        %4330 = vmatprep.subr.mxu0 0.0
        %4331 = vmatpush1.msra.mxu0 0.0
        %4332 = vmatprep.subr.mxu0 0.0
        %4333 = vmatpush1.msra.mxu0 0.0
        %4334 = vmatprep.subr.mxu0 0.0
        %4335 = vmatpush1.msra.mxu0 0.0
        %4336 = vmatprep.subr.mxu0 0.0
        %4337 = vmatpush1.msra.mxu0 0.0
        %4338 = vmatprep.subr.mxu0 0.0
        %4339 = vmatpush1.msra.mxu0 0.0
        %4340 = vmatprep.subr.mxu0 0.0
        %4341 = vmatpush1.msra.mxu0 0.0
        %4342 = vmatprep.subr.mxu0 0.0
        %4343 = vmatpush1.msra.mxu0 0.0
        %4344 = vmatprep.subr.mxu0 0.0
        %4345 = vmatpush1.msra.mxu0 0.0
        %4346 = vmatprep.subr.mxu0 0.0
        %4347 = vmatpush1.msra.mxu0 0.0
        %4348 = vmatprep.subr.mxu0 0.0
        %4349 = vmatpush1.msra.mxu0 0.0
        %4350 = vmatprep.mubr.f32.mxu0 0.0
        %4351 = vmatmul.mubr.f32.gmra.mrb[0].mxu0 %v4282
        %v4352 = vpop.f32.mrb[0].mxu0
        %v4353 = vadd.f32 0.0, %v4352
        %v4354 = vpop.f32.mrb[0].mxu0
        %v4355 = vadd.f32 0.0, %v4354
        %4356 = vmatprep.mubr.f32.mxu0 0.0
        %4357 = vmatmul.mubr.f32.gmra.mrb[0].mxu0 %v4284
        %v4358 = vpop.f32.mrb[0].mxu0
        %v4359 = vadd.f32 0.0, %v4358
        %v4360 = vpop.f32.mrb[0].mxu0
        %v4361 = vadd.f32 0.0, %v4360
        %4362 = vdwg.mxu0
        %4363 = vmatprep.subr.mxu0 %v4207
        %4364 = vmatpush1.msra.mxu0 %v4206
        %4365 = vmatprep.subr.mxu0 %v4225
        %4366 = vmatpush1.msra.mxu0 %v4224
        %4367 = vmatprep.subr.mxu0 %v4243
        %4368 = vmatpush1.msra.mxu0 %v4242
        %4369 = vmatprep.subr.mxu0 %v4261
        %4370 = vmatpush1.msra.mxu0 %v4260
        %4371 = vmatprep.subr.mxu0 0.0
        %4372 = vmatpush1.msra.mxu0 0.0
        %4373 = vmatprep.subr.mxu0 0.0
        %4374 = vmatpush1.msra.mxu0 0.0
        %4375 = vmatprep.subr.mxu0 0.0
        %4376 = vmatpush1.msra.mxu0 0.0
        %4377 = vmatprep.subr.mxu0 0.0
        %4378 = vmatpush1.msra.mxu0 0.0
        %4379 = vmatprep.subr.mxu0 0.0
        %4380 = vmatpush1.msra.mxu0 0.0
        %4381 = vmatprep.subr.mxu0 0.0
        %4382 = vmatpush1.msra.mxu0 0.0
        %4383 = vmatprep.subr.mxu0 0.0
        %4384 = vmatpush1.msra.mxu0 0.0
        %4385 = vmatprep.subr.mxu0 0.0
        %4386 = vmatpush1.msra.mxu0 0.0
        %4387 = vmatprep.subr.mxu0 0.0
        %4388 = vmatpush1.msra.mxu0 0.0
        %4389 = vmatprep.subr.mxu0 0.0
        %4390 = vmatpush1.msra.mxu0 0.0
        %4391 = vmatprep.subr.mxu0 0.0
        %4392 = vmatpush1.msra.mxu0 0.0
        %4393 = vmatprep.subr.mxu0 0.0
        %4394 = vmatpush1.msra.mxu0 0.0
        %4395 = vmatprep.subr.mxu0 0.0
        %4396 = vmatpush1.msra.mxu0 0.0
        %4397 = vmatprep.subr.mxu0 0.0
        %4398 = vmatpush1.msra.mxu0 0.0
        %4399 = vmatprep.subr.mxu0 0.0
        %4400 = vmatpush1.msra.mxu0 0.0
        %4401 = vmatprep.subr.mxu0 0.0
        %4402 = vmatpush1.msra.mxu0 0.0
        %4403 = vmatprep.subr.mxu0 0.0
        %4404 = vmatpush1.msra.mxu0 0.0
        %4405 = vmatprep.subr.mxu0 0.0
        %4406 = vmatpush1.msra.mxu0 0.0
        %4407 = vmatprep.subr.mxu0 0.0
        %4408 = vmatpush1.msra.mxu0 0.0
        %4409 = vmatprep.subr.mxu0 0.0
        %4410 = vmatpush1.msra.mxu0 0.0
        %4411 = vmatprep.subr.mxu0 0.0
        %4412 = vmatpush1.msra.mxu0 0.0
        %4413 = vmatprep.subr.mxu0 0.0
        %4414 = vmatpush1.msra.mxu0 0.0
        %4415 = vmatprep.subr.mxu0 0.0
        %4416 = vmatpush1.msra.mxu0 0.0
        %4417 = vmatprep.subr.mxu0 0.0
        %4418 = vmatpush1.msra.mxu0 0.0
        %4419 = vmatprep.subr.mxu0 0.0
        %4420 = vmatpush1.msra.mxu0 0.0
        %4421 = vmatprep.subr.mxu0 0.0
        %4422 = vmatpush1.msra.mxu0 0.0
        %4423 = vmatprep.subr.mxu0 0.0
        %4424 = vmatpush1.msra.mxu0 0.0
        %4425 = vmatprep.subr.mxu0 0.0
        %4426 = vmatpush1.msra.mxu0 0.0
        %4427 = vmatprep.mubr.f32.mxu0 0.0
        %4428 = vmatmul.mubr.f32.gmra.mrb[0].mxu0 %v4282
        %v4429 = vpop.f32.mrb[0].mxu0
        %v4430 = vadd.f32 0.0, %v4429
        %v4431 = vpop.f32.mrb[0].mxu0
        %v4432 = vadd.f32 0.0, %v4431
        %4433 = vmatprep.mubr.f32.mxu0 0.0
        %4434 = vmatmul.mubr.f32.gmra.mrb[0].mxu0 %v4284
        %v4435 = vpop.f32.mrb[0].mxu0
        %v4436 = vadd.f32 0.0, %v4435
        %v4437 = vpop.f32.mrb[0].mxu0
        %v4438 = vadd.f32 0.0, %v4437
        %4439 = vdwg.mxu0
        %4440 = vmatprep.subr.mxu0 %v4209
        %4441 = vmatpush1.msra.mxu0 %v4208
        %4442 = vmatprep.subr.mxu0 %v4227
        %4443 = vmatpush1.msra.mxu0 %v4226
        %4444 = vmatprep.subr.mxu0 %v4245
        %4445 = vmatpush1.msra.mxu0 %v4244
        %4446 = vmatprep.subr.mxu0 %v4263
        %4447 = vmatpush1.msra.mxu0 %v4262
        %4448 = vmatprep.subr.mxu0 0.0
        %4449 = vmatpush1.msra.mxu0 0.0
        %4450 = vmatprep.subr.mxu0 0.0
        %4451 = vmatpush1.msra.mxu0 0.0
        %4452 = vmatprep.subr.mxu0 0.0
        %4453 = vmatpush1.msra.mxu0 0.0
        %4454 = vmatprep.subr.mxu0 0.0
        %4455 = vmatpush1.msra.mxu0 0.0
        %4456 = vmatprep.subr.mxu0 0.0
        %4457 = vmatpush1.msra.mxu0 0.0
        %4458 = vmatprep.subr.mxu0 0.0
        %4459 = vmatpush1.msra.mxu0 0.0
        %4460 = vmatprep.subr.mxu0 0.0
        %4461 = vmatpush1.msra.mxu0 0.0
        %4462 = vmatprep.subr.mxu0 0.0
        %4463 = vmatpush1.msra.mxu0 0.0
        %4464 = vmatprep.subr.mxu0 0.0
        %4465 = vmatpush1.msra.mxu0 0.0
        %4466 = vmatprep.subr.mxu0 0.0
        %4467 = vmatpush1.msra.mxu0 0.0
        %4468 = vmatprep.subr.mxu0 0.0
        %4469 = vmatpush1.msra.mxu0 0.0
        %4470 = vmatprep.subr.mxu0 0.0
        %4471 = vmatpush1.msra.mxu0 0.0
        %4472 = vmatprep.subr.mxu0 0.0
        %4473 = vmatpush1.msra.mxu0 0.0
        %4474 = vmatprep.subr.mxu0 0.0
        %4475 = vmatpush1.msra.mxu0 0.0
        %4476 = vmatprep.subr.mxu0 0.0
        %4477 = vmatpush1.msra.mxu0 0.0
        %4478 = vmatprep.subr.mxu0 0.0
        %4479 = vmatpush1.msra.mxu0 0.0
        %4480 = vmatprep.subr.mxu0 0.0
        %4481 = vmatpush1.msra.mxu0 0.0
        %4482 = vmatprep.subr.mxu0 0.0
        %4483 = vmatpush1.msra.mxu0 0.0
        %4484 = vmatprep.subr.mxu0 0.0
        %4485 = vmatpush1.msra.mxu0 0.0
        %4486 = vmatprep.subr.mxu0 0.0
        %4487 = vmatpush1.msra.mxu0 0.0
        %4488 = vmatprep.subr.mxu0 0.0
        %4489 = vmatpush1.msra.mxu0 0.0
        %4490 = vmatprep.subr.mxu0 0.0
        %4491 = vmatpush1.msra.mxu0 0.0
        %4492 = vmatprep.subr.mxu0 0.0
        %4493 = vmatpush1.msra.mxu0 0.0
        %4494 = vmatprep.subr.mxu0 0.0
        %4495 = vmatpush1.msra.mxu0 0.0
        %4496 = vmatprep.subr.mxu0 0.0
        %4497 = vmatpush1.msra.mxu0 0.0
        %4498 = vmatprep.subr.mxu0 0.0
        %4499 = vmatpush1.msra.mxu0 0.0
        %4500 = vmatprep.subr.mxu0 0.0
        %4501 = vmatpush1.msra.mxu0 0.0
        %4502 = vmatprep.subr.mxu0 0.0
        %4503 = vmatpush1.msra.mxu0 0.0
        %4504 = vmatprep.mubr.f32.mxu0 0.0
        %4505 = vmatmul.mubr.f32.gmra.mrb[0].mxu0 %v4282
        %v4506 = vpop.f32.mrb[0].mxu0
        %v4507 = vadd.f32 0.0, %v4506
        %v4508 = vpop.f32.mrb[0].mxu0
        %v4509 = vadd.f32 0.0, %v4508
        %4510 = vmatprep.mubr.f32.mxu0 0.0
        %4511 = vmatmul.mubr.f32.gmra.mrb[0].mxu0 %v4284
        %v4512 = vpop.f32.mrb[0].mxu0
        %v4513 = vadd.f32 0.0, %v4512
        %v4514 = vpop.f32.mrb[0].mxu0
        %v4515 = vadd.f32 0.0, %v4514
        %4516 = vdwg.mxu0
        %4517 = vmatprep.subr.mxu0 %v4211
        %4518 = vmatpush1.msra.mxu0 %v4210
        %4519 = vmatprep.subr.mxu0 %v4229
        %4520 = vmatpush1.msra.mxu0 %v4228
        %4521 = vmatprep.subr.mxu0 %v4247
        %4522 = vmatpush1.msra.mxu0 %v4246
        %4523 = vmatprep.subr.mxu0 %v4265
        %4524 = vmatpush1.msra.mxu0 %v4264
        %4525 = vmatprep.subr.mxu0 0.0
        %4526 = vmatpush1.msra.mxu0 0.0
        %4527 = vmatprep.subr.mxu0 0.0
        %4528 = vmatpush1.msra.mxu0 0.0
        %4529 = vmatprep.subr.mxu0 0.0
        %4530 = vmatpush1.msra.mxu0 0.0
        %4531 = vmatprep.subr.mxu0 0.0
        %4532 = vmatpush1.msra.mxu0 0.0
        %4533 = vmatprep.subr.mxu0 0.0
        %4534 = vmatpush1.msra.mxu0 0.0
        %4535 = vmatprep.subr.mxu0 0.0
        %4536 = vmatpush1.msra.mxu0 0.0
        %4537 = vmatprep.subr.mxu0 0.0
        %4538 = vmatpush1.msra.mxu0 0.0
        %4539 = vmatprep.subr.mxu0 0.0
        %4540 = vmatpush1.msra.mxu0 0.0
        %4541 = vmatprep.subr.mxu0 0.0
        %4542 = vmatpush1.msra.mxu0 0.0
        %4543 = vmatprep.subr.mxu0 0.0
        %4544 = vmatpush1.msra.mxu0 0.0
        %4545 = vmatprep.subr.mxu0 0.0
        %4546 = vmatpush1.msra.mxu0 0.0
        %4547 = vmatprep.subr.mxu0 0.0
        %4548 = vmatpush1.msra.mxu0 0.0
        %4549 = vmatprep.subr.mxu0 0.0
        %4550 = vmatpush1.msra.mxu0 0.0
        %4551 = vmatprep.subr.mxu0 0.0
        %4552 = vmatpush1.msra.mxu0 0.0
        %4553 = vmatprep.subr.mxu0 0.0
        %4554 = vmatpush1.msra.mxu0 0.0
        %4555 = vmatprep.subr.mxu0 0.0
        %4556 = vmatpush1.msra.mxu0 0.0
        %4557 = vmatprep.subr.mxu0 0.0
        %4558 = vmatpush1.msra.mxu0 0.0
        %4559 = vmatprep.subr.mxu0 0.0
        %4560 = vmatpush1.msra.mxu0 0.0
        %4561 = vmatprep.subr.mxu0 0.0
        %4562 = vmatpush1.msra.mxu0 0.0
        %4563 = vmatprep.subr.mxu0 0.0
        %4564 = vmatpush1.msra.mxu0 0.0
        %4565 = vmatprep.subr.mxu0 0.0
        %4566 = vmatpush1.msra.mxu0 0.0
        %4567 = vmatprep.subr.mxu0 0.0
        %4568 = vmatpush1.msra.mxu0 0.0
        %4569 = vmatprep.subr.mxu0 0.0
        %4570 = vmatpush1.msra.mxu0 0.0
        %4571 = vmatprep.subr.mxu0 0.0
        %4572 = vmatpush1.msra.mxu0 0.0
        %4573 = vmatprep.subr.mxu0 0.0
        %4574 = vmatpush1.msra.mxu0 0.0
        %4575 = vmatprep.subr.mxu0 0.0
        %4576 = vmatpush1.msra.mxu0 0.0
        %4577 = vmatprep.subr.mxu0 0.0
        %4578 = vmatpush1.msra.mxu0 0.0
        %4579 = vmatprep.subr.mxu0 0.0
        %4580 = vmatpush1.msra.mxu0 0.0
        %4581 = vmatprep.mubr.f32.mxu0 0.0
        %4582 = vmatmul.mubr.f32.gmra.mrb[0].mxu0 %v4282
        %v4583 = vpop.f32.mrb[0].mxu0
        %v4584 = vadd.f32 0.0, %v4583
        %v4585 = vpop.f32.mrb[0].mxu0
        %v4586 = vadd.f32 0.0, %v4585
        %4587 = vmatprep.mubr.f32.mxu0 0.0
        %4588 = vmatmul.mubr.f32.gmra.mrb[0].mxu0 %v4284
        %v4589 = vpop.f32.mrb[0].mxu0
        %v4590 = vadd.f32 0.0, %v4589
        %v4591 = vpop.f32.mrb[0].mxu0
        %v4592 = vadd.f32 0.0, %v4591
        %4593 = vdwg.mxu0
        %4594 = vmatprep.subr.mxu0 %v4213
        %4595 = vmatpush1.msra.mxu0 %v4212
        %4596 = vmatprep.subr.mxu0 %v4231
        %4597 = vmatpush1.msra.mxu0 %v4230
        %4598 = vmatprep.subr.mxu0 %v4249
        %4599 = vmatpush1.msra.mxu0 %v4248
        %4600 = vmatprep.subr.mxu0 %v4267
        %4601 = vmatpush1.msra.mxu0 %v4266
        %4602 = vmatprep.subr.mxu0 0.0
        %4603 = vmatpush1.msra.mxu0 0.0
        %4604 = vmatprep.subr.mxu0 0.0
        %4605 = vmatpush1.msra.mxu0 0.0
        %4606 = vmatprep.subr.mxu0 0.0
        %4607 = vmatpush1.msra.mxu0 0.0
        %4608 = vmatprep.subr.mxu0 0.0
        %4609 = vmatpush1.msra.mxu0 0.0
        %4610 = vmatprep.subr.mxu0 0.0
        %4611 = vmatpush1.msra.mxu0 0.0
        %4612 = vmatprep.subr.mxu0 0.0
        %4613 = vmatpush1.msra.mxu0 0.0
        %4614 = vmatprep.subr.mxu0 0.0
        %4615 = vmatpush1.msra.mxu0 0.0
        %4616 = vmatprep.subr.mxu0 0.0
        %4617 = vmatpush1.msra.mxu0 0.0
        %4618 = vmatprep.subr.mxu0 0.0
        %4619 = vmatpush1.msra.mxu0 0.0
        %4620 = vmatprep.subr.mxu0 0.0
        %4621 = vmatpush1.msra.mxu0 0.0
        %4622 = vmatprep.subr.mxu0 0.0
        %4623 = vmatpush1.msra.mxu0 0.0
        %4624 = vmatprep.subr.mxu0 0.0
        %4625 = vmatpush1.msra.mxu0 0.0
        %4626 = vmatprep.subr.mxu0 0.0
        %4627 = vmatpush1.msra.mxu0 0.0
        %4628 = vmatprep.subr.mxu0 0.0
        %4629 = vmatpush1.msra.mxu0 0.0
        %4630 = vmatprep.subr.mxu0 0.0
        %4631 = vmatpush1.msra.mxu0 0.0
        %4632 = vmatprep.subr.mxu0 0.0
        %4633 = vmatpush1.msra.mxu0 0.0
        %4634 = vmatprep.subr.mxu0 0.0
        %4635 = vmatpush1.msra.mxu0 0.0
        %4636 = vmatprep.subr.mxu0 0.0
        %4637 = vmatpush1.msra.mxu0 0.0
        %4638 = vmatprep.subr.mxu0 0.0
        %4639 = vmatpush1.msra.mxu0 0.0
        %4640 = vmatprep.subr.mxu0 0.0
        %4641 = vmatpush1.msra.mxu0 0.0
        %4642 = vmatprep.subr.mxu0 0.0
        %4643 = vmatpush1.msra.mxu0 0.0
        %4644 = vmatprep.subr.mxu0 0.0
        %4645 = vmatpush1.msra.mxu0 0.0
        %4646 = vmatprep.subr.mxu0 0.0
        %4647 = vmatpush1.msra.mxu0 0.0
        %4648 = vmatprep.subr.mxu0 0.0
        %4649 = vmatpush1.msra.mxu0 0.0
        %4650 = vmatprep.subr.mxu0 0.0
        %4651 = vmatpush1.msra.mxu0 0.0
        %4652 = vmatprep.subr.mxu0 0.0
        %4653 = vmatpush1.msra.mxu0 0.0
        %4654 = vmatprep.subr.mxu0 0.0
        %4655 = vmatpush1.msra.mxu0 0.0
        %4656 = vmatprep.subr.mxu0 0.0
        %4657 = vmatpush1.msra.mxu0 0.0
        %4658 = vmatprep.mubr.f32.mxu0 0.0
        %4659 = vmatmul.mubr.f32.gmra.mrb[0].mxu0 %v4282
        %v4660 = vpop.f32.mrb[0].mxu0
        %v4661 = vadd.f32 0.0, %v4660
        %v4662 = vpop.f32.mrb[0].mxu0
        %v4663 = vadd.f32 0.0, %v4662
        %4664 = vmatprep.mubr.f32.mxu0 0.0
        %4665 = vmatmul.mubr.f32.gmra.mrb[0].mxu0 %v4284
        %v4666 = vpop.f32.mrb[0].mxu0
        %v4667 = vadd.f32 0.0, %v4666
        %v4668 = vpop.f32.mrb[0].mxu0
        %v4669 = vadd.f32 0.0, %v4668
        %4670 = vdwg.mxu0
        %4671 = vmatprep.subr.mxu0 %v4215
        %4672 = vmatpush1.msra.mxu0 %v4214
        %4673 = vmatprep.subr.mxu0 %v4233
        %4674 = vmatpush1.msra.mxu0 %v4232
        %4675 = vmatprep.subr.mxu0 %v4251
        %4676 = vmatpush1.msra.mxu0 %v4250
        %4677 = vmatprep.subr.mxu0 %v4269
        %4678 = vmatpush1.msra.mxu0 %v4268
        %4679 = vmatprep.subr.mxu0 0.0
        %4680 = vmatpush1.msra.mxu0 0.0
        %4681 = vmatprep.subr.mxu0 0.0
        %4682 = vmatpush1.msra.mxu0 0.0
        %4683 = vmatprep.subr.mxu0 0.0
        %4684 = vmatpush1.msra.mxu0 0.0
        %4685 = vmatprep.subr.mxu0 0.0
        %4686 = vmatpush1.msra.mxu0 0.0
        %4687 = vmatprep.subr.mxu0 0.0
        %4688 = vmatpush1.msra.mxu0 0.0
        %4689 = vmatprep.subr.mxu0 0.0
        %4690 = vmatpush1.msra.mxu0 0.0
        %4691 = vmatprep.subr.mxu0 0.0
        %4692 = vmatpush1.msra.mxu0 0.0
        %4693 = vmatprep.subr.mxu0 0.0
        %4694 = vmatpush1.msra.mxu0 0.0
        %4695 = vmatprep.subr.mxu0 0.0
        %4696 = vmatpush1.msra.mxu0 0.0
        %4697 = vmatprep.subr.mxu0 0.0
        %4698 = vmatpush1.msra.mxu0 0.0
        %4699 = vmatprep.subr.mxu0 0.0
        %4700 = vmatpush1.msra.mxu0 0.0
        %4701 = vmatprep.subr.mxu0 0.0
        %4702 = vmatpush1.msra.mxu0 0.0
        %4703 = vmatprep.subr.mxu0 0.0
        %4704 = vmatpush1.msra.mxu0 0.0
        %4705 = vmatprep.subr.mxu0 0.0
        %4706 = vmatpush1.msra.mxu0 0.0
        %4707 = vmatprep.subr.mxu0 0.0
        %4708 = vmatpush1.msra.mxu0 0.0
        %4709 = vmatprep.subr.mxu0 0.0
        %4710 = vmatpush1.msra.mxu0 0.0
        %4711 = vmatprep.subr.mxu0 0.0
        %4712 = vmatpush1.msra.mxu0 0.0
        %4713 = vmatprep.subr.mxu0 0.0
        %4714 = vmatpush1.msra.mxu0 0.0
        %4715 = vmatprep.subr.mxu0 0.0
        %4716 = vmatpush1.msra.mxu0 0.0
        %4717 = vmatprep.subr.mxu0 0.0
        %4718 = vmatpush1.msra.mxu0 0.0
        %4719 = vmatprep.subr.mxu0 0.0
        %4720 = vmatpush1.msra.mxu0 0.0
        %4721 = vmatprep.subr.mxu0 0.0
        %4722 = vmatpush1.msra.mxu0 0.0
        %4723 = vmatprep.subr.mxu0 0.0
        %4724 = vmatpush1.msra.mxu0 0.0
        %4725 = vmatprep.subr.mxu0 0.0
        %4726 = vmatpush1.msra.mxu0 0.0
        %4727 = vmatprep.subr.mxu0 0.0
        %4728 = vmatpush1.msra.mxu0 0.0
        %4729 = vmatprep.subr.mxu0 0.0
        %4730 = vmatpush1.msra.mxu0 0.0
        %4731 = vmatprep.subr.mxu0 0.0
        %4732 = vmatpush1.msra.mxu0 0.0
        %4733 = vmatprep.subr.mxu0 0.0
        %4734 = vmatpush1.msra.mxu0 0.0
        %4735 = vmatprep.mubr.f32.mxu0 0.0
        %4736 = vmatmul.mubr.f32.gmra.mrb[0].mxu0 %v4282
        %v4737 = vpop.f32.mrb[0].mxu0
        %v4738 = vadd.f32 0.0, %v4737
        %v4739 = vpop.f32.mrb[0].mxu0
        %v4740 = vadd.f32 0.0, %v4739
        %4741 = vmatprep.mubr.f32.mxu0 0.0
        %4742 = vmatmul.mubr.f32.gmra.mrb[0].mxu0 %v4284
        %v4743 = vpop.f32.mrb[0].mxu0
        %v4744 = vadd.f32 0.0, %v4743
        %v4745 = vpop.f32.mrb[0].mxu0
        %v4746 = vadd.f32 0.0, %v4745
        %4747 = vdwg.mxu0
        %4748 = vmatprep.subr.mxu0 %v4217
        %4749 = vmatpush1.msra.mxu0 %v4216
        %4750 = vmatprep.subr.mxu0 %v4235
        %4751 = vmatpush1.msra.mxu0 %v4234
        %4752 = vmatprep.subr.mxu0 %v4253
        %4753 = vmatpush1.msra.mxu0 %v4252
        %4754 = vmatprep.subr.mxu0 %v4271
        %4755 = vmatpush1.msra.mxu0 %v4270
        %4756 = vmatprep.subr.mxu0 0.0
        %4757 = vmatpush1.msra.mxu0 0.0
        %4758 = vmatprep.subr.mxu0 0.0
        %4759 = vmatpush1.msra.mxu0 0.0
        %4760 = vmatprep.subr.mxu0 0.0
        %4761 = vmatpush1.msra.mxu0 0.0
        %4762 = vmatprep.subr.mxu0 0.0
        %4763 = vmatpush1.msra.mxu0 0.0
        %4764 = vmatprep.subr.mxu0 0.0
        %4765 = vmatpush1.msra.mxu0 0.0
        %4766 = vmatprep.subr.mxu0 0.0
        %4767 = vmatpush1.msra.mxu0 0.0
        %4768 = vmatprep.subr.mxu0 0.0
        %4769 = vmatpush1.msra.mxu0 0.0
        %4770 = vmatprep.subr.mxu0 0.0
        %4771 = vmatpush1.msra.mxu0 0.0
        %4772 = vmatprep.subr.mxu0 0.0
        %4773 = vmatpush1.msra.mxu0 0.0
        %4774 = vmatprep.subr.mxu0 0.0
        %4775 = vmatpush1.msra.mxu0 0.0
        %4776 = vmatprep.subr.mxu0 0.0
        %4777 = vmatpush1.msra.mxu0 0.0
        %4778 = vmatprep.subr.mxu0 0.0
        %4779 = vmatpush1.msra.mxu0 0.0
        %4780 = vmatprep.subr.mxu0 0.0
        %4781 = vmatpush1.msra.mxu0 0.0
        %4782 = vmatprep.subr.mxu0 0.0
        %4783 = vmatpush1.msra.mxu0 0.0
        %4784 = vmatprep.subr.mxu0 0.0
        %4785 = vmatpush1.msra.mxu0 0.0
        %4786 = vmatprep.subr.mxu0 0.0
        %4787 = vmatpush1.msra.mxu0 0.0
        %4788 = vmatprep.subr.mxu0 0.0
        %4789 = vmatpush1.msra.mxu0 0.0
        %4790 = vmatprep.subr.mxu0 0.0
        %4791 = vmatpush1.msra.mxu0 0.0
        %4792 = vmatprep.subr.mxu0 0.0
        %4793 = vmatpush1.msra.mxu0 0.0
        %4794 = vmatprep.subr.mxu0 0.0
        %4795 = vmatpush1.msra.mxu0 0.0
        %4796 = vmatprep.subr.mxu0 0.0
        %4797 = vmatpush1.msra.mxu0 0.0
        %4798 = vmatprep.subr.mxu0 0.0
        %4799 = vmatpush1.msra.mxu0 0.0
        %4800 = vmatprep.subr.mxu0 0.0
        %4801 = vmatpush1.msra.mxu0 0.0
        %4802 = vmatprep.subr.mxu0 0.0
        %4803 = vmatpush1.msra.mxu0 0.0
        %4804 = vmatprep.subr.mxu0 0.0
        %4805 = vmatpush1.msra.mxu0 0.0
        %4806 = vmatprep.subr.mxu0 0.0
        %4807 = vmatpush1.msra.mxu0 0.0
        %4808 = vmatprep.subr.mxu0 0.0
        %4809 = vmatpush1.msra.mxu0 0.0
        %4810 = vmatprep.subr.mxu0 0.0
        %4811 = vmatpush1.msra.mxu0 0.0
        %4812 = vmatprep.mubr.f32.mxu0 0.0
        %4813 = vmatmul.mubr.f32.gmra.mrb[0].mxu0 %v4282
        %v4814 = vpop.f32.mrb[0].mxu0
        %v4815 = vadd.f32 0.0, %v4814
        %v4816 = vpop.f32.mrb[0].mxu0
        %v4817 = vadd.f32 0.0, %v4816
        %4818 = vmatprep.mubr.f32.mxu0 0.0
        %4819 = vmatmul.mubr.f32.gmra.mrb[0].mxu0 %v4284
        %v4820 = vpop.f32.mrb[0].mxu0
        %v4821 = vadd.f32 0.0, %v4820
        %v4822 = vpop.f32.mrb[0].mxu0
        %v4823 = vadd.f32 0.0, %v4822
        %4824 = vdwg.mxu0
        %4825 = vmatprep.subr.mxu0 %v4219
        %4826 = vmatpush1.msra.mxu0 %v4218
        %4827 = vmatprep.subr.mxu0 %v4237
        %4828 = vmatpush1.msra.mxu0 %v4236
        %4829 = vmatprep.subr.mxu0 %v4255
        %4830 = vmatpush1.msra.mxu0 %v4254
        %4831 = vmatprep.subr.mxu0 %v4273
        %4832 = vmatpush1.msra.mxu0 %v4272
        %4833 = vmatprep.subr.mxu0 0.0
        %4834 = vmatpush1.msra.mxu0 0.0
        %4835 = vmatprep.subr.mxu0 0.0
        %4836 = vmatpush1.msra.mxu0 0.0
        %4837 = vmatprep.subr.mxu0 0.0
        %4838 = vmatpush1.msra.mxu0 0.0
        %4839 = vmatprep.subr.mxu0 0.0
        %4840 = vmatpush1.msra.mxu0 0.0
        %4841 = vmatprep.subr.mxu0 0.0
        %4842 = vmatpush1.msra.mxu0 0.0
        %4843 = vmatprep.subr.mxu0 0.0
        %4844 = vmatpush1.msra.mxu0 0.0
        %4845 = vmatprep.subr.mxu0 0.0
        %4846 = vmatpush1.msra.mxu0 0.0
        %4847 = vmatprep.subr.mxu0 0.0
        %4848 = vmatpush1.msra.mxu0 0.0
        %4849 = vmatprep.subr.mxu0 0.0
        %4850 = vmatpush1.msra.mxu0 0.0
        %4851 = vmatprep.subr.mxu0 0.0
        %4852 = vmatpush1.msra.mxu0 0.0
        %4853 = vmatprep.subr.mxu0 0.0
        %4854 = vmatpush1.msra.mxu0 0.0
        %4855 = vmatprep.subr.mxu0 0.0
        %4856 = vmatpush1.msra.mxu0 0.0
        %4857 = vmatprep.subr.mxu0 0.0
        %4858 = vmatpush1.msra.mxu0 0.0
        %4859 = vmatprep.subr.mxu0 0.0
        %4860 = vmatpush1.msra.mxu0 0.0
        %4861 = vmatprep.subr.mxu0 0.0
        %4862 = vmatpush1.msra.mxu0 0.0
        %4863 = vmatprep.subr.mxu0 0.0
        %4864 = vmatpush1.msra.mxu0 0.0
        %4865 = vmatprep.subr.mxu0 0.0
        %4866 = vmatpush1.msra.mxu0 0.0
        %4867 = vmatprep.subr.mxu0 0.0
        %4868 = vmatpush1.msra.mxu0 0.0
        %4869 = vmatprep.subr.mxu0 0.0
        %4870 = vmatpush1.msra.mxu0 0.0
        %4871 = vmatprep.subr.mxu0 0.0
        %4872 = vmatpush1.msra.mxu0 0.0
        %4873 = vmatprep.subr.mxu0 0.0
        %4874 = vmatpush1.msra.mxu0 0.0
        %4875 = vmatprep.subr.mxu0 0.0
        %4876 = vmatpush1.msra.mxu0 0.0
        %4877 = vmatprep.subr.mxu0 0.0
        %4878 = vmatpush1.msra.mxu0 0.0
        %4879 = vmatprep.subr.mxu0 0.0
        %4880 = vmatpush1.msra.mxu0 0.0
        %4881 = vmatprep.subr.mxu0 0.0
        %4882 = vmatpush1.msra.mxu0 0.0
        %4883 = vmatprep.subr.mxu0 0.0
        %4884 = vmatpush1.msra.mxu0 0.0
        %4885 = vmatprep.subr.mxu0 0.0
        %4886 = vmatpush1.msra.mxu0 0.0
        %4887 = vmatprep.subr.mxu0 0.0
        %4888 = vmatpush1.msra.mxu0 0.0
        %4889 = vmatprep.mubr.f32.mxu0 0.0
        %4890 = vmatmul.mubr.f32.gmra.mrb[0].mxu0 %v4282
        %v4891 = vpop.f32.mrb[0].mxu0
        %v4892 = vadd.f32 0.0, %v4891
        %v4893 = vpop.f32.mrb[0].mxu0
        %v4894 = vadd.f32 0.0, %v4893
        %4895 = vmatprep.mubr.f32.mxu0 0.0
        %4896 = vmatmul.mubr.f32.gmra.mrb[0].mxu0 %v4284
        %v4897 = vpop.f32.mrb[0].mxu0
        %v4898 = vadd.f32 0.0, %v4897
        %v4899 = vpop.f32.mrb[0].mxu0
        %v4900 = vadd.f32 0.0, %v4899
        %4901 = vdwg.mxu0
        %4902 = vmatprep.subr.mxu0 %v4221
        %4903 = vmatpush1.msra.mxu0 %v4220
        %4904 = vmatprep.subr.mxu0 %v4239
        %4905 = vmatpush1.msra.mxu0 %v4238
        %4906 = vmatprep.subr.mxu0 %v4257
        %4907 = vmatpush1.msra.mxu0 %v4256
        %4908 = vmatprep.subr.mxu0 %v4275
        %4909 = vmatpush1.msra.mxu0 %v4274
        %4910 = vmatprep.subr.mxu0 0.0
        %4911 = vmatpush1.msra.mxu0 0.0
        %4912 = vmatprep.subr.mxu0 0.0
        %4913 = vmatpush1.msra.mxu0 0.0
        %4914 = vmatprep.subr.mxu0 0.0
        %4915 = vmatpush1.msra.mxu0 0.0
        %4916 = vmatprep.subr.mxu0 0.0
        %4917 = vmatpush1.msra.mxu0 0.0
        %4918 = vmatprep.subr.mxu0 0.0
        %4919 = vmatpush1.msra.mxu0 0.0
        %4920 = vmatprep.subr.mxu0 0.0
        %4921 = vmatpush1.msra.mxu0 0.0
        %4922 = vmatprep.subr.mxu0 0.0
        %4923 = vmatpush1.msra.mxu0 0.0
        %4924 = vmatprep.subr.mxu0 0.0
        %4925 = vmatpush1.msra.mxu0 0.0
        %4926 = vmatprep.subr.mxu0 0.0
        %4927 = vmatpush1.msra.mxu0 0.0
        %4928 = vmatprep.subr.mxu0 0.0
        %4929 = vmatpush1.msra.mxu0 0.0
        %4930 = vmatprep.subr.mxu0 0.0
        %4931 = vmatpush1.msra.mxu0 0.0
        %4932 = vmatprep.subr.mxu0 0.0
        %4933 = vmatpush1.msra.mxu0 0.0
        %4934 = vmatprep.subr.mxu0 0.0
        %4935 = vmatpush1.msra.mxu0 0.0
        %4936 = vmatprep.subr.mxu0 0.0
        %4937 = vmatpush1.msra.mxu0 0.0
        %4938 = vmatprep.subr.mxu0 0.0
        %4939 = vmatpush1.msra.mxu0 0.0
        %4940 = vmatprep.subr.mxu0 0.0
        %4941 = vmatpush1.msra.mxu0 0.0
        %4942 = vmatprep.subr.mxu0 0.0
        %4943 = vmatpush1.msra.mxu0 0.0
        %4944 = vmatprep.subr.mxu0 0.0
        %4945 = vmatpush1.msra.mxu0 0.0
        %4946 = vmatprep.subr.mxu0 0.0
        %4947 = vmatpush1.msra.mxu0 0.0
        %4948 = vmatprep.subr.mxu0 0.0
        %4949 = vmatpush1.msra.mxu0 0.0
        %4950 = vmatprep.subr.mxu0 0.0
        %4951 = vmatpush1.msra.mxu0 0.0
        %4952 = vmatprep.subr.mxu0 0.0
        %4953 = vmatpush1.msra.mxu0 0.0
        %4954 = vmatprep.subr.mxu0 0.0
        %4955 = vmatpush1.msra.mxu0 0.0
        %4956 = vmatprep.subr.mxu0 0.0
        %4957 = vmatpush1.msra.mxu0 0.0
        %4958 = vmatprep.subr.mxu0 0.0
        %4959 = vmatpush1.msra.mxu0 0.0
        %4960 = vmatprep.subr.mxu0 0.0
        %4961 = vmatpush1.msra.mxu0 0.0
        %4962 = vmatprep.subr.mxu0 0.0
        %4963 = vmatpush1.msra.mxu0 0.0
        %4964 = vmatprep.subr.mxu0 0.0
        %4965 = vmatpush1.msra.mxu0 0.0
        %4966 = vmatprep.mubr.f32.mxu0 0.0
        %4967 = vmatmul.mubr.f32.gmra.mrb[0].mxu0 %v4282
        %v4968 = vpop.f32.mrb[0].mxu0
        %v4969 = vadd.f32 0.0, %v4968
        %v4970 = vpop.f32.mrb[0].mxu0
        %v4971 = vadd.f32 0.0, %v4970
        %4972 = vmatprep.mubr.f32.mxu0 0.0
        %4973 = vmatmul.mubr.f32.gmra.mrb[0].mxu0 %v4284
        %v4974 = vpop.f32.mrb[0].mxu0
        %v4975 = vadd.f32 0.0, %v4974
        %v4976 = vpop.f32.mrb[0].mxu0
        %v4977 = vadd.f32 0.0, %v4976
        %4978 = vdwg.mxu0
        %v4979 = vadd.f32 %v4167, %v4353
        %v4980 = vadd.f32 %v4168, %v4355
        %v4981 = vadd.f32 %v4169, %v4430
        %v4982 = vadd.f32 %v4170, %v4432
        %v4983 = vadd.f32 %v4171, %v4507
        %v4984 = vadd.f32 %v4172, %v4509
        %v4985 = vadd.f32 %v4173, %v4584
        %v4986 = vadd.f32 %v4174, %v4586
        %v4987 = vadd.f32 %v4175, %v4661
        %v4988 = vadd.f32 %v4176, %v4663
        %v4989 = vadd.f32 %v4177, %v4738
        %v4990 = vadd.f32 %v4178, %v4740
        %v4991 = vadd.f32 %v4179, %v4815
        %v4992 = vadd.f32 %v4180, %v4817
        %v4993 = vadd.f32 %v4181, %v4892
        %v4994 = vadd.f32 %v4182, %v4894
        %v4995 = vadd.f32 %v4183, %v4969
        %v4996 = vadd.f32 %v4184, %v4971
        %v4997 = vadd.f32 %v4185, %v4359
        %v4998 = vadd.f32 %v4186, %v4361
        %v4999 = vadd.f32 %v4187, %v4436
        %v5000 = vadd.f32 %v4188, %v4438
        %v5001 = vadd.f32 %v4189, %v4513
        %v5002 = vadd.f32 %v4190, %v4515
        %v5003 = vadd.f32 %v4191, %v4590
        %v5004 = vadd.f32 %v4192, %v4592
        %v5005 = vadd.f32 %v4193, %v4667
        %v5006 = vadd.f32 %v4194, %v4669
        %v5007 = vadd.f32 %v4195, %v4744
        %v5008 = vadd.f32 %v4196, %v4746
        %v5009 = vadd.f32 %v4197, %v4821
        %v5010 = vadd.f32 %v4198, %v4823
        %v5011 = vadd.f32 %v4199, %v4898
        %v5012 = vadd.f32 %v4200, %v4900
        %v5013 = vadd.f32 %v4201, %v4975
        %v5014 = vadd.f32 %v4202, %v4977
        %s5015 = scalar_lea.vmem [#allocation2], 3456
        %v5016 = vld [vmem:[%s5015] sm:$0xff]
        %v5017 = vld [vmem:[%s5015 + $0x8] sm:$0xff]
        %v5018 = vld [vmem:[%s5015 + $0x10] sm:$0xff]
        %v5019 = vld [vmem:[%s5015 + $0x18] sm:$0xff]
        %v5020 = vld [vmem:[%s5015 + $0x20] sm:$0xff]
        %v5021 = vld [vmem:[%s5015 + $0x28] sm:$0xff]
        %v5022 = vld [vmem:[%s5015 + $0x30] sm:$0xff]
        %v5023 = vld [vmem:[%s5015 + $0x38] sm:$0xff]
        %v5024 = vld [vmem:[%s5015 + $0x40] sm:$0xff]
        %v5025 = vld [vmem:[%s5015 + $0x48] sm:$0xff]
        %v5026 = vld [vmem:[%s5015 + $0x50] sm:$0xff]
        %v5027 = vld [vmem:[%s5015 + $0x58] sm:$0xff]
        %v5028 = vld [vmem:[%s5015 + $0x60] sm:$0xff]
        %v5029 = vld [vmem:[%s5015 + $0x68] sm:$0xff]
        %v5030 = vld [vmem:[%s5015 + $0x70] sm:$0xff]
        %v5031 = vld [vmem:[%s5015 + $0x78] sm:$0xff]
        %v5032 = vld [vmem:[%s5015 + $0x80] sm:$0xff]
        %v5033 = vld [vmem:[%s5015 + $0x88] sm:$0xff]
        %v5034 = vld [vmem:[%s5015 + $0x90] sm:$0xff]
        %v5035 = vld [vmem:[%s5015 + $0x98] sm:$0xff]
        %v5036 = vld [vmem:[%s5015 + $0xa0] sm:$0xff]
        %v5037 = vld [vmem:[%s5015 + $0xa8] sm:$0xff]
        %v5038 = vld [vmem:[%s5015 + $0xb0] sm:$0xff]
        %v5039 = vld [vmem:[%s5015 + $0xb8] sm:$0xff]
        %v5040 = vld [vmem:[%s5015 + $0xc0] sm:$0xff]
        %v5041 = vld [vmem:[%s5015 + $0xc8] sm:$0xff]
        %v5042 = vld [vmem:[%s5015 + $0xd0] sm:$0xff]
        %v5043 = vld [vmem:[%s5015 + $0xd8] sm:$0xff]
        %v5044 = vld [vmem:[%s5015 + $0xe0] sm:$0xff]
        %v5045 = vld [vmem:[%s5015 + $0xe8] sm:$0xff]
        %v5046 = vld [vmem:[%s5015 + $0xf0] sm:$0xff]
        %v5047 = vld [vmem:[%s5015 + $0xf8] sm:$0xff]
        %v5048 = vld [vmem:[%s5015 + $0x100] sm:$0xff]
        %v5049 = vld [vmem:[%s5015 + $0x108] sm:$0xff]
        %v5050 = vld [vmem:[%s5015 + $0x110] sm:$0xff]
        %v5051 = vld [vmem:[%s5015 + $0x118] sm:$0xff]
        %v5052 = vld [vmem:[%s5015 + $0x120] sm:$0xff]
        %v5053 = vld [vmem:[%s5015 + $0x128] sm:$0xff]
        %v5054 = vld [vmem:[%s5015 + $0x130] sm:$0xff]
        %v5055 = vld [vmem:[%s5015 + $0x138] sm:$0xff]
        %v5056 = vld [vmem:[%s5015 + $0x140] sm:$0xff]
        %v5057 = vld [vmem:[%s5015 + $0x148] sm:$0xff]
        %v5058 = vld [vmem:[%s5015 + $0x150] sm:$0xff]
        %v5059 = vld [vmem:[%s5015 + $0x158] sm:$0xff]
        %v5060 = vld [vmem:[%s5015 + $0x160] sm:$0xff]
        %v5061 = vld [vmem:[%s5015 + $0x168] sm:$0xff]
        %v5062 = vld [vmem:[%s5015 + $0x170] sm:$0xff]
        %v5063 = vld [vmem:[%s5015 + $0x178] sm:$0xff]
        %v5064 = vld [vmem:[%s5015 + $0x180] sm:$0xff]
        %v5065 = vld [vmem:[%s5015 + $0x188] sm:$0xff]
        %v5066 = vld [vmem:[%s5015 + $0x190] sm:$0xff]
        %v5067 = vld [vmem:[%s5015 + $0x198] sm:$0xff]
        %v5068 = vld [vmem:[%s5015 + $0x1a0] sm:$0xff]
        %v5069 = vld [vmem:[%s5015 + $0x1a8] sm:$0xff]
        %v5070 = vld [vmem:[%s5015 + $0x1b0] sm:$0xff]
        %v5071 = vld [vmem:[%s5015 + $0x1b8] sm:$0xff]
        %v5072 = vld [vmem:[%s5015 + $0x1c0] sm:$0xff]
        %v5073 = vld [vmem:[%s5015 + $0x1c8] sm:$0xff]
        %v5074 = vld [vmem:[%s5015 + $0x1d0] sm:$0xff]
        %v5075 = vld [vmem:[%s5015 + $0x1d8] sm:$0xff]
        %v5076 = vld [vmem:[%s5015 + $0x1e0] sm:$0xff]
        %v5077 = vld [vmem:[%s5015 + $0x1e8] sm:$0xff]
        %v5078 = vld [vmem:[%s5015 + $0x1f0] sm:$0xff]
        %v5079 = vld [vmem:[%s5015 + $0x1f8] sm:$0xff]
        %v5080 = vld [vmem:[%s5015 + $0x200] sm:$0xff]
        %v5081 = vld [vmem:[%s5015 + $0x208] sm:$0xff]
        %v5082 = vld [vmem:[%s5015 + $0x210] sm:$0xff]
        %v5083 = vld [vmem:[%s5015 + $0x218] sm:$0xff]
        %v5084 = vld [vmem:[%s5015 + $0x220] sm:$0xff]
        %v5085 = vld [vmem:[%s5015 + $0x228] sm:$0xff]
        %v5086 = vld [vmem:[%s5015 + $0x230] sm:$0xff]
        %v5087 = vld [vmem:[%s5015 + $0x238] sm:$0xff]
        %vm5088 = vcmask 1041408
        %v5089 = vrot.slane %v214, 6
        %v5090 = vrot.slane %v215, 6
        %v5091 = vsel %vm5088, %v5089, %v5090
        %v5092 = vrot.slane %v216, 6
        %v5093 = vsel %vm5088, %v5090, %v5092
        %v5094 = vsel %vm372, %v5091, 0
        %v5096 = vsel %vm372, %v5093, 0
        %5098 = vmatprep.subr.mxu0 %v5017
        %5099 = vmatpush1.msra.mxu0 %v5016
        %5100 = vmatprep.subr.mxu0 %v5035
        %5101 = vmatpush1.msra.mxu0 %v5034
        %5102 = vmatprep.subr.mxu0 %v5053
        %5103 = vmatpush1.msra.mxu0 %v5052
        %5104 = vmatprep.subr.mxu0 %v5071
        %5105 = vmatpush1.msra.mxu0 %v5070
        %5106 = vmatprep.subr.mxu0 0.0
        %5107 = vmatpush1.msra.mxu0 0.0
        %5108 = vmatprep.subr.mxu0 0.0
        %5109 = vmatpush1.msra.mxu0 0.0
        %5110 = vmatprep.subr.mxu0 0.0
        %5111 = vmatpush1.msra.mxu0 0.0
        %5112 = vmatprep.subr.mxu0 0.0
        %5113 = vmatpush1.msra.mxu0 0.0
        %5114 = vmatprep.subr.mxu0 0.0
        %5115 = vmatpush1.msra.mxu0 0.0
        %5116 = vmatprep.subr.mxu0 0.0
        %5117 = vmatpush1.msra.mxu0 0.0
        %5118 = vmatprep.subr.mxu0 0.0
        %5119 = vmatpush1.msra.mxu0 0.0
        %5120 = vmatprep.subr.mxu0 0.0
        %5121 = vmatpush1.msra.mxu0 0.0
        %5122 = vmatprep.subr.mxu0 0.0
        %5123 = vmatpush1.msra.mxu0 0.0
        %5124 = vmatprep.subr.mxu0 0.0
        %5125 = vmatpush1.msra.mxu0 0.0
        %5126 = vmatprep.subr.mxu0 0.0
        %5127 = vmatpush1.msra.mxu0 0.0
        %5128 = vmatprep.subr.mxu0 0.0
        %5129 = vmatpush1.msra.mxu0 0.0
        %5130 = vmatprep.subr.mxu0 0.0
        %5131 = vmatpush1.msra.mxu0 0.0
        %5132 = vmatprep.subr.mxu0 0.0
        %5133 = vmatpush1.msra.mxu0 0.0
        %5134 = vmatprep.subr.mxu0 0.0
        %5135 = vmatpush1.msra.mxu0 0.0
        %5136 = vmatprep.subr.mxu0 0.0
        %5137 = vmatpush1.msra.mxu0 0.0
        %5138 = vmatprep.subr.mxu0 0.0
        %5139 = vmatpush1.msra.mxu0 0.0
        %5140 = vmatprep.subr.mxu0 0.0
        %5141 = vmatpush1.msra.mxu0 0.0
        %5142 = vmatprep.subr.mxu0 0.0
        %5143 = vmatpush1.msra.mxu0 0.0
        %5144 = vmatprep.subr.mxu0 0.0
        %5145 = vmatpush1.msra.mxu0 0.0
        %5146 = vmatprep.subr.mxu0 0.0
        %5147 = vmatpush1.msra.mxu0 0.0
        %5148 = vmatprep.subr.mxu0 0.0
        %5149 = vmatpush1.msra.mxu0 0.0
        %5150 = vmatprep.subr.mxu0 0.0
        %5151 = vmatpush1.msra.mxu0 0.0
        %5152 = vmatprep.subr.mxu0 0.0
        %5153 = vmatpush1.msra.mxu0 0.0
        %5154 = vmatprep.subr.mxu0 0.0
        %5155 = vmatpush1.msra.mxu0 0.0
        %5156 = vmatprep.subr.mxu0 0.0
        %5157 = vmatpush1.msra.mxu0 0.0
        %5158 = vmatprep.subr.mxu0 0.0
        %5159 = vmatpush1.msra.mxu0 0.0
        %5160 = vmatprep.subr.mxu0 0.0
        %5161 = vmatpush1.msra.mxu0 0.0
        %5162 = vmatprep.mubr.f32.mxu0 0.0
        %5163 = vmatmul.mubr.f32.gmra.mrb[0].mxu0 %v5094
        %v5164 = vpop.f32.mrb[0].mxu0
        %v5165 = vadd.f32 0.0, %v5164
        %v5166 = vpop.f32.mrb[0].mxu0
        %v5167 = vadd.f32 0.0, %v5166
        %5168 = vmatprep.mubr.f32.mxu0 0.0
        %5169 = vmatmul.mubr.f32.gmra.mrb[0].mxu0 %v5096
        %v5170 = vpop.f32.mrb[0].mxu0
        %v5171 = vadd.f32 0.0, %v5170
        %v5172 = vpop.f32.mrb[0].mxu0
        %v5173 = vadd.f32 0.0, %v5172
        %5174 = vdwg.mxu0
        %5175 = vmatprep.subr.mxu0 %v5019
        %5176 = vmatpush1.msra.mxu0 %v5018
        %5177 = vmatprep.subr.mxu0 %v5037
        %5178 = vmatpush1.msra.mxu0 %v5036
        %5179 = vmatprep.subr.mxu0 %v5055
        %5180 = vmatpush1.msra.mxu0 %v5054
        %5181 = vmatprep.subr.mxu0 %v5073
        %5182 = vmatpush1.msra.mxu0 %v5072
        %5183 = vmatprep.subr.mxu0 0.0
        %5184 = vmatpush1.msra.mxu0 0.0
        %5185 = vmatprep.subr.mxu0 0.0
        %5186 = vmatpush1.msra.mxu0 0.0
        %5187 = vmatprep.subr.mxu0 0.0
        %5188 = vmatpush1.msra.mxu0 0.0
        %5189 = vmatprep.subr.mxu0 0.0
        %5190 = vmatpush1.msra.mxu0 0.0
        %5191 = vmatprep.subr.mxu0 0.0
        %5192 = vmatpush1.msra.mxu0 0.0
        %5193 = vmatprep.subr.mxu0 0.0
        %5194 = vmatpush1.msra.mxu0 0.0
        %5195 = vmatprep.subr.mxu0 0.0
        %5196 = vmatpush1.msra.mxu0 0.0
        %5197 = vmatprep.subr.mxu0 0.0
        %5198 = vmatpush1.msra.mxu0 0.0
        %5199 = vmatprep.subr.mxu0 0.0
        %5200 = vmatpush1.msra.mxu0 0.0
        %5201 = vmatprep.subr.mxu0 0.0
        %5202 = vmatpush1.msra.mxu0 0.0
        %5203 = vmatprep.subr.mxu0 0.0
        %5204 = vmatpush1.msra.mxu0 0.0
        %5205 = vmatprep.subr.mxu0 0.0
        %5206 = vmatpush1.msra.mxu0 0.0
        %5207 = vmatprep.subr.mxu0 0.0
        %5208 = vmatpush1.msra.mxu0 0.0
        %5209 = vmatprep.subr.mxu0 0.0
        %5210 = vmatpush1.msra.mxu0 0.0
        %5211 = vmatprep.subr.mxu0 0.0
        %5212 = vmatpush1.msra.mxu0 0.0
        %5213 = vmatprep.subr.mxu0 0.0
        %5214 = vmatpush1.msra.mxu0 0.0
        %5215 = vmatprep.subr.mxu0 0.0
        %5216 = vmatpush1.msra.mxu0 0.0
        %5217 = vmatprep.subr.mxu0 0.0
        %5218 = vmatpush1.msra.mxu0 0.0
        %5219 = vmatprep.subr.mxu0 0.0
        %5220 = vmatpush1.msra.mxu0 0.0
        %5221 = vmatprep.subr.mxu0 0.0
        %5222 = vmatpush1.msra.mxu0 0.0
        %5223 = vmatprep.subr.mxu0 0.0
        %5224 = vmatpush1.msra.mxu0 0.0
        %5225 = vmatprep.subr.mxu0 0.0
        %5226 = vmatpush1.msra.mxu0 0.0
        %5227 = vmatprep.subr.mxu0 0.0
        %5228 = vmatpush1.msra.mxu0 0.0
        %5229 = vmatprep.subr.mxu0 0.0
        %5230 = vmatpush1.msra.mxu0 0.0
        %5231 = vmatprep.subr.mxu0 0.0
        %5232 = vmatpush1.msra.mxu0 0.0
        %5233 = vmatprep.subr.mxu0 0.0
        %5234 = vmatpush1.msra.mxu0 0.0
        %5235 = vmatprep.subr.mxu0 0.0
        %5236 = vmatpush1.msra.mxu0 0.0
        %5237 = vmatprep.subr.mxu0 0.0
        %5238 = vmatpush1.msra.mxu0 0.0
        %5239 = vmatprep.mubr.f32.mxu0 0.0
        %5240 = vmatmul.mubr.f32.gmra.mrb[0].mxu0 %v5094
        %v5241 = vpop.f32.mrb[0].mxu0
        %v5242 = vadd.f32 0.0, %v5241
        %v5243 = vpop.f32.mrb[0].mxu0
        %v5244 = vadd.f32 0.0, %v5243
        %5245 = vmatprep.mubr.f32.mxu0 0.0
        %5246 = vmatmul.mubr.f32.gmra.mrb[0].mxu0 %v5096
        %v5247 = vpop.f32.mrb[0].mxu0
        %v5248 = vadd.f32 0.0, %v5247
        %v5249 = vpop.f32.mrb[0].mxu0
        %v5250 = vadd.f32 0.0, %v5249
        %5251 = vdwg.mxu0
        %5252 = vmatprep.subr.mxu0 %v5021
        %5253 = vmatpush1.msra.mxu0 %v5020
        %5254 = vmatprep.subr.mxu0 %v5039
        %5255 = vmatpush1.msra.mxu0 %v5038
        %5256 = vmatprep.subr.mxu0 %v5057
        %5257 = vmatpush1.msra.mxu0 %v5056
        %5258 = vmatprep.subr.mxu0 %v5075
        %5259 = vmatpush1.msra.mxu0 %v5074
        %5260 = vmatprep.subr.mxu0 0.0
        %5261 = vmatpush1.msra.mxu0 0.0
        %5262 = vmatprep.subr.mxu0 0.0
        %5263 = vmatpush1.msra.mxu0 0.0
        %5264 = vmatprep.subr.mxu0 0.0
        %5265 = vmatpush1.msra.mxu0 0.0
        %5266 = vmatprep.subr.mxu0 0.0
        %5267 = vmatpush1.msra.mxu0 0.0
        %5268 = vmatprep.subr.mxu0 0.0
        %5269 = vmatpush1.msra.mxu0 0.0
        %5270 = vmatprep.subr.mxu0 0.0
        %5271 = vmatpush1.msra.mxu0 0.0
        %5272 = vmatprep.subr.mxu0 0.0
        %5273 = vmatpush1.msra.mxu0 0.0
        %5274 = vmatprep.subr.mxu0 0.0
        %5275 = vmatpush1.msra.mxu0 0.0
        %5276 = vmatprep.subr.mxu0 0.0
        %5277 = vmatpush1.msra.mxu0 0.0
        %5278 = vmatprep.subr.mxu0 0.0
        %5279 = vmatpush1.msra.mxu0 0.0
        %5280 = vmatprep.subr.mxu0 0.0
        %5281 = vmatpush1.msra.mxu0 0.0
        %5282 = vmatprep.subr.mxu0 0.0
        %5283 = vmatpush1.msra.mxu0 0.0
        %5284 = vmatprep.subr.mxu0 0.0
        %5285 = vmatpush1.msra.mxu0 0.0
        %5286 = vmatprep.subr.mxu0 0.0
        %5287 = vmatpush1.msra.mxu0 0.0
        %5288 = vmatprep.subr.mxu0 0.0
        %5289 = vmatpush1.msra.mxu0 0.0
        %5290 = vmatprep.subr.mxu0 0.0
        %5291 = vmatpush1.msra.mxu0 0.0
        %5292 = vmatprep.subr.mxu0 0.0
        %5293 = vmatpush1.msra.mxu0 0.0
        %5294 = vmatprep.subr.mxu0 0.0
        %5295 = vmatpush1.msra.mxu0 0.0
        %5296 = vmatprep.subr.mxu0 0.0
        %5297 = vmatpush1.msra.mxu0 0.0
        %5298 = vmatprep.subr.mxu0 0.0
        %5299 = vmatpush1.msra.mxu0 0.0
        %5300 = vmatprep.subr.mxu0 0.0
        %5301 = vmatpush1.msra.mxu0 0.0
        %5302 = vmatprep.subr.mxu0 0.0
        %5303 = vmatpush1.msra.mxu0 0.0
        %5304 = vmatprep.subr.mxu0 0.0
        %5305 = vmatpush1.msra.mxu0 0.0
        %5306 = vmatprep.subr.mxu0 0.0
        %5307 = vmatpush1.msra.mxu0 0.0
        %5308 = vmatprep.subr.mxu0 0.0
        %5309 = vmatpush1.msra.mxu0 0.0
        %5310 = vmatprep.subr.mxu0 0.0
        %5311 = vmatpush1.msra.mxu0 0.0
        %5312 = vmatprep.subr.mxu0 0.0
        %5313 = vmatpush1.msra.mxu0 0.0
        %5314 = vmatprep.subr.mxu0 0.0
        %5315 = vmatpush1.msra.mxu0 0.0
        %5316 = vmatprep.mubr.f32.mxu0 0.0
        %5317 = vmatmul.mubr.f32.gmra.mrb[0].mxu0 %v5094
        %v5318 = vpop.f32.mrb[0].mxu0
        %v5319 = vadd.f32 0.0, %v5318
        %v5320 = vpop.f32.mrb[0].mxu0
        %v5321 = vadd.f32 0.0, %v5320
        %5322 = vmatprep.mubr.f32.mxu0 0.0
        %5323 = vmatmul.mubr.f32.gmra.mrb[0].mxu0 %v5096
        %v5324 = vpop.f32.mrb[0].mxu0
        %v5325 = vadd.f32 0.0, %v5324
        %v5326 = vpop.f32.mrb[0].mxu0
        %v5327 = vadd.f32 0.0, %v5326
        %5328 = vdwg.mxu0
        %5329 = vmatprep.subr.mxu0 %v5023
        %5330 = vmatpush1.msra.mxu0 %v5022
        %5331 = vmatprep.subr.mxu0 %v5041
        %5332 = vmatpush1.msra.mxu0 %v5040
        %5333 = vmatprep.subr.mxu0 %v5059
        %5334 = vmatpush1.msra.mxu0 %v5058
        %5335 = vmatprep.subr.mxu0 %v5077
        %5336 = vmatpush1.msra.mxu0 %v5076
        %5337 = vmatprep.subr.mxu0 0.0
        %5338 = vmatpush1.msra.mxu0 0.0
        %5339 = vmatprep.subr.mxu0 0.0
        %5340 = vmatpush1.msra.mxu0 0.0
        %5341 = vmatprep.subr.mxu0 0.0
        %5342 = vmatpush1.msra.mxu0 0.0
        %5343 = vmatprep.subr.mxu0 0.0
        %5344 = vmatpush1.msra.mxu0 0.0
        %5345 = vmatprep.subr.mxu0 0.0
        %5346 = vmatpush1.msra.mxu0 0.0
        %5347 = vmatprep.subr.mxu0 0.0
        %5348 = vmatpush1.msra.mxu0 0.0
        %5349 = vmatprep.subr.mxu0 0.0
        %5350 = vmatpush1.msra.mxu0 0.0
        %5351 = vmatprep.subr.mxu0 0.0
        %5352 = vmatpush1.msra.mxu0 0.0
        %5353 = vmatprep.subr.mxu0 0.0
        %5354 = vmatpush1.msra.mxu0 0.0
        %5355 = vmatprep.subr.mxu0 0.0
        %5356 = vmatpush1.msra.mxu0 0.0
        %5357 = vmatprep.subr.mxu0 0.0
        %5358 = vmatpush1.msra.mxu0 0.0
        %5359 = vmatprep.subr.mxu0 0.0
        %5360 = vmatpush1.msra.mxu0 0.0
        %5361 = vmatprep.subr.mxu0 0.0
        %5362 = vmatpush1.msra.mxu0 0.0
        %5363 = vmatprep.subr.mxu0 0.0
        %5364 = vmatpush1.msra.mxu0 0.0
        %5365 = vmatprep.subr.mxu0 0.0
        %5366 = vmatpush1.msra.mxu0 0.0
        %5367 = vmatprep.subr.mxu0 0.0
        %5368 = vmatpush1.msra.mxu0 0.0
        %5369 = vmatprep.subr.mxu0 0.0
        %5370 = vmatpush1.msra.mxu0 0.0
        %5371 = vmatprep.subr.mxu0 0.0
        %5372 = vmatpush1.msra.mxu0 0.0
        %5373 = vmatprep.subr.mxu0 0.0
        %5374 = vmatpush1.msra.mxu0 0.0
        %5375 = vmatprep.subr.mxu0 0.0
        %5376 = vmatpush1.msra.mxu0 0.0
        %5377 = vmatprep.subr.mxu0 0.0
        %5378 = vmatpush1.msra.mxu0 0.0
        %5379 = vmatprep.subr.mxu0 0.0
        %5380 = vmatpush1.msra.mxu0 0.0
        %5381 = vmatprep.subr.mxu0 0.0
        %5382 = vmatpush1.msra.mxu0 0.0
        %5383 = vmatprep.subr.mxu0 0.0
        %5384 = vmatpush1.msra.mxu0 0.0
        %5385 = vmatprep.subr.mxu0 0.0
        %5386 = vmatpush1.msra.mxu0 0.0
        %5387 = vmatprep.subr.mxu0 0.0
        %5388 = vmatpush1.msra.mxu0 0.0
        %5389 = vmatprep.subr.mxu0 0.0
        %5390 = vmatpush1.msra.mxu0 0.0
        %5391 = vmatprep.subr.mxu0 0.0
        %5392 = vmatpush1.msra.mxu0 0.0
        %5393 = vmatprep.mubr.f32.mxu0 0.0
        %5394 = vmatmul.mubr.f32.gmra.mrb[0].mxu0 %v5094
        %v5395 = vpop.f32.mrb[0].mxu0
        %v5396 = vadd.f32 0.0, %v5395
        %v5397 = vpop.f32.mrb[0].mxu0
        %v5398 = vadd.f32 0.0, %v5397
        %5399 = vmatprep.mubr.f32.mxu0 0.0
        %5400 = vmatmul.mubr.f32.gmra.mrb[0].mxu0 %v5096
        %v5401 = vpop.f32.mrb[0].mxu0
        %v5402 = vadd.f32 0.0, %v5401
        %v5403 = vpop.f32.mrb[0].mxu0
        %v5404 = vadd.f32 0.0, %v5403
        %5405 = vdwg.mxu0
        %5406 = vmatprep.subr.mxu0 %v5025
        %5407 = vmatpush1.msra.mxu0 %v5024
        %5408 = vmatprep.subr.mxu0 %v5043
        %5409 = vmatpush1.msra.mxu0 %v5042
        %5410 = vmatprep.subr.mxu0 %v5061
        %5411 = vmatpush1.msra.mxu0 %v5060
        %5412 = vmatprep.subr.mxu0 %v5079
        %5413 = vmatpush1.msra.mxu0 %v5078
        %5414 = vmatprep.subr.mxu0 0.0
        %5415 = vmatpush1.msra.mxu0 0.0
        %5416 = vmatprep.subr.mxu0 0.0
        %5417 = vmatpush1.msra.mxu0 0.0
        %5418 = vmatprep.subr.mxu0 0.0
        %5419 = vmatpush1.msra.mxu0 0.0
        %5420 = vmatprep.subr.mxu0 0.0
        %5421 = vmatpush1.msra.mxu0 0.0
        %5422 = vmatprep.subr.mxu0 0.0
        %5423 = vmatpush1.msra.mxu0 0.0
        %5424 = vmatprep.subr.mxu0 0.0
        %5425 = vmatpush1.msra.mxu0 0.0
        %5426 = vmatprep.subr.mxu0 0.0
        %5427 = vmatpush1.msra.mxu0 0.0
        %5428 = vmatprep.subr.mxu0 0.0
        %5429 = vmatpush1.msra.mxu0 0.0
        %5430 = vmatprep.subr.mxu0 0.0
        %5431 = vmatpush1.msra.mxu0 0.0
        %5432 = vmatprep.subr.mxu0 0.0
        %5433 = vmatpush1.msra.mxu0 0.0
        %5434 = vmatprep.subr.mxu0 0.0
        %5435 = vmatpush1.msra.mxu0 0.0
        %5436 = vmatprep.subr.mxu0 0.0
        %5437 = vmatpush1.msra.mxu0 0.0
        %5438 = vmatprep.subr.mxu0 0.0
        %5439 = vmatpush1.msra.mxu0 0.0
        %5440 = vmatprep.subr.mxu0 0.0
        %5441 = vmatpush1.msra.mxu0 0.0
        %5442 = vmatprep.subr.mxu0 0.0
        %5443 = vmatpush1.msra.mxu0 0.0
        %5444 = vmatprep.subr.mxu0 0.0
        %5445 = vmatpush1.msra.mxu0 0.0
        %5446 = vmatprep.subr.mxu0 0.0
        %5447 = vmatpush1.msra.mxu0 0.0
        %5448 = vmatprep.subr.mxu0 0.0
        %5449 = vmatpush1.msra.mxu0 0.0
        %5450 = vmatprep.subr.mxu0 0.0
        %5451 = vmatpush1.msra.mxu0 0.0
        %5452 = vmatprep.subr.mxu0 0.0
        %5453 = vmatpush1.msra.mxu0 0.0
        %5454 = vmatprep.subr.mxu0 0.0
        %5455 = vmatpush1.msra.mxu0 0.0
        %5456 = vmatprep.subr.mxu0 0.0
        %5457 = vmatpush1.msra.mxu0 0.0
        %5458 = vmatprep.subr.mxu0 0.0
        %5459 = vmatpush1.msra.mxu0 0.0
        %5460 = vmatprep.subr.mxu0 0.0
        %5461 = vmatpush1.msra.mxu0 0.0
        %5462 = vmatprep.subr.mxu0 0.0
        %5463 = vmatpush1.msra.mxu0 0.0
        %5464 = vmatprep.subr.mxu0 0.0
        %5465 = vmatpush1.msra.mxu0 0.0
        %5466 = vmatprep.subr.mxu0 0.0
        %5467 = vmatpush1.msra.mxu0 0.0
        %5468 = vmatprep.subr.mxu0 0.0
        %5469 = vmatpush1.msra.mxu0 0.0
        %5470 = vmatprep.mubr.f32.mxu0 0.0
        %5471 = vmatmul.mubr.f32.gmra.mrb[0].mxu0 %v5094
        %v5472 = vpop.f32.mrb[0].mxu0
        %v5473 = vadd.f32 0.0, %v5472
        %v5474 = vpop.f32.mrb[0].mxu0
        %v5475 = vadd.f32 0.0, %v5474
        %5476 = vmatprep.mubr.f32.mxu0 0.0
        %5477 = vmatmul.mubr.f32.gmra.mrb[0].mxu0 %v5096
        %v5478 = vpop.f32.mrb[0].mxu0
        %v5479 = vadd.f32 0.0, %v5478
        %v5480 = vpop.f32.mrb[0].mxu0
        %v5481 = vadd.f32 0.0, %v5480
        %5482 = vdwg.mxu0
        %5483 = vmatprep.subr.mxu0 %v5027
        %5484 = vmatpush1.msra.mxu0 %v5026
        %5485 = vmatprep.subr.mxu0 %v5045
        %5486 = vmatpush1.msra.mxu0 %v5044
        %5487 = vmatprep.subr.mxu0 %v5063
        %5488 = vmatpush1.msra.mxu0 %v5062
        %5489 = vmatprep.subr.mxu0 %v5081
        %5490 = vmatpush1.msra.mxu0 %v5080
        %5491 = vmatprep.subr.mxu0 0.0
        %5492 = vmatpush1.msra.mxu0 0.0
        %5493 = vmatprep.subr.mxu0 0.0
        %5494 = vmatpush1.msra.mxu0 0.0
        %5495 = vmatprep.subr.mxu0 0.0
        %5496 = vmatpush1.msra.mxu0 0.0
        %5497 = vmatprep.subr.mxu0 0.0
        %5498 = vmatpush1.msra.mxu0 0.0
        %5499 = vmatprep.subr.mxu0 0.0
        %5500 = vmatpush1.msra.mxu0 0.0
        %5501 = vmatprep.subr.mxu0 0.0
        %5502 = vmatpush1.msra.mxu0 0.0
        %5503 = vmatprep.subr.mxu0 0.0
        %5504 = vmatpush1.msra.mxu0 0.0
        %5505 = vmatprep.subr.mxu0 0.0
        %5506 = vmatpush1.msra.mxu0 0.0
        %5507 = vmatprep.subr.mxu0 0.0
        %5508 = vmatpush1.msra.mxu0 0.0
        %5509 = vmatprep.subr.mxu0 0.0
        %5510 = vmatpush1.msra.mxu0 0.0
        %5511 = vmatprep.subr.mxu0 0.0
        %5512 = vmatpush1.msra.mxu0 0.0
        %5513 = vmatprep.subr.mxu0 0.0
        %5514 = vmatpush1.msra.mxu0 0.0
        %5515 = vmatprep.subr.mxu0 0.0
        %5516 = vmatpush1.msra.mxu0 0.0
        %5517 = vmatprep.subr.mxu0 0.0
        %5518 = vmatpush1.msra.mxu0 0.0
        %5519 = vmatprep.subr.mxu0 0.0
        %5520 = vmatpush1.msra.mxu0 0.0
        %5521 = vmatprep.subr.mxu0 0.0
        %5522 = vmatpush1.msra.mxu0 0.0
        %5523 = vmatprep.subr.mxu0 0.0
        %5524 = vmatpush1.msra.mxu0 0.0
        %5525 = vmatprep.subr.mxu0 0.0
        %5526 = vmatpush1.msra.mxu0 0.0
        %5527 = vmatprep.subr.mxu0 0.0
        %5528 = vmatpush1.msra.mxu0 0.0
        %5529 = vmatprep.subr.mxu0 0.0
        %5530 = vmatpush1.msra.mxu0 0.0
        %5531 = vmatprep.subr.mxu0 0.0
        %5532 = vmatpush1.msra.mxu0 0.0
        %5533 = vmatprep.subr.mxu0 0.0
        %5534 = vmatpush1.msra.mxu0 0.0
        %5535 = vmatprep.subr.mxu0 0.0
        %5536 = vmatpush1.msra.mxu0 0.0
        %5537 = vmatprep.subr.mxu0 0.0
        %5538 = vmatpush1.msra.mxu0 0.0
        %5539 = vmatprep.subr.mxu0 0.0
        %5540 = vmatpush1.msra.mxu0 0.0
        %5541 = vmatprep.subr.mxu0 0.0
        %5542 = vmatpush1.msra.mxu0 0.0
        %5543 = vmatprep.subr.mxu0 0.0
        %5544 = vmatpush1.msra.mxu0 0.0
        %5545 = vmatprep.subr.mxu0 0.0
        %5546 = vmatpush1.msra.mxu0 0.0
        %5547 = vmatprep.mubr.f32.mxu0 0.0
        %5548 = vmatmul.mubr.f32.gmra.mrb[0].mxu0 %v5094
        %v5549 = vpop.f32.mrb[0].mxu0
        %v5550 = vadd.f32 0.0, %v5549
        %v5551 = vpop.f32.mrb[0].mxu0
        %v5552 = vadd.f32 0.0, %v5551
        %5553 = vmatprep.mubr.f32.mxu0 0.0
        %5554 = vmatmul.mubr.f32.gmra.mrb[0].mxu0 %v5096
        %v5555 = vpop.f32.mrb[0].mxu0
        %v5556 = vadd.f32 0.0, %v5555
        %v5557 = vpop.f32.mrb[0].mxu0
        %v5558 = vadd.f32 0.0, %v5557
        %5559 = vdwg.mxu0
        %5560 = vmatprep.subr.mxu0 %v5029
        %5561 = vmatpush1.msra.mxu0 %v5028
        %5562 = vmatprep.subr.mxu0 %v5047
        %5563 = vmatpush1.msra.mxu0 %v5046
        %5564 = vmatprep.subr.mxu0 %v5065
        %5565 = vmatpush1.msra.mxu0 %v5064
        %5566 = vmatprep.subr.mxu0 %v5083
        %5567 = vmatpush1.msra.mxu0 %v5082
        %5568 = vmatprep.subr.mxu0 0.0
        %5569 = vmatpush1.msra.mxu0 0.0
        %5570 = vmatprep.subr.mxu0 0.0
        %5571 = vmatpush1.msra.mxu0 0.0
        %5572 = vmatprep.subr.mxu0 0.0
        %5573 = vmatpush1.msra.mxu0 0.0
        %5574 = vmatprep.subr.mxu0 0.0
        %5575 = vmatpush1.msra.mxu0 0.0
        %5576 = vmatprep.subr.mxu0 0.0
        %5577 = vmatpush1.msra.mxu0 0.0
        %5578 = vmatprep.subr.mxu0 0.0
        %5579 = vmatpush1.msra.mxu0 0.0
        %5580 = vmatprep.subr.mxu0 0.0
        %5581 = vmatpush1.msra.mxu0 0.0
        %5582 = vmatprep.subr.mxu0 0.0
        %5583 = vmatpush1.msra.mxu0 0.0
        %5584 = vmatprep.subr.mxu0 0.0
        %5585 = vmatpush1.msra.mxu0 0.0
        %5586 = vmatprep.subr.mxu0 0.0
        %5587 = vmatpush1.msra.mxu0 0.0
        %5588 = vmatprep.subr.mxu0 0.0
        %5589 = vmatpush1.msra.mxu0 0.0
        %5590 = vmatprep.subr.mxu0 0.0
        %5591 = vmatpush1.msra.mxu0 0.0
        %5592 = vmatprep.subr.mxu0 0.0
        %5593 = vmatpush1.msra.mxu0 0.0
        %5594 = vmatprep.subr.mxu0 0.0
        %5595 = vmatpush1.msra.mxu0 0.0
        %5596 = vmatprep.subr.mxu0 0.0
        %5597 = vmatpush1.msra.mxu0 0.0
        %5598 = vmatprep.subr.mxu0 0.0
        %5599 = vmatpush1.msra.mxu0 0.0
        %5600 = vmatprep.subr.mxu0 0.0
        %5601 = vmatpush1.msra.mxu0 0.0
        %5602 = vmatprep.subr.mxu0 0.0
        %5603 = vmatpush1.msra.mxu0 0.0
        %5604 = vmatprep.subr.mxu0 0.0
        %5605 = vmatpush1.msra.mxu0 0.0
        %5606 = vmatprep.subr.mxu0 0.0
        %5607 = vmatpush1.msra.mxu0 0.0
        %5608 = vmatprep.subr.mxu0 0.0
        %5609 = vmatpush1.msra.mxu0 0.0
        %5610 = vmatprep.subr.mxu0 0.0
        %5611 = vmatpush1.msra.mxu0 0.0
        %5612 = vmatprep.subr.mxu0 0.0
        %5613 = vmatpush1.msra.mxu0 0.0
        %5614 = vmatprep.subr.mxu0 0.0
        %5615 = vmatpush1.msra.mxu0 0.0
        %5616 = vmatprep.subr.mxu0 0.0
        %5617 = vmatpush1.msra.mxu0 0.0
        %5618 = vmatprep.subr.mxu0 0.0
        %5619 = vmatpush1.msra.mxu0 0.0
        %5620 = vmatprep.subr.mxu0 0.0
        %5621 = vmatpush1.msra.mxu0 0.0
        %5622 = vmatprep.subr.mxu0 0.0
        %5623 = vmatpush1.msra.mxu0 0.0
        %5624 = vmatprep.mubr.f32.mxu0 0.0
        %5625 = vmatmul.mubr.f32.gmra.mrb[0].mxu0 %v5094
        %v5626 = vpop.f32.mrb[0].mxu0
        %v5627 = vadd.f32 0.0, %v5626
        %v5628 = vpop.f32.mrb[0].mxu0
        %v5629 = vadd.f32 0.0, %v5628
        %5630 = vmatprep.mubr.f32.mxu0 0.0
        %5631 = vmatmul.mubr.f32.gmra.mrb[0].mxu0 %v5096
        %v5632 = vpop.f32.mrb[0].mxu0
        %v5633 = vadd.f32 0.0, %v5632
        %v5634 = vpop.f32.mrb[0].mxu0
        %v5635 = vadd.f32 0.0, %v5634
        %5636 = vdwg.mxu0
        %5637 = vmatprep.subr.mxu0 %v5031
        %5638 = vmatpush1.msra.mxu0 %v5030
        %5639 = vmatprep.subr.mxu0 %v5049
        %5640 = vmatpush1.msra.mxu0 %v5048
        %5641 = vmatprep.subr.mxu0 %v5067
        %5642 = vmatpush1.msra.mxu0 %v5066
        %5643 = vmatprep.subr.mxu0 %v5085
        %5644 = vmatpush1.msra.mxu0 %v5084
        %5645 = vmatprep.subr.mxu0 0.0
        %5646 = vmatpush1.msra.mxu0 0.0
        %5647 = vmatprep.subr.mxu0 0.0
        %5648 = vmatpush1.msra.mxu0 0.0
        %5649 = vmatprep.subr.mxu0 0.0
        %5650 = vmatpush1.msra.mxu0 0.0
        %5651 = vmatprep.subr.mxu0 0.0
        %5652 = vmatpush1.msra.mxu0 0.0
        %5653 = vmatprep.subr.mxu0 0.0
        %5654 = vmatpush1.msra.mxu0 0.0
        %5655 = vmatprep.subr.mxu0 0.0
        %5656 = vmatpush1.msra.mxu0 0.0
        %5657 = vmatprep.subr.mxu0 0.0
        %5658 = vmatpush1.msra.mxu0 0.0
        %5659 = vmatprep.subr.mxu0 0.0
        %5660 = vmatpush1.msra.mxu0 0.0
        %5661 = vmatprep.subr.mxu0 0.0
        %5662 = vmatpush1.msra.mxu0 0.0
        %5663 = vmatprep.subr.mxu0 0.0
        %5664 = vmatpush1.msra.mxu0 0.0
        %5665 = vmatprep.subr.mxu0 0.0
        %5666 = vmatpush1.msra.mxu0 0.0
        %5667 = vmatprep.subr.mxu0 0.0
        %5668 = vmatpush1.msra.mxu0 0.0
        %5669 = vmatprep.subr.mxu0 0.0
        %5670 = vmatpush1.msra.mxu0 0.0
        %5671 = vmatprep.subr.mxu0 0.0
        %5672 = vmatpush1.msra.mxu0 0.0
        %5673 = vmatprep.subr.mxu0 0.0
        %5674 = vmatpush1.msra.mxu0 0.0
        %5675 = vmatprep.subr.mxu0 0.0
        %5676 = vmatpush1.msra.mxu0 0.0
        %5677 = vmatprep.subr.mxu0 0.0
        %5678 = vmatpush1.msra.mxu0 0.0
        %5679 = vmatprep.subr.mxu0 0.0
        %5680 = vmatpush1.msra.mxu0 0.0
        %5681 = vmatprep.subr.mxu0 0.0
        %5682 = vmatpush1.msra.mxu0 0.0
        %5683 = vmatprep.subr.mxu0 0.0
        %5684 = vmatpush1.msra.mxu0 0.0
        %5685 = vmatprep.subr.mxu0 0.0
        %5686 = vmatpush1.msra.mxu0 0.0
        %5687 = vmatprep.subr.mxu0 0.0
        %5688 = vmatpush1.msra.mxu0 0.0
        %5689 = vmatprep.subr.mxu0 0.0
        %5690 = vmatpush1.msra.mxu0 0.0
        %5691 = vmatprep.subr.mxu0 0.0
        %5692 = vmatpush1.msra.mxu0 0.0
        %5693 = vmatprep.subr.mxu0 0.0
        %5694 = vmatpush1.msra.mxu0 0.0
        %5695 = vmatprep.subr.mxu0 0.0
        %5696 = vmatpush1.msra.mxu0 0.0
        %5697 = vmatprep.subr.mxu0 0.0
        %5698 = vmatpush1.msra.mxu0 0.0
        %5699 = vmatprep.subr.mxu0 0.0
        %5700 = vmatpush1.msra.mxu0 0.0
        %5701 = vmatprep.mubr.f32.mxu0 0.0
        %5702 = vmatmul.mubr.f32.gmra.mrb[0].mxu0 %v5094
        %v5703 = vpop.f32.mrb[0].mxu0
        %v5704 = vadd.f32 0.0, %v5703
        %v5705 = vpop.f32.mrb[0].mxu0
        %v5706 = vadd.f32 0.0, %v5705
        %5707 = vmatprep.mubr.f32.mxu0 0.0
        %5708 = vmatmul.mubr.f32.gmra.mrb[0].mxu0 %v5096
        %v5709 = vpop.f32.mrb[0].mxu0
        %v5710 = vadd.f32 0.0, %v5709
        %v5711 = vpop.f32.mrb[0].mxu0
        %v5712 = vadd.f32 0.0, %v5711
        %5713 = vdwg.mxu0
        %5714 = vmatprep.subr.mxu0 %v5033
        %5715 = vmatpush1.msra.mxu0 %v5032
        %5716 = vmatprep.subr.mxu0 %v5051
        %5717 = vmatpush1.msra.mxu0 %v5050
        %5718 = vmatprep.subr.mxu0 %v5069
        %5719 = vmatpush1.msra.mxu0 %v5068
        %5720 = vmatprep.subr.mxu0 %v5087
        %5721 = vmatpush1.msra.mxu0 %v5086
        %5722 = vmatprep.subr.mxu0 0.0
        %5723 = vmatpush1.msra.mxu0 0.0
        %5724 = vmatprep.subr.mxu0 0.0
        %5725 = vmatpush1.msra.mxu0 0.0
        %5726 = vmatprep.subr.mxu0 0.0
        %5727 = vmatpush1.msra.mxu0 0.0
        %5728 = vmatprep.subr.mxu0 0.0
        %5729 = vmatpush1.msra.mxu0 0.0
        %5730 = vmatprep.subr.mxu0 0.0
        %5731 = vmatpush1.msra.mxu0 0.0
        %5732 = vmatprep.subr.mxu0 0.0
        %5733 = vmatpush1.msra.mxu0 0.0
        %5734 = vmatprep.subr.mxu0 0.0
        %5735 = vmatpush1.msra.mxu0 0.0
        %5736 = vmatprep.subr.mxu0 0.0
        %5737 = vmatpush1.msra.mxu0 0.0
        %5738 = vmatprep.subr.mxu0 0.0
        %5739 = vmatpush1.msra.mxu0 0.0
        %5740 = vmatprep.subr.mxu0 0.0
        %5741 = vmatpush1.msra.mxu0 0.0
        %5742 = vmatprep.subr.mxu0 0.0
        %5743 = vmatpush1.msra.mxu0 0.0
        %5744 = vmatprep.subr.mxu0 0.0
        %5745 = vmatpush1.msra.mxu0 0.0
        %5746 = vmatprep.subr.mxu0 0.0
        %5747 = vmatpush1.msra.mxu0 0.0
        %5748 = vmatprep.subr.mxu0 0.0
        %5749 = vmatpush1.msra.mxu0 0.0
        %5750 = vmatprep.subr.mxu0 0.0
        %5751 = vmatpush1.msra.mxu0 0.0
        %5752 = vmatprep.subr.mxu0 0.0
        %5753 = vmatpush1.msra.mxu0 0.0
        %5754 = vmatprep.subr.mxu0 0.0
        %5755 = vmatpush1.msra.mxu0 0.0
        %5756 = vmatprep.subr.mxu0 0.0
        %5757 = vmatpush1.msra.mxu0 0.0
        %5758 = vmatprep.subr.mxu0 0.0
        %5759 = vmatpush1.msra.mxu0 0.0
        %5760 = vmatprep.subr.mxu0 0.0
        %5761 = vmatpush1.msra.mxu0 0.0
        %5762 = vmatprep.subr.mxu0 0.0
        %5763 = vmatpush1.msra.mxu0 0.0
        %5764 = vmatprep.subr.mxu0 0.0
        %5765 = vmatpush1.msra.mxu0 0.0
        %5766 = vmatprep.subr.mxu0 0.0
        %5767 = vmatpush1.msra.mxu0 0.0
        %5768 = vmatprep.subr.mxu0 0.0
        %5769 = vmatpush1.msra.mxu0 0.0
        %5770 = vmatprep.subr.mxu0 0.0
        %5771 = vmatpush1.msra.mxu0 0.0
        %5772 = vmatprep.subr.mxu0 0.0
        %5773 = vmatpush1.msra.mxu0 0.0
        %5774 = vmatprep.subr.mxu0 0.0
        %5775 = vmatpush1.msra.mxu0 0.0
        %5776 = vmatprep.subr.mxu0 0.0
        %5777 = vmatpush1.msra.mxu0 0.0
        %5778 = vmatprep.mubr.f32.mxu0 0.0
        %5779 = vmatmul.mubr.f32.gmra.mrb[0].mxu0 %v5094
        %v5780 = vpop.f32.mrb[0].mxu0
        %v5781 = vadd.f32 0.0, %v5780
        %v5782 = vpop.f32.mrb[0].mxu0
        %v5783 = vadd.f32 0.0, %v5782
        %5784 = vmatprep.mubr.f32.mxu0 0.0
        %5785 = vmatmul.mubr.f32.gmra.mrb[0].mxu0 %v5096
        %v5786 = vpop.f32.mrb[0].mxu0
        %v5787 = vadd.f32 0.0, %v5786
        %v5788 = vpop.f32.mrb[0].mxu0
        %v5789 = vadd.f32 0.0, %v5788
        %5790 = vdwg.mxu0
        %v5791 = vadd.f32 %v4979, %v5165
        %v5792 = vadd.f32 %v4980, %v5167
        %v5793 = vadd.f32 %v4981, %v5242
        %v5794 = vadd.f32 %v4982, %v5244
        %v5795 = vadd.f32 %v4983, %v5319
        %v5796 = vadd.f32 %v4984, %v5321
        %v5797 = vadd.f32 %v4985, %v5396
        %v5798 = vadd.f32 %v4986, %v5398
        %v5799 = vadd.f32 %v4987, %v5473
        %v5800 = vadd.f32 %v4988, %v5475
        %v5801 = vadd.f32 %v4989, %v5550
        %v5802 = vadd.f32 %v4990, %v5552
        %v5803 = vadd.f32 %v4991, %v5627
        %v5804 = vadd.f32 %v4992, %v5629
        %v5805 = vadd.f32 %v4993, %v5704
        %v5806 = vadd.f32 %v4994, %v5706
        %v5807 = vadd.f32 %v4995, %v5781
        %v5808 = vadd.f32 %v4996, %v5783
        %v5809 = vadd.f32 %v4997, %v5171
        %v5810 = vadd.f32 %v4998, %v5173
        %v5811 = vadd.f32 %v4999, %v5248
        %v5812 = vadd.f32 %v5000, %v5250
        %v5813 = vadd.f32 %v5001, %v5325
        %v5814 = vadd.f32 %v5002, %v5327
        %v5815 = vadd.f32 %v5003, %v5402
        %v5816 = vadd.f32 %v5004, %v5404
        %v5817 = vadd.f32 %v5005, %v5479
        %v5818 = vadd.f32 %v5006, %v5481
        %v5819 = vadd.f32 %v5007, %v5556
        %v5820 = vadd.f32 %v5008, %v5558
        %v5821 = vadd.f32 %v5009, %v5633
        %v5822 = vadd.f32 %v5010, %v5635
        %v5823 = vadd.f32 %v5011, %v5710
        %v5824 = vadd.f32 %v5012, %v5712
        %v5825 = vadd.f32 %v5013, %v5787
        %v5826 = vadd.f32 %v5014, %v5789
        %s5827 = scalar_lea.vmem [#allocation2], 4032
        %v5828 = vld [vmem:[%s5827] sm:$0xff]
        %v5829 = vld [vmem:[%s5827 + $0x8] sm:$0xff]
        %v5830 = vld [vmem:[%s5827 + $0x10] sm:$0xff]
        %v5831 = vld [vmem:[%s5827 + $0x18] sm:$0xff]
        %v5832 = vld [vmem:[%s5827 + $0x20] sm:$0xff]
        %v5833 = vld [vmem:[%s5827 + $0x28] sm:$0xff]
        %v5834 = vld [vmem:[%s5827 + $0x30] sm:$0xff]
        %v5835 = vld [vmem:[%s5827 + $0x38] sm:$0xff]
        %v5836 = vld [vmem:[%s5827 + $0x40] sm:$0xff]
        %v5837 = vld [vmem:[%s5827 + $0x48] sm:$0xff]
        %v5838 = vld [vmem:[%s5827 + $0x50] sm:$0xff]
        %v5839 = vld [vmem:[%s5827 + $0x58] sm:$0xff]
        %v5840 = vld [vmem:[%s5827 + $0x60] sm:$0xff]
        %v5841 = vld [vmem:[%s5827 + $0x68] sm:$0xff]
        %v5842 = vld [vmem:[%s5827 + $0x70] sm:$0xff]
        %v5843 = vld [vmem:[%s5827 + $0x78] sm:$0xff]
        %v5844 = vld [vmem:[%s5827 + $0x80] sm:$0xff]
        %v5845 = vld [vmem:[%s5827 + $0x88] sm:$0xff]
        %v5846 = vld [vmem:[%s5827 + $0x90] sm:$0xff]
        %v5847 = vld [vmem:[%s5827 + $0x98] sm:$0xff]
        %v5848 = vld [vmem:[%s5827 + $0xa0] sm:$0xff]
        %v5849 = vld [vmem:[%s5827 + $0xa8] sm:$0xff]
        %v5850 = vld [vmem:[%s5827 + $0xb0] sm:$0xff]
        %v5851 = vld [vmem:[%s5827 + $0xb8] sm:$0xff]
        %v5852 = vld [vmem:[%s5827 + $0xc0] sm:$0xff]
        %v5853 = vld [vmem:[%s5827 + $0xc8] sm:$0xff]
        %v5854 = vld [vmem:[%s5827 + $0xd0] sm:$0xff]
        %v5855 = vld [vmem:[%s5827 + $0xd8] sm:$0xff]
        %v5856 = vld [vmem:[%s5827 + $0xe0] sm:$0xff]
        %v5857 = vld [vmem:[%s5827 + $0xe8] sm:$0xff]
        %v5858 = vld [vmem:[%s5827 + $0xf0] sm:$0xff]
        %v5859 = vld [vmem:[%s5827 + $0xf8] sm:$0xff]
        %v5860 = vld [vmem:[%s5827 + $0x100] sm:$0xff]
        %v5861 = vld [vmem:[%s5827 + $0x108] sm:$0xff]
        %v5862 = vld [vmem:[%s5827 + $0x110] sm:$0xff]
        %v5863 = vld [vmem:[%s5827 + $0x118] sm:$0xff]
        %v5864 = vld [vmem:[%s5827 + $0x120] sm:$0xff]
        %v5865 = vld [vmem:[%s5827 + $0x128] sm:$0xff]
        %v5866 = vld [vmem:[%s5827 + $0x130] sm:$0xff]
        %v5867 = vld [vmem:[%s5827 + $0x138] sm:$0xff]
        %v5868 = vld [vmem:[%s5827 + $0x140] sm:$0xff]
        %v5869 = vld [vmem:[%s5827 + $0x148] sm:$0xff]
        %v5870 = vld [vmem:[%s5827 + $0x150] sm:$0xff]
        %v5871 = vld [vmem:[%s5827 + $0x158] sm:$0xff]
        %v5872 = vld [vmem:[%s5827 + $0x160] sm:$0xff]
        %v5873 = vld [vmem:[%s5827 + $0x168] sm:$0xff]
        %v5874 = vld [vmem:[%s5827 + $0x170] sm:$0xff]
        %v5875 = vld [vmem:[%s5827 + $0x178] sm:$0xff]
        %v5876 = vld [vmem:[%s5827 + $0x180] sm:$0xff]
        %v5877 = vld [vmem:[%s5827 + $0x188] sm:$0xff]
        %v5878 = vld [vmem:[%s5827 + $0x190] sm:$0xff]
        %v5879 = vld [vmem:[%s5827 + $0x198] sm:$0xff]
        %v5880 = vld [vmem:[%s5827 + $0x1a0] sm:$0xff]
        %v5881 = vld [vmem:[%s5827 + $0x1a8] sm:$0xff]
        %v5882 = vld [vmem:[%s5827 + $0x1b0] sm:$0xff]
        %v5883 = vld [vmem:[%s5827 + $0x1b8] sm:$0xff]
        %v5884 = vld [vmem:[%s5827 + $0x1c0] sm:$0xff]
        %v5885 = vld [vmem:[%s5827 + $0x1c8] sm:$0xff]
        %v5886 = vld [vmem:[%s5827 + $0x1d0] sm:$0xff]
        %v5887 = vld [vmem:[%s5827 + $0x1d8] sm:$0xff]
        %v5888 = vld [vmem:[%s5827 + $0x1e0] sm:$0xff]
        %v5889 = vld [vmem:[%s5827 + $0x1e8] sm:$0xff]
        %v5890 = vld [vmem:[%s5827 + $0x1f0] sm:$0xff]
        %v5891 = vld [vmem:[%s5827 + $0x1f8] sm:$0xff]
        %v5892 = vld [vmem:[%s5827 + $0x200] sm:$0xff]
        %v5893 = vld [vmem:[%s5827 + $0x208] sm:$0xff]
        %v5894 = vld [vmem:[%s5827 + $0x210] sm:$0xff]
        %v5895 = vld [vmem:[%s5827 + $0x218] sm:$0xff]
        %v5896 = vld [vmem:[%s5827 + $0x220] sm:$0xff]
        %v5897 = vld [vmem:[%s5827 + $0x228] sm:$0xff]
        %v5898 = vld [vmem:[%s5827 + $0x230] sm:$0xff]
        %v5899 = vld [vmem:[%s5827 + $0x238] sm:$0xff]
        %vm5900 = vcmask 1040384
        %v5901 = vrot.slane %v214, 7
        %v5902 = vrot.slane %v215, 7
        %v5903 = vsel %vm5900, %v5901, %v5902
        %v5904 = vrot.slane %v216, 7
        %v5905 = vsel %vm5900, %v5902, %v5904
        %v5906 = vsel %vm372, %v5903, 0
        %v5908 = vsel %vm372, %v5905, 0
        %5910 = vmatprep.subr.mxu0 %v5829
        %5911 = vmatpush1.msra.mxu0 %v5828
        %5912 = vmatprep.subr.mxu0 %v5847
        %5913 = vmatpush1.msra.mxu0 %v5846
        %5914 = vmatprep.subr.mxu0 %v5865
        %5915 = vmatpush1.msra.mxu0 %v5864
        %5916 = vmatprep.subr.mxu0 %v5883
        %5917 = vmatpush1.msra.mxu0 %v5882
        %5918 = vmatprep.subr.mxu0 0.0
        %5919 = vmatpush1.msra.mxu0 0.0
        %5920 = vmatprep.subr.mxu0 0.0
        %5921 = vmatpush1.msra.mxu0 0.0
        %5922 = vmatprep.subr.mxu0 0.0
        %5923 = vmatpush1.msra.mxu0 0.0
        %5924 = vmatprep.subr.mxu0 0.0
        %5925 = vmatpush1.msra.mxu0 0.0
        %5926 = vmatprep.subr.mxu0 0.0
        %5927 = vmatpush1.msra.mxu0 0.0
        %5928 = vmatprep.subr.mxu0 0.0
        %5929 = vmatpush1.msra.mxu0 0.0
        %5930 = vmatprep.subr.mxu0 0.0
        %5931 = vmatpush1.msra.mxu0 0.0
        %5932 = vmatprep.subr.mxu0 0.0
        %5933 = vmatpush1.msra.mxu0 0.0
        %5934 = vmatprep.subr.mxu0 0.0
        %5935 = vmatpush1.msra.mxu0 0.0
        %5936 = vmatprep.subr.mxu0 0.0
        %5937 = vmatpush1.msra.mxu0 0.0
        %5938 = vmatprep.subr.mxu0 0.0
        %5939 = vmatpush1.msra.mxu0 0.0
        %5940 = vmatprep.subr.mxu0 0.0
        %5941 = vmatpush1.msra.mxu0 0.0
        %5942 = vmatprep.subr.mxu0 0.0
        %5943 = vmatpush1.msra.mxu0 0.0
        %5944 = vmatprep.subr.mxu0 0.0
        %5945 = vmatpush1.msra.mxu0 0.0
        %5946 = vmatprep.subr.mxu0 0.0
        %5947 = vmatpush1.msra.mxu0 0.0
        %5948 = vmatprep.subr.mxu0 0.0
        %5949 = vmatpush1.msra.mxu0 0.0
        %5950 = vmatprep.subr.mxu0 0.0
        %5951 = vmatpush1.msra.mxu0 0.0
        %5952 = vmatprep.subr.mxu0 0.0
        %5953 = vmatpush1.msra.mxu0 0.0
        %5954 = vmatprep.subr.mxu0 0.0
        %5955 = vmatpush1.msra.mxu0 0.0
        %5956 = vmatprep.subr.mxu0 0.0
        %5957 = vmatpush1.msra.mxu0 0.0
        %5958 = vmatprep.subr.mxu0 0.0
        %5959 = vmatpush1.msra.mxu0 0.0
        %5960 = vmatprep.subr.mxu0 0.0
        %5961 = vmatpush1.msra.mxu0 0.0
        %5962 = vmatprep.subr.mxu0 0.0
        %5963 = vmatpush1.msra.mxu0 0.0
        %5964 = vmatprep.subr.mxu0 0.0
        %5965 = vmatpush1.msra.mxu0 0.0
        %5966 = vmatprep.subr.mxu0 0.0
        %5967 = vmatpush1.msra.mxu0 0.0
        %5968 = vmatprep.subr.mxu0 0.0
        %5969 = vmatpush1.msra.mxu0 0.0
        %5970 = vmatprep.subr.mxu0 0.0
        %5971 = vmatpush1.msra.mxu0 0.0
        %5972 = vmatprep.subr.mxu0 0.0
        %5973 = vmatpush1.msra.mxu0 0.0
        %5974 = vmatprep.mubr.f32.mxu0 0.0
        %5975 = vmatmul.mubr.f32.gmra.mrb[0].mxu0 %v5906
        %v5976 = vpop.f32.mrb[0].mxu0
        %v5977 = vadd.f32 0.0, %v5976
        %v5978 = vpop.f32.mrb[0].mxu0
        %v5979 = vadd.f32 0.0, %v5978
        %5980 = vmatprep.mubr.f32.mxu0 0.0
        %5981 = vmatmul.mubr.f32.gmra.mrb[0].mxu0 %v5908
        %v5982 = vpop.f32.mrb[0].mxu0
        %v5983 = vadd.f32 0.0, %v5982
        %v5984 = vpop.f32.mrb[0].mxu0
        %v5985 = vadd.f32 0.0, %v5984
        %5986 = vdwg.mxu0
        %5987 = vmatprep.subr.mxu0 %v5831
        %5988 = vmatpush1.msra.mxu0 %v5830
        %5989 = vmatprep.subr.mxu0 %v5849
        %5990 = vmatpush1.msra.mxu0 %v5848
        %5991 = vmatprep.subr.mxu0 %v5867
        %5992 = vmatpush1.msra.mxu0 %v5866
        %5993 = vmatprep.subr.mxu0 %v5885
        %5994 = vmatpush1.msra.mxu0 %v5884
        %5995 = vmatprep.subr.mxu0 0.0
        %5996 = vmatpush1.msra.mxu0 0.0
        %5997 = vmatprep.subr.mxu0 0.0
        %5998 = vmatpush1.msra.mxu0 0.0
        %5999 = vmatprep.subr.mxu0 0.0
        %6000 = vmatpush1.msra.mxu0 0.0
        %6001 = vmatprep.subr.mxu0 0.0
        %6002 = vmatpush1.msra.mxu0 0.0
        %6003 = vmatprep.subr.mxu0 0.0
        %6004 = vmatpush1.msra.mxu0 0.0
        %6005 = vmatprep.subr.mxu0 0.0
        %6006 = vmatpush1.msra.mxu0 0.0
        %6007 = vmatprep.subr.mxu0 0.0
        %6008 = vmatpush1.msra.mxu0 0.0
        %6009 = vmatprep.subr.mxu0 0.0
        %6010 = vmatpush1.msra.mxu0 0.0
        %6011 = vmatprep.subr.mxu0 0.0
        %6012 = vmatpush1.msra.mxu0 0.0
        %6013 = vmatprep.subr.mxu0 0.0
        %6014 = vmatpush1.msra.mxu0 0.0
        %6015 = vmatprep.subr.mxu0 0.0
        %6016 = vmatpush1.msra.mxu0 0.0
        %6017 = vmatprep.subr.mxu0 0.0
        %6018 = vmatpush1.msra.mxu0 0.0
        %6019 = vmatprep.subr.mxu0 0.0
        %6020 = vmatpush1.msra.mxu0 0.0
        %6021 = vmatprep.subr.mxu0 0.0
        %6022 = vmatpush1.msra.mxu0 0.0
        %6023 = vmatprep.subr.mxu0 0.0
        %6024 = vmatpush1.msra.mxu0 0.0
        %6025 = vmatprep.subr.mxu0 0.0
        %6026 = vmatpush1.msra.mxu0 0.0
        %6027 = vmatprep.subr.mxu0 0.0
        %6028 = vmatpush1.msra.mxu0 0.0
        %6029 = vmatprep.subr.mxu0 0.0
        %6030 = vmatpush1.msra.mxu0 0.0
        %6031 = vmatprep.subr.mxu0 0.0
        %6032 = vmatpush1.msra.mxu0 0.0
        %6033 = vmatprep.subr.mxu0 0.0
        %6034 = vmatpush1.msra.mxu0 0.0
        %6035 = vmatprep.subr.mxu0 0.0
        %6036 = vmatpush1.msra.mxu0 0.0
        %6037 = vmatprep.subr.mxu0 0.0
        %6038 = vmatpush1.msra.mxu0 0.0
        %6039 = vmatprep.subr.mxu0 0.0
        %6040 = vmatpush1.msra.mxu0 0.0
        %6041 = vmatprep.subr.mxu0 0.0
        %6042 = vmatpush1.msra.mxu0 0.0
        %6043 = vmatprep.subr.mxu0 0.0
        %6044 = vmatpush1.msra.mxu0 0.0
        %6045 = vmatprep.subr.mxu0 0.0
        %6046 = vmatpush1.msra.mxu0 0.0
        %6047 = vmatprep.subr.mxu0 0.0
        %6048 = vmatpush1.msra.mxu0 0.0
        %6049 = vmatprep.subr.mxu0 0.0
        %6050 = vmatpush1.msra.mxu0 0.0
        %6051 = vmatprep.mubr.f32.mxu0 0.0
        %6052 = vmatmul.mubr.f32.gmra.mrb[0].mxu0 %v5906
        %v6053 = vpop.f32.mrb[0].mxu0
        %v6054 = vadd.f32 0.0, %v6053
        %v6055 = vpop.f32.mrb[0].mxu0
        %v6056 = vadd.f32 0.0, %v6055
        %6057 = vmatprep.mubr.f32.mxu0 0.0
        %6058 = vmatmul.mubr.f32.gmra.mrb[0].mxu0 %v5908
        %v6059 = vpop.f32.mrb[0].mxu0
        %v6060 = vadd.f32 0.0, %v6059
        %v6061 = vpop.f32.mrb[0].mxu0
        %v6062 = vadd.f32 0.0, %v6061
        %6063 = vdwg.mxu0
        %6064 = vmatprep.subr.mxu0 %v5833
        %6065 = vmatpush1.msra.mxu0 %v5832
        %6066 = vmatprep.subr.mxu0 %v5851
        %6067 = vmatpush1.msra.mxu0 %v5850
        %6068 = vmatprep.subr.mxu0 %v5869
        %6069 = vmatpush1.msra.mxu0 %v5868
        %6070 = vmatprep.subr.mxu0 %v5887
        %6071 = vmatpush1.msra.mxu0 %v5886
        %6072 = vmatprep.subr.mxu0 0.0
        %6073 = vmatpush1.msra.mxu0 0.0
        %6074 = vmatprep.subr.mxu0 0.0
        %6075 = vmatpush1.msra.mxu0 0.0
        %6076 = vmatprep.subr.mxu0 0.0
        %6077 = vmatpush1.msra.mxu0 0.0
        %6078 = vmatprep.subr.mxu0 0.0
        %6079 = vmatpush1.msra.mxu0 0.0
        %6080 = vmatprep.subr.mxu0 0.0
        %6081 = vmatpush1.msra.mxu0 0.0
        %6082 = vmatprep.subr.mxu0 0.0
        %6083 = vmatpush1.msra.mxu0 0.0
        %6084 = vmatprep.subr.mxu0 0.0
        %6085 = vmatpush1.msra.mxu0 0.0
        %6086 = vmatprep.subr.mxu0 0.0
        %6087 = vmatpush1.msra.mxu0 0.0
        %6088 = vmatprep.subr.mxu0 0.0
        %6089 = vmatpush1.msra.mxu0 0.0
        %6090 = vmatprep.subr.mxu0 0.0
        %6091 = vmatpush1.msra.mxu0 0.0
        %6092 = vmatprep.subr.mxu0 0.0
        %6093 = vmatpush1.msra.mxu0 0.0
        %6094 = vmatprep.subr.mxu0 0.0
        %6095 = vmatpush1.msra.mxu0 0.0
        %6096 = vmatprep.subr.mxu0 0.0
        %6097 = vmatpush1.msra.mxu0 0.0
        %6098 = vmatprep.subr.mxu0 0.0
        %6099 = vmatpush1.msra.mxu0 0.0
        %6100 = vmatprep.subr.mxu0 0.0
        %6101 = vmatpush1.msra.mxu0 0.0
        %6102 = vmatprep.subr.mxu0 0.0
        %6103 = vmatpush1.msra.mxu0 0.0
        %6104 = vmatprep.subr.mxu0 0.0
        %6105 = vmatpush1.msra.mxu0 0.0
        %6106 = vmatprep.subr.mxu0 0.0
        %6107 = vmatpush1.msra.mxu0 0.0
        %6108 = vmatprep.subr.mxu0 0.0
        %6109 = vmatpush1.msra.mxu0 0.0
        %6110 = vmatprep.subr.mxu0 0.0
        %6111 = vmatpush1.msra.mxu0 0.0
        %6112 = vmatprep.subr.mxu0 0.0
        %6113 = vmatpush1.msra.mxu0 0.0
        %6114 = vmatprep.subr.mxu0 0.0
        %6115 = vmatpush1.msra.mxu0 0.0
        %6116 = vmatprep.subr.mxu0 0.0
        %6117 = vmatpush1.msra.mxu0 0.0
        %6118 = vmatprep.subr.mxu0 0.0
        %6119 = vmatpush1.msra.mxu0 0.0
        %6120 = vmatprep.subr.mxu0 0.0
        %6121 = vmatpush1.msra.mxu0 0.0
        %6122 = vmatprep.subr.mxu0 0.0
        %6123 = vmatpush1.msra.mxu0 0.0
        %6124 = vmatprep.subr.mxu0 0.0
        %6125 = vmatpush1.msra.mxu0 0.0
        %6126 = vmatprep.subr.mxu0 0.0
        %6127 = vmatpush1.msra.mxu0 0.0
        %6128 = vmatprep.mubr.f32.mxu0 0.0
        %6129 = vmatmul.mubr.f32.gmra.mrb[0].mxu0 %v5906
        %v6130 = vpop.f32.mrb[0].mxu0
        %v6131 = vadd.f32 0.0, %v6130
        %v6132 = vpop.f32.mrb[0].mxu0
        %v6133 = vadd.f32 0.0, %v6132
        %6134 = vmatprep.mubr.f32.mxu0 0.0
        %6135 = vmatmul.mubr.f32.gmra.mrb[0].mxu0 %v5908
        %v6136 = vpop.f32.mrb[0].mxu0
        %v6137 = vadd.f32 0.0, %v6136
        %v6138 = vpop.f32.mrb[0].mxu0
        %v6139 = vadd.f32 0.0, %v6138
        %6140 = vdwg.mxu0
        %6141 = vmatprep.subr.mxu0 %v5835
        %6142 = vmatpush1.msra.mxu0 %v5834
        %6143 = vmatprep.subr.mxu0 %v5853
        %6144 = vmatpush1.msra.mxu0 %v5852
        %6145 = vmatprep.subr.mxu0 %v5871
        %6146 = vmatpush1.msra.mxu0 %v5870
        %6147 = vmatprep.subr.mxu0 %v5889
        %6148 = vmatpush1.msra.mxu0 %v5888
        %6149 = vmatprep.subr.mxu0 0.0
        %6150 = vmatpush1.msra.mxu0 0.0
        %6151 = vmatprep.subr.mxu0 0.0
        %6152 = vmatpush1.msra.mxu0 0.0
        %6153 = vmatprep.subr.mxu0 0.0
        %6154 = vmatpush1.msra.mxu0 0.0
        %6155 = vmatprep.subr.mxu0 0.0
        %6156 = vmatpush1.msra.mxu0 0.0
        %6157 = vmatprep.subr.mxu0 0.0
        %6158 = vmatpush1.msra.mxu0 0.0
        %6159 = vmatprep.subr.mxu0 0.0
        %6160 = vmatpush1.msra.mxu0 0.0
        %6161 = vmatprep.subr.mxu0 0.0
        %6162 = vmatpush1.msra.mxu0 0.0
        %6163 = vmatprep.subr.mxu0 0.0
        %6164 = vmatpush1.msra.mxu0 0.0
        %6165 = vmatprep.subr.mxu0 0.0
        %6166 = vmatpush1.msra.mxu0 0.0
        %6167 = vmatprep.subr.mxu0 0.0
        %6168 = vmatpush1.msra.mxu0 0.0
        %6169 = vmatprep.subr.mxu0 0.0
        %6170 = vmatpush1.msra.mxu0 0.0
        %6171 = vmatprep.subr.mxu0 0.0
        %6172 = vmatpush1.msra.mxu0 0.0
        %6173 = vmatprep.subr.mxu0 0.0
        %6174 = vmatpush1.msra.mxu0 0.0
        %6175 = vmatprep.subr.mxu0 0.0
        %6176 = vmatpush1.msra.mxu0 0.0
        %6177 = vmatprep.subr.mxu0 0.0
        %6178 = vmatpush1.msra.mxu0 0.0
        %6179 = vmatprep.subr.mxu0 0.0
        %6180 = vmatpush1.msra.mxu0 0.0
        %6181 = vmatprep.subr.mxu0 0.0
        %6182 = vmatpush1.msra.mxu0 0.0
        %6183 = vmatprep.subr.mxu0 0.0
        %6184 = vmatpush1.msra.mxu0 0.0
        %6185 = vmatprep.subr.mxu0 0.0
        %6186 = vmatpush1.msra.mxu0 0.0
        %6187 = vmatprep.subr.mxu0 0.0
        %6188 = vmatpush1.msra.mxu0 0.0
        %6189 = vmatprep.subr.mxu0 0.0
        %6190 = vmatpush1.msra.mxu0 0.0
        %6191 = vmatprep.subr.mxu0 0.0
        %6192 = vmatpush1.msra.mxu0 0.0
        %6193 = vmatprep.subr.mxu0 0.0
        %6194 = vmatpush1.msra.mxu0 0.0
        %6195 = vmatprep.subr.mxu0 0.0
        %6196 = vmatpush1.msra.mxu0 0.0
        %6197 = vmatprep.subr.mxu0 0.0
        %6198 = vmatpush1.msra.mxu0 0.0
        %6199 = vmatprep.subr.mxu0 0.0
        %6200 = vmatpush1.msra.mxu0 0.0
        %6201 = vmatprep.subr.mxu0 0.0
        %6202 = vmatpush1.msra.mxu0 0.0
        %6203 = vmatprep.subr.mxu0 0.0
        %6204 = vmatpush1.msra.mxu0 0.0
        %6205 = vmatprep.mubr.f32.mxu0 0.0
        %6206 = vmatmul.mubr.f32.gmra.mrb[0].mxu0 %v5906
        %v6207 = vpop.f32.mrb[0].mxu0
        %v6208 = vadd.f32 0.0, %v6207
        %v6209 = vpop.f32.mrb[0].mxu0
        %v6210 = vadd.f32 0.0, %v6209
        %6211 = vmatprep.mubr.f32.mxu0 0.0
        %6212 = vmatmul.mubr.f32.gmra.mrb[0].mxu0 %v5908
        %v6213 = vpop.f32.mrb[0].mxu0
        %v6214 = vadd.f32 0.0, %v6213
        %v6215 = vpop.f32.mrb[0].mxu0
        %v6216 = vadd.f32 0.0, %v6215
        %6217 = vdwg.mxu0
        %6218 = vmatprep.subr.mxu0 %v5837
        %6219 = vmatpush1.msra.mxu0 %v5836
        %6220 = vmatprep.subr.mxu0 %v5855
        %6221 = vmatpush1.msra.mxu0 %v5854
        %6222 = vmatprep.subr.mxu0 %v5873
        %6223 = vmatpush1.msra.mxu0 %v5872
        %6224 = vmatprep.subr.mxu0 %v5891
        %6225 = vmatpush1.msra.mxu0 %v5890
        %6226 = vmatprep.subr.mxu0 0.0
        %6227 = vmatpush1.msra.mxu0 0.0
        %6228 = vmatprep.subr.mxu0 0.0
        %6229 = vmatpush1.msra.mxu0 0.0
        %6230 = vmatprep.subr.mxu0 0.0
        %6231 = vmatpush1.msra.mxu0 0.0
        %6232 = vmatprep.subr.mxu0 0.0
        %6233 = vmatpush1.msra.mxu0 0.0
        %6234 = vmatprep.subr.mxu0 0.0
        %6235 = vmatpush1.msra.mxu0 0.0
        %6236 = vmatprep.subr.mxu0 0.0
        %6237 = vmatpush1.msra.mxu0 0.0
        %6238 = vmatprep.subr.mxu0 0.0
        %6239 = vmatpush1.msra.mxu0 0.0
        %6240 = vmatprep.subr.mxu0 0.0
        %6241 = vmatpush1.msra.mxu0 0.0
        %6242 = vmatprep.subr.mxu0 0.0
        %6243 = vmatpush1.msra.mxu0 0.0
        %6244 = vmatprep.subr.mxu0 0.0
        %6245 = vmatpush1.msra.mxu0 0.0
        %6246 = vmatprep.subr.mxu0 0.0
        %6247 = vmatpush1.msra.mxu0 0.0
        %6248 = vmatprep.subr.mxu0 0.0
        %6249 = vmatpush1.msra.mxu0 0.0
        %6250 = vmatprep.subr.mxu0 0.0
        %6251 = vmatpush1.msra.mxu0 0.0
        %6252 = vmatprep.subr.mxu0 0.0
        %6253 = vmatpush1.msra.mxu0 0.0
        %6254 = vmatprep.subr.mxu0 0.0
        %6255 = vmatpush1.msra.mxu0 0.0
        %6256 = vmatprep.subr.mxu0 0.0
        %6257 = vmatpush1.msra.mxu0 0.0
        %6258 = vmatprep.subr.mxu0 0.0
        %6259 = vmatpush1.msra.mxu0 0.0
        %6260 = vmatprep.subr.mxu0 0.0
        %6261 = vmatpush1.msra.mxu0 0.0
        %6262 = vmatprep.subr.mxu0 0.0
        %6263 = vmatpush1.msra.mxu0 0.0
        %6264 = vmatprep.subr.mxu0 0.0
        %6265 = vmatpush1.msra.mxu0 0.0
        %6266 = vmatprep.subr.mxu0 0.0
        %6267 = vmatpush1.msra.mxu0 0.0
        %6268 = vmatprep.subr.mxu0 0.0
        %6269 = vmatpush1.msra.mxu0 0.0
        %6270 = vmatprep.subr.mxu0 0.0
        %6271 = vmatpush1.msra.mxu0 0.0
        %6272 = vmatprep.subr.mxu0 0.0
        %6273 = vmatpush1.msra.mxu0 0.0
        %6274 = vmatprep.subr.mxu0 0.0
        %6275 = vmatpush1.msra.mxu0 0.0
        %6276 = vmatprep.subr.mxu0 0.0
        %6277 = vmatpush1.msra.mxu0 0.0
        %6278 = vmatprep.subr.mxu0 0.0
        %6279 = vmatpush1.msra.mxu0 0.0
        %6280 = vmatprep.subr.mxu0 0.0
        %6281 = vmatpush1.msra.mxu0 0.0
        %6282 = vmatprep.mubr.f32.mxu0 0.0
        %6283 = vmatmul.mubr.f32.gmra.mrb[0].mxu0 %v5906
        %v6284 = vpop.f32.mrb[0].mxu0
        %v6285 = vadd.f32 0.0, %v6284
        %v6286 = vpop.f32.mrb[0].mxu0
        %v6287 = vadd.f32 0.0, %v6286
        %6288 = vmatprep.mubr.f32.mxu0 0.0
        %6289 = vmatmul.mubr.f32.gmra.mrb[0].mxu0 %v5908
        %v6290 = vpop.f32.mrb[0].mxu0
        %v6291 = vadd.f32 0.0, %v6290
        %v6292 = vpop.f32.mrb[0].mxu0
        %v6293 = vadd.f32 0.0, %v6292
        %6294 = vdwg.mxu0
        %6295 = vmatprep.subr.mxu0 %v5839
        %6296 = vmatpush1.msra.mxu0 %v5838
        %6297 = vmatprep.subr.mxu0 %v5857
        %6298 = vmatpush1.msra.mxu0 %v5856
        %6299 = vmatprep.subr.mxu0 %v5875
        %6300 = vmatpush1.msra.mxu0 %v5874
        %6301 = vmatprep.subr.mxu0 %v5893
        %6302 = vmatpush1.msra.mxu0 %v5892
        %6303 = vmatprep.subr.mxu0 0.0
        %6304 = vmatpush1.msra.mxu0 0.0
        %6305 = vmatprep.subr.mxu0 0.0
        %6306 = vmatpush1.msra.mxu0 0.0
        %6307 = vmatprep.subr.mxu0 0.0
        %6308 = vmatpush1.msra.mxu0 0.0
        %6309 = vmatprep.subr.mxu0 0.0
        %6310 = vmatpush1.msra.mxu0 0.0
        %6311 = vmatprep.subr.mxu0 0.0
        %6312 = vmatpush1.msra.mxu0 0.0
        %6313 = vmatprep.subr.mxu0 0.0
        %6314 = vmatpush1.msra.mxu0 0.0
        %6315 = vmatprep.subr.mxu0 0.0
        %6316 = vmatpush1.msra.mxu0 0.0
        %6317 = vmatprep.subr.mxu0 0.0
        %6318 = vmatpush1.msra.mxu0 0.0
        %6319 = vmatprep.subr.mxu0 0.0
        %6320 = vmatpush1.msra.mxu0 0.0
        %6321 = vmatprep.subr.mxu0 0.0
        %6322 = vmatpush1.msra.mxu0 0.0
        %6323 = vmatprep.subr.mxu0 0.0
        %6324 = vmatpush1.msra.mxu0 0.0
        %6325 = vmatprep.subr.mxu0 0.0
        %6326 = vmatpush1.msra.mxu0 0.0
        %6327 = vmatprep.subr.mxu0 0.0
        %6328 = vmatpush1.msra.mxu0 0.0
        %6329 = vmatprep.subr.mxu0 0.0
        %6330 = vmatpush1.msra.mxu0 0.0
        %6331 = vmatprep.subr.mxu0 0.0
        %6332 = vmatpush1.msra.mxu0 0.0
        %6333 = vmatprep.subr.mxu0 0.0
        %6334 = vmatpush1.msra.mxu0 0.0
        %6335 = vmatprep.subr.mxu0 0.0
        %6336 = vmatpush1.msra.mxu0 0.0
        %6337 = vmatprep.subr.mxu0 0.0
        %6338 = vmatpush1.msra.mxu0 0.0
        %6339 = vmatprep.subr.mxu0 0.0
        %6340 = vmatpush1.msra.mxu0 0.0
        %6341 = vmatprep.subr.mxu0 0.0
        %6342 = vmatpush1.msra.mxu0 0.0
        %6343 = vmatprep.subr.mxu0 0.0
        %6344 = vmatpush1.msra.mxu0 0.0
        %6345 = vmatprep.subr.mxu0 0.0
        %6346 = vmatpush1.msra.mxu0 0.0
        %6347 = vmatprep.subr.mxu0 0.0
        %6348 = vmatpush1.msra.mxu0 0.0
        %6349 = vmatprep.subr.mxu0 0.0
        %6350 = vmatpush1.msra.mxu0 0.0
        %6351 = vmatprep.subr.mxu0 0.0
        %6352 = vmatpush1.msra.mxu0 0.0
        %6353 = vmatprep.subr.mxu0 0.0
        %6354 = vmatpush1.msra.mxu0 0.0
        %6355 = vmatprep.subr.mxu0 0.0
        %6356 = vmatpush1.msra.mxu0 0.0
        %6357 = vmatprep.subr.mxu0 0.0
        %6358 = vmatpush1.msra.mxu0 0.0
        %6359 = vmatprep.mubr.f32.mxu0 0.0
        %6360 = vmatmul.mubr.f32.gmra.mrb[0].mxu0 %v5906
        %v6361 = vpop.f32.mrb[0].mxu0
        %v6362 = vadd.f32 0.0, %v6361
        %v6363 = vpop.f32.mrb[0].mxu0
        %v6364 = vadd.f32 0.0, %v6363
        %6365 = vmatprep.mubr.f32.mxu0 0.0
        %6366 = vmatmul.mubr.f32.gmra.mrb[0].mxu0 %v5908
        %v6367 = vpop.f32.mrb[0].mxu0
        %v6368 = vadd.f32 0.0, %v6367
        %v6369 = vpop.f32.mrb[0].mxu0
        %v6370 = vadd.f32 0.0, %v6369
        %6371 = vdwg.mxu0
        %6372 = vmatprep.subr.mxu0 %v5841
        %6373 = vmatpush1.msra.mxu0 %v5840
        %6374 = vmatprep.subr.mxu0 %v5859
        %6375 = vmatpush1.msra.mxu0 %v5858
        %6376 = vmatprep.subr.mxu0 %v5877
        %6377 = vmatpush1.msra.mxu0 %v5876
        %6378 = vmatprep.subr.mxu0 %v5895
        %6379 = vmatpush1.msra.mxu0 %v5894
        %6380 = vmatprep.subr.mxu0 0.0
        %6381 = vmatpush1.msra.mxu0 0.0
        %6382 = vmatprep.subr.mxu0 0.0
        %6383 = vmatpush1.msra.mxu0 0.0
        %6384 = vmatprep.subr.mxu0 0.0
        %6385 = vmatpush1.msra.mxu0 0.0
        %6386 = vmatprep.subr.mxu0 0.0
        %6387 = vmatpush1.msra.mxu0 0.0
        %6388 = vmatprep.subr.mxu0 0.0
        %6389 = vmatpush1.msra.mxu0 0.0
        %6390 = vmatprep.subr.mxu0 0.0
        %6391 = vmatpush1.msra.mxu0 0.0
        %6392 = vmatprep.subr.mxu0 0.0
        %6393 = vmatpush1.msra.mxu0 0.0
        %6394 = vmatprep.subr.mxu0 0.0
        %6395 = vmatpush1.msra.mxu0 0.0
        %6396 = vmatprep.subr.mxu0 0.0
        %6397 = vmatpush1.msra.mxu0 0.0
        %6398 = vmatprep.subr.mxu0 0.0
        %6399 = vmatpush1.msra.mxu0 0.0
        %6400 = vmatprep.subr.mxu0 0.0
        %6401 = vmatpush1.msra.mxu0 0.0
        %6402 = vmatprep.subr.mxu0 0.0
        %6403 = vmatpush1.msra.mxu0 0.0
        %6404 = vmatprep.subr.mxu0 0.0
        %6405 = vmatpush1.msra.mxu0 0.0
        %6406 = vmatprep.subr.mxu0 0.0
        %6407 = vmatpush1.msra.mxu0 0.0
        %6408 = vmatprep.subr.mxu0 0.0
        %6409 = vmatpush1.msra.mxu0 0.0
        %6410 = vmatprep.subr.mxu0 0.0
        %6411 = vmatpush1.msra.mxu0 0.0
        %6412 = vmatprep.subr.mxu0 0.0
        %6413 = vmatpush1.msra.mxu0 0.0
        %6414 = vmatprep.subr.mxu0 0.0
        %6415 = vmatpush1.msra.mxu0 0.0
        %6416 = vmatprep.subr.mxu0 0.0
        %6417 = vmatpush1.msra.mxu0 0.0
        %6418 = vmatprep.subr.mxu0 0.0
        %6419 = vmatpush1.msra.mxu0 0.0
        %6420 = vmatprep.subr.mxu0 0.0
        %6421 = vmatpush1.msra.mxu0 0.0
        %6422 = vmatprep.subr.mxu0 0.0
        %6423 = vmatpush1.msra.mxu0 0.0
        %6424 = vmatprep.subr.mxu0 0.0
        %6425 = vmatpush1.msra.mxu0 0.0
        %6426 = vmatprep.subr.mxu0 0.0
        %6427 = vmatpush1.msra.mxu0 0.0
        %6428 = vmatprep.subr.mxu0 0.0
        %6429 = vmatpush1.msra.mxu0 0.0
        %6430 = vmatprep.subr.mxu0 0.0
        %6431 = vmatpush1.msra.mxu0 0.0
        %6432 = vmatprep.subr.mxu0 0.0
        %6433 = vmatpush1.msra.mxu0 0.0
        %6434 = vmatprep.subr.mxu0 0.0
        %6435 = vmatpush1.msra.mxu0 0.0
        %6436 = vmatprep.mubr.f32.mxu0 0.0
        %6437 = vmatmul.mubr.f32.gmra.mrb[0].mxu0 %v5906
        %v6438 = vpop.f32.mrb[0].mxu0
        %v6439 = vadd.f32 0.0, %v6438
        %v6440 = vpop.f32.mrb[0].mxu0
        %v6441 = vadd.f32 0.0, %v6440
        %6442 = vmatprep.mubr.f32.mxu0 0.0
        %6443 = vmatmul.mubr.f32.gmra.mrb[0].mxu0 %v5908
        %v6444 = vpop.f32.mrb[0].mxu0
        %v6445 = vadd.f32 0.0, %v6444
        %v6446 = vpop.f32.mrb[0].mxu0
        %v6447 = vadd.f32 0.0, %v6446
        %6448 = vdwg.mxu0
        %6449 = vmatprep.subr.mxu0 %v5843
        %6450 = vmatpush1.msra.mxu0 %v5842
        %6451 = vmatprep.subr.mxu0 %v5861
        %6452 = vmatpush1.msra.mxu0 %v5860
        %6453 = vmatprep.subr.mxu0 %v5879
        %6454 = vmatpush1.msra.mxu0 %v5878
        %6455 = vmatprep.subr.mxu0 %v5897
        %6456 = vmatpush1.msra.mxu0 %v5896
        %6457 = vmatprep.subr.mxu0 0.0
        %6458 = vmatpush1.msra.mxu0 0.0
        %6459 = vmatprep.subr.mxu0 0.0
        %6460 = vmatpush1.msra.mxu0 0.0
        %6461 = vmatprep.subr.mxu0 0.0
        %6462 = vmatpush1.msra.mxu0 0.0
        %6463 = vmatprep.subr.mxu0 0.0
        %6464 = vmatpush1.msra.mxu0 0.0
        %6465 = vmatprep.subr.mxu0 0.0
        %6466 = vmatpush1.msra.mxu0 0.0
        %6467 = vmatprep.subr.mxu0 0.0
        %6468 = vmatpush1.msra.mxu0 0.0
        %6469 = vmatprep.subr.mxu0 0.0
        %6470 = vmatpush1.msra.mxu0 0.0
        %6471 = vmatprep.subr.mxu0 0.0
        %6472 = vmatpush1.msra.mxu0 0.0
        %6473 = vmatprep.subr.mxu0 0.0
        %6474 = vmatpush1.msra.mxu0 0.0
        %6475 = vmatprep.subr.mxu0 0.0
        %6476 = vmatpush1.msra.mxu0 0.0
        %6477 = vmatprep.subr.mxu0 0.0
        %6478 = vmatpush1.msra.mxu0 0.0
        %6479 = vmatprep.subr.mxu0 0.0
        %6480 = vmatpush1.msra.mxu0 0.0
        %6481 = vmatprep.subr.mxu0 0.0
        %6482 = vmatpush1.msra.mxu0 0.0
        %6483 = vmatprep.subr.mxu0 0.0
        %6484 = vmatpush1.msra.mxu0 0.0
        %6485 = vmatprep.subr.mxu0 0.0
        %6486 = vmatpush1.msra.mxu0 0.0
        %6487 = vmatprep.subr.mxu0 0.0
        %6488 = vmatpush1.msra.mxu0 0.0
        %6489 = vmatprep.subr.mxu0 0.0
        %6490 = vmatpush1.msra.mxu0 0.0
        %6491 = vmatprep.subr.mxu0 0.0
        %6492 = vmatpush1.msra.mxu0 0.0
        %6493 = vmatprep.subr.mxu0 0.0
        %6494 = vmatpush1.msra.mxu0 0.0
        %6495 = vmatprep.subr.mxu0 0.0
        %6496 = vmatpush1.msra.mxu0 0.0
        %6497 = vmatprep.subr.mxu0 0.0
        %6498 = vmatpush1.msra.mxu0 0.0
        %6499 = vmatprep.subr.mxu0 0.0
        %6500 = vmatpush1.msra.mxu0 0.0
        %6501 = vmatprep.subr.mxu0 0.0
        %6502 = vmatpush1.msra.mxu0 0.0
        %6503 = vmatprep.subr.mxu0 0.0
        %6504 = vmatpush1.msra.mxu0 0.0
        %6505 = vmatprep.subr.mxu0 0.0
        %6506 = vmatpush1.msra.mxu0 0.0
        %6507 = vmatprep.subr.mxu0 0.0
        %6508 = vmatpush1.msra.mxu0 0.0
        %6509 = vmatprep.subr.mxu0 0.0
        %6510 = vmatpush1.msra.mxu0 0.0
        %6511 = vmatprep.subr.mxu0 0.0
        %6512 = vmatpush1.msra.mxu0 0.0
        %6513 = vmatprep.mubr.f32.mxu0 0.0
        %6514 = vmatmul.mubr.f32.gmra.mrb[0].mxu0 %v5906
        %v6515 = vpop.f32.mrb[0].mxu0
        %v6516 = vadd.f32 0.0, %v6515
        %v6517 = vpop.f32.mrb[0].mxu0
        %v6518 = vadd.f32 0.0, %v6517
        %6519 = vmatprep.mubr.f32.mxu0 0.0
        %6520 = vmatmul.mubr.f32.gmra.mrb[0].mxu0 %v5908
        %v6521 = vpop.f32.mrb[0].mxu0
        %v6522 = vadd.f32 0.0, %v6521
        %v6523 = vpop.f32.mrb[0].mxu0
        %v6524 = vadd.f32 0.0, %v6523
        %6525 = vdwg.mxu0
        %6526 = vmatprep.subr.mxu0 %v5845
        %6527 = vmatpush1.msra.mxu0 %v5844
        %6528 = vmatprep.subr.mxu0 %v5863
        %6529 = vmatpush1.msra.mxu0 %v5862
        %6530 = vmatprep.subr.mxu0 %v5881
        %6531 = vmatpush1.msra.mxu0 %v5880
        %6532 = vmatprep.subr.mxu0 %v5899
        %6533 = vmatpush1.msra.mxu0 %v5898
        %6534 = vmatprep.subr.mxu0 0.0
        %6535 = vmatpush1.msra.mxu0 0.0
        %6536 = vmatprep.subr.mxu0 0.0
        %6537 = vmatpush1.msra.mxu0 0.0
        %6538 = vmatprep.subr.mxu0 0.0
        %6539 = vmatpush1.msra.mxu0 0.0
        %6540 = vmatprep.subr.mxu0 0.0
        %6541 = vmatpush1.msra.mxu0 0.0
        %6542 = vmatprep.subr.mxu0 0.0
        %6543 = vmatpush1.msra.mxu0 0.0
        %6544 = vmatprep.subr.mxu0 0.0
        %6545 = vmatpush1.msra.mxu0 0.0
        %6546 = vmatprep.subr.mxu0 0.0
        %6547 = vmatpush1.msra.mxu0 0.0
        %6548 = vmatprep.subr.mxu0 0.0
        %6549 = vmatpush1.msra.mxu0 0.0
        %6550 = vmatprep.subr.mxu0 0.0
        %6551 = vmatpush1.msra.mxu0 0.0
        %6552 = vmatprep.subr.mxu0 0.0
        %6553 = vmatpush1.msra.mxu0 0.0
        %6554 = vmatprep.subr.mxu0 0.0
        %6555 = vmatpush1.msra.mxu0 0.0
        %6556 = vmatprep.subr.mxu0 0.0
        %6557 = vmatpush1.msra.mxu0 0.0
        %6558 = vmatprep.subr.mxu0 0.0
        %6559 = vmatpush1.msra.mxu0 0.0
        %6560 = vmatprep.subr.mxu0 0.0
        %6561 = vmatpush1.msra.mxu0 0.0
        %6562 = vmatprep.subr.mxu0 0.0
        %6563 = vmatpush1.msra.mxu0 0.0
        %6564 = vmatprep.subr.mxu0 0.0
        %6565 = vmatpush1.msra.mxu0 0.0
        %6566 = vmatprep.subr.mxu0 0.0
        %6567 = vmatpush1.msra.mxu0 0.0
        %6568 = vmatprep.subr.mxu0 0.0
        %6569 = vmatpush1.msra.mxu0 0.0
        %6570 = vmatprep.subr.mxu0 0.0
        %6571 = vmatpush1.msra.mxu0 0.0
        %6572 = vmatprep.subr.mxu0 0.0
        %6573 = vmatpush1.msra.mxu0 0.0
        %6574 = vmatprep.subr.mxu0 0.0
        %6575 = vmatpush1.msra.mxu0 0.0
        %6576 = vmatprep.subr.mxu0 0.0
        %6577 = vmatpush1.msra.mxu0 0.0
        %6578 = vmatprep.subr.mxu0 0.0
        %6579 = vmatpush1.msra.mxu0 0.0
        %6580 = vmatprep.subr.mxu0 0.0
        %6581 = vmatpush1.msra.mxu0 0.0
        %6582 = vmatprep.subr.mxu0 0.0
        %6583 = vmatpush1.msra.mxu0 0.0
        %6584 = vmatprep.subr.mxu0 0.0
        %6585 = vmatpush1.msra.mxu0 0.0
        %6586 = vmatprep.subr.mxu0 0.0
        %6587 = vmatpush1.msra.mxu0 0.0
        %6588 = vmatprep.subr.mxu0 0.0
        %6589 = vmatpush1.msra.mxu0 0.0
        %6590 = vmatprep.mubr.f32.mxu0 0.0
        %6591 = vmatmul.mubr.f32.gmra.mrb[0].mxu0 %v5906
        %v6592 = vpop.f32.mrb[0].mxu0
        %v6593 = vadd.f32 0.0, %v6592
        %v6594 = vpop.f32.mrb[0].mxu0
        %v6595 = vadd.f32 0.0, %v6594
        %6596 = vmatprep.mubr.f32.mxu0 0.0
        %6597 = vmatmul.mubr.f32.gmra.mrb[0].mxu0 %v5908
        %v6598 = vpop.f32.mrb[0].mxu0
        %v6599 = vadd.f32 0.0, %v6598
        %v6600 = vpop.f32.mrb[0].mxu0
        %v6601 = vadd.f32 0.0, %v6600
        %6602 = vdwg.mxu0
        %v6603 = vadd.f32 %v5791, %v5977
        %v6604 = vadd.f32 %v5792, %v5979
        %v6605 = vadd.f32 %v5793, %v6054
        %v6606 = vadd.f32 %v5794, %v6056
        %v6607 = vadd.f32 %v5795, %v6131
        %v6608 = vadd.f32 %v5796, %v6133
        %v6609 = vadd.f32 %v5797, %v6208
        %v6610 = vadd.f32 %v5798, %v6210
        %v6611 = vadd.f32 %v5799, %v6285
        %v6612 = vadd.f32 %v5800, %v6287
        %v6613 = vadd.f32 %v5801, %v6362
        %v6614 = vadd.f32 %v5802, %v6364
        %v6615 = vadd.f32 %v5803, %v6439
        %v6616 = vadd.f32 %v5804, %v6441
        %v6617 = vadd.f32 %v5805, %v6516
        %v6618 = vadd.f32 %v5806, %v6518
        %v6619 = vadd.f32 %v5807, %v6593
        %v6620 = vadd.f32 %v5808, %v6595
        %v6621 = vadd.f32 %v5809, %v5983
        %v6622 = vadd.f32 %v5810, %v5985
        %v6623 = vadd.f32 %v5811, %v6060
        %v6624 = vadd.f32 %v5812, %v6062
        %v6625 = vadd.f32 %v5813, %v6137
        %v6626 = vadd.f32 %v5814, %v6139
        %v6627 = vadd.f32 %v5815, %v6214
        %v6628 = vadd.f32 %v5816, %v6216
        %v6629 = vadd.f32 %v5817, %v6291
        %v6630 = vadd.f32 %v5818, %v6293
        %v6631 = vadd.f32 %v5819, %v6368
        %v6632 = vadd.f32 %v5820, %v6370
        %v6633 = vadd.f32 %v5821, %v6445
        %v6634 = vadd.f32 %v5822, %v6447
        %v6635 = vadd.f32 %v5823, %v6522
        %v6636 = vadd.f32 %v5824, %v6524
        %v6637 = vadd.f32 %v5825, %v6599
        %v6638 = vadd.f32 %v5826, %v6601
        %s6639 = scalar_lea.vmem [#allocation2], 4608
        %v6640 = vld [vmem:[%s6639] sm:$0xff]
        %v6641 = vld [vmem:[%s6639 + $0x8] sm:$0xff]
        %v6642 = vld [vmem:[%s6639 + $0x10] sm:$0xff]
        %v6643 = vld [vmem:[%s6639 + $0x18] sm:$0xff]
        %v6644 = vld [vmem:[%s6639 + $0x20] sm:$0xff]
        %v6645 = vld [vmem:[%s6639 + $0x28] sm:$0xff]
        %v6646 = vld [vmem:[%s6639 + $0x30] sm:$0xff]
        %v6647 = vld [vmem:[%s6639 + $0x38] sm:$0xff]
        %v6648 = vld [vmem:[%s6639 + $0x40] sm:$0xff]
        %v6649 = vld [vmem:[%s6639 + $0x48] sm:$0xff]
        %v6650 = vld [vmem:[%s6639 + $0x50] sm:$0xff]
        %v6651 = vld [vmem:[%s6639 + $0x58] sm:$0xff]
        %v6652 = vld [vmem:[%s6639 + $0x60] sm:$0xff]
        %v6653 = vld [vmem:[%s6639 + $0x68] sm:$0xff]
        %v6654 = vld [vmem:[%s6639 + $0x70] sm:$0xff]
        %v6655 = vld [vmem:[%s6639 + $0x78] sm:$0xff]
        %v6656 = vld [vmem:[%s6639 + $0x80] sm:$0xff]
        %v6657 = vld [vmem:[%s6639 + $0x88] sm:$0xff]
        %v6658 = vld [vmem:[%s6639 + $0x90] sm:$0xff]
        %v6659 = vld [vmem:[%s6639 + $0x98] sm:$0xff]
        %v6660 = vld [vmem:[%s6639 + $0xa0] sm:$0xff]
        %v6661 = vld [vmem:[%s6639 + $0xa8] sm:$0xff]
        %v6662 = vld [vmem:[%s6639 + $0xb0] sm:$0xff]
        %v6663 = vld [vmem:[%s6639 + $0xb8] sm:$0xff]
        %v6664 = vld [vmem:[%s6639 + $0xc0] sm:$0xff]
        %v6665 = vld [vmem:[%s6639 + $0xc8] sm:$0xff]
        %v6666 = vld [vmem:[%s6639 + $0xd0] sm:$0xff]
        %v6667 = vld [vmem:[%s6639 + $0xd8] sm:$0xff]
        %v6668 = vld [vmem:[%s6639 + $0xe0] sm:$0xff]
        %v6669 = vld [vmem:[%s6639 + $0xe8] sm:$0xff]
        %v6670 = vld [vmem:[%s6639 + $0xf0] sm:$0xff]
        %v6671 = vld [vmem:[%s6639 + $0xf8] sm:$0xff]
        %v6672 = vld [vmem:[%s6639 + $0x100] sm:$0xff]
        %v6673 = vld [vmem:[%s6639 + $0x108] sm:$0xff]
        %v6674 = vld [vmem:[%s6639 + $0x110] sm:$0xff]
        %v6675 = vld [vmem:[%s6639 + $0x118] sm:$0xff]
        %v6676 = vld [vmem:[%s6639 + $0x120] sm:$0xff]
        %v6677 = vld [vmem:[%s6639 + $0x128] sm:$0xff]
        %v6678 = vld [vmem:[%s6639 + $0x130] sm:$0xff]
        %v6679 = vld [vmem:[%s6639 + $0x138] sm:$0xff]
        %v6680 = vld [vmem:[%s6639 + $0x140] sm:$0xff]
        %v6681 = vld [vmem:[%s6639 + $0x148] sm:$0xff]
        %v6682 = vld [vmem:[%s6639 + $0x150] sm:$0xff]
        %v6683 = vld [vmem:[%s6639 + $0x158] sm:$0xff]
        %v6684 = vld [vmem:[%s6639 + $0x160] sm:$0xff]
        %v6685 = vld [vmem:[%s6639 + $0x168] sm:$0xff]
        %v6686 = vld [vmem:[%s6639 + $0x170] sm:$0xff]
        %v6687 = vld [vmem:[%s6639 + $0x178] sm:$0xff]
        %v6688 = vld [vmem:[%s6639 + $0x180] sm:$0xff]
        %v6689 = vld [vmem:[%s6639 + $0x188] sm:$0xff]
        %v6690 = vld [vmem:[%s6639 + $0x190] sm:$0xff]
        %v6691 = vld [vmem:[%s6639 + $0x198] sm:$0xff]
        %v6692 = vld [vmem:[%s6639 + $0x1a0] sm:$0xff]
        %v6693 = vld [vmem:[%s6639 + $0x1a8] sm:$0xff]
        %v6694 = vld [vmem:[%s6639 + $0x1b0] sm:$0xff]
        %v6695 = vld [vmem:[%s6639 + $0x1b8] sm:$0xff]
        %v6696 = vld [vmem:[%s6639 + $0x1c0] sm:$0xff]
        %v6697 = vld [vmem:[%s6639 + $0x1c8] sm:$0xff]
        %v6698 = vld [vmem:[%s6639 + $0x1d0] sm:$0xff]
        %v6699 = vld [vmem:[%s6639 + $0x1d8] sm:$0xff]
        %v6700 = vld [vmem:[%s6639 + $0x1e0] sm:$0xff]
        %v6701 = vld [vmem:[%s6639 + $0x1e8] sm:$0xff]
        %v6702 = vld [vmem:[%s6639 + $0x1f0] sm:$0xff]
        %v6703 = vld [vmem:[%s6639 + $0x1f8] sm:$0xff]
        %v6704 = vld [vmem:[%s6639 + $0x200] sm:$0xff]
        %v6705 = vld [vmem:[%s6639 + $0x208] sm:$0xff]
        %v6706 = vld [vmem:[%s6639 + $0x210] sm:$0xff]
        %v6707 = vld [vmem:[%s6639 + $0x218] sm:$0xff]
        %v6708 = vld [vmem:[%s6639 + $0x220] sm:$0xff]
        %v6709 = vld [vmem:[%s6639 + $0x228] sm:$0xff]
        %v6710 = vld [vmem:[%s6639 + $0x230] sm:$0xff]
        %v6711 = vld [vmem:[%s6639 + $0x238] sm:$0xff]
        %v6712 = vsel %vm372, %v216, 0
        %6714 = vmatprep.subr.mxu0 %v6641
        %6715 = vmatpush1.msra.mxu0 %v6640
        %6716 = vmatprep.subr.mxu0 %v6659
        %6717 = vmatpush1.msra.mxu0 %v6658
        %6718 = vmatprep.subr.mxu0 %v6677
        %6719 = vmatpush1.msra.mxu0 %v6676
        %6720 = vmatprep.subr.mxu0 %v6695
        %6721 = vmatpush1.msra.mxu0 %v6694
        %6722 = vmatprep.subr.mxu0 0.0
        %6723 = vmatpush1.msra.mxu0 0.0
        %6724 = vmatprep.subr.mxu0 0.0
        %6725 = vmatpush1.msra.mxu0 0.0
        %6726 = vmatprep.subr.mxu0 0.0
        %6727 = vmatpush1.msra.mxu0 0.0
        %6728 = vmatprep.subr.mxu0 0.0
        %6729 = vmatpush1.msra.mxu0 0.0
        %6730 = vmatprep.subr.mxu0 0.0
        %6731 = vmatpush1.msra.mxu0 0.0
        %6732 = vmatprep.subr.mxu0 0.0
        %6733 = vmatpush1.msra.mxu0 0.0
        %6734 = vmatprep.subr.mxu0 0.0
        %6735 = vmatpush1.msra.mxu0 0.0
        %6736 = vmatprep.subr.mxu0 0.0
        %6737 = vmatpush1.msra.mxu0 0.0
        %6738 = vmatprep.subr.mxu0 0.0
        %6739 = vmatpush1.msra.mxu0 0.0
        %6740 = vmatprep.subr.mxu0 0.0
        %6741 = vmatpush1.msra.mxu0 0.0
        %6742 = vmatprep.subr.mxu0 0.0
        %6743 = vmatpush1.msra.mxu0 0.0
        %6744 = vmatprep.subr.mxu0 0.0
        %6745 = vmatpush1.msra.mxu0 0.0
        %6746 = vmatprep.subr.mxu0 0.0
        %6747 = vmatpush1.msra.mxu0 0.0
        %6748 = vmatprep.subr.mxu0 0.0
        %6749 = vmatpush1.msra.mxu0 0.0
        %6750 = vmatprep.subr.mxu0 0.0
        %6751 = vmatpush1.msra.mxu0 0.0
        %6752 = vmatprep.subr.mxu0 0.0
        %6753 = vmatpush1.msra.mxu0 0.0
        %6754 = vmatprep.subr.mxu0 0.0
        %6755 = vmatpush1.msra.mxu0 0.0
        %6756 = vmatprep.subr.mxu0 0.0
        %6757 = vmatpush1.msra.mxu0 0.0
        %6758 = vmatprep.subr.mxu0 0.0
        %6759 = vmatpush1.msra.mxu0 0.0
        %6760 = vmatprep.subr.mxu0 0.0
        %6761 = vmatpush1.msra.mxu0 0.0
        %6762 = vmatprep.subr.mxu0 0.0
        %6763 = vmatpush1.msra.mxu0 0.0
        %6764 = vmatprep.subr.mxu0 0.0
        %6765 = vmatpush1.msra.mxu0 0.0
        %6766 = vmatprep.subr.mxu0 0.0
        %6767 = vmatpush1.msra.mxu0 0.0
        %6768 = vmatprep.subr.mxu0 0.0
        %6769 = vmatpush1.msra.mxu0 0.0
        %6770 = vmatprep.subr.mxu0 0.0
        %6771 = vmatpush1.msra.mxu0 0.0
        %6772 = vmatprep.subr.mxu0 0.0
        %6773 = vmatpush1.msra.mxu0 0.0
        %6774 = vmatprep.subr.mxu0 0.0
        %6775 = vmatpush1.msra.mxu0 0.0
        %6776 = vmatprep.subr.mxu0 0.0
        %6777 = vmatpush1.msra.mxu0 0.0
        %6778 = vmatprep.mubr.f32.mxu0 0.0
        %6779 = vmatmul.mubr.f32.gmra.mrb[0].mxu0 %v1072
        %v6780 = vpop.f32.mrb[0].mxu0
        %v6781 = vadd.f32 0.0, %v6780
        %v6782 = vpop.f32.mrb[0].mxu0
        %v6783 = vadd.f32 0.0, %v6782
        %6784 = vmatprep.mubr.f32.mxu0 0.0
        %6785 = vmatmul.mubr.f32.gmra.mrb[0].mxu0 %v6712
        %v6786 = vpop.f32.mrb[0].mxu0
        %v6787 = vadd.f32 0.0, %v6786
        %v6788 = vpop.f32.mrb[0].mxu0
        %v6789 = vadd.f32 0.0, %v6788
        %6790 = vdwg.mxu0
        %6791 = vmatprep.subr.mxu0 %v6643
        %6792 = vmatpush1.msra.mxu0 %v6642
        %6793 = vmatprep.subr.mxu0 %v6661
        %6794 = vmatpush1.msra.mxu0 %v6660
        %6795 = vmatprep.subr.mxu0 %v6679
        %6796 = vmatpush1.msra.mxu0 %v6678
        %6797 = vmatprep.subr.mxu0 %v6697
        %6798 = vmatpush1.msra.mxu0 %v6696
        %6799 = vmatprep.subr.mxu0 0.0
        %6800 = vmatpush1.msra.mxu0 0.0
        %6801 = vmatprep.subr.mxu0 0.0
        %6802 = vmatpush1.msra.mxu0 0.0
        %6803 = vmatprep.subr.mxu0 0.0
        %6804 = vmatpush1.msra.mxu0 0.0
        %6805 = vmatprep.subr.mxu0 0.0
        %6806 = vmatpush1.msra.mxu0 0.0
        %6807 = vmatprep.subr.mxu0 0.0
        %6808 = vmatpush1.msra.mxu0 0.0
        %6809 = vmatprep.subr.mxu0 0.0
        %6810 = vmatpush1.msra.mxu0 0.0
        %6811 = vmatprep.subr.mxu0 0.0
        %6812 = vmatpush1.msra.mxu0 0.0
        %6813 = vmatprep.subr.mxu0 0.0
        %6814 = vmatpush1.msra.mxu0 0.0
        %6815 = vmatprep.subr.mxu0 0.0
        %6816 = vmatpush1.msra.mxu0 0.0
        %6817 = vmatprep.subr.mxu0 0.0
        %6818 = vmatpush1.msra.mxu0 0.0
        %6819 = vmatprep.subr.mxu0 0.0
        %6820 = vmatpush1.msra.mxu0 0.0
        %6821 = vmatprep.subr.mxu0 0.0
        %6822 = vmatpush1.msra.mxu0 0.0
        %6823 = vmatprep.subr.mxu0 0.0
        %6824 = vmatpush1.msra.mxu0 0.0
        %6825 = vmatprep.subr.mxu0 0.0
        %6826 = vmatpush1.msra.mxu0 0.0
        %6827 = vmatprep.subr.mxu0 0.0
        %6828 = vmatpush1.msra.mxu0 0.0
        %6829 = vmatprep.subr.mxu0 0.0
        %6830 = vmatpush1.msra.mxu0 0.0
        %6831 = vmatprep.subr.mxu0 0.0
        %6832 = vmatpush1.msra.mxu0 0.0
        %6833 = vmatprep.subr.mxu0 0.0
        %6834 = vmatpush1.msra.mxu0 0.0
        %6835 = vmatprep.subr.mxu0 0.0
        %6836 = vmatpush1.msra.mxu0 0.0
        %6837 = vmatprep.subr.mxu0 0.0
        %6838 = vmatpush1.msra.mxu0 0.0
        %6839 = vmatprep.subr.mxu0 0.0
        %6840 = vmatpush1.msra.mxu0 0.0
        %6841 = vmatprep.subr.mxu0 0.0
        %6842 = vmatpush1.msra.mxu0 0.0
        %6843 = vmatprep.subr.mxu0 0.0
        %6844 = vmatpush1.msra.mxu0 0.0
        %6845 = vmatprep.subr.mxu0 0.0
        %6846 = vmatpush1.msra.mxu0 0.0
        %6847 = vmatprep.subr.mxu0 0.0
        %6848 = vmatpush1.msra.mxu0 0.0
        %6849 = vmatprep.subr.mxu0 0.0
        %6850 = vmatpush1.msra.mxu0 0.0
        %6851 = vmatprep.subr.mxu0 0.0
        %6852 = vmatpush1.msra.mxu0 0.0
        %6853 = vmatprep.subr.mxu0 0.0
        %6854 = vmatpush1.msra.mxu0 0.0
        %6855 = vmatprep.mubr.f32.mxu0 0.0
        %6856 = vmatmul.mubr.f32.gmra.mrb[0].mxu0 %v1072
        %v6857 = vpop.f32.mrb[0].mxu0
        %v6858 = vadd.f32 0.0, %v6857
        %v6859 = vpop.f32.mrb[0].mxu0
        %v6860 = vadd.f32 0.0, %v6859
        %6861 = vmatprep.mubr.f32.mxu0 0.0
        %6862 = vmatmul.mubr.f32.gmra.mrb[0].mxu0 %v6712
        %v6863 = vpop.f32.mrb[0].mxu0
        %v6864 = vadd.f32 0.0, %v6863
        %v6865 = vpop.f32.mrb[0].mxu0
        %v6866 = vadd.f32 0.0, %v6865
        %6867 = vdwg.mxu0
        %6868 = vmatprep.subr.mxu0 %v6645
        %6869 = vmatpush1.msra.mxu0 %v6644
        %6870 = vmatprep.subr.mxu0 %v6663
        %6871 = vmatpush1.msra.mxu0 %v6662
        %6872 = vmatprep.subr.mxu0 %v6681
        %6873 = vmatpush1.msra.mxu0 %v6680
        %6874 = vmatprep.subr.mxu0 %v6699
        %6875 = vmatpush1.msra.mxu0 %v6698
        %6876 = vmatprep.subr.mxu0 0.0
        %6877 = vmatpush1.msra.mxu0 0.0
        %6878 = vmatprep.subr.mxu0 0.0
        %6879 = vmatpush1.msra.mxu0 0.0
        %6880 = vmatprep.subr.mxu0 0.0
        %6881 = vmatpush1.msra.mxu0 0.0
        %6882 = vmatprep.subr.mxu0 0.0
        %6883 = vmatpush1.msra.mxu0 0.0
        %6884 = vmatprep.subr.mxu0 0.0
        %6885 = vmatpush1.msra.mxu0 0.0
        %6886 = vmatprep.subr.mxu0 0.0
        %6887 = vmatpush1.msra.mxu0 0.0
        %6888 = vmatprep.subr.mxu0 0.0
        %6889 = vmatpush1.msra.mxu0 0.0
        %6890 = vmatprep.subr.mxu0 0.0
        %6891 = vmatpush1.msra.mxu0 0.0
        %6892 = vmatprep.subr.mxu0 0.0
        %6893 = vmatpush1.msra.mxu0 0.0
        %6894 = vmatprep.subr.mxu0 0.0
        %6895 = vmatpush1.msra.mxu0 0.0
        %6896 = vmatprep.subr.mxu0 0.0
        %6897 = vmatpush1.msra.mxu0 0.0
        %6898 = vmatprep.subr.mxu0 0.0
        %6899 = vmatpush1.msra.mxu0 0.0
        %6900 = vmatprep.subr.mxu0 0.0
        %6901 = vmatpush1.msra.mxu0 0.0
        %6902 = vmatprep.subr.mxu0 0.0
        %6903 = vmatpush1.msra.mxu0 0.0
        %6904 = vmatprep.subr.mxu0 0.0
        %6905 = vmatpush1.msra.mxu0 0.0
        %6906 = vmatprep.subr.mxu0 0.0
        %6907 = vmatpush1.msra.mxu0 0.0
        %6908 = vmatprep.subr.mxu0 0.0
        %6909 = vmatpush1.msra.mxu0 0.0
        %6910 = vmatprep.subr.mxu0 0.0
        %6911 = vmatpush1.msra.mxu0 0.0
        %6912 = vmatprep.subr.mxu0 0.0
        %6913 = vmatpush1.msra.mxu0 0.0
        %6914 = vmatprep.subr.mxu0 0.0
        %6915 = vmatpush1.msra.mxu0 0.0
        %6916 = vmatprep.subr.mxu0 0.0
        %6917 = vmatpush1.msra.mxu0 0.0
        %6918 = vmatprep.subr.mxu0 0.0
        %6919 = vmatpush1.msra.mxu0 0.0
        %6920 = vmatprep.subr.mxu0 0.0
        %6921 = vmatpush1.msra.mxu0 0.0
        %6922 = vmatprep.subr.mxu0 0.0
        %6923 = vmatpush1.msra.mxu0 0.0
        %6924 = vmatprep.subr.mxu0 0.0
        %6925 = vmatpush1.msra.mxu0 0.0
        %6926 = vmatprep.subr.mxu0 0.0
        %6927 = vmatpush1.msra.mxu0 0.0
        %6928 = vmatprep.subr.mxu0 0.0
        %6929 = vmatpush1.msra.mxu0 0.0
        %6930 = vmatprep.subr.mxu0 0.0
        %6931 = vmatpush1.msra.mxu0 0.0
        %6932 = vmatprep.mubr.f32.mxu0 0.0
        %6933 = vmatmul.mubr.f32.gmra.mrb[0].mxu0 %v1072
        %v6934 = vpop.f32.mrb[0].mxu0
        %v6935 = vadd.f32 0.0, %v6934
        %v6936 = vpop.f32.mrb[0].mxu0
        %v6937 = vadd.f32 0.0, %v6936
        %6938 = vmatprep.mubr.f32.mxu0 0.0
        %6939 = vmatmul.mubr.f32.gmra.mrb[0].mxu0 %v6712
        %v6940 = vpop.f32.mrb[0].mxu0
        %v6941 = vadd.f32 0.0, %v6940
        %v6942 = vpop.f32.mrb[0].mxu0
        %v6943 = vadd.f32 0.0, %v6942
        %6944 = vdwg.mxu0
        %6945 = vmatprep.subr.mxu0 %v6647
        %6946 = vmatpush1.msra.mxu0 %v6646
        %6947 = vmatprep.subr.mxu0 %v6665
        %6948 = vmatpush1.msra.mxu0 %v6664
        %6949 = vmatprep.subr.mxu0 %v6683
        %6950 = vmatpush1.msra.mxu0 %v6682
        %6951 = vmatprep.subr.mxu0 %v6701
        %6952 = vmatpush1.msra.mxu0 %v6700
        %6953 = vmatprep.subr.mxu0 0.0
        %6954 = vmatpush1.msra.mxu0 0.0
        %6955 = vmatprep.subr.mxu0 0.0
        %6956 = vmatpush1.msra.mxu0 0.0
        %6957 = vmatprep.subr.mxu0 0.0
        %6958 = vmatpush1.msra.mxu0 0.0
        %6959 = vmatprep.subr.mxu0 0.0
        %6960 = vmatpush1.msra.mxu0 0.0
        %6961 = vmatprep.subr.mxu0 0.0
        %6962 = vmatpush1.msra.mxu0 0.0
        %6963 = vmatprep.subr.mxu0 0.0
        %6964 = vmatpush1.msra.mxu0 0.0
        %6965 = vmatprep.subr.mxu0 0.0
        %6966 = vmatpush1.msra.mxu0 0.0
        %6967 = vmatprep.subr.mxu0 0.0
        %6968 = vmatpush1.msra.mxu0 0.0
        %6969 = vmatprep.subr.mxu0 0.0
        %6970 = vmatpush1.msra.mxu0 0.0
        %6971 = vmatprep.subr.mxu0 0.0
        %6972 = vmatpush1.msra.mxu0 0.0
        %6973 = vmatprep.subr.mxu0 0.0
        %6974 = vmatpush1.msra.mxu0 0.0
        %6975 = vmatprep.subr.mxu0 0.0
        %6976 = vmatpush1.msra.mxu0 0.0
        %6977 = vmatprep.subr.mxu0 0.0
        %6978 = vmatpush1.msra.mxu0 0.0
        %6979 = vmatprep.subr.mxu0 0.0
        %6980 = vmatpush1.msra.mxu0 0.0
        %6981 = vmatprep.subr.mxu0 0.0
        %6982 = vmatpush1.msra.mxu0 0.0
        %6983 = vmatprep.subr.mxu0 0.0
        %6984 = vmatpush1.msra.mxu0 0.0
        %6985 = vmatprep.subr.mxu0 0.0
        %6986 = vmatpush1.msra.mxu0 0.0
        %6987 = vmatprep.subr.mxu0 0.0
        %6988 = vmatpush1.msra.mxu0 0.0
        %6989 = vmatprep.subr.mxu0 0.0
        %6990 = vmatpush1.msra.mxu0 0.0
        %6991 = vmatprep.subr.mxu0 0.0
        %6992 = vmatpush1.msra.mxu0 0.0
        %6993 = vmatprep.subr.mxu0 0.0
        %6994 = vmatpush1.msra.mxu0 0.0
        %6995 = vmatprep.subr.mxu0 0.0
        %6996 = vmatpush1.msra.mxu0 0.0
        %6997 = vmatprep.subr.mxu0 0.0
        %6998 = vmatpush1.msra.mxu0 0.0
        %6999 = vmatprep.subr.mxu0 0.0
        %7000 = vmatpush1.msra.mxu0 0.0
        %7001 = vmatprep.subr.mxu0 0.0
        %7002 = vmatpush1.msra.mxu0 0.0
        %7003 = vmatprep.subr.mxu0 0.0
        %7004 = vmatpush1.msra.mxu0 0.0
        %7005 = vmatprep.subr.mxu0 0.0
        %7006 = vmatpush1.msra.mxu0 0.0
        %7007 = vmatprep.subr.mxu0 0.0
        %7008 = vmatpush1.msra.mxu0 0.0
        %7009 = vmatprep.mubr.f32.mxu0 0.0
        %7010 = vmatmul.mubr.f32.gmra.mrb[0].mxu0 %v1072
        %v7011 = vpop.f32.mrb[0].mxu0
        %v7012 = vadd.f32 0.0, %v7011
        %v7013 = vpop.f32.mrb[0].mxu0
        %v7014 = vadd.f32 0.0, %v7013
        %7015 = vmatprep.mubr.f32.mxu0 0.0
        %7016 = vmatmul.mubr.f32.gmra.mrb[0].mxu0 %v6712
        %v7017 = vpop.f32.mrb[0].mxu0
        %v7018 = vadd.f32 0.0, %v7017
        %v7019 = vpop.f32.mrb[0].mxu0
        %v7020 = vadd.f32 0.0, %v7019
        %7021 = vdwg.mxu0
        %7022 = vmatprep.subr.mxu0 %v6649
        %7023 = vmatpush1.msra.mxu0 %v6648
        %7024 = vmatprep.subr.mxu0 %v6667
        %7025 = vmatpush1.msra.mxu0 %v6666
        %7026 = vmatprep.subr.mxu0 %v6685
        %7027 = vmatpush1.msra.mxu0 %v6684
        %7028 = vmatprep.subr.mxu0 %v6703
        %7029 = vmatpush1.msra.mxu0 %v6702
        %7030 = vmatprep.subr.mxu0 0.0
        %7031 = vmatpush1.msra.mxu0 0.0
        %7032 = vmatprep.subr.mxu0 0.0
        %7033 = vmatpush1.msra.mxu0 0.0
        %7034 = vmatprep.subr.mxu0 0.0
        %7035 = vmatpush1.msra.mxu0 0.0
        %7036 = vmatprep.subr.mxu0 0.0
        %7037 = vmatpush1.msra.mxu0 0.0
        %7038 = vmatprep.subr.mxu0 0.0
        %7039 = vmatpush1.msra.mxu0 0.0
        %7040 = vmatprep.subr.mxu0 0.0
        %7041 = vmatpush1.msra.mxu0 0.0
        %7042 = vmatprep.subr.mxu0 0.0
        %7043 = vmatpush1.msra.mxu0 0.0
        %7044 = vmatprep.subr.mxu0 0.0
        %7045 = vmatpush1.msra.mxu0 0.0
        %7046 = vmatprep.subr.mxu0 0.0
        %7047 = vmatpush1.msra.mxu0 0.0
        %7048 = vmatprep.subr.mxu0 0.0
        %7049 = vmatpush1.msra.mxu0 0.0
        %7050 = vmatprep.subr.mxu0 0.0
        %7051 = vmatpush1.msra.mxu0 0.0
        %7052 = vmatprep.subr.mxu0 0.0
        %7053 = vmatpush1.msra.mxu0 0.0
        %7054 = vmatprep.subr.mxu0 0.0
        %7055 = vmatpush1.msra.mxu0 0.0
        %7056 = vmatprep.subr.mxu0 0.0
        %7057 = vmatpush1.msra.mxu0 0.0
        %7058 = vmatprep.subr.mxu0 0.0
        %7059 = vmatpush1.msra.mxu0 0.0
        %7060 = vmatprep.subr.mxu0 0.0
        %7061 = vmatpush1.msra.mxu0 0.0
        %7062 = vmatprep.subr.mxu0 0.0
        %7063 = vmatpush1.msra.mxu0 0.0
        %7064 = vmatprep.subr.mxu0 0.0
        %7065 = vmatpush1.msra.mxu0 0.0
        %7066 = vmatprep.subr.mxu0 0.0
        %7067 = vmatpush1.msra.mxu0 0.0
        %7068 = vmatprep.subr.mxu0 0.0
        %7069 = vmatpush1.msra.mxu0 0.0
        %7070 = vmatprep.subr.mxu0 0.0
        %7071 = vmatpush1.msra.mxu0 0.0
        %7072 = vmatprep.subr.mxu0 0.0
        %7073 = vmatpush1.msra.mxu0 0.0
        %7074 = vmatprep.subr.mxu0 0.0
        %7075 = vmatpush1.msra.mxu0 0.0
        %7076 = vmatprep.subr.mxu0 0.0
        %7077 = vmatpush1.msra.mxu0 0.0
        %7078 = vmatprep.subr.mxu0 0.0
        %7079 = vmatpush1.msra.mxu0 0.0
        %7080 = vmatprep.subr.mxu0 0.0
        %7081 = vmatpush1.msra.mxu0 0.0
        %7082 = vmatprep.subr.mxu0 0.0
        %7083 = vmatpush1.msra.mxu0 0.0
        %7084 = vmatprep.subr.mxu0 0.0
        %7085 = vmatpush1.msra.mxu0 0.0
        %7086 = vmatprep.mubr.f32.mxu0 0.0
        %7087 = vmatmul.mubr.f32.gmra.mrb[0].mxu0 %v1072
        %v7088 = vpop.f32.mrb[0].mxu0
        %v7089 = vadd.f32 0.0, %v7088
        %v7090 = vpop.f32.mrb[0].mxu0
        %v7091 = vadd.f32 0.0, %v7090
        %7092 = vmatprep.mubr.f32.mxu0 0.0
        %7093 = vmatmul.mubr.f32.gmra.mrb[0].mxu0 %v6712
        %v7094 = vpop.f32.mrb[0].mxu0
        %v7095 = vadd.f32 0.0, %v7094
        %v7096 = vpop.f32.mrb[0].mxu0
        %v7097 = vadd.f32 0.0, %v7096
        %7098 = vdwg.mxu0
        %7099 = vmatprep.subr.mxu0 %v6651
        %7100 = vmatpush1.msra.mxu0 %v6650
        %7101 = vmatprep.subr.mxu0 %v6669
        %7102 = vmatpush1.msra.mxu0 %v6668
        %7103 = vmatprep.subr.mxu0 %v6687
        %7104 = vmatpush1.msra.mxu0 %v6686
        %7105 = vmatprep.subr.mxu0 %v6705
        %7106 = vmatpush1.msra.mxu0 %v6704
        %7107 = vmatprep.subr.mxu0 0.0
        %7108 = vmatpush1.msra.mxu0 0.0
        %7109 = vmatprep.subr.mxu0 0.0
        %7110 = vmatpush1.msra.mxu0 0.0
        %7111 = vmatprep.subr.mxu0 0.0
        %7112 = vmatpush1.msra.mxu0 0.0
        %7113 = vmatprep.subr.mxu0 0.0
        %7114 = vmatpush1.msra.mxu0 0.0
        %7115 = vmatprep.subr.mxu0 0.0
        %7116 = vmatpush1.msra.mxu0 0.0
        %7117 = vmatprep.subr.mxu0 0.0
        %7118 = vmatpush1.msra.mxu0 0.0
        %7119 = vmatprep.subr.mxu0 0.0
        %7120 = vmatpush1.msra.mxu0 0.0
        %7121 = vmatprep.subr.mxu0 0.0
        %7122 = vmatpush1.msra.mxu0 0.0
        %7123 = vmatprep.subr.mxu0 0.0
        %7124 = vmatpush1.msra.mxu0 0.0
        %7125 = vmatprep.subr.mxu0 0.0
        %7126 = vmatpush1.msra.mxu0 0.0
        %7127 = vmatprep.subr.mxu0 0.0
        %7128 = vmatpush1.msra.mxu0 0.0
        %7129 = vmatprep.subr.mxu0 0.0
        %7130 = vmatpush1.msra.mxu0 0.0
        %7131 = vmatprep.subr.mxu0 0.0
        %7132 = vmatpush1.msra.mxu0 0.0
        %7133 = vmatprep.subr.mxu0 0.0
        %7134 = vmatpush1.msra.mxu0 0.0
        %7135 = vmatprep.subr.mxu0 0.0
        %7136 = vmatpush1.msra.mxu0 0.0
        %7137 = vmatprep.subr.mxu0 0.0
        %7138 = vmatpush1.msra.mxu0 0.0
        %7139 = vmatprep.subr.mxu0 0.0
        %7140 = vmatpush1.msra.mxu0 0.0
        %7141 = vmatprep.subr.mxu0 0.0
        %7142 = vmatpush1.msra.mxu0 0.0
        %7143 = vmatprep.subr.mxu0 0.0
        %7144 = vmatpush1.msra.mxu0 0.0
        %7145 = vmatprep.subr.mxu0 0.0
        %7146 = vmatpush1.msra.mxu0 0.0
        %7147 = vmatprep.subr.mxu0 0.0
        %7148 = vmatpush1.msra.mxu0 0.0
        %7149 = vmatprep.subr.mxu0 0.0
        %7150 = vmatpush1.msra.mxu0 0.0
        %7151 = vmatprep.subr.mxu0 0.0
        %7152 = vmatpush1.msra.mxu0 0.0
        %7153 = vmatprep.subr.mxu0 0.0
        %7154 = vmatpush1.msra.mxu0 0.0
        %7155 = vmatprep.subr.mxu0 0.0
        %7156 = vmatpush1.msra.mxu0 0.0
        %7157 = vmatprep.subr.mxu0 0.0
        %7158 = vmatpush1.msra.mxu0 0.0
        %7159 = vmatprep.subr.mxu0 0.0
        %7160 = vmatpush1.msra.mxu0 0.0
        %7161 = vmatprep.subr.mxu0 0.0
        %7162 = vmatpush1.msra.mxu0 0.0
        %7163 = vmatprep.mubr.f32.mxu0 0.0
        %7164 = vmatmul.mubr.f32.gmra.mrb[0].mxu0 %v1072
        %v7165 = vpop.f32.mrb[0].mxu0
        %v7166 = vadd.f32 0.0, %v7165
        %v7167 = vpop.f32.mrb[0].mxu0
        %v7168 = vadd.f32 0.0, %v7167
        %7169 = vmatprep.mubr.f32.mxu0 0.0
        %7170 = vmatmul.mubr.f32.gmra.mrb[0].mxu0 %v6712
        %v7171 = vpop.f32.mrb[0].mxu0
        %v7172 = vadd.f32 0.0, %v7171
        %v7173 = vpop.f32.mrb[0].mxu0
        %v7174 = vadd.f32 0.0, %v7173
        %7175 = vdwg.mxu0
        %7176 = vmatprep.subr.mxu0 %v6653
        %7177 = vmatpush1.msra.mxu0 %v6652
        %7178 = vmatprep.subr.mxu0 %v6671
        %7179 = vmatpush1.msra.mxu0 %v6670
        %7180 = vmatprep.subr.mxu0 %v6689
        %7181 = vmatpush1.msra.mxu0 %v6688
        %7182 = vmatprep.subr.mxu0 %v6707
        %7183 = vmatpush1.msra.mxu0 %v6706
        %7184 = vmatprep.subr.mxu0 0.0
        %7185 = vmatpush1.msra.mxu0 0.0
        %7186 = vmatprep.subr.mxu0 0.0
        %7187 = vmatpush1.msra.mxu0 0.0
        %7188 = vmatprep.subr.mxu0 0.0
        %7189 = vmatpush1.msra.mxu0 0.0
        %7190 = vmatprep.subr.mxu0 0.0
        %7191 = vmatpush1.msra.mxu0 0.0
        %7192 = vmatprep.subr.mxu0 0.0
        %7193 = vmatpush1.msra.mxu0 0.0
        %7194 = vmatprep.subr.mxu0 0.0
        %7195 = vmatpush1.msra.mxu0 0.0
        %7196 = vmatprep.subr.mxu0 0.0
        %7197 = vmatpush1.msra.mxu0 0.0
        %7198 = vmatprep.subr.mxu0 0.0
        %7199 = vmatpush1.msra.mxu0 0.0
        %7200 = vmatprep.subr.mxu0 0.0
        %7201 = vmatpush1.msra.mxu0 0.0
        %7202 = vmatprep.subr.mxu0 0.0
        %7203 = vmatpush1.msra.mxu0 0.0
        %7204 = vmatprep.subr.mxu0 0.0
        %7205 = vmatpush1.msra.mxu0 0.0
        %7206 = vmatprep.subr.mxu0 0.0
        %7207 = vmatpush1.msra.mxu0 0.0
        %7208 = vmatprep.subr.mxu0 0.0
        %7209 = vmatpush1.msra.mxu0 0.0
        %7210 = vmatprep.subr.mxu0 0.0
        %7211 = vmatpush1.msra.mxu0 0.0
        %7212 = vmatprep.subr.mxu0 0.0
        %7213 = vmatpush1.msra.mxu0 0.0
        %7214 = vmatprep.subr.mxu0 0.0
        %7215 = vmatpush1.msra.mxu0 0.0
        %7216 = vmatprep.subr.mxu0 0.0
        %7217 = vmatpush1.msra.mxu0 0.0
        %7218 = vmatprep.subr.mxu0 0.0
        %7219 = vmatpush1.msra.mxu0 0.0
        %7220 = vmatprep.subr.mxu0 0.0
        %7221 = vmatpush1.msra.mxu0 0.0
        %7222 = vmatprep.subr.mxu0 0.0
        %7223 = vmatpush1.msra.mxu0 0.0
        %7224 = vmatprep.subr.mxu0 0.0
        %7225 = vmatpush1.msra.mxu0 0.0
        %7226 = vmatprep.subr.mxu0 0.0
        %7227 = vmatpush1.msra.mxu0 0.0
        %7228 = vmatprep.subr.mxu0 0.0
        %7229 = vmatpush1.msra.mxu0 0.0
        %7230 = vmatprep.subr.mxu0 0.0
        %7231 = vmatpush1.msra.mxu0 0.0
        %7232 = vmatprep.subr.mxu0 0.0
        %7233 = vmatpush1.msra.mxu0 0.0
        %7234 = vmatprep.subr.mxu0 0.0
        %7235 = vmatpush1.msra.mxu0 0.0
        %7236 = vmatprep.subr.mxu0 0.0
        %7237 = vmatpush1.msra.mxu0 0.0
        %7238 = vmatprep.subr.mxu0 0.0
        %7239 = vmatpush1.msra.mxu0 0.0
        %7240 = vmatprep.mubr.f32.mxu0 0.0
        %7241 = vmatmul.mubr.f32.gmra.mrb[0].mxu0 %v1072
        %v7242 = vpop.f32.mrb[0].mxu0
        %v7243 = vadd.f32 0.0, %v7242
        %v7244 = vpop.f32.mrb[0].mxu0
        %v7245 = vadd.f32 0.0, %v7244
        %7246 = vmatprep.mubr.f32.mxu0 0.0
        %7247 = vmatmul.mubr.f32.gmra.mrb[0].mxu0 %v6712
        %v7248 = vpop.f32.mrb[0].mxu0
        %v7249 = vadd.f32 0.0, %v7248
        %v7250 = vpop.f32.mrb[0].mxu0
        %v7251 = vadd.f32 0.0, %v7250
        %7252 = vdwg.mxu0
        %7253 = vmatprep.subr.mxu0 %v6655
        %7254 = vmatpush1.msra.mxu0 %v6654
        %7255 = vmatprep.subr.mxu0 %v6673
        %7256 = vmatpush1.msra.mxu0 %v6672
        %7257 = vmatprep.subr.mxu0 %v6691
        %7258 = vmatpush1.msra.mxu0 %v6690
        %7259 = vmatprep.subr.mxu0 %v6709
        %7260 = vmatpush1.msra.mxu0 %v6708
        %7261 = vmatprep.subr.mxu0 0.0
        %7262 = vmatpush1.msra.mxu0 0.0
        %7263 = vmatprep.subr.mxu0 0.0
        %7264 = vmatpush1.msra.mxu0 0.0
        %7265 = vmatprep.subr.mxu0 0.0
        %7266 = vmatpush1.msra.mxu0 0.0
        %7267 = vmatprep.subr.mxu0 0.0
        %7268 = vmatpush1.msra.mxu0 0.0
        %7269 = vmatprep.subr.mxu0 0.0
        %7270 = vmatpush1.msra.mxu0 0.0
        %7271 = vmatprep.subr.mxu0 0.0
        %7272 = vmatpush1.msra.mxu0 0.0
        %7273 = vmatprep.subr.mxu0 0.0
        %7274 = vmatpush1.msra.mxu0 0.0
        %7275 = vmatprep.subr.mxu0 0.0
        %7276 = vmatpush1.msra.mxu0 0.0
        %7277 = vmatprep.subr.mxu0 0.0
        %7278 = vmatpush1.msra.mxu0 0.0
        %7279 = vmatprep.subr.mxu0 0.0
        %7280 = vmatpush1.msra.mxu0 0.0
        %7281 = vmatprep.subr.mxu0 0.0
        %7282 = vmatpush1.msra.mxu0 0.0
        %7283 = vmatprep.subr.mxu0 0.0
        %7284 = vmatpush1.msra.mxu0 0.0
        %7285 = vmatprep.subr.mxu0 0.0
        %7286 = vmatpush1.msra.mxu0 0.0
        %7287 = vmatprep.subr.mxu0 0.0
        %7288 = vmatpush1.msra.mxu0 0.0
        %7289 = vmatprep.subr.mxu0 0.0
        %7290 = vmatpush1.msra.mxu0 0.0
        %7291 = vmatprep.subr.mxu0 0.0
        %7292 = vmatpush1.msra.mxu0 0.0
        %7293 = vmatprep.subr.mxu0 0.0
        %7294 = vmatpush1.msra.mxu0 0.0
        %7295 = vmatprep.subr.mxu0 0.0
        %7296 = vmatpush1.msra.mxu0 0.0
        %7297 = vmatprep.subr.mxu0 0.0
        %7298 = vmatpush1.msra.mxu0 0.0
        %7299 = vmatprep.subr.mxu0 0.0
        %7300 = vmatpush1.msra.mxu0 0.0
        %7301 = vmatprep.subr.mxu0 0.0
        %7302 = vmatpush1.msra.mxu0 0.0
        %7303 = vmatprep.subr.mxu0 0.0
        %7304 = vmatpush1.msra.mxu0 0.0
        %7305 = vmatprep.subr.mxu0 0.0
        %7306 = vmatpush1.msra.mxu0 0.0
        %7307 = vmatprep.subr.mxu0 0.0
        %7308 = vmatpush1.msra.mxu0 0.0
        %7309 = vmatprep.subr.mxu0 0.0
        %7310 = vmatpush1.msra.mxu0 0.0
        %7311 = vmatprep.subr.mxu0 0.0
        %7312 = vmatpush1.msra.mxu0 0.0
        %7313 = vmatprep.subr.mxu0 0.0
        %7314 = vmatpush1.msra.mxu0 0.0
        %7315 = vmatprep.subr.mxu0 0.0
        %7316 = vmatpush1.msra.mxu0 0.0
        %7317 = vmatprep.mubr.f32.mxu0 0.0
        %7318 = vmatmul.mubr.f32.gmra.mrb[0].mxu0 %v1072
        %v7319 = vpop.f32.mrb[0].mxu0
        %v7320 = vadd.f32 0.0, %v7319
        %v7321 = vpop.f32.mrb[0].mxu0
        %v7322 = vadd.f32 0.0, %v7321
        %7323 = vmatprep.mubr.f32.mxu0 0.0
        %7324 = vmatmul.mubr.f32.gmra.mrb[0].mxu0 %v6712
        %v7325 = vpop.f32.mrb[0].mxu0
        %v7326 = vadd.f32 0.0, %v7325
        %v7327 = vpop.f32.mrb[0].mxu0
        %v7328 = vadd.f32 0.0, %v7327
        %7329 = vdwg.mxu0
        %7330 = vmatprep.subr.mxu0 %v6657
        %7331 = vmatpush1.msra.mxu0 %v6656
        %7332 = vmatprep.subr.mxu0 %v6675
        %7333 = vmatpush1.msra.mxu0 %v6674
        %7334 = vmatprep.subr.mxu0 %v6693
        %7335 = vmatpush1.msra.mxu0 %v6692
        %7336 = vmatprep.subr.mxu0 %v6711
        %7337 = vmatpush1.msra.mxu0 %v6710
        %7338 = vmatprep.subr.mxu0 0.0
        %7339 = vmatpush1.msra.mxu0 0.0
        %7340 = vmatprep.subr.mxu0 0.0
        %7341 = vmatpush1.msra.mxu0 0.0
        %7342 = vmatprep.subr.mxu0 0.0
        %7343 = vmatpush1.msra.mxu0 0.0
        %7344 = vmatprep.subr.mxu0 0.0
        %7345 = vmatpush1.msra.mxu0 0.0
        %7346 = vmatprep.subr.mxu0 0.0
        %7347 = vmatpush1.msra.mxu0 0.0
        %7348 = vmatprep.subr.mxu0 0.0
        %7349 = vmatpush1.msra.mxu0 0.0
        %7350 = vmatprep.subr.mxu0 0.0
        %7351 = vmatpush1.msra.mxu0 0.0
        %7352 = vmatprep.subr.mxu0 0.0
        %7353 = vmatpush1.msra.mxu0 0.0
        %7354 = vmatprep.subr.mxu0 0.0
        %7355 = vmatpush1.msra.mxu0 0.0
        %7356 = vmatprep.subr.mxu0 0.0
        %7357 = vmatpush1.msra.mxu0 0.0
        %7358 = vmatprep.subr.mxu0 0.0
        %7359 = vmatpush1.msra.mxu0 0.0
        %7360 = vmatprep.subr.mxu0 0.0
        %7361 = vmatpush1.msra.mxu0 0.0
        %7362 = vmatprep.subr.mxu0 0.0
        %7363 = vmatpush1.msra.mxu0 0.0
        %7364 = vmatprep.subr.mxu0 0.0
        %7365 = vmatpush1.msra.mxu0 0.0
        %7366 = vmatprep.subr.mxu0 0.0
        %7367 = vmatpush1.msra.mxu0 0.0
        %7368 = vmatprep.subr.mxu0 0.0
        %7369 = vmatpush1.msra.mxu0 0.0
        %7370 = vmatprep.subr.mxu0 0.0
        %7371 = vmatpush1.msra.mxu0 0.0
        %7372 = vmatprep.subr.mxu0 0.0
        %7373 = vmatpush1.msra.mxu0 0.0
        %7374 = vmatprep.subr.mxu0 0.0
        %7375 = vmatpush1.msra.mxu0 0.0
        %7376 = vmatprep.subr.mxu0 0.0
        %7377 = vmatpush1.msra.mxu0 0.0
        %7378 = vmatprep.subr.mxu0 0.0
        %7379 = vmatpush1.msra.mxu0 0.0
        %7380 = vmatprep.subr.mxu0 0.0
        %7381 = vmatpush1.msra.mxu0 0.0
        %7382 = vmatprep.subr.mxu0 0.0
        %7383 = vmatpush1.msra.mxu0 0.0
        %7384 = vmatprep.subr.mxu0 0.0
        %7385 = vmatpush1.msra.mxu0 0.0
        %7386 = vmatprep.subr.mxu0 0.0
        %7387 = vmatpush1.msra.mxu0 0.0
        %7388 = vmatprep.subr.mxu0 0.0
        %7389 = vmatpush1.msra.mxu0 0.0
        %7390 = vmatprep.subr.mxu0 0.0
        %7391 = vmatpush1.msra.mxu0 0.0
        %7392 = vmatprep.subr.mxu0 0.0
        %7393 = vmatpush1.msra.mxu0 0.0
        %7394 = vmatprep.mubr.f32.mxu0 0.0
        %7395 = vmatmul.mubr.f32.gmra.mrb[0].mxu0 %v1072
        %v7396 = vpop.f32.mrb[0].mxu0
        %v7397 = vadd.f32 0.0, %v7396
        %v7398 = vpop.f32.mrb[0].mxu0
        %v7399 = vadd.f32 0.0, %v7398
        %7400 = vmatprep.mubr.f32.mxu0 0.0
        %7401 = vmatmul.mubr.f32.gmra.mrb[0].mxu0 %v6712
        %v7402 = vpop.f32.mrb[0].mxu0
        %v7403 = vadd.f32 0.0, %v7402
        %v7404 = vpop.f32.mrb[0].mxu0
        %v7405 = vadd.f32 0.0, %v7404
        %7406 = vdwg.mxu0
        %v7407 = vadd.f32 %v6603, %v6781
        %v7408 = vadd.f32 %v6604, %v6783
        %v7409 = vadd.f32 %v6605, %v6858
        %v7410 = vadd.f32 %v6606, %v6860
        %v7411 = vadd.f32 %v6607, %v6935
        %v7412 = vadd.f32 %v6608, %v6937
        %v7413 = vadd.f32 %v6609, %v7012
        %v7414 = vadd.f32 %v6610, %v7014
        %v7415 = vadd.f32 %v6611, %v7089
        %v7416 = vadd.f32 %v6612, %v7091
        %v7417 = vadd.f32 %v6613, %v7166
        %v7418 = vadd.f32 %v6614, %v7168
        %v7419 = vadd.f32 %v6615, %v7243
        %v7420 = vadd.f32 %v6616, %v7245
        %v7421 = vadd.f32 %v6617, %v7320
        %v7422 = vadd.f32 %v6618, %v7322
        %v7423 = vadd.f32 %v6619, %v7397
        %v7424 = vadd.f32 %v6620, %v7399
        %v7425 = vadd.f32 %v6621, %v6787
        %v7426 = vadd.f32 %v6622, %v6789
        %v7427 = vadd.f32 %v6623, %v6864
        %v7428 = vadd.f32 %v6624, %v6866
        %v7429 = vadd.f32 %v6625, %v6941
        %v7430 = vadd.f32 %v6626, %v6943
        %v7431 = vadd.f32 %v6627, %v7018
        %v7432 = vadd.f32 %v6628, %v7020
        %v7433 = vadd.f32 %v6629, %v7095
        %v7434 = vadd.f32 %v6630, %v7097
        %v7435 = vadd.f32 %v6631, %v7172
        %v7436 = vadd.f32 %v6632, %v7174
        %v7437 = vadd.f32 %v6633, %v7249
        %v7438 = vadd.f32 %v6634, %v7251
        %v7439 = vadd.f32 %v6635, %v7326
        %v7440 = vadd.f32 %v6636, %v7328
        %v7441 = vadd.f32 %v6637, %v7403
        %v7442 = vadd.f32 %v6638, %v7405
        %s7443 = scalar_lea.vmem [#allocation2], 5184
        %v7444 = vld [vmem:[%s7443] sm:$0xff]
        %v7445 = vld [vmem:[%s7443 + $0x8] sm:$0xff]
        %v7446 = vld [vmem:[%s7443 + $0x10] sm:$0xff]
        %v7447 = vld [vmem:[%s7443 + $0x18] sm:$0xff]
        %v7448 = vld [vmem:[%s7443 + $0x20] sm:$0xff]
        %v7449 = vld [vmem:[%s7443 + $0x28] sm:$0xff]
        %v7450 = vld [vmem:[%s7443 + $0x30] sm:$0xff]
        %v7451 = vld [vmem:[%s7443 + $0x38] sm:$0xff]
        %v7452 = vld [vmem:[%s7443 + $0x40] sm:$0xff]
        %v7453 = vld [vmem:[%s7443 + $0x48] sm:$0xff]
        %v7454 = vld [vmem:[%s7443 + $0x50] sm:$0xff]
        %v7455 = vld [vmem:[%s7443 + $0x58] sm:$0xff]
        %v7456 = vld [vmem:[%s7443 + $0x60] sm:$0xff]
        %v7457 = vld [vmem:[%s7443 + $0x68] sm:$0xff]
        %v7458 = vld [vmem:[%s7443 + $0x70] sm:$0xff]
        %v7459 = vld [vmem:[%s7443 + $0x78] sm:$0xff]
        %v7460 = vld [vmem:[%s7443 + $0x80] sm:$0xff]
        %v7461 = vld [vmem:[%s7443 + $0x88] sm:$0xff]
        %v7462 = vld [vmem:[%s7443 + $0x90] sm:$0xff]
        %v7463 = vld [vmem:[%s7443 + $0x98] sm:$0xff]
        %v7464 = vld [vmem:[%s7443 + $0xa0] sm:$0xff]
        %v7465 = vld [vmem:[%s7443 + $0xa8] sm:$0xff]
        %v7466 = vld [vmem:[%s7443 + $0xb0] sm:$0xff]
        %v7467 = vld [vmem:[%s7443 + $0xb8] sm:$0xff]
        %v7468 = vld [vmem:[%s7443 + $0xc0] sm:$0xff]
        %v7469 = vld [vmem:[%s7443 + $0xc8] sm:$0xff]
        %v7470 = vld [vmem:[%s7443 + $0xd0] sm:$0xff]
        %v7471 = vld [vmem:[%s7443 + $0xd8] sm:$0xff]
        %v7472 = vld [vmem:[%s7443 + $0xe0] sm:$0xff]
        %v7473 = vld [vmem:[%s7443 + $0xe8] sm:$0xff]
        %v7474 = vld [vmem:[%s7443 + $0xf0] sm:$0xff]
        %v7475 = vld [vmem:[%s7443 + $0xf8] sm:$0xff]
        %v7476 = vld [vmem:[%s7443 + $0x100] sm:$0xff]
        %v7477 = vld [vmem:[%s7443 + $0x108] sm:$0xff]
        %v7478 = vld [vmem:[%s7443 + $0x110] sm:$0xff]
        %v7479 = vld [vmem:[%s7443 + $0x118] sm:$0xff]
        %v7480 = vld [vmem:[%s7443 + $0x120] sm:$0xff]
        %v7481 = vld [vmem:[%s7443 + $0x128] sm:$0xff]
        %v7482 = vld [vmem:[%s7443 + $0x130] sm:$0xff]
        %v7483 = vld [vmem:[%s7443 + $0x138] sm:$0xff]
        %v7484 = vld [vmem:[%s7443 + $0x140] sm:$0xff]
        %v7485 = vld [vmem:[%s7443 + $0x148] sm:$0xff]
        %v7486 = vld [vmem:[%s7443 + $0x150] sm:$0xff]
        %v7487 = vld [vmem:[%s7443 + $0x158] sm:$0xff]
        %v7488 = vld [vmem:[%s7443 + $0x160] sm:$0xff]
        %v7489 = vld [vmem:[%s7443 + $0x168] sm:$0xff]
        %v7490 = vld [vmem:[%s7443 + $0x170] sm:$0xff]
        %v7491 = vld [vmem:[%s7443 + $0x178] sm:$0xff]
        %v7492 = vld [vmem:[%s7443 + $0x180] sm:$0xff]
        %v7493 = vld [vmem:[%s7443 + $0x188] sm:$0xff]
        %v7494 = vld [vmem:[%s7443 + $0x190] sm:$0xff]
        %v7495 = vld [vmem:[%s7443 + $0x198] sm:$0xff]
        %v7496 = vld [vmem:[%s7443 + $0x1a0] sm:$0xff]
        %v7497 = vld [vmem:[%s7443 + $0x1a8] sm:$0xff]
        %v7498 = vld [vmem:[%s7443 + $0x1b0] sm:$0xff]
        %v7499 = vld [vmem:[%s7443 + $0x1b8] sm:$0xff]
        %v7500 = vld [vmem:[%s7443 + $0x1c0] sm:$0xff]
        %v7501 = vld [vmem:[%s7443 + $0x1c8] sm:$0xff]
        %v7502 = vld [vmem:[%s7443 + $0x1d0] sm:$0xff]
        %v7503 = vld [vmem:[%s7443 + $0x1d8] sm:$0xff]
        %v7504 = vld [vmem:[%s7443 + $0x1e0] sm:$0xff]
        %v7505 = vld [vmem:[%s7443 + $0x1e8] sm:$0xff]
        %v7506 = vld [vmem:[%s7443 + $0x1f0] sm:$0xff]
        %v7507 = vld [vmem:[%s7443 + $0x1f8] sm:$0xff]
        %v7508 = vld [vmem:[%s7443 + $0x200] sm:$0xff]
        %v7509 = vld [vmem:[%s7443 + $0x208] sm:$0xff]
        %v7510 = vld [vmem:[%s7443 + $0x210] sm:$0xff]
        %v7511 = vld [vmem:[%s7443 + $0x218] sm:$0xff]
        %v7512 = vld [vmem:[%s7443 + $0x220] sm:$0xff]
        %v7513 = vld [vmem:[%s7443 + $0x228] sm:$0xff]
        %v7514 = vld [vmem:[%s7443 + $0x230] sm:$0xff]
        %v7515 = vld [vmem:[%s7443 + $0x238] sm:$0xff]
        %v7517 = vrot.slane %v217, 1
        %v7518 = vsel %vm366, %v370, %v7517
        %v7519 = vsel %vm372, %v7518, 0
        %7521 = vmatprep.subr.mxu0 %v7445
        %7522 = vmatpush1.msra.mxu0 %v7444
        %7523 = vmatprep.subr.mxu0 %v7463
        %7524 = vmatpush1.msra.mxu0 %v7462
        %7525 = vmatprep.subr.mxu0 %v7481
        %7526 = vmatpush1.msra.mxu0 %v7480
        %7527 = vmatprep.subr.mxu0 %v7499
        %7528 = vmatpush1.msra.mxu0 %v7498
        %7529 = vmatprep.subr.mxu0 0.0
        %7530 = vmatpush1.msra.mxu0 0.0
        %7531 = vmatprep.subr.mxu0 0.0
        %7532 = vmatpush1.msra.mxu0 0.0
        %7533 = vmatprep.subr.mxu0 0.0
        %7534 = vmatpush1.msra.mxu0 0.0
        %7535 = vmatprep.subr.mxu0 0.0
        %7536 = vmatpush1.msra.mxu0 0.0
        %7537 = vmatprep.subr.mxu0 0.0
        %7538 = vmatpush1.msra.mxu0 0.0
        %7539 = vmatprep.subr.mxu0 0.0
        %7540 = vmatpush1.msra.mxu0 0.0
        %7541 = vmatprep.subr.mxu0 0.0
        %7542 = vmatpush1.msra.mxu0 0.0
        %7543 = vmatprep.subr.mxu0 0.0
        %7544 = vmatpush1.msra.mxu0 0.0
        %7545 = vmatprep.subr.mxu0 0.0
        %7546 = vmatpush1.msra.mxu0 0.0
        %7547 = vmatprep.subr.mxu0 0.0
        %7548 = vmatpush1.msra.mxu0 0.0
        %7549 = vmatprep.subr.mxu0 0.0
        %7550 = vmatpush1.msra.mxu0 0.0
        %7551 = vmatprep.subr.mxu0 0.0
        %7552 = vmatpush1.msra.mxu0 0.0
        %7553 = vmatprep.subr.mxu0 0.0
        %7554 = vmatpush1.msra.mxu0 0.0
        %7555 = vmatprep.subr.mxu0 0.0
        %7556 = vmatpush1.msra.mxu0 0.0
        %7557 = vmatprep.subr.mxu0 0.0
        %7558 = vmatpush1.msra.mxu0 0.0
        %7559 = vmatprep.subr.mxu0 0.0
        %7560 = vmatpush1.msra.mxu0 0.0
        %7561 = vmatprep.subr.mxu0 0.0
        %7562 = vmatpush1.msra.mxu0 0.0
        %7563 = vmatprep.subr.mxu0 0.0
        %7564 = vmatpush1.msra.mxu0 0.0
        %7565 = vmatprep.subr.mxu0 0.0
        %7566 = vmatpush1.msra.mxu0 0.0
        %7567 = vmatprep.subr.mxu0 0.0
        %7568 = vmatpush1.msra.mxu0 0.0
        %7569 = vmatprep.subr.mxu0 0.0
        %7570 = vmatpush1.msra.mxu0 0.0
        %7571 = vmatprep.subr.mxu0 0.0
        %7572 = vmatpush1.msra.mxu0 0.0
        %7573 = vmatprep.subr.mxu0 0.0
        %7574 = vmatpush1.msra.mxu0 0.0
        %7575 = vmatprep.subr.mxu0 0.0
        %7576 = vmatpush1.msra.mxu0 0.0
        %7577 = vmatprep.subr.mxu0 0.0
        %7578 = vmatpush1.msra.mxu0 0.0
        %7579 = vmatprep.subr.mxu0 0.0
        %7580 = vmatpush1.msra.mxu0 0.0
        %7581 = vmatprep.subr.mxu0 0.0
        %7582 = vmatpush1.msra.mxu0 0.0
        %7583 = vmatprep.subr.mxu0 0.0
        %7584 = vmatpush1.msra.mxu0 0.0
        %7585 = vmatprep.mubr.f32.mxu0 0.0
        %7586 = vmatmul.mubr.f32.gmra.mrb[0].mxu0 %v375
        %v7587 = vpop.f32.mrb[0].mxu0
        %v7588 = vadd.f32 0.0, %v7587
        %v7589 = vpop.f32.mrb[0].mxu0
        %v7590 = vadd.f32 0.0, %v7589
        %7591 = vmatprep.mubr.f32.mxu0 0.0
        %7592 = vmatmul.mubr.f32.gmra.mrb[0].mxu0 %v7519
        %v7593 = vpop.f32.mrb[0].mxu0
        %v7594 = vadd.f32 0.0, %v7593
        %v7595 = vpop.f32.mrb[0].mxu0
        %v7596 = vadd.f32 0.0, %v7595
        %7597 = vdwg.mxu0
        %7598 = vmatprep.subr.mxu0 %v7447
        %7599 = vmatpush1.msra.mxu0 %v7446
        %7600 = vmatprep.subr.mxu0 %v7465
        %7601 = vmatpush1.msra.mxu0 %v7464
        %7602 = vmatprep.subr.mxu0 %v7483
        %7603 = vmatpush1.msra.mxu0 %v7482
        %7604 = vmatprep.subr.mxu0 %v7501
        %7605 = vmatpush1.msra.mxu0 %v7500
        %7606 = vmatprep.subr.mxu0 0.0
        %7607 = vmatpush1.msra.mxu0 0.0
        %7608 = vmatprep.subr.mxu0 0.0
        %7609 = vmatpush1.msra.mxu0 0.0
        %7610 = vmatprep.subr.mxu0 0.0
        %7611 = vmatpush1.msra.mxu0 0.0
        %7612 = vmatprep.subr.mxu0 0.0
        %7613 = vmatpush1.msra.mxu0 0.0
        %7614 = vmatprep.subr.mxu0 0.0
        %7615 = vmatpush1.msra.mxu0 0.0
        %7616 = vmatprep.subr.mxu0 0.0
        %7617 = vmatpush1.msra.mxu0 0.0
        %7618 = vmatprep.subr.mxu0 0.0
        %7619 = vmatpush1.msra.mxu0 0.0
        %7620 = vmatprep.subr.mxu0 0.0
        %7621 = vmatpush1.msra.mxu0 0.0
        %7622 = vmatprep.subr.mxu0 0.0
        %7623 = vmatpush1.msra.mxu0 0.0
        %7624 = vmatprep.subr.mxu0 0.0
        %7625 = vmatpush1.msra.mxu0 0.0
        %7626 = vmatprep.subr.mxu0 0.0
        %7627 = vmatpush1.msra.mxu0 0.0
        %7628 = vmatprep.subr.mxu0 0.0
        %7629 = vmatpush1.msra.mxu0 0.0
        %7630 = vmatprep.subr.mxu0 0.0
        %7631 = vmatpush1.msra.mxu0 0.0
        %7632 = vmatprep.subr.mxu0 0.0
        %7633 = vmatpush1.msra.mxu0 0.0
        %7634 = vmatprep.subr.mxu0 0.0
        %7635 = vmatpush1.msra.mxu0 0.0
        %7636 = vmatprep.subr.mxu0 0.0
        %7637 = vmatpush1.msra.mxu0 0.0
        %7638 = vmatprep.subr.mxu0 0.0
        %7639 = vmatpush1.msra.mxu0 0.0
        %7640 = vmatprep.subr.mxu0 0.0
        %7641 = vmatpush1.msra.mxu0 0.0
        %7642 = vmatprep.subr.mxu0 0.0
        %7643 = vmatpush1.msra.mxu0 0.0
        %7644 = vmatprep.subr.mxu0 0.0
        %7645 = vmatpush1.msra.mxu0 0.0
        %7646 = vmatprep.subr.mxu0 0.0
        %7647 = vmatpush1.msra.mxu0 0.0
        %7648 = vmatprep.subr.mxu0 0.0
        %7649 = vmatpush1.msra.mxu0 0.0
        %7650 = vmatprep.subr.mxu0 0.0
        %7651 = vmatpush1.msra.mxu0 0.0
        %7652 = vmatprep.subr.mxu0 0.0
        %7653 = vmatpush1.msra.mxu0 0.0
        %7654 = vmatprep.subr.mxu0 0.0
        %7655 = vmatpush1.msra.mxu0 0.0
        %7656 = vmatprep.subr.mxu0 0.0
        %7657 = vmatpush1.msra.mxu0 0.0
        %7658 = vmatprep.subr.mxu0 0.0
        %7659 = vmatpush1.msra.mxu0 0.0
        %7660 = vmatprep.subr.mxu0 0.0
        %7661 = vmatpush1.msra.mxu0 0.0
        %7662 = vmatprep.mubr.f32.mxu0 0.0
        %7663 = vmatmul.mubr.f32.gmra.mrb[0].mxu0 %v375
        %v7664 = vpop.f32.mrb[0].mxu0
        %v7665 = vadd.f32 0.0, %v7664
        %v7666 = vpop.f32.mrb[0].mxu0
        %v7667 = vadd.f32 0.0, %v7666
        %7668 = vmatprep.mubr.f32.mxu0 0.0
        %7669 = vmatmul.mubr.f32.gmra.mrb[0].mxu0 %v7519
        %v7670 = vpop.f32.mrb[0].mxu0
        %v7671 = vadd.f32 0.0, %v7670
        %v7672 = vpop.f32.mrb[0].mxu0
        %v7673 = vadd.f32 0.0, %v7672
        %7674 = vdwg.mxu0
        %7675 = vmatprep.subr.mxu0 %v7449
        %7676 = vmatpush1.msra.mxu0 %v7448
        %7677 = vmatprep.subr.mxu0 %v7467
        %7678 = vmatpush1.msra.mxu0 %v7466
        %7679 = vmatprep.subr.mxu0 %v7485
        %7680 = vmatpush1.msra.mxu0 %v7484
        %7681 = vmatprep.subr.mxu0 %v7503
        %7682 = vmatpush1.msra.mxu0 %v7502
        %7683 = vmatprep.subr.mxu0 0.0
        %7684 = vmatpush1.msra.mxu0 0.0
        %7685 = vmatprep.subr.mxu0 0.0
        %7686 = vmatpush1.msra.mxu0 0.0
        %7687 = vmatprep.subr.mxu0 0.0
        %7688 = vmatpush1.msra.mxu0 0.0
        %7689 = vmatprep.subr.mxu0 0.0
        %7690 = vmatpush1.msra.mxu0 0.0
        %7691 = vmatprep.subr.mxu0 0.0
        %7692 = vmatpush1.msra.mxu0 0.0
        %7693 = vmatprep.subr.mxu0 0.0
        %7694 = vmatpush1.msra.mxu0 0.0
        %7695 = vmatprep.subr.mxu0 0.0
        %7696 = vmatpush1.msra.mxu0 0.0
        %7697 = vmatprep.subr.mxu0 0.0
        %7698 = vmatpush1.msra.mxu0 0.0
        %7699 = vmatprep.subr.mxu0 0.0
        %7700 = vmatpush1.msra.mxu0 0.0
        %7701 = vmatprep.subr.mxu0 0.0
        %7702 = vmatpush1.msra.mxu0 0.0
        %7703 = vmatprep.subr.mxu0 0.0
        %7704 = vmatpush1.msra.mxu0 0.0
        %7705 = vmatprep.subr.mxu0 0.0
        %7706 = vmatpush1.msra.mxu0 0.0
        %7707 = vmatprep.subr.mxu0 0.0
        %7708 = vmatpush1.msra.mxu0 0.0
        %7709 = vmatprep.subr.mxu0 0.0
        %7710 = vmatpush1.msra.mxu0 0.0
        %7711 = vmatprep.subr.mxu0 0.0
        %7712 = vmatpush1.msra.mxu0 0.0
        %7713 = vmatprep.subr.mxu0 0.0
        %7714 = vmatpush1.msra.mxu0 0.0
        %7715 = vmatprep.subr.mxu0 0.0
        %7716 = vmatpush1.msra.mxu0 0.0
        %7717 = vmatprep.subr.mxu0 0.0
        %7718 = vmatpush1.msra.mxu0 0.0
        %7719 = vmatprep.subr.mxu0 0.0
        %7720 = vmatpush1.msra.mxu0 0.0
        %7721 = vmatprep.subr.mxu0 0.0
        %7722 = vmatpush1.msra.mxu0 0.0
        %7723 = vmatprep.subr.mxu0 0.0
        %7724 = vmatpush1.msra.mxu0 0.0
        %7725 = vmatprep.subr.mxu0 0.0
        %7726 = vmatpush1.msra.mxu0 0.0
        %7727 = vmatprep.subr.mxu0 0.0
        %7728 = vmatpush1.msra.mxu0 0.0
        %7729 = vmatprep.subr.mxu0 0.0
        %7730 = vmatpush1.msra.mxu0 0.0
        %7731 = vmatprep.subr.mxu0 0.0
        %7732 = vmatpush1.msra.mxu0 0.0
        %7733 = vmatprep.subr.mxu0 0.0
        %7734 = vmatpush1.msra.mxu0 0.0
        %7735 = vmatprep.subr.mxu0 0.0
        %7736 = vmatpush1.msra.mxu0 0.0
        %7737 = vmatprep.subr.mxu0 0.0
        %7738 = vmatpush1.msra.mxu0 0.0
        %7739 = vmatprep.mubr.f32.mxu0 0.0
        %7740 = vmatmul.mubr.f32.gmra.mrb[0].mxu0 %v375
        %v7741 = vpop.f32.mrb[0].mxu0
        %v7742 = vadd.f32 0.0, %v7741
        %v7743 = vpop.f32.mrb[0].mxu0
        %v7744 = vadd.f32 0.0, %v7743
        %7745 = vmatprep.mubr.f32.mxu0 0.0
        %7746 = vmatmul.mubr.f32.gmra.mrb[0].mxu0 %v7519
        %v7747 = vpop.f32.mrb[0].mxu0
        %v7748 = vadd.f32 0.0, %v7747
        %v7749 = vpop.f32.mrb[0].mxu0
        %v7750 = vadd.f32 0.0, %v7749
        %7751 = vdwg.mxu0
        %7752 = vmatprep.subr.mxu0 %v7451
        %7753 = vmatpush1.msra.mxu0 %v7450
        %7754 = vmatprep.subr.mxu0 %v7469
        %7755 = vmatpush1.msra.mxu0 %v7468
        %7756 = vmatprep.subr.mxu0 %v7487
        %7757 = vmatpush1.msra.mxu0 %v7486
        %7758 = vmatprep.subr.mxu0 %v7505
        %7759 = vmatpush1.msra.mxu0 %v7504
        %7760 = vmatprep.subr.mxu0 0.0
        %7761 = vmatpush1.msra.mxu0 0.0
        %7762 = vmatprep.subr.mxu0 0.0
        %7763 = vmatpush1.msra.mxu0 0.0
        %7764 = vmatprep.subr.mxu0 0.0
        %7765 = vmatpush1.msra.mxu0 0.0
        %7766 = vmatprep.subr.mxu0 0.0
        %7767 = vmatpush1.msra.mxu0 0.0
        %7768 = vmatprep.subr.mxu0 0.0
        %7769 = vmatpush1.msra.mxu0 0.0
        %7770 = vmatprep.subr.mxu0 0.0
        %7771 = vmatpush1.msra.mxu0 0.0
        %7772 = vmatprep.subr.mxu0 0.0
        %7773 = vmatpush1.msra.mxu0 0.0
        %7774 = vmatprep.subr.mxu0 0.0
        %7775 = vmatpush1.msra.mxu0 0.0
        %7776 = vmatprep.subr.mxu0 0.0
        %7777 = vmatpush1.msra.mxu0 0.0
        %7778 = vmatprep.subr.mxu0 0.0
        %7779 = vmatpush1.msra.mxu0 0.0
        %7780 = vmatprep.subr.mxu0 0.0
        %7781 = vmatpush1.msra.mxu0 0.0
        %7782 = vmatprep.subr.mxu0 0.0
        %7783 = vmatpush1.msra.mxu0 0.0
        %7784 = vmatprep.subr.mxu0 0.0
        %7785 = vmatpush1.msra.mxu0 0.0
        %7786 = vmatprep.subr.mxu0 0.0
        %7787 = vmatpush1.msra.mxu0 0.0
        %7788 = vmatprep.subr.mxu0 0.0
        %7789 = vmatpush1.msra.mxu0 0.0
        %7790 = vmatprep.subr.mxu0 0.0
        %7791 = vmatpush1.msra.mxu0 0.0
        %7792 = vmatprep.subr.mxu0 0.0
        %7793 = vmatpush1.msra.mxu0 0.0
        %7794 = vmatprep.subr.mxu0 0.0
        %7795 = vmatpush1.msra.mxu0 0.0
        %7796 = vmatprep.subr.mxu0 0.0
        %7797 = vmatpush1.msra.mxu0 0.0
        %7798 = vmatprep.subr.mxu0 0.0
        %7799 = vmatpush1.msra.mxu0 0.0
        %7800 = vmatprep.subr.mxu0 0.0
        %7801 = vmatpush1.msra.mxu0 0.0
        %7802 = vmatprep.subr.mxu0 0.0
        %7803 = vmatpush1.msra.mxu0 0.0
        %7804 = vmatprep.subr.mxu0 0.0
        %7805 = vmatpush1.msra.mxu0 0.0
        %7806 = vmatprep.subr.mxu0 0.0
        %7807 = vmatpush1.msra.mxu0 0.0
        %7808 = vmatprep.subr.mxu0 0.0
        %7809 = vmatpush1.msra.mxu0 0.0
        %7810 = vmatprep.subr.mxu0 0.0
        %7811 = vmatpush1.msra.mxu0 0.0
        %7812 = vmatprep.subr.mxu0 0.0
        %7813 = vmatpush1.msra.mxu0 0.0
        %7814 = vmatprep.subr.mxu0 0.0
        %7815 = vmatpush1.msra.mxu0 0.0
        %7816 = vmatprep.mubr.f32.mxu0 0.0
        %7817 = vmatmul.mubr.f32.gmra.mrb[0].mxu0 %v375
        %v7818 = vpop.f32.mrb[0].mxu0
        %v7819 = vadd.f32 0.0, %v7818
        %v7820 = vpop.f32.mrb[0].mxu0
        %v7821 = vadd.f32 0.0, %v7820
        %7822 = vmatprep.mubr.f32.mxu0 0.0
        %7823 = vmatmul.mubr.f32.gmra.mrb[0].mxu0 %v7519
        %v7824 = vpop.f32.mrb[0].mxu0
        %v7825 = vadd.f32 0.0, %v7824
        %v7826 = vpop.f32.mrb[0].mxu0
        %v7827 = vadd.f32 0.0, %v7826
        %7828 = vdwg.mxu0
        %7829 = vmatprep.subr.mxu0 %v7453
        %7830 = vmatpush1.msra.mxu0 %v7452
        %7831 = vmatprep.subr.mxu0 %v7471
        %7832 = vmatpush1.msra.mxu0 %v7470
        %7833 = vmatprep.subr.mxu0 %v7489
        %7834 = vmatpush1.msra.mxu0 %v7488
        %7835 = vmatprep.subr.mxu0 %v7507
        %7836 = vmatpush1.msra.mxu0 %v7506
        %7837 = vmatprep.subr.mxu0 0.0
        %7838 = vmatpush1.msra.mxu0 0.0
        %7839 = vmatprep.subr.mxu0 0.0
        %7840 = vmatpush1.msra.mxu0 0.0
        %7841 = vmatprep.subr.mxu0 0.0
        %7842 = vmatpush1.msra.mxu0 0.0
        %7843 = vmatprep.subr.mxu0 0.0
        %7844 = vmatpush1.msra.mxu0 0.0
        %7845 = vmatprep.subr.mxu0 0.0
        %7846 = vmatpush1.msra.mxu0 0.0
        %7847 = vmatprep.subr.mxu0 0.0
        %7848 = vmatpush1.msra.mxu0 0.0
        %7849 = vmatprep.subr.mxu0 0.0
        %7850 = vmatpush1.msra.mxu0 0.0
        %7851 = vmatprep.subr.mxu0 0.0
        %7852 = vmatpush1.msra.mxu0 0.0
        %7853 = vmatprep.subr.mxu0 0.0
        %7854 = vmatpush1.msra.mxu0 0.0
        %7855 = vmatprep.subr.mxu0 0.0
        %7856 = vmatpush1.msra.mxu0 0.0
        %7857 = vmatprep.subr.mxu0 0.0
        %7858 = vmatpush1.msra.mxu0 0.0
        %7859 = vmatprep.subr.mxu0 0.0
        %7860 = vmatpush1.msra.mxu0 0.0
        %7861 = vmatprep.subr.mxu0 0.0
        %7862 = vmatpush1.msra.mxu0 0.0
        %7863 = vmatprep.subr.mxu0 0.0
        %7864 = vmatpush1.msra.mxu0 0.0
        %7865 = vmatprep.subr.mxu0 0.0
        %7866 = vmatpush1.msra.mxu0 0.0
        %7867 = vmatprep.subr.mxu0 0.0
        %7868 = vmatpush1.msra.mxu0 0.0
        %7869 = vmatprep.subr.mxu0 0.0
        %7870 = vmatpush1.msra.mxu0 0.0
        %7871 = vmatprep.subr.mxu0 0.0
        %7872 = vmatpush1.msra.mxu0 0.0
        %7873 = vmatprep.subr.mxu0 0.0
        %7874 = vmatpush1.msra.mxu0 0.0
        %7875 = vmatprep.subr.mxu0 0.0
        %7876 = vmatpush1.msra.mxu0 0.0
        %7877 = vmatprep.subr.mxu0 0.0
        %7878 = vmatpush1.msra.mxu0 0.0
        %7879 = vmatprep.subr.mxu0 0.0
        %7880 = vmatpush1.msra.mxu0 0.0
        %7881 = vmatprep.subr.mxu0 0.0
        %7882 = vmatpush1.msra.mxu0 0.0
        %7883 = vmatprep.subr.mxu0 0.0
        %7884 = vmatpush1.msra.mxu0 0.0
        %7885 = vmatprep.subr.mxu0 0.0
        %7886 = vmatpush1.msra.mxu0 0.0
        %7887 = vmatprep.subr.mxu0 0.0
        %7888 = vmatpush1.msra.mxu0 0.0
        %7889 = vmatprep.subr.mxu0 0.0
        %7890 = vmatpush1.msra.mxu0 0.0
        %7891 = vmatprep.subr.mxu0 0.0
        %7892 = vmatpush1.msra.mxu0 0.0
        %7893 = vmatprep.mubr.f32.mxu0 0.0
        %7894 = vmatmul.mubr.f32.gmra.mrb[0].mxu0 %v375
        %v7895 = vpop.f32.mrb[0].mxu0
        %v7896 = vadd.f32 0.0, %v7895
        %v7897 = vpop.f32.mrb[0].mxu0
        %v7898 = vadd.f32 0.0, %v7897
        %7899 = vmatprep.mubr.f32.mxu0 0.0
        %7900 = vmatmul.mubr.f32.gmra.mrb[0].mxu0 %v7519
        %v7901 = vpop.f32.mrb[0].mxu0
        %v7902 = vadd.f32 0.0, %v7901
        %v7903 = vpop.f32.mrb[0].mxu0
        %v7904 = vadd.f32 0.0, %v7903
        %7905 = vdwg.mxu0
        %7906 = vmatprep.subr.mxu0 %v7455
        %7907 = vmatpush1.msra.mxu0 %v7454
        %7908 = vmatprep.subr.mxu0 %v7473
        %7909 = vmatpush1.msra.mxu0 %v7472
        %7910 = vmatprep.subr.mxu0 %v7491
        %7911 = vmatpush1.msra.mxu0 %v7490
        %7912 = vmatprep.subr.mxu0 %v7509
        %7913 = vmatpush1.msra.mxu0 %v7508
        %7914 = vmatprep.subr.mxu0 0.0
        %7915 = vmatpush1.msra.mxu0 0.0
        %7916 = vmatprep.subr.mxu0 0.0
        %7917 = vmatpush1.msra.mxu0 0.0
        %7918 = vmatprep.subr.mxu0 0.0
        %7919 = vmatpush1.msra.mxu0 0.0
        %7920 = vmatprep.subr.mxu0 0.0
        %7921 = vmatpush1.msra.mxu0 0.0
        %7922 = vmatprep.subr.mxu0 0.0
        %7923 = vmatpush1.msra.mxu0 0.0
        %7924 = vmatprep.subr.mxu0 0.0
        %7925 = vmatpush1.msra.mxu0 0.0
        %7926 = vmatprep.subr.mxu0 0.0
        %7927 = vmatpush1.msra.mxu0 0.0
        %7928 = vmatprep.subr.mxu0 0.0
        %7929 = vmatpush1.msra.mxu0 0.0
        %7930 = vmatprep.subr.mxu0 0.0
        %7931 = vmatpush1.msra.mxu0 0.0
        %7932 = vmatprep.subr.mxu0 0.0
        %7933 = vmatpush1.msra.mxu0 0.0
        %7934 = vmatprep.subr.mxu0 0.0
        %7935 = vmatpush1.msra.mxu0 0.0
        %7936 = vmatprep.subr.mxu0 0.0
        %7937 = vmatpush1.msra.mxu0 0.0
        %7938 = vmatprep.subr.mxu0 0.0
        %7939 = vmatpush1.msra.mxu0 0.0
        %7940 = vmatprep.subr.mxu0 0.0
        %7941 = vmatpush1.msra.mxu0 0.0
        %7942 = vmatprep.subr.mxu0 0.0
        %7943 = vmatpush1.msra.mxu0 0.0
        %7944 = vmatprep.subr.mxu0 0.0
        %7945 = vmatpush1.msra.mxu0 0.0
        %7946 = vmatprep.subr.mxu0 0.0
        %7947 = vmatpush1.msra.mxu0 0.0
        %7948 = vmatprep.subr.mxu0 0.0
        %7949 = vmatpush1.msra.mxu0 0.0
        %7950 = vmatprep.subr.mxu0 0.0
        %7951 = vmatpush1.msra.mxu0 0.0
        %7952 = vmatprep.subr.mxu0 0.0
        %7953 = vmatpush1.msra.mxu0 0.0
        %7954 = vmatprep.subr.mxu0 0.0
        %7955 = vmatpush1.msra.mxu0 0.0
        %7956 = vmatprep.subr.mxu0 0.0
        %7957 = vmatpush1.msra.mxu0 0.0
        %7958 = vmatprep.subr.mxu0 0.0
        %7959 = vmatpush1.msra.mxu0 0.0
        %7960 = vmatprep.subr.mxu0 0.0
        %7961 = vmatpush1.msra.mxu0 0.0
        %7962 = vmatprep.subr.mxu0 0.0
        %7963 = vmatpush1.msra.mxu0 0.0
        %7964 = vmatprep.subr.mxu0 0.0
        %7965 = vmatpush1.msra.mxu0 0.0
        %7966 = vmatprep.subr.mxu0 0.0
        %7967 = vmatpush1.msra.mxu0 0.0
        %7968 = vmatprep.subr.mxu0 0.0
        %7969 = vmatpush1.msra.mxu0 0.0
        %7970 = vmatprep.mubr.f32.mxu0 0.0
        %7971 = vmatmul.mubr.f32.gmra.mrb[0].mxu0 %v375
        %v7972 = vpop.f32.mrb[0].mxu0
        %v7973 = vadd.f32 0.0, %v7972
        %v7974 = vpop.f32.mrb[0].mxu0
        %v7975 = vadd.f32 0.0, %v7974
        %7976 = vmatprep.mubr.f32.mxu0 0.0
        %7977 = vmatmul.mubr.f32.gmra.mrb[0].mxu0 %v7519
        %v7978 = vpop.f32.mrb[0].mxu0
        %v7979 = vadd.f32 0.0, %v7978
        %v7980 = vpop.f32.mrb[0].mxu0
        %v7981 = vadd.f32 0.0, %v7980
        %7982 = vdwg.mxu0
        %7983 = vmatprep.subr.mxu0 %v7457
        %7984 = vmatpush1.msra.mxu0 %v7456
        %7985 = vmatprep.subr.mxu0 %v7475
        %7986 = vmatpush1.msra.mxu0 %v7474
        %7987 = vmatprep.subr.mxu0 %v7493
        %7988 = vmatpush1.msra.mxu0 %v7492
        %7989 = vmatprep.subr.mxu0 %v7511
        %7990 = vmatpush1.msra.mxu0 %v7510
        %7991 = vmatprep.subr.mxu0 0.0
        %7992 = vmatpush1.msra.mxu0 0.0
        %7993 = vmatprep.subr.mxu0 0.0
        %7994 = vmatpush1.msra.mxu0 0.0
        %7995 = vmatprep.subr.mxu0 0.0
        %7996 = vmatpush1.msra.mxu0 0.0
        %7997 = vmatprep.subr.mxu0 0.0
        %7998 = vmatpush1.msra.mxu0 0.0
        %7999 = vmatprep.subr.mxu0 0.0
        %8000 = vmatpush1.msra.mxu0 0.0
        %8001 = vmatprep.subr.mxu0 0.0
        %8002 = vmatpush1.msra.mxu0 0.0
        %8003 = vmatprep.subr.mxu0 0.0
        %8004 = vmatpush1.msra.mxu0 0.0
        %8005 = vmatprep.subr.mxu0 0.0
        %8006 = vmatpush1.msra.mxu0 0.0
        %8007 = vmatprep.subr.mxu0 0.0
        %8008 = vmatpush1.msra.mxu0 0.0
        %8009 = vmatprep.subr.mxu0 0.0
        %8010 = vmatpush1.msra.mxu0 0.0
        %8011 = vmatprep.subr.mxu0 0.0
        %8012 = vmatpush1.msra.mxu0 0.0
        %8013 = vmatprep.subr.mxu0 0.0
        %8014 = vmatpush1.msra.mxu0 0.0
        %8015 = vmatprep.subr.mxu0 0.0
        %8016 = vmatpush1.msra.mxu0 0.0
        %8017 = vmatprep.subr.mxu0 0.0
        %8018 = vmatpush1.msra.mxu0 0.0
        %8019 = vmatprep.subr.mxu0 0.0
        %8020 = vmatpush1.msra.mxu0 0.0
        %8021 = vmatprep.subr.mxu0 0.0
        %8022 = vmatpush1.msra.mxu0 0.0
        %8023 = vmatprep.subr.mxu0 0.0
        %8024 = vmatpush1.msra.mxu0 0.0
        %8025 = vmatprep.subr.mxu0 0.0
        %8026 = vmatpush1.msra.mxu0 0.0
        %8027 = vmatprep.subr.mxu0 0.0
        %8028 = vmatpush1.msra.mxu0 0.0
        %8029 = vmatprep.subr.mxu0 0.0
        %8030 = vmatpush1.msra.mxu0 0.0
        %8031 = vmatprep.subr.mxu0 0.0
        %8032 = vmatpush1.msra.mxu0 0.0
        %8033 = vmatprep.subr.mxu0 0.0
        %8034 = vmatpush1.msra.mxu0 0.0
        %8035 = vmatprep.subr.mxu0 0.0
        %8036 = vmatpush1.msra.mxu0 0.0
        %8037 = vmatprep.subr.mxu0 0.0
        %8038 = vmatpush1.msra.mxu0 0.0
        %8039 = vmatprep.subr.mxu0 0.0
        %8040 = vmatpush1.msra.mxu0 0.0
        %8041 = vmatprep.subr.mxu0 0.0
        %8042 = vmatpush1.msra.mxu0 0.0
        %8043 = vmatprep.subr.mxu0 0.0
        %8044 = vmatpush1.msra.mxu0 0.0
        %8045 = vmatprep.subr.mxu0 0.0
        %8046 = vmatpush1.msra.mxu0 0.0
        %8047 = vmatprep.mubr.f32.mxu0 0.0
        %8048 = vmatmul.mubr.f32.gmra.mrb[0].mxu0 %v375
        %v8049 = vpop.f32.mrb[0].mxu0
        %v8050 = vadd.f32 0.0, %v8049
        %v8051 = vpop.f32.mrb[0].mxu0
        %v8052 = vadd.f32 0.0, %v8051
        %8053 = vmatprep.mubr.f32.mxu0 0.0
        %8054 = vmatmul.mubr.f32.gmra.mrb[0].mxu0 %v7519
        %v8055 = vpop.f32.mrb[0].mxu0
        %v8056 = vadd.f32 0.0, %v8055
        %v8057 = vpop.f32.mrb[0].mxu0
        %v8058 = vadd.f32 0.0, %v8057
        %8059 = vdwg.mxu0
        %8060 = vmatprep.subr.mxu0 %v7459
        %8061 = vmatpush1.msra.mxu0 %v7458
        %8062 = vmatprep.subr.mxu0 %v7477
        %8063 = vmatpush1.msra.mxu0 %v7476
        %8064 = vmatprep.subr.mxu0 %v7495
        %8065 = vmatpush1.msra.mxu0 %v7494
        %8066 = vmatprep.subr.mxu0 %v7513
        %8067 = vmatpush1.msra.mxu0 %v7512
        %8068 = vmatprep.subr.mxu0 0.0
        %8069 = vmatpush1.msra.mxu0 0.0
        %8070 = vmatprep.subr.mxu0 0.0
        %8071 = vmatpush1.msra.mxu0 0.0
        %8072 = vmatprep.subr.mxu0 0.0
        %8073 = vmatpush1.msra.mxu0 0.0
        %8074 = vmatprep.subr.mxu0 0.0
        %8075 = vmatpush1.msra.mxu0 0.0
        %8076 = vmatprep.subr.mxu0 0.0
        %8077 = vmatpush1.msra.mxu0 0.0
        %8078 = vmatprep.subr.mxu0 0.0
        %8079 = vmatpush1.msra.mxu0 0.0
        %8080 = vmatprep.subr.mxu0 0.0
        %8081 = vmatpush1.msra.mxu0 0.0
        %8082 = vmatprep.subr.mxu0 0.0
        %8083 = vmatpush1.msra.mxu0 0.0
        %8084 = vmatprep.subr.mxu0 0.0
        %8085 = vmatpush1.msra.mxu0 0.0
        %8086 = vmatprep.subr.mxu0 0.0
        %8087 = vmatpush1.msra.mxu0 0.0
        %8088 = vmatprep.subr.mxu0 0.0
        %8089 = vmatpush1.msra.mxu0 0.0
        %8090 = vmatprep.subr.mxu0 0.0
        %8091 = vmatpush1.msra.mxu0 0.0
        %8092 = vmatprep.subr.mxu0 0.0
        %8093 = vmatpush1.msra.mxu0 0.0
        %8094 = vmatprep.subr.mxu0 0.0
        %8095 = vmatpush1.msra.mxu0 0.0
        %8096 = vmatprep.subr.mxu0 0.0
        %8097 = vmatpush1.msra.mxu0 0.0
        %8098 = vmatprep.subr.mxu0 0.0
        %8099 = vmatpush1.msra.mxu0 0.0
        %8100 = vmatprep.subr.mxu0 0.0
        %8101 = vmatpush1.msra.mxu0 0.0
        %8102 = vmatprep.subr.mxu0 0.0
        %8103 = vmatpush1.msra.mxu0 0.0
        %8104 = vmatprep.subr.mxu0 0.0
        %8105 = vmatpush1.msra.mxu0 0.0
        %8106 = vmatprep.subr.mxu0 0.0
        %8107 = vmatpush1.msra.mxu0 0.0
        %8108 = vmatprep.subr.mxu0 0.0
        %8109 = vmatpush1.msra.mxu0 0.0
        %8110 = vmatprep.subr.mxu0 0.0
        %8111 = vmatpush1.msra.mxu0 0.0
        %8112 = vmatprep.subr.mxu0 0.0
        %8113 = vmatpush1.msra.mxu0 0.0
        %8114 = vmatprep.subr.mxu0 0.0
        %8115 = vmatpush1.msra.mxu0 0.0
        %8116 = vmatprep.subr.mxu0 0.0
        %8117 = vmatpush1.msra.mxu0 0.0
        %8118 = vmatprep.subr.mxu0 0.0
        %8119 = vmatpush1.msra.mxu0 0.0
        %8120 = vmatprep.subr.mxu0 0.0
        %8121 = vmatpush1.msra.mxu0 0.0
        %8122 = vmatprep.subr.mxu0 0.0
        %8123 = vmatpush1.msra.mxu0 0.0
        %8124 = vmatprep.mubr.f32.mxu0 0.0
        %8125 = vmatmul.mubr.f32.gmra.mrb[0].mxu0 %v375
        %v8126 = vpop.f32.mrb[0].mxu0
        %v8127 = vadd.f32 0.0, %v8126
        %v8128 = vpop.f32.mrb[0].mxu0
        %v8129 = vadd.f32 0.0, %v8128
        %8130 = vmatprep.mubr.f32.mxu0 0.0
        %8131 = vmatmul.mubr.f32.gmra.mrb[0].mxu0 %v7519
        %v8132 = vpop.f32.mrb[0].mxu0
        %v8133 = vadd.f32 0.0, %v8132
        %v8134 = vpop.f32.mrb[0].mxu0
        %v8135 = vadd.f32 0.0, %v8134
        %8136 = vdwg.mxu0
        %8137 = vmatprep.subr.mxu0 %v7461
        %8138 = vmatpush1.msra.mxu0 %v7460
        %8139 = vmatprep.subr.mxu0 %v7479
        %8140 = vmatpush1.msra.mxu0 %v7478
        %8141 = vmatprep.subr.mxu0 %v7497
        %8142 = vmatpush1.msra.mxu0 %v7496
        %8143 = vmatprep.subr.mxu0 %v7515
        %8144 = vmatpush1.msra.mxu0 %v7514
        %8145 = vmatprep.subr.mxu0 0.0
        %8146 = vmatpush1.msra.mxu0 0.0
        %8147 = vmatprep.subr.mxu0 0.0
        %8148 = vmatpush1.msra.mxu0 0.0
        %8149 = vmatprep.subr.mxu0 0.0
        %8150 = vmatpush1.msra.mxu0 0.0
        %8151 = vmatprep.subr.mxu0 0.0
        %8152 = vmatpush1.msra.mxu0 0.0
        %8153 = vmatprep.subr.mxu0 0.0
        %8154 = vmatpush1.msra.mxu0 0.0
        %8155 = vmatprep.subr.mxu0 0.0
        %8156 = vmatpush1.msra.mxu0 0.0
        %8157 = vmatprep.subr.mxu0 0.0
        %8158 = vmatpush1.msra.mxu0 0.0
        %8159 = vmatprep.subr.mxu0 0.0
        %8160 = vmatpush1.msra.mxu0 0.0
        %8161 = vmatprep.subr.mxu0 0.0
        %8162 = vmatpush1.msra.mxu0 0.0
        %8163 = vmatprep.subr.mxu0 0.0
        %8164 = vmatpush1.msra.mxu0 0.0
        %8165 = vmatprep.subr.mxu0 0.0
        %8166 = vmatpush1.msra.mxu0 0.0
        %8167 = vmatprep.subr.mxu0 0.0
        %8168 = vmatpush1.msra.mxu0 0.0
        %8169 = vmatprep.subr.mxu0 0.0
        %8170 = vmatpush1.msra.mxu0 0.0
        %8171 = vmatprep.subr.mxu0 0.0
        %8172 = vmatpush1.msra.mxu0 0.0
        %8173 = vmatprep.subr.mxu0 0.0
        %8174 = vmatpush1.msra.mxu0 0.0
        %8175 = vmatprep.subr.mxu0 0.0
        %8176 = vmatpush1.msra.mxu0 0.0
        %8177 = vmatprep.subr.mxu0 0.0
        %8178 = vmatpush1.msra.mxu0 0.0
        %8179 = vmatprep.subr.mxu0 0.0
        %8180 = vmatpush1.msra.mxu0 0.0
        %8181 = vmatprep.subr.mxu0 0.0
        %8182 = vmatpush1.msra.mxu0 0.0
        %8183 = vmatprep.subr.mxu0 0.0
        %8184 = vmatpush1.msra.mxu0 0.0
        %8185 = vmatprep.subr.mxu0 0.0
        %8186 = vmatpush1.msra.mxu0 0.0
        %8187 = vmatprep.subr.mxu0 0.0
        %8188 = vmatpush1.msra.mxu0 0.0
        %8189 = vmatprep.subr.mxu0 0.0
        %8190 = vmatpush1.msra.mxu0 0.0
        %8191 = vmatprep.subr.mxu0 0.0
        %8192 = vmatpush1.msra.mxu0 0.0
        %8193 = vmatprep.subr.mxu0 0.0
        %8194 = vmatpush1.msra.mxu0 0.0
        %8195 = vmatprep.subr.mxu0 0.0
        %8196 = vmatpush1.msra.mxu0 0.0
        %8197 = vmatprep.subr.mxu0 0.0
        %8198 = vmatpush1.msra.mxu0 0.0
        %8199 = vmatprep.subr.mxu0 0.0
        %8200 = vmatpush1.msra.mxu0 0.0
        %8201 = vmatprep.mubr.f32.mxu0 0.0
        %8202 = vmatmul.mubr.f32.gmra.mrb[0].mxu0 %v375
        %v8203 = vpop.f32.mrb[0].mxu0
        %v8204 = vadd.f32 0.0, %v8203
        %v8205 = vpop.f32.mrb[0].mxu0
        %v8206 = vadd.f32 0.0, %v8205
        %8207 = vmatprep.mubr.f32.mxu0 0.0
        %8208 = vmatmul.mubr.f32.gmra.mrb[0].mxu0 %v7519
        %v8209 = vpop.f32.mrb[0].mxu0
        %v8210 = vadd.f32 0.0, %v8209
        %v8211 = vpop.f32.mrb[0].mxu0
        %v8212 = vadd.f32 0.0, %v8211
        %8213 = vdwg.mxu0
        %v8214 = vadd.f32 %v7407, %v7588
        %v8215 = vadd.f32 %v7408, %v7590
        %v8216 = vadd.f32 %v7409, %v7665
        %v8217 = vadd.f32 %v7410, %v7667
        %v8218 = vadd.f32 %v7411, %v7742
        %v8219 = vadd.f32 %v7412, %v7744
        %v8220 = vadd.f32 %v7413, %v7819
        %v8221 = vadd.f32 %v7414, %v7821
        %v8222 = vadd.f32 %v7415, %v7896
        %v8223 = vadd.f32 %v7416, %v7898
        %v8224 = vadd.f32 %v7417, %v7973
        %v8225 = vadd.f32 %v7418, %v7975
        %v8226 = vadd.f32 %v7419, %v8050
        %v8227 = vadd.f32 %v7420, %v8052
        %v8228 = vadd.f32 %v7421, %v8127
        %v8229 = vadd.f32 %v7422, %v8129
        %v8230 = vadd.f32 %v7423, %v8204
        %v8231 = vadd.f32 %v7424, %v8206
        %v8232 = vadd.f32 %v7425, %v7594
        %v8233 = vadd.f32 %v7426, %v7596
        %v8234 = vadd.f32 %v7427, %v7671
        %v8235 = vadd.f32 %v7428, %v7673
        %v8236 = vadd.f32 %v7429, %v7748
        %v8237 = vadd.f32 %v7430, %v7750
        %v8238 = vadd.f32 %v7431, %v7825
        %v8239 = vadd.f32 %v7432, %v7827
        %v8240 = vadd.f32 %v7433, %v7902
        %v8241 = vadd.f32 %v7434, %v7904
        %v8242 = vadd.f32 %v7435, %v7979
        %v8243 = vadd.f32 %v7436, %v7981
        %v8244 = vadd.f32 %v7437, %v8056
        %v8245 = vadd.f32 %v7438, %v8058
        %v8246 = vadd.f32 %v7439, %v8133
        %v8247 = vadd.f32 %v7440, %v8135
        %v8248 = vadd.f32 %v7441, %v8210
        %v8249 = vadd.f32 %v7442, %v8212
        %s8250 = scalar_lea.vmem [#allocation2], 5760
        %v8251 = vld [vmem:[%s8250] sm:$0xff]
        %v8252 = vld [vmem:[%s8250 + $0x8] sm:$0xff]
        %v8253 = vld [vmem:[%s8250 + $0x10] sm:$0xff]
        %v8254 = vld [vmem:[%s8250 + $0x18] sm:$0xff]
        %v8255 = vld [vmem:[%s8250 + $0x20] sm:$0xff]
        %v8256 = vld [vmem:[%s8250 + $0x28] sm:$0xff]
        %v8257 = vld [vmem:[%s8250 + $0x30] sm:$0xff]
        %v8258 = vld [vmem:[%s8250 + $0x38] sm:$0xff]
        %v8259 = vld [vmem:[%s8250 + $0x40] sm:$0xff]
        %v8260 = vld [vmem:[%s8250 + $0x48] sm:$0xff]
        %v8261 = vld [vmem:[%s8250 + $0x50] sm:$0xff]
        %v8262 = vld [vmem:[%s8250 + $0x58] sm:$0xff]
        %v8263 = vld [vmem:[%s8250 + $0x60] sm:$0xff]
        %v8264 = vld [vmem:[%s8250 + $0x68] sm:$0xff]
        %v8265 = vld [vmem:[%s8250 + $0x70] sm:$0xff]
        %v8266 = vld [vmem:[%s8250 + $0x78] sm:$0xff]
        %v8267 = vld [vmem:[%s8250 + $0x80] sm:$0xff]
        %v8268 = vld [vmem:[%s8250 + $0x88] sm:$0xff]
        %v8269 = vld [vmem:[%s8250 + $0x90] sm:$0xff]
        %v8270 = vld [vmem:[%s8250 + $0x98] sm:$0xff]
        %v8271 = vld [vmem:[%s8250 + $0xa0] sm:$0xff]
        %v8272 = vld [vmem:[%s8250 + $0xa8] sm:$0xff]
        %v8273 = vld [vmem:[%s8250 + $0xb0] sm:$0xff]
        %v8274 = vld [vmem:[%s8250 + $0xb8] sm:$0xff]
        %v8275 = vld [vmem:[%s8250 + $0xc0] sm:$0xff]
        %v8276 = vld [vmem:[%s8250 + $0xc8] sm:$0xff]
        %v8277 = vld [vmem:[%s8250 + $0xd0] sm:$0xff]
        %v8278 = vld [vmem:[%s8250 + $0xd8] sm:$0xff]
        %v8279 = vld [vmem:[%s8250 + $0xe0] sm:$0xff]
        %v8280 = vld [vmem:[%s8250 + $0xe8] sm:$0xff]
        %v8281 = vld [vmem:[%s8250 + $0xf0] sm:$0xff]
        %v8282 = vld [vmem:[%s8250 + $0xf8] sm:$0xff]
        %v8283 = vld [vmem:[%s8250 + $0x100] sm:$0xff]
        %v8284 = vld [vmem:[%s8250 + $0x108] sm:$0xff]
        %v8285 = vld [vmem:[%s8250 + $0x110] sm:$0xff]
        %v8286 = vld [vmem:[%s8250 + $0x118] sm:$0xff]
        %v8287 = vld [vmem:[%s8250 + $0x120] sm:$0xff]
        %v8288 = vld [vmem:[%s8250 + $0x128] sm:$0xff]
        %v8289 = vld [vmem:[%s8250 + $0x130] sm:$0xff]
        %v8290 = vld [vmem:[%s8250 + $0x138] sm:$0xff]
        %v8291 = vld [vmem:[%s8250 + $0x140] sm:$0xff]
        %v8292 = vld [vmem:[%s8250 + $0x148] sm:$0xff]
        %v8293 = vld [vmem:[%s8250 + $0x150] sm:$0xff]
        %v8294 = vld [vmem:[%s8250 + $0x158] sm:$0xff]
        %v8295 = vld [vmem:[%s8250 + $0x160] sm:$0xff]
        %v8296 = vld [vmem:[%s8250 + $0x168] sm:$0xff]
        %v8297 = vld [vmem:[%s8250 + $0x170] sm:$0xff]
        %v8298 = vld [vmem:[%s8250 + $0x178] sm:$0xff]
        %v8299 = vld [vmem:[%s8250 + $0x180] sm:$0xff]
        %v8300 = vld [vmem:[%s8250 + $0x188] sm:$0xff]
        %v8301 = vld [vmem:[%s8250 + $0x190] sm:$0xff]
        %v8302 = vld [vmem:[%s8250 + $0x198] sm:$0xff]
        %v8303 = vld [vmem:[%s8250 + $0x1a0] sm:$0xff]
        %v8304 = vld [vmem:[%s8250 + $0x1a8] sm:$0xff]
        %v8305 = vld [vmem:[%s8250 + $0x1b0] sm:$0xff]
        %v8306 = vld [vmem:[%s8250 + $0x1b8] sm:$0xff]
        %v8307 = vld [vmem:[%s8250 + $0x1c0] sm:$0xff]
        %v8308 = vld [vmem:[%s8250 + $0x1c8] sm:$0xff]
        %v8309 = vld [vmem:[%s8250 + $0x1d0] sm:$0xff]
        %v8310 = vld [vmem:[%s8250 + $0x1d8] sm:$0xff]
        %v8311 = vld [vmem:[%s8250 + $0x1e0] sm:$0xff]
        %v8312 = vld [vmem:[%s8250 + $0x1e8] sm:$0xff]
        %v8313 = vld [vmem:[%s8250 + $0x1f0] sm:$0xff]
        %v8314 = vld [vmem:[%s8250 + $0x1f8] sm:$0xff]
        %v8315 = vld [vmem:[%s8250 + $0x200] sm:$0xff]
        %v8316 = vld [vmem:[%s8250 + $0x208] sm:$0xff]
        %v8317 = vld [vmem:[%s8250 + $0x210] sm:$0xff]
        %v8318 = vld [vmem:[%s8250 + $0x218] sm:$0xff]
        %v8319 = vld [vmem:[%s8250 + $0x220] sm:$0xff]
        %v8320 = vld [vmem:[%s8250 + $0x228] sm:$0xff]
        %v8321 = vld [vmem:[%s8250 + $0x230] sm:$0xff]
        %v8322 = vld [vmem:[%s8250 + $0x238] sm:$0xff]
        %v8323 = vrot.slane %v217, 2
        %v8324 = vsel %vm1840, %v1844, %v8323
        %v8325 = vsel %vm372, %v8324, 0
        %8327 = vmatprep.subr.mxu0 %v8252
        %8328 = vmatpush1.msra.mxu0 %v8251
        %8329 = vmatprep.subr.mxu0 %v8270
        %8330 = vmatpush1.msra.mxu0 %v8269
        %8331 = vmatprep.subr.mxu0 %v8288
        %8332 = vmatpush1.msra.mxu0 %v8287
        %8333 = vmatprep.subr.mxu0 %v8306
        %8334 = vmatpush1.msra.mxu0 %v8305
        %8335 = vmatprep.subr.mxu0 0.0
        %8336 = vmatpush1.msra.mxu0 0.0
        %8337 = vmatprep.subr.mxu0 0.0
        %8338 = vmatpush1.msra.mxu0 0.0
        %8339 = vmatprep.subr.mxu0 0.0
        %8340 = vmatpush1.msra.mxu0 0.0
        %8341 = vmatprep.subr.mxu0 0.0
        %8342 = vmatpush1.msra.mxu0 0.0
        %8343 = vmatprep.subr.mxu0 0.0
        %8344 = vmatpush1.msra.mxu0 0.0
        %8345 = vmatprep.subr.mxu0 0.0
        %8346 = vmatpush1.msra.mxu0 0.0
        %8347 = vmatprep.subr.mxu0 0.0
        %8348 = vmatpush1.msra.mxu0 0.0
        %8349 = vmatprep.subr.mxu0 0.0
        %8350 = vmatpush1.msra.mxu0 0.0
        %8351 = vmatprep.subr.mxu0 0.0
        %8352 = vmatpush1.msra.mxu0 0.0
        %8353 = vmatprep.subr.mxu0 0.0
        %8354 = vmatpush1.msra.mxu0 0.0
        %8355 = vmatprep.subr.mxu0 0.0
        %8356 = vmatpush1.msra.mxu0 0.0
        %8357 = vmatprep.subr.mxu0 0.0
        %8358 = vmatpush1.msra.mxu0 0.0
        %8359 = vmatprep.subr.mxu0 0.0
        %8360 = vmatpush1.msra.mxu0 0.0
        %8361 = vmatprep.subr.mxu0 0.0
        %8362 = vmatpush1.msra.mxu0 0.0
        %8363 = vmatprep.subr.mxu0 0.0
        %8364 = vmatpush1.msra.mxu0 0.0
        %8365 = vmatprep.subr.mxu0 0.0
        %8366 = vmatpush1.msra.mxu0 0.0
        %8367 = vmatprep.subr.mxu0 0.0
        %8368 = vmatpush1.msra.mxu0 0.0
        %8369 = vmatprep.subr.mxu0 0.0
        %8370 = vmatpush1.msra.mxu0 0.0
        %8371 = vmatprep.subr.mxu0 0.0
        %8372 = vmatpush1.msra.mxu0 0.0
        %8373 = vmatprep.subr.mxu0 0.0
        %8374 = vmatpush1.msra.mxu0 0.0
        %8375 = vmatprep.subr.mxu0 0.0
        %8376 = vmatpush1.msra.mxu0 0.0
        %8377 = vmatprep.subr.mxu0 0.0
        %8378 = vmatpush1.msra.mxu0 0.0
        %8379 = vmatprep.subr.mxu0 0.0
        %8380 = vmatpush1.msra.mxu0 0.0
        %8381 = vmatprep.subr.mxu0 0.0
        %8382 = vmatpush1.msra.mxu0 0.0
        %8383 = vmatprep.subr.mxu0 0.0
        %8384 = vmatpush1.msra.mxu0 0.0
        %8385 = vmatprep.subr.mxu0 0.0
        %8386 = vmatpush1.msra.mxu0 0.0
        %8387 = vmatprep.subr.mxu0 0.0
        %8388 = vmatpush1.msra.mxu0 0.0
        %8389 = vmatprep.subr.mxu0 0.0
        %8390 = vmatpush1.msra.mxu0 0.0
        %8391 = vmatprep.mubr.f32.mxu0 0.0
        %8392 = vmatmul.mubr.f32.gmra.mrb[0].mxu0 %v1848
        %v8393 = vpop.f32.mrb[0].mxu0
        %v8394 = vadd.f32 0.0, %v8393
        %v8395 = vpop.f32.mrb[0].mxu0
        %v8396 = vadd.f32 0.0, %v8395
        %8397 = vmatprep.mubr.f32.mxu0 0.0
        %8398 = vmatmul.mubr.f32.gmra.mrb[0].mxu0 %v8325
        %v8399 = vpop.f32.mrb[0].mxu0
        %v8400 = vadd.f32 0.0, %v8399
        %v8401 = vpop.f32.mrb[0].mxu0
        %v8402 = vadd.f32 0.0, %v8401
        %8403 = vdwg.mxu0
        %8404 = vmatprep.subr.mxu0 %v8254
        %8405 = vmatpush1.msra.mxu0 %v8253
        %8406 = vmatprep.subr.mxu0 %v8272
        %8407 = vmatpush1.msra.mxu0 %v8271
        %8408 = vmatprep.subr.mxu0 %v8290
        %8409 = vmatpush1.msra.mxu0 %v8289
        %8410 = vmatprep.subr.mxu0 %v8308
        %8411 = vmatpush1.msra.mxu0 %v8307
        %8412 = vmatprep.subr.mxu0 0.0
        %8413 = vmatpush1.msra.mxu0 0.0
        %8414 = vmatprep.subr.mxu0 0.0
        %8415 = vmatpush1.msra.mxu0 0.0
        %8416 = vmatprep.subr.mxu0 0.0
        %8417 = vmatpush1.msra.mxu0 0.0
        %8418 = vmatprep.subr.mxu0 0.0
        %8419 = vmatpush1.msra.mxu0 0.0
        %8420 = vmatprep.subr.mxu0 0.0
        %8421 = vmatpush1.msra.mxu0 0.0
        %8422 = vmatprep.subr.mxu0 0.0
        %8423 = vmatpush1.msra.mxu0 0.0
        %8424 = vmatprep.subr.mxu0 0.0
        %8425 = vmatpush1.msra.mxu0 0.0
        %8426 = vmatprep.subr.mxu0 0.0
        %8427 = vmatpush1.msra.mxu0 0.0
        %8428 = vmatprep.subr.mxu0 0.0
        %8429 = vmatpush1.msra.mxu0 0.0
        %8430 = vmatprep.subr.mxu0 0.0
        %8431 = vmatpush1.msra.mxu0 0.0
        %8432 = vmatprep.subr.mxu0 0.0
        %8433 = vmatpush1.msra.mxu0 0.0
        %8434 = vmatprep.subr.mxu0 0.0
        %8435 = vmatpush1.msra.mxu0 0.0
        %8436 = vmatprep.subr.mxu0 0.0
        %8437 = vmatpush1.msra.mxu0 0.0
        %8438 = vmatprep.subr.mxu0 0.0
        %8439 = vmatpush1.msra.mxu0 0.0
        %8440 = vmatprep.subr.mxu0 0.0
        %8441 = vmatpush1.msra.mxu0 0.0
        %8442 = vmatprep.subr.mxu0 0.0
        %8443 = vmatpush1.msra.mxu0 0.0
        %8444 = vmatprep.subr.mxu0 0.0
        %8445 = vmatpush1.msra.mxu0 0.0
        %8446 = vmatprep.subr.mxu0 0.0
        %8447 = vmatpush1.msra.mxu0 0.0
        %8448 = vmatprep.subr.mxu0 0.0
        %8449 = vmatpush1.msra.mxu0 0.0
        %8450 = vmatprep.subr.mxu0 0.0
        %8451 = vmatpush1.msra.mxu0 0.0
        %8452 = vmatprep.subr.mxu0 0.0
        %8453 = vmatpush1.msra.mxu0 0.0
        %8454 = vmatprep.subr.mxu0 0.0
        %8455 = vmatpush1.msra.mxu0 0.0
        %8456 = vmatprep.subr.mxu0 0.0
        %8457 = vmatpush1.msra.mxu0 0.0
        %8458 = vmatprep.subr.mxu0 0.0
        %8459 = vmatpush1.msra.mxu0 0.0
        %8460 = vmatprep.subr.mxu0 0.0
        %8461 = vmatpush1.msra.mxu0 0.0
        %8462 = vmatprep.subr.mxu0 0.0
        %8463 = vmatpush1.msra.mxu0 0.0
        %8464 = vmatprep.subr.mxu0 0.0
        %8465 = vmatpush1.msra.mxu0 0.0
        %8466 = vmatprep.subr.mxu0 0.0
        %8467 = vmatpush1.msra.mxu0 0.0
        %8468 = vmatprep.mubr.f32.mxu0 0.0
        %8469 = vmatmul.mubr.f32.gmra.mrb[0].mxu0 %v1848
        %v8470 = vpop.f32.mrb[0].mxu0
        %v8471 = vadd.f32 0.0, %v8470
        %v8472 = vpop.f32.mrb[0].mxu0
        %v8473 = vadd.f32 0.0, %v8472
        %8474 = vmatprep.mubr.f32.mxu0 0.0
        %8475 = vmatmul.mubr.f32.gmra.mrb[0].mxu0 %v8325
        %v8476 = vpop.f32.mrb[0].mxu0
        %v8477 = vadd.f32 0.0, %v8476
        %v8478 = vpop.f32.mrb[0].mxu0
        %v8479 = vadd.f32 0.0, %v8478
        %8480 = vdwg.mxu0
        %8481 = vmatprep.subr.mxu0 %v8256
        %8482 = vmatpush1.msra.mxu0 %v8255
        %8483 = vmatprep.subr.mxu0 %v8274
        %8484 = vmatpush1.msra.mxu0 %v8273
        %8485 = vmatprep.subr.mxu0 %v8292
        %8486 = vmatpush1.msra.mxu0 %v8291
        %8487 = vmatprep.subr.mxu0 %v8310
        %8488 = vmatpush1.msra.mxu0 %v8309
        %8489 = vmatprep.subr.mxu0 0.0
        %8490 = vmatpush1.msra.mxu0 0.0
        %8491 = vmatprep.subr.mxu0 0.0
        %8492 = vmatpush1.msra.mxu0 0.0
        %8493 = vmatprep.subr.mxu0 0.0
        %8494 = vmatpush1.msra.mxu0 0.0
        %8495 = vmatprep.subr.mxu0 0.0
        %8496 = vmatpush1.msra.mxu0 0.0
        %8497 = vmatprep.subr.mxu0 0.0
        %8498 = vmatpush1.msra.mxu0 0.0
        %8499 = vmatprep.subr.mxu0 0.0
        %8500 = vmatpush1.msra.mxu0 0.0
        %8501 = vmatprep.subr.mxu0 0.0
        %8502 = vmatpush1.msra.mxu0 0.0
        %8503 = vmatprep.subr.mxu0 0.0
        %8504 = vmatpush1.msra.mxu0 0.0
        %8505 = vmatprep.subr.mxu0 0.0
        %8506 = vmatpush1.msra.mxu0 0.0
        %8507 = vmatprep.subr.mxu0 0.0
        %8508 = vmatpush1.msra.mxu0 0.0
        %8509 = vmatprep.subr.mxu0 0.0
        %8510 = vmatpush1.msra.mxu0 0.0
        %8511 = vmatprep.subr.mxu0 0.0
        %8512 = vmatpush1.msra.mxu0 0.0
        %8513 = vmatprep.subr.mxu0 0.0
        %8514 = vmatpush1.msra.mxu0 0.0
        %8515 = vmatprep.subr.mxu0 0.0
        %8516 = vmatpush1.msra.mxu0 0.0
        %8517 = vmatprep.subr.mxu0 0.0
        %8518 = vmatpush1.msra.mxu0 0.0
        %8519 = vmatprep.subr.mxu0 0.0
        %8520 = vmatpush1.msra.mxu0 0.0
        %8521 = vmatprep.subr.mxu0 0.0
        %8522 = vmatpush1.msra.mxu0 0.0
        %8523 = vmatprep.subr.mxu0 0.0
        %8524 = vmatpush1.msra.mxu0 0.0
        %8525 = vmatprep.subr.mxu0 0.0
        %8526 = vmatpush1.msra.mxu0 0.0
        %8527 = vmatprep.subr.mxu0 0.0
        %8528 = vmatpush1.msra.mxu0 0.0
        %8529 = vmatprep.subr.mxu0 0.0
        %8530 = vmatpush1.msra.mxu0 0.0
        %8531 = vmatprep.subr.mxu0 0.0
        %8532 = vmatpush1.msra.mxu0 0.0
        %8533 = vmatprep.subr.mxu0 0.0
        %8534 = vmatpush1.msra.mxu0 0.0
        %8535 = vmatprep.subr.mxu0 0.0
        %8536 = vmatpush1.msra.mxu0 0.0
        %8537 = vmatprep.subr.mxu0 0.0
        %8538 = vmatpush1.msra.mxu0 0.0
        %8539 = vmatprep.subr.mxu0 0.0
        %8540 = vmatpush1.msra.mxu0 0.0
        %8541 = vmatprep.subr.mxu0 0.0
        %8542 = vmatpush1.msra.mxu0 0.0
        %8543 = vmatprep.subr.mxu0 0.0
        %8544 = vmatpush1.msra.mxu0 0.0
        %8545 = vmatprep.mubr.f32.mxu0 0.0
        %8546 = vmatmul.mubr.f32.gmra.mrb[0].mxu0 %v1848
        %v8547 = vpop.f32.mrb[0].mxu0
        %v8548 = vadd.f32 0.0, %v8547
        %v8549 = vpop.f32.mrb[0].mxu0
        %v8550 = vadd.f32 0.0, %v8549
        %8551 = vmatprep.mubr.f32.mxu0 0.0
        %8552 = vmatmul.mubr.f32.gmra.mrb[0].mxu0 %v8325
        %v8553 = vpop.f32.mrb[0].mxu0
        %v8554 = vadd.f32 0.0, %v8553
        %v8555 = vpop.f32.mrb[0].mxu0
        %v8556 = vadd.f32 0.0, %v8555
        %8557 = vdwg.mxu0
        %8558 = vmatprep.subr.mxu0 %v8258
        %8559 = vmatpush1.msra.mxu0 %v8257
        %8560 = vmatprep.subr.mxu0 %v8276
        %8561 = vmatpush1.msra.mxu0 %v8275
        %8562 = vmatprep.subr.mxu0 %v8294
        %8563 = vmatpush1.msra.mxu0 %v8293
        %8564 = vmatprep.subr.mxu0 %v8312
        %8565 = vmatpush1.msra.mxu0 %v8311
        %8566 = vmatprep.subr.mxu0 0.0
        %8567 = vmatpush1.msra.mxu0 0.0
        %8568 = vmatprep.subr.mxu0 0.0
        %8569 = vmatpush1.msra.mxu0 0.0
        %8570 = vmatprep.subr.mxu0 0.0
        %8571 = vmatpush1.msra.mxu0 0.0
        %8572 = vmatprep.subr.mxu0 0.0
        %8573 = vmatpush1.msra.mxu0 0.0
        %8574 = vmatprep.subr.mxu0 0.0
        %8575 = vmatpush1.msra.mxu0 0.0
        %8576 = vmatprep.subr.mxu0 0.0
        %8577 = vmatpush1.msra.mxu0 0.0
        %8578 = vmatprep.subr.mxu0 0.0
        %8579 = vmatpush1.msra.mxu0 0.0
        %8580 = vmatprep.subr.mxu0 0.0
        %8581 = vmatpush1.msra.mxu0 0.0
        %8582 = vmatprep.subr.mxu0 0.0
        %8583 = vmatpush1.msra.mxu0 0.0
        %8584 = vmatprep.subr.mxu0 0.0
        %8585 = vmatpush1.msra.mxu0 0.0
        %8586 = vmatprep.subr.mxu0 0.0
        %8587 = vmatpush1.msra.mxu0 0.0
        %8588 = vmatprep.subr.mxu0 0.0
        %8589 = vmatpush1.msra.mxu0 0.0
        %8590 = vmatprep.subr.mxu0 0.0
        %8591 = vmatpush1.msra.mxu0 0.0
        %8592 = vmatprep.subr.mxu0 0.0
        %8593 = vmatpush1.msra.mxu0 0.0
        %8594 = vmatprep.subr.mxu0 0.0
        %8595 = vmatpush1.msra.mxu0 0.0
        %8596 = vmatprep.subr.mxu0 0.0
        %8597 = vmatpush1.msra.mxu0 0.0
        %8598 = vmatprep.subr.mxu0 0.0
        %8599 = vmatpush1.msra.mxu0 0.0
        %8600 = vmatprep.subr.mxu0 0.0
        %8601 = vmatpush1.msra.mxu0 0.0
        %8602 = vmatprep.subr.mxu0 0.0
        %8603 = vmatpush1.msra.mxu0 0.0
        %8604 = vmatprep.subr.mxu0 0.0
        %8605 = vmatpush1.msra.mxu0 0.0
        %8606 = vmatprep.subr.mxu0 0.0
        %8607 = vmatpush1.msra.mxu0 0.0
        %8608 = vmatprep.subr.mxu0 0.0
        %8609 = vmatpush1.msra.mxu0 0.0
        %8610 = vmatprep.subr.mxu0 0.0
        %8611 = vmatpush1.msra.mxu0 0.0
        %8612 = vmatprep.subr.mxu0 0.0
        %8613 = vmatpush1.msra.mxu0 0.0
        %8614 = vmatprep.subr.mxu0 0.0
        %8615 = vmatpush1.msra.mxu0 0.0
        %8616 = vmatprep.subr.mxu0 0.0
        %8617 = vmatpush1.msra.mxu0 0.0
        %8618 = vmatprep.subr.mxu0 0.0
        %8619 = vmatpush1.msra.mxu0 0.0
        %8620 = vmatprep.subr.mxu0 0.0
        %8621 = vmatpush1.msra.mxu0 0.0
        %8622 = vmatprep.mubr.f32.mxu0 0.0
        %8623 = vmatmul.mubr.f32.gmra.mrb[0].mxu0 %v1848
        %v8624 = vpop.f32.mrb[0].mxu0
        %v8625 = vadd.f32 0.0, %v8624
        %v8626 = vpop.f32.mrb[0].mxu0
        %v8627 = vadd.f32 0.0, %v8626
        %8628 = vmatprep.mubr.f32.mxu0 0.0
        %8629 = vmatmul.mubr.f32.gmra.mrb[0].mxu0 %v8325
        %v8630 = vpop.f32.mrb[0].mxu0
        %v8631 = vadd.f32 0.0, %v8630
        %v8632 = vpop.f32.mrb[0].mxu0
        %v8633 = vadd.f32 0.0, %v8632
        %8634 = vdwg.mxu0
        %8635 = vmatprep.subr.mxu0 %v8260
        %8636 = vmatpush1.msra.mxu0 %v8259
        %8637 = vmatprep.subr.mxu0 %v8278
        %8638 = vmatpush1.msra.mxu0 %v8277
        %8639 = vmatprep.subr.mxu0 %v8296
        %8640 = vmatpush1.msra.mxu0 %v8295
        %8641 = vmatprep.subr.mxu0 %v8314
        %8642 = vmatpush1.msra.mxu0 %v8313
        %8643 = vmatprep.subr.mxu0 0.0
        %8644 = vmatpush1.msra.mxu0 0.0
        %8645 = vmatprep.subr.mxu0 0.0
        %8646 = vmatpush1.msra.mxu0 0.0
        %8647 = vmatprep.subr.mxu0 0.0
        %8648 = vmatpush1.msra.mxu0 0.0
        %8649 = vmatprep.subr.mxu0 0.0
        %8650 = vmatpush1.msra.mxu0 0.0
        %8651 = vmatprep.subr.mxu0 0.0
        %8652 = vmatpush1.msra.mxu0 0.0
        %8653 = vmatprep.subr.mxu0 0.0
        %8654 = vmatpush1.msra.mxu0 0.0
        %8655 = vmatprep.subr.mxu0 0.0
        %8656 = vmatpush1.msra.mxu0 0.0
        %8657 = vmatprep.subr.mxu0 0.0
        %8658 = vmatpush1.msra.mxu0 0.0
        %8659 = vmatprep.subr.mxu0 0.0
        %8660 = vmatpush1.msra.mxu0 0.0
        %8661 = vmatprep.subr.mxu0 0.0
        %8662 = vmatpush1.msra.mxu0 0.0
        %8663 = vmatprep.subr.mxu0 0.0
        %8664 = vmatpush1.msra.mxu0 0.0
        %8665 = vmatprep.subr.mxu0 0.0
        %8666 = vmatpush1.msra.mxu0 0.0
        %8667 = vmatprep.subr.mxu0 0.0
        %8668 = vmatpush1.msra.mxu0 0.0
        %8669 = vmatprep.subr.mxu0 0.0
        %8670 = vmatpush1.msra.mxu0 0.0
        %8671 = vmatprep.subr.mxu0 0.0
        %8672 = vmatpush1.msra.mxu0 0.0
        %8673 = vmatprep.subr.mxu0 0.0
        %8674 = vmatpush1.msra.mxu0 0.0
        %8675 = vmatprep.subr.mxu0 0.0
        %8676 = vmatpush1.msra.mxu0 0.0
        %8677 = vmatprep.subr.mxu0 0.0
        %8678 = vmatpush1.msra.mxu0 0.0
        %8679 = vmatprep.subr.mxu0 0.0
        %8680 = vmatpush1.msra.mxu0 0.0
        %8681 = vmatprep.subr.mxu0 0.0
        %8682 = vmatpush1.msra.mxu0 0.0
        %8683 = vmatprep.subr.mxu0 0.0
        %8684 = vmatpush1.msra.mxu0 0.0
        %8685 = vmatprep.subr.mxu0 0.0
        %8686 = vmatpush1.msra.mxu0 0.0
        %8687 = vmatprep.subr.mxu0 0.0
        %8688 = vmatpush1.msra.mxu0 0.0
        %8689 = vmatprep.subr.mxu0 0.0
        %8690 = vmatpush1.msra.mxu0 0.0
        %8691 = vmatprep.subr.mxu0 0.0
        %8692 = vmatpush1.msra.mxu0 0.0
        %8693 = vmatprep.subr.mxu0 0.0
        %8694 = vmatpush1.msra.mxu0 0.0
        %8695 = vmatprep.subr.mxu0 0.0
        %8696 = vmatpush1.msra.mxu0 0.0
        %8697 = vmatprep.subr.mxu0 0.0
        %8698 = vmatpush1.msra.mxu0 0.0
        %8699 = vmatprep.mubr.f32.mxu0 0.0
        %8700 = vmatmul.mubr.f32.gmra.mrb[0].mxu0 %v1848
        %v8701 = vpop.f32.mrb[0].mxu0
        %v8702 = vadd.f32 0.0, %v8701
        %v8703 = vpop.f32.mrb[0].mxu0
        %v8704 = vadd.f32 0.0, %v8703
        %8705 = vmatprep.mubr.f32.mxu0 0.0
        %8706 = vmatmul.mubr.f32.gmra.mrb[0].mxu0 %v8325
        %v8707 = vpop.f32.mrb[0].mxu0
        %v8708 = vadd.f32 0.0, %v8707
        %v8709 = vpop.f32.mrb[0].mxu0
        %v8710 = vadd.f32 0.0, %v8709
        %8711 = vdwg.mxu0
        %8712 = vmatprep.subr.mxu0 %v8262
        %8713 = vmatpush1.msra.mxu0 %v8261
        %8714 = vmatprep.subr.mxu0 %v8280
        %8715 = vmatpush1.msra.mxu0 %v8279
        %8716 = vmatprep.subr.mxu0 %v8298
        %8717 = vmatpush1.msra.mxu0 %v8297
        %8718 = vmatprep.subr.mxu0 %v8316
        %8719 = vmatpush1.msra.mxu0 %v8315
        %8720 = vmatprep.subr.mxu0 0.0
        %8721 = vmatpush1.msra.mxu0 0.0
        %8722 = vmatprep.subr.mxu0 0.0
        %8723 = vmatpush1.msra.mxu0 0.0
        %8724 = vmatprep.subr.mxu0 0.0
        %8725 = vmatpush1.msra.mxu0 0.0
        %8726 = vmatprep.subr.mxu0 0.0
        %8727 = vmatpush1.msra.mxu0 0.0
        %8728 = vmatprep.subr.mxu0 0.0
        %8729 = vmatpush1.msra.mxu0 0.0
        %8730 = vmatprep.subr.mxu0 0.0
        %8731 = vmatpush1.msra.mxu0 0.0
        %8732 = vmatprep.subr.mxu0 0.0
        %8733 = vmatpush1.msra.mxu0 0.0
        %8734 = vmatprep.subr.mxu0 0.0
        %8735 = vmatpush1.msra.mxu0 0.0
        %8736 = vmatprep.subr.mxu0 0.0
        %8737 = vmatpush1.msra.mxu0 0.0
        %8738 = vmatprep.subr.mxu0 0.0
        %8739 = vmatpush1.msra.mxu0 0.0
        %8740 = vmatprep.subr.mxu0 0.0
        %8741 = vmatpush1.msra.mxu0 0.0
        %8742 = vmatprep.subr.mxu0 0.0
        %8743 = vmatpush1.msra.mxu0 0.0
        %8744 = vmatprep.subr.mxu0 0.0
        %8745 = vmatpush1.msra.mxu0 0.0
        %8746 = vmatprep.subr.mxu0 0.0
        %8747 = vmatpush1.msra.mxu0 0.0
        %8748 = vmatprep.subr.mxu0 0.0
        %8749 = vmatpush1.msra.mxu0 0.0
        %8750 = vmatprep.subr.mxu0 0.0
        %8751 = vmatpush1.msra.mxu0 0.0
        %8752 = vmatprep.subr.mxu0 0.0
        %8753 = vmatpush1.msra.mxu0 0.0
        %8754 = vmatprep.subr.mxu0 0.0
        %8755 = vmatpush1.msra.mxu0 0.0
        %8756 = vmatprep.subr.mxu0 0.0
        %8757 = vmatpush1.msra.mxu0 0.0
        %8758 = vmatprep.subr.mxu0 0.0
        %8759 = vmatpush1.msra.mxu0 0.0
        %8760 = vmatprep.subr.mxu0 0.0
        %8761 = vmatpush1.msra.mxu0 0.0
        %8762 = vmatprep.subr.mxu0 0.0
        %8763 = vmatpush1.msra.mxu0 0.0
        %8764 = vmatprep.subr.mxu0 0.0
        %8765 = vmatpush1.msra.mxu0 0.0
        %8766 = vmatprep.subr.mxu0 0.0
        %8767 = vmatpush1.msra.mxu0 0.0
        %8768 = vmatprep.subr.mxu0 0.0
        %8769 = vmatpush1.msra.mxu0 0.0
        %8770 = vmatprep.subr.mxu0 0.0
        %8771 = vmatpush1.msra.mxu0 0.0
        %8772 = vmatprep.subr.mxu0 0.0
        %8773 = vmatpush1.msra.mxu0 0.0
        %8774 = vmatprep.subr.mxu0 0.0
        %8775 = vmatpush1.msra.mxu0 0.0
        %8776 = vmatprep.mubr.f32.mxu0 0.0
        %8777 = vmatmul.mubr.f32.gmra.mrb[0].mxu0 %v1848
        %v8778 = vpop.f32.mrb[0].mxu0
        %v8779 = vadd.f32 0.0, %v8778
        %v8780 = vpop.f32.mrb[0].mxu0
        %v8781 = vadd.f32 0.0, %v8780
        %8782 = vmatprep.mubr.f32.mxu0 0.0
        %8783 = vmatmul.mubr.f32.gmra.mrb[0].mxu0 %v8325
        %v8784 = vpop.f32.mrb[0].mxu0
        %v8785 = vadd.f32 0.0, %v8784
        %v8786 = vpop.f32.mrb[0].mxu0
        %v8787 = vadd.f32 0.0, %v8786
        %8788 = vdwg.mxu0
        %8789 = vmatprep.subr.mxu0 %v8264
        %8790 = vmatpush1.msra.mxu0 %v8263
        %8791 = vmatprep.subr.mxu0 %v8282
        %8792 = vmatpush1.msra.mxu0 %v8281
        %8793 = vmatprep.subr.mxu0 %v8300
        %8794 = vmatpush1.msra.mxu0 %v8299
        %8795 = vmatprep.subr.mxu0 %v8318
        %8796 = vmatpush1.msra.mxu0 %v8317
        %8797 = vmatprep.subr.mxu0 0.0
        %8798 = vmatpush1.msra.mxu0 0.0
        %8799 = vmatprep.subr.mxu0 0.0
        %8800 = vmatpush1.msra.mxu0 0.0
        %8801 = vmatprep.subr.mxu0 0.0
        %8802 = vmatpush1.msra.mxu0 0.0
        %8803 = vmatprep.subr.mxu0 0.0
        %8804 = vmatpush1.msra.mxu0 0.0
        %8805 = vmatprep.subr.mxu0 0.0
        %8806 = vmatpush1.msra.mxu0 0.0
        %8807 = vmatprep.subr.mxu0 0.0
        %8808 = vmatpush1.msra.mxu0 0.0
        %8809 = vmatprep.subr.mxu0 0.0
        %8810 = vmatpush1.msra.mxu0 0.0
        %8811 = vmatprep.subr.mxu0 0.0
        %8812 = vmatpush1.msra.mxu0 0.0
        %8813 = vmatprep.subr.mxu0 0.0
        %8814 = vmatpush1.msra.mxu0 0.0
        %8815 = vmatprep.subr.mxu0 0.0
        %8816 = vmatpush1.msra.mxu0 0.0
        %8817 = vmatprep.subr.mxu0 0.0
        %8818 = vmatpush1.msra.mxu0 0.0
        %8819 = vmatprep.subr.mxu0 0.0
        %8820 = vmatpush1.msra.mxu0 0.0
        %8821 = vmatprep.subr.mxu0 0.0
        %8822 = vmatpush1.msra.mxu0 0.0
        %8823 = vmatprep.subr.mxu0 0.0
        %8824 = vmatpush1.msra.mxu0 0.0
        %8825 = vmatprep.subr.mxu0 0.0
        %8826 = vmatpush1.msra.mxu0 0.0
        %8827 = vmatprep.subr.mxu0 0.0
        %8828 = vmatpush1.msra.mxu0 0.0
        %8829 = vmatprep.subr.mxu0 0.0
        %8830 = vmatpush1.msra.mxu0 0.0
        %8831 = vmatprep.subr.mxu0 0.0
        %8832 = vmatpush1.msra.mxu0 0.0
        %8833 = vmatprep.subr.mxu0 0.0
        %8834 = vmatpush1.msra.mxu0 0.0
        %8835 = vmatprep.subr.mxu0 0.0
        %8836 = vmatpush1.msra.mxu0 0.0
        %8837 = vmatprep.subr.mxu0 0.0
        %8838 = vmatpush1.msra.mxu0 0.0
        %8839 = vmatprep.subr.mxu0 0.0
        %8840 = vmatpush1.msra.mxu0 0.0
        %8841 = vmatprep.subr.mxu0 0.0
        %8842 = vmatpush1.msra.mxu0 0.0
        %8843 = vmatprep.subr.mxu0 0.0
        %8844 = vmatpush1.msra.mxu0 0.0
        %8845 = vmatprep.subr.mxu0 0.0
        %8846 = vmatpush1.msra.mxu0 0.0
        %8847 = vmatprep.subr.mxu0 0.0
        %8848 = vmatpush1.msra.mxu0 0.0
        %8849 = vmatprep.subr.mxu0 0.0
        %8850 = vmatpush1.msra.mxu0 0.0
        %8851 = vmatprep.subr.mxu0 0.0
        %8852 = vmatpush1.msra.mxu0 0.0
        %8853 = vmatprep.mubr.f32.mxu0 0.0
        %8854 = vmatmul.mubr.f32.gmra.mrb[0].mxu0 %v1848
        %v8855 = vpop.f32.mrb[0].mxu0
        %v8856 = vadd.f32 0.0, %v8855
        %v8857 = vpop.f32.mrb[0].mxu0
        %v8858 = vadd.f32 0.0, %v8857
        %8859 = vmatprep.mubr.f32.mxu0 0.0
        %8860 = vmatmul.mubr.f32.gmra.mrb[0].mxu0 %v8325
        %v8861 = vpop.f32.mrb[0].mxu0
        %v8862 = vadd.f32 0.0, %v8861
        %v8863 = vpop.f32.mrb[0].mxu0
        %v8864 = vadd.f32 0.0, %v8863
        %8865 = vdwg.mxu0
        %8866 = vmatprep.subr.mxu0 %v8266
        %8867 = vmatpush1.msra.mxu0 %v8265
        %8868 = vmatprep.subr.mxu0 %v8284
        %8869 = vmatpush1.msra.mxu0 %v8283
        %8870 = vmatprep.subr.mxu0 %v8302
        %8871 = vmatpush1.msra.mxu0 %v8301
        %8872 = vmatprep.subr.mxu0 %v8320
        %8873 = vmatpush1.msra.mxu0 %v8319
        %8874 = vmatprep.subr.mxu0 0.0
        %8875 = vmatpush1.msra.mxu0 0.0
        %8876 = vmatprep.subr.mxu0 0.0
        %8877 = vmatpush1.msra.mxu0 0.0
        %8878 = vmatprep.subr.mxu0 0.0
        %8879 = vmatpush1.msra.mxu0 0.0
        %8880 = vmatprep.subr.mxu0 0.0
        %8881 = vmatpush1.msra.mxu0 0.0
        %8882 = vmatprep.subr.mxu0 0.0
        %8883 = vmatpush1.msra.mxu0 0.0
        %8884 = vmatprep.subr.mxu0 0.0
        %8885 = vmatpush1.msra.mxu0 0.0
        %8886 = vmatprep.subr.mxu0 0.0
        %8887 = vmatpush1.msra.mxu0 0.0
        %8888 = vmatprep.subr.mxu0 0.0
        %8889 = vmatpush1.msra.mxu0 0.0
        %8890 = vmatprep.subr.mxu0 0.0
        %8891 = vmatpush1.msra.mxu0 0.0
        %8892 = vmatprep.subr.mxu0 0.0
        %8893 = vmatpush1.msra.mxu0 0.0
        %8894 = vmatprep.subr.mxu0 0.0
        %8895 = vmatpush1.msra.mxu0 0.0
        %8896 = vmatprep.subr.mxu0 0.0
        %8897 = vmatpush1.msra.mxu0 0.0
        %8898 = vmatprep.subr.mxu0 0.0
        %8899 = vmatpush1.msra.mxu0 0.0
        %8900 = vmatprep.subr.mxu0 0.0
        %8901 = vmatpush1.msra.mxu0 0.0
        %8902 = vmatprep.subr.mxu0 0.0
        %8903 = vmatpush1.msra.mxu0 0.0
        %8904 = vmatprep.subr.mxu0 0.0
        %8905 = vmatpush1.msra.mxu0 0.0
        %8906 = vmatprep.subr.mxu0 0.0
        %8907 = vmatpush1.msra.mxu0 0.0
        %8908 = vmatprep.subr.mxu0 0.0
        %8909 = vmatpush1.msra.mxu0 0.0
        %8910 = vmatprep.subr.mxu0 0.0
        %8911 = vmatpush1.msra.mxu0 0.0
        %8912 = vmatprep.subr.mxu0 0.0
        %8913 = vmatpush1.msra.mxu0 0.0
        %8914 = vmatprep.subr.mxu0 0.0
        %8915 = vmatpush1.msra.mxu0 0.0
        %8916 = vmatprep.subr.mxu0 0.0
        %8917 = vmatpush1.msra.mxu0 0.0
        %8918 = vmatprep.subr.mxu0 0.0
        %8919 = vmatpush1.msra.mxu0 0.0
        %8920 = vmatprep.subr.mxu0 0.0
        %8921 = vmatpush1.msra.mxu0 0.0
        %8922 = vmatprep.subr.mxu0 0.0
        %8923 = vmatpush1.msra.mxu0 0.0
        %8924 = vmatprep.subr.mxu0 0.0
        %8925 = vmatpush1.msra.mxu0 0.0
        %8926 = vmatprep.subr.mxu0 0.0
        %8927 = vmatpush1.msra.mxu0 0.0
        %8928 = vmatprep.subr.mxu0 0.0
        %8929 = vmatpush1.msra.mxu0 0.0
        %8930 = vmatprep.mubr.f32.mxu0 0.0
        %8931 = vmatmul.mubr.f32.gmra.mrb[0].mxu0 %v1848
        %v8932 = vpop.f32.mrb[0].mxu0
        %v8933 = vadd.f32 0.0, %v8932
        %v8934 = vpop.f32.mrb[0].mxu0
        %v8935 = vadd.f32 0.0, %v8934
        %8936 = vmatprep.mubr.f32.mxu0 0.0
        %8937 = vmatmul.mubr.f32.gmra.mrb[0].mxu0 %v8325
        %v8938 = vpop.f32.mrb[0].mxu0
        %v8939 = vadd.f32 0.0, %v8938
        %v8940 = vpop.f32.mrb[0].mxu0
        %v8941 = vadd.f32 0.0, %v8940
        %8942 = vdwg.mxu0
        %8943 = vmatprep.subr.mxu0 %v8268
        %8944 = vmatpush1.msra.mxu0 %v8267
        %8945 = vmatprep.subr.mxu0 %v8286
        %8946 = vmatpush1.msra.mxu0 %v8285
        %8947 = vmatprep.subr.mxu0 %v8304
        %8948 = vmatpush1.msra.mxu0 %v8303
        %8949 = vmatprep.subr.mxu0 %v8322
        %8950 = vmatpush1.msra.mxu0 %v8321
        %8951 = vmatprep.subr.mxu0 0.0
        %8952 = vmatpush1.msra.mxu0 0.0
        %8953 = vmatprep.subr.mxu0 0.0
        %8954 = vmatpush1.msra.mxu0 0.0
        %8955 = vmatprep.subr.mxu0 0.0
        %8956 = vmatpush1.msra.mxu0 0.0
        %8957 = vmatprep.subr.mxu0 0.0
        %8958 = vmatpush1.msra.mxu0 0.0
        %8959 = vmatprep.subr.mxu0 0.0
        %8960 = vmatpush1.msra.mxu0 0.0
        %8961 = vmatprep.subr.mxu0 0.0
        %8962 = vmatpush1.msra.mxu0 0.0
        %8963 = vmatprep.subr.mxu0 0.0
        %8964 = vmatpush1.msra.mxu0 0.0
        %8965 = vmatprep.subr.mxu0 0.0
        %8966 = vmatpush1.msra.mxu0 0.0
        %8967 = vmatprep.subr.mxu0 0.0
        %8968 = vmatpush1.msra.mxu0 0.0
        %8969 = vmatprep.subr.mxu0 0.0
        %8970 = vmatpush1.msra.mxu0 0.0
        %8971 = vmatprep.subr.mxu0 0.0
        %8972 = vmatpush1.msra.mxu0 0.0
        %8973 = vmatprep.subr.mxu0 0.0
        %8974 = vmatpush1.msra.mxu0 0.0
        %8975 = vmatprep.subr.mxu0 0.0
        %8976 = vmatpush1.msra.mxu0 0.0
        %8977 = vmatprep.subr.mxu0 0.0
        %8978 = vmatpush1.msra.mxu0 0.0
        %8979 = vmatprep.subr.mxu0 0.0
        %8980 = vmatpush1.msra.mxu0 0.0
        %8981 = vmatprep.subr.mxu0 0.0
        %8982 = vmatpush1.msra.mxu0 0.0
        %8983 = vmatprep.subr.mxu0 0.0
        %8984 = vmatpush1.msra.mxu0 0.0
        %8985 = vmatprep.subr.mxu0 0.0
        %8986 = vmatpush1.msra.mxu0 0.0
        %8987 = vmatprep.subr.mxu0 0.0
        %8988 = vmatpush1.msra.mxu0 0.0
        %8989 = vmatprep.subr.mxu0 0.0
        %8990 = vmatpush1.msra.mxu0 0.0
        %8991 = vmatprep.subr.mxu0 0.0
        %8992 = vmatpush1.msra.mxu0 0.0
        %8993 = vmatprep.subr.mxu0 0.0
        %8994 = vmatpush1.msra.mxu0 0.0
        %8995 = vmatprep.subr.mxu0 0.0
        %8996 = vmatpush1.msra.mxu0 0.0
        %8997 = vmatprep.subr.mxu0 0.0
        %8998 = vmatpush1.msra.mxu0 0.0
        %8999 = vmatprep.subr.mxu0 0.0
        %9000 = vmatpush1.msra.mxu0 0.0
        %9001 = vmatprep.subr.mxu0 0.0
        %9002 = vmatpush1.msra.mxu0 0.0
        %9003 = vmatprep.subr.mxu0 0.0
        %9004 = vmatpush1.msra.mxu0 0.0
        %9005 = vmatprep.subr.mxu0 0.0
        %9006 = vmatpush1.msra.mxu0 0.0
        %9007 = vmatprep.mubr.f32.mxu0 0.0
        %9008 = vmatmul.mubr.f32.gmra.mrb[0].mxu0 %v1848
        %v9009 = vpop.f32.mrb[0].mxu0
        %v9010 = vadd.f32 0.0, %v9009
        %v9011 = vpop.f32.mrb[0].mxu0
        %v9012 = vadd.f32 0.0, %v9011
        %9013 = vmatprep.mubr.f32.mxu0 0.0
        %9014 = vmatmul.mubr.f32.gmra.mrb[0].mxu0 %v8325
        %v9015 = vpop.f32.mrb[0].mxu0
        %v9016 = vadd.f32 0.0, %v9015
        %v9017 = vpop.f32.mrb[0].mxu0
        %v9018 = vadd.f32 0.0, %v9017
        %9019 = vdwg.mxu0
        %v9020 = vadd.f32 %v8214, %v8394
        %v9021 = vadd.f32 %v8215, %v8396
        %v9022 = vadd.f32 %v8216, %v8471
        %v9023 = vadd.f32 %v8217, %v8473
        %v9024 = vadd.f32 %v8218, %v8548
        %v9025 = vadd.f32 %v8219, %v8550
        %v9026 = vadd.f32 %v8220, %v8625
        %v9027 = vadd.f32 %v8221, %v8627
        %v9028 = vadd.f32 %v8222, %v8702
        %v9029 = vadd.f32 %v8223, %v8704
        %v9030 = vadd.f32 %v8224, %v8779
        %v9031 = vadd.f32 %v8225, %v8781
        %v9032 = vadd.f32 %v8226, %v8856
        %v9033 = vadd.f32 %v8227, %v8858
        %v9034 = vadd.f32 %v8228, %v8933
        %v9035 = vadd.f32 %v8229, %v8935
        %v9036 = vadd.f32 %v8230, %v9010
        %v9037 = vadd.f32 %v8231, %v9012
        %v9038 = vadd.f32 %v8232, %v8400
        %v9039 = vadd.f32 %v8233, %v8402
        %v9040 = vadd.f32 %v8234, %v8477
        %v9041 = vadd.f32 %v8235, %v8479
        %v9042 = vadd.f32 %v8236, %v8554
        %v9043 = vadd.f32 %v8237, %v8556
        %v9044 = vadd.f32 %v8238, %v8631
        %v9045 = vadd.f32 %v8239, %v8633
        %v9046 = vadd.f32 %v8240, %v8708
        %v9047 = vadd.f32 %v8241, %v8710
        %v9048 = vadd.f32 %v8242, %v8785
        %v9049 = vadd.f32 %v8243, %v8787
        %v9050 = vadd.f32 %v8244, %v8862
        %v9051 = vadd.f32 %v8245, %v8864
        %v9052 = vadd.f32 %v8246, %v8939
        %v9053 = vadd.f32 %v8247, %v8941
        %v9054 = vadd.f32 %v8248, %v9016
        %v9055 = vadd.f32 %v8249, %v9018
        %v9056 = vld [vmem:[#allocation5] sm:$0xff]
        %v9057 = vld [vmem:[#allocation5 + $0x8] sm:$0xff]
        %v9058 = vld [vmem:[#allocation5 + $0x10] sm:$0x3]
        %v9062 = vlaneseq
        %v9063 = vshrl.u32 %v9062, 7
        %v9064 = vsub.s32 0, %v9063
        %v9065 = vrot.slane %v9056, %v9064
        %v9066 = vlaneseq
        %v9067 = vshrl.u32 %v9066, 7
        %v9068 = vsub.s32 1, %v9067
        %v9069 = vrot.slane %v9056, %v9068
        %v9070 = vlaneseq
        %v9071 = vshrl.u32 %v9070, 7
        %v9072 = vsub.s32 2, %v9071
        %v9073 = vrot.slane %v9056, %v9072
        %v9074 = vlaneseq
        %v9075 = vshrl.u32 %v9074, 7
        %v9076 = vsub.s32 3, %v9075
        %v9077 = vrot.slane %v9056, %v9076
        %v9078 = vlaneseq
        %v9079 = vshrl.u32 %v9078, 7
        %v9080 = vsub.s32 4, %v9079
        %v9081 = vrot.slane %v9056, %v9080
        %v9082 = vlaneseq
        %v9083 = vshrl.u32 %v9082, 7
        %v9084 = vsub.s32 5, %v9083
        %v9085 = vrot.slane %v9056, %v9084
        %v9086 = vlaneseq
        %v9087 = vshrl.u32 %v9086, 7
        %v9088 = vsub.s32 6, %v9087
        %v9089 = vrot.slane %v9056, %v9088
        %v9090 = vlaneseq
        %v9091 = vshrl.u32 %v9090, 7
        %v9092 = vsub.s32 7, %v9091
        %v9093 = vrot.slane %v9056, %v9092
        %v9094 = vlaneseq
        %v9095 = vshrl.u32 %v9094, 7
        %v9096 = vsub.s32 0, %v9095
        %v9097 = vrot.slane %v9057, %v9096
        %v9098 = vlaneseq
        %v9099 = vshrl.u32 %v9098, 7
        %v9100 = vsub.s32 1, %v9099
        %v9101 = vrot.slane %v9057, %v9100
        %v9102 = vlaneseq
        %v9103 = vshrl.u32 %v9102, 7
        %v9104 = vsub.s32 2, %v9103
        %v9105 = vrot.slane %v9057, %v9104
        %v9106 = vlaneseq
        %v9107 = vshrl.u32 %v9106, 7
        %v9108 = vsub.s32 3, %v9107
        %v9109 = vrot.slane %v9057, %v9108
        %v9110 = vlaneseq
        %v9111 = vshrl.u32 %v9110, 7
        %v9112 = vsub.s32 4, %v9111
        %v9113 = vrot.slane %v9057, %v9112
        %v9114 = vlaneseq
        %v9115 = vshrl.u32 %v9114, 7
        %v9116 = vsub.s32 5, %v9115
        %v9117 = vrot.slane %v9057, %v9116
        %v9118 = vlaneseq
        %v9119 = vshrl.u32 %v9118, 7
        %v9120 = vsub.s32 6, %v9119
        %v9121 = vrot.slane %v9057, %v9120
        %v9122 = vlaneseq
        %v9123 = vshrl.u32 %v9122, 7
        %v9124 = vsub.s32 7, %v9123
        %v9125 = vrot.slane %v9057, %v9124
        %v9126 = vlaneseq
        %v9127 = vshrl.u32 %v9126, 7
        %v9128 = vsub.s32 0, %v9127
        %v9129 = vrot.slane %v9058, %v9128
        %v9130 = vlaneseq
        %v9131 = vshrl.u32 %v9130, 7
        %v9132 = vsub.s32 1, %v9131
        %v9133 = vrot.slane %v9058, %v9132
        %v9152 = vadd.f32 %v9020, %v9065
        %v9153 = vadd.f32 %v9021, %v9069
        %v9154 = vadd.f32 %v9022, %v9073
        %v9155 = vadd.f32 %v9023, %v9077
        %v9156 = vadd.f32 %v9024, %v9081
        %v9157 = vadd.f32 %v9025, %v9085
        %v9158 = vadd.f32 %v9026, %v9089
        %v9159 = vadd.f32 %v9027, %v9093
        %v9160 = vadd.f32 %v9028, %v9097
        %v9161 = vadd.f32 %v9029, %v9101
        %v9162 = vadd.f32 %v9030, %v9105
        %v9163 = vadd.f32 %v9031, %v9109
        %v9164 = vadd.f32 %v9032, %v9113
        %v9165 = vadd.f32 %v9033, %v9117
        %v9166 = vadd.f32 %v9034, %v9121
        %v9167 = vadd.f32 %v9035, %v9125
        %v9168 = vadd.f32 %v9036, %v9129
        %v9169 = vadd.f32 %v9037, %v9133
        %v9170 = vadd.f32 %v9038, %v9065
        %v9171 = vadd.f32 %v9039, %v9069
        %v9172 = vadd.f32 %v9040, %v9073
        %v9173 = vadd.f32 %v9041, %v9077
        %v9174 = vadd.f32 %v9042, %v9081
        %v9175 = vadd.f32 %v9043, %v9085
        %v9176 = vadd.f32 %v9044, %v9089
        %v9177 = vadd.f32 %v9045, %v9093
        %v9178 = vadd.f32 %v9046, %v9097
        %v9179 = vadd.f32 %v9047, %v9101
        %v9180 = vadd.f32 %v9048, %v9105
        %v9181 = vadd.f32 %v9049, %v9109
        %v9182 = vadd.f32 %v9050, %v9113
        %v9183 = vadd.f32 %v9051, %v9117
        %v9184 = vadd.f32 %v9052, %v9121
        %v9185 = vadd.f32 %v9053, %v9125
        %v9186 = vadd.f32 %v9054, %v9129
        %v9187 = vadd.f32 %v9055, %v9133
        %v9188 = vmul.f32 %v9152, 0.5
        %v9189 = vmul.f32 %v9153, 0.5
        %v9190 = vmul.f32 %v9154, 0.5
        %v9191 = vmul.f32 %v9155, 0.5
        %v9192 = vmul.f32 %v9156, 0.5
        %v9193 = vmul.f32 %v9157, 0.5
        %v9194 = vmul.f32 %v9158, 0.5
        %v9195 = vmul.f32 %v9159, 0.5
        %v9196 = vmul.f32 %v9160, 0.5
        %v9197 = vmul.f32 %v9161, 0.5
        %v9198 = vmul.f32 %v9162, 0.5
        %v9199 = vmul.f32 %v9163, 0.5
        %v9200 = vmul.f32 %v9164, 0.5
        %v9201 = vmul.f32 %v9165, 0.5
        %v9202 = vmul.f32 %v9166, 0.5
        %v9203 = vmul.f32 %v9167, 0.5
        %v9204 = vmul.f32 %v9168, 0.5
        %v9205 = vmul.f32 %v9169, 0.5
        %v9206 = vmul.f32 %v9170, 0.5
        %v9207 = vmul.f32 %v9171, 0.5
        %v9208 = vmul.f32 %v9172, 0.5
        %v9209 = vmul.f32 %v9173, 0.5
        %v9210 = vmul.f32 %v9174, 0.5
        %v9211 = vmul.f32 %v9175, 0.5
        %v9212 = vmul.f32 %v9176, 0.5
        %v9213 = vmul.f32 %v9177, 0.5
        %v9214 = vmul.f32 %v9178, 0.5
        %v9215 = vmul.f32 %v9179, 0.5
        %v9216 = vmul.f32 %v9180, 0.5
        %v9217 = vmul.f32 %v9181, 0.5
        %v9218 = vmul.f32 %v9182, 0.5
        %v9219 = vmul.f32 %v9183, 0.5
        %v9220 = vmul.f32 %v9184, 0.5
        %v9221 = vmul.f32 %v9185, 0.5
        %v9222 = vmul.f32 %v9186, 0.5
        %v9223 = vmul.f32 %v9187, 0.5
        %v9224 = vmul.f32 %v9152, 0.70710677
        %v9225 = vmul.f32 %v9153, 0.70710677
        %v9226 = vmul.f32 %v9154, 0.70710677
        %v9227 = vmul.f32 %v9155, 0.70710677
        %v9228 = vmul.f32 %v9156, 0.70710677
        %v9229 = vmul.f32 %v9157, 0.70710677
        %v9230 = vmul.f32 %v9158, 0.70710677
        %v9231 = vmul.f32 %v9159, 0.70710677
        %v9232 = vmul.f32 %v9160, 0.70710677
        %v9233 = vmul.f32 %v9161, 0.70710677
        %v9234 = vmul.f32 %v9162, 0.70710677
        %v9235 = vmul.f32 %v9163, 0.70710677
        %v9236 = vmul.f32 %v9164, 0.70710677
        %v9237 = vmul.f32 %v9165, 0.70710677
        %v9238 = vmul.f32 %v9166, 0.70710677
        %v9239 = vmul.f32 %v9167, 0.70710677
        %v9240 = vmul.f32 %v9168, 0.70710677
        %v9241 = vmul.f32 %v9169, 0.70710677
        %v9242 = vmul.f32 %v9170, 0.70710677
        %v9243 = vmul.f32 %v9171, 0.70710677
        %v9244 = vmul.f32 %v9172, 0.70710677
        %v9245 = vmul.f32 %v9173, 0.70710677
        %v9246 = vmul.f32 %v9174, 0.70710677
        %v9247 = vmul.f32 %v9175, 0.70710677
        %v9248 = vmul.f32 %v9176, 0.70710677
        %v9249 = vmul.f32 %v9177, 0.70710677
        %v9250 = vmul.f32 %v9178, 0.70710677
        %v9251 = vmul.f32 %v9179, 0.70710677
        %v9252 = vmul.f32 %v9180, 0.70710677
        %v9253 = vmul.f32 %v9181, 0.70710677
        %v9254 = vmul.f32 %v9182, 0.70710677
        %v9255 = vmul.f32 %v9183, 0.70710677
        %v9256 = vmul.f32 %v9184, 0.70710677
        %v9257 = vmul.f32 %v9185, 0.70710677
        %v9258 = vmul.f32 %v9186, 0.70710677
        %v9259 = vmul.f32 %v9187, 0.70710677
        %v9260 = verf.f32.pop %v9224
        %v9261 = verf.f32.pop %v9225
        %v9262 = verf.f32.pop %v9226
        %v9263 = verf.f32.pop %v9227
        %v9264 = verf.f32.pop %v9228
        %v9265 = verf.f32.pop %v9229
        %v9266 = verf.f32.pop %v9230
        %v9267 = verf.f32.pop %v9231
        %v9268 = verf.f32.pop %v9232
        %v9269 = verf.f32.pop %v9233
        %v9270 = verf.f32.pop %v9234
        %v9271 = verf.f32.pop %v9235
        %v9272 = verf.f32.pop %v9236
        %v9273 = verf.f32.pop %v9237
        %v9274 = verf.f32.pop %v9238
        %v9275 = verf.f32.pop %v9239
        %v9276 = verf.f32.pop %v9240
        %v9277 = verf.f32.pop %v9241
        %v9278 = verf.f32.pop %v9242
        %v9279 = verf.f32.pop %v9243
        %v9280 = verf.f32.pop %v9244
        %v9281 = verf.f32.pop %v9245
        %v9282 = verf.f32.pop %v9246
        %v9283 = verf.f32.pop %v9247
        %v9284 = verf.f32.pop %v9248
        %v9285 = verf.f32.pop %v9249
        %v9286 = verf.f32.pop %v9250
        %v9287 = verf.f32.pop %v9251
        %v9288 = verf.f32.pop %v9252
        %v9289 = verf.f32.pop %v9253
        %v9290 = verf.f32.pop %v9254
        %v9291 = verf.f32.pop %v9255
        %v9292 = verf.f32.pop %v9256
        %v9293 = verf.f32.pop %v9257
        %v9294 = verf.f32.pop %v9258
        %v9295 = verf.f32.pop %v9259
        %v9296 = vadd.f32 %v9260, 1.0
        %v9297 = vadd.f32 %v9261, 1.0
        %v9298 = vadd.f32 %v9262, 1.0
        %v9299 = vadd.f32 %v9263, 1.0
        %v9300 = vadd.f32 %v9264, 1.0
        %v9301 = vadd.f32 %v9265, 1.0
        %v9302 = vadd.f32 %v9266, 1.0
        %v9303 = vadd.f32 %v9267, 1.0
        %v9304 = vadd.f32 %v9268, 1.0
        %v9305 = vadd.f32 %v9269, 1.0
        %v9306 = vadd.f32 %v9270, 1.0
        %v9307 = vadd.f32 %v9271, 1.0
        %v9308 = vadd.f32 %v9272, 1.0
        %v9309 = vadd.f32 %v9273, 1.0
        %v9310 = vadd.f32 %v9274, 1.0
        %v9311 = vadd.f32 %v9275, 1.0
        %v9312 = vadd.f32 %v9276, 1.0
        %v9313 = vadd.f32 %v9277, 1.0
        %v9314 = vadd.f32 %v9278, 1.0
        %v9315 = vadd.f32 %v9279, 1.0
        %v9316 = vadd.f32 %v9280, 1.0
        %v9317 = vadd.f32 %v9281, 1.0
        %v9318 = vadd.f32 %v9282, 1.0
        %v9319 = vadd.f32 %v9283, 1.0
        %v9320 = vadd.f32 %v9284, 1.0
        %v9321 = vadd.f32 %v9285, 1.0
        %v9322 = vadd.f32 %v9286, 1.0
        %v9323 = vadd.f32 %v9287, 1.0
        %v9324 = vadd.f32 %v9288, 1.0
        %v9325 = vadd.f32 %v9289, 1.0
        %v9326 = vadd.f32 %v9290, 1.0
        %v9327 = vadd.f32 %v9291, 1.0
        %v9328 = vadd.f32 %v9292, 1.0
        %v9329 = vadd.f32 %v9293, 1.0
        %v9330 = vadd.f32 %v9294, 1.0
        %v9331 = vadd.f32 %v9295, 1.0
        %v9332 = vmul.f32 %v9188, %v9296
        %v9333 = vmul.f32 %v9189, %v9297
        %v9334 = vmul.f32 %v9190, %v9298
        %v9335 = vmul.f32 %v9191, %v9299
        %v9336 = vmul.f32 %v9192, %v9300
        %v9337 = vmul.f32 %v9193, %v9301
        %v9338 = vmul.f32 %v9194, %v9302
        %v9339 = vmul.f32 %v9195, %v9303
        %v9340 = vmul.f32 %v9196, %v9304
        %v9341 = vmul.f32 %v9197, %v9305
        %v9342 = vmul.f32 %v9198, %v9306
        %v9343 = vmul.f32 %v9199, %v9307
        %v9344 = vmul.f32 %v9200, %v9308
        %v9345 = vmul.f32 %v9201, %v9309
        %v9346 = vmul.f32 %v9202, %v9310
        %v9347 = vmul.f32 %v9203, %v9311
        %v9348 = vmul.f32 %v9204, %v9312
        %v9349 = vmul.f32 %v9205, %v9313
        %v9350 = vmul.f32 %v9206, %v9314
        %v9351 = vmul.f32 %v9207, %v9315
        %v9352 = vmul.f32 %v9208, %v9316
        %v9353 = vmul.f32 %v9209, %v9317
        %v9354 = vmul.f32 %v9210, %v9318
        %v9355 = vmul.f32 %v9211, %v9319
        %v9356 = vmul.f32 %v9212, %v9320
        %v9357 = vmul.f32 %v9213, %v9321
        %v9358 = vmul.f32 %v9214, %v9322
        %v9359 = vmul.f32 %v9215, %v9323
        %v9360 = vmul.f32 %v9216, %v9324
        %v9361 = vmul.f32 %v9217, %v9325
        %v9362 = vmul.f32 %v9218, %v9326
        %v9363 = vmul.f32 %v9219, %v9327
        %v9364 = vmul.f32 %v9220, %v9328
        %v9365 = vmul.f32 %v9221, %v9329
        %v9366 = vmul.f32 %v9222, %v9330
        %v9367 = vmul.f32 %v9223, %v9331
        %v9368 = vpack.c.bf16 %v9350, %v9332
        %v9369 = vpack.c.bf16 %v9351, %v9333
        %v9370 = vpack.c.bf16 %v9352, %v9334
        %v9371 = vpack.c.bf16 %v9353, %v9335
        %v9372 = vpack.c.bf16 %v9354, %v9336
        %v9373 = vpack.c.bf16 %v9355, %v9337
        %v9374 = vpack.c.bf16 %v9356, %v9338
        %v9375 = vpack.c.bf16 %v9357, %v9339
        %v9376 = vpack.c.bf16 %v9358, %v9340
        %v9377 = vpack.c.bf16 %v9359, %v9341
        %v9378 = vpack.c.bf16 %v9360, %v9342
        %v9379 = vpack.c.bf16 %v9361, %v9343
        %v9380 = vpack.c.bf16 %v9362, %v9344
        %v9381 = vpack.c.bf16 %v9363, %v9345
        %v9382 = vpack.c.bf16 %v9364, %v9346
        %v9383 = vpack.c.bf16 %v9365, %v9347
        %v9384 = vpack.c.bf16 %v9366, %v9348
        %v9385 = vpack.c.bf16 %v9367, %v9349
        %v9404 = vunpack.c.l.b16 %v9368
        %v9405 = vunpack.c.l.b16 %v9369
        %v9406 = vunpack.c.l.b16 %v9370
        %v9407 = vunpack.c.l.b16 %v9371
        %v9408 = vunpack.c.l.b16 %v9372
        %v9409 = vunpack.c.l.b16 %v9373
        %v9410 = vunpack.c.l.b16 %v9374
        %v9411 = vunpack.c.l.b16 %v9375
        %v9412 = vunpack.c.l.b16 %v9376
        %v9413 = vunpack.c.l.b16 %v9377
        %v9414 = vunpack.c.l.b16 %v9378
        %v9415 = vunpack.c.l.b16 %v9379
        %v9416 = vunpack.c.l.b16 %v9380
        %v9417 = vunpack.c.l.b16 %v9381
        %v9418 = vunpack.c.l.b16 %v9382
        %v9419 = vunpack.c.l.b16 %v9383
        %v9420 = vunpack.c.l.b16 %v9384
        %v9421 = vunpack.c.l.b16 %v9385
        %v9422 = vunpack.c.h.b16 %v9368
        %v9423 = vunpack.c.h.b16 %v9369
        %v9424 = vunpack.c.h.b16 %v9370
        %v9425 = vunpack.c.h.b16 %v9371
        %v9426 = vunpack.c.h.b16 %v9372
        %v9427 = vunpack.c.h.b16 %v9373
        %v9428 = vunpack.c.h.b16 %v9374
        %v9429 = vunpack.c.h.b16 %v9375
        %v9430 = vunpack.c.h.b16 %v9376
        %v9431 = vunpack.c.h.b16 %v9377
        %v9432 = vunpack.c.h.b16 %v9378
        %v9433 = vunpack.c.h.b16 %v9379
        %v9434 = vunpack.c.h.b16 %v9380
        %v9435 = vunpack.c.h.b16 %v9381
        %v9436 = vunpack.c.h.b16 %v9382
        %v9437 = vunpack.c.h.b16 %v9383
        %v9438 = vunpack.c.h.b16 %v9384
        %v9439 = vunpack.c.h.b16 %v9385
        %v9440 = vpack.c.b16 %v9405, %v9404
        %v9441 = vpack.c.b16 %v9407, %v9406
        %v9442 = vpack.c.b16 %v9409, %v9408
        %v9443 = vpack.c.b16 %v9411, %v9410
        %v9444 = vpack.c.b16 %v9413, %v9412
        %v9445 = vpack.c.b16 %v9415, %v9414
        %v9446 = vpack.c.b16 %v9417, %v9416
        %v9447 = vpack.c.b16 %v9419, %v9418
        %v9448 = vpack.c.b16 %v9421, %v9420
        %v9449 = vpack.c.b16 %v9423, %v9422
        %v9450 = vpack.c.b16 %v9425, %v9424
        %v9451 = vpack.c.b16 %v9427, %v9426
        %v9452 = vpack.c.b16 %v9429, %v9428
        %v9453 = vpack.c.b16 %v9431, %v9430
        %v9454 = vpack.c.b16 %v9433, %v9432
        %v9455 = vpack.c.b16 %v9435, %v9434
        %v9456 = vpack.c.b16 %v9437, %v9436
        %v9457 = vpack.c.b16 %v9439, %v9438
        %9476 = vst [vmem:[%s205] sm:$0xff] %v9440
        %9477 = vst [vmem:[%s205 + $0x8] sm:$0xff] %v9441
        %9478 = vst [vmem:[%s205 + $0x10] sm:$0xff] %v9442
        %9479 = vst [vmem:[%s205 + $0x18] sm:$0xff] %v9443
        %9480 = vst [vmem:[%s205 + $0x20] sm:$0xff] %v9444
        %9481 = vst [vmem:[%s205 + $0x28] sm:$0xff] %v9445
        %9482 = vst [vmem:[%s205 + $0x30] sm:$0xff] %v9446
        %9483 = vst [vmem:[%s205 + $0x38] sm:$0xff] %v9447
        %9484 = vst [vmem:[%s205 + $0x40] sm:$0xff] %v9448
        %9485 = vst [vmem:[%s205 + $0x48] sm:$0xff] %v9449
        %9486 = vst [vmem:[%s205 + $0x50] sm:$0xff] %v9450
        %9487 = vst [vmem:[%s205 + $0x58] sm:$0xff] %v9451
        %9488 = vst [vmem:[%s205 + $0x60] sm:$0xff] %v9452
        %9489 = vst [vmem:[%s205 + $0x68] sm:$0xff] %v9453
        %9490 = vst [vmem:[%s205 + $0x70] sm:$0xff] %v9454
        %9491 = vst [vmem:[%s205 + $0x78] sm:$0xff] %v9455
        %9492 = vst [vmem:[%s205 + $0x80] sm:$0xff] %v9456
        %9493 = vst [vmem:[%s205 + $0x88] sm:$0xff] %v9457
        %s9494 = sand.u32 %s109, 1
        %s9495 = scalar_lea.sflag [#allocation4], %s9494
        %s9496 = sand.u32 %s109, 1
        %s9497 = smul.addr %s9496, 144
        %s9498 = scalar_lea.vmem [#allocation7], %s9497
        // Predicated region
        $region41: #{tpu_custom_call.1} parent=31 // pred_check
          %p9499 = pneg %p119
        $region42: #{tpu_custom_call.1} parent=31 // pred_check_branch
          %9501 = sbr.rel (%p9499) target = $region44
        $region43: #{tpu_custom_call.1} parent=31 // pred_region
          %s9502 = smul.u32 2, %s24
          %s9504 = ssub.s32 2304, 2304
          %9505 = vsyncadd %s9495, %s9504
          %s9506 = smul.addr %s9502, 18
          %s9507 = smul.addr %s23, 36
          %s9508 = sadd.s32 %s9506, %s9507
          %s9509 = smul.addr %s9508, 64
          %s9510 = scalar_lea.hbm %s3, %s9509
          %s9511 = sshll.u32 %s9498, 4
          %s9512 = int_to_ptr.vmem [resolvable:$true] %s9511
          %9517 = dma.vmem_to_hbm [thread:$0]  %s9512, 2304, %s9510, %s9495, 1152, 1152, 72
        $region44: #{tpu_custom_call.1} parent=31 // pred_fallthru
          _
      $region32: #{tpu_custom_call.1} parent=5 // pred_fallthru
        _
      %p9518 = scmp.le.s32.totalorder 2, %s14
      // Predicated region
      $region45: #{tpu_custom_call.1} parent=5 // pred_check
        %p9519 = pneg %p9518
      $region46: #{tpu_custom_call.1} parent=5 // pred_check_branch
        %9521 = sbr.rel (%p9519) target = $region48
      $region47: #{tpu_custom_call.1} parent=5 // pred_region
        %s9522 = ssub.s32 %s14, 2
        // Predicated region
        $region49: #{tpu_custom_call.1} parent=47 // pred_check
          %p9523 = pneg %p125
        $region50: #{tpu_custom_call.1} parent=47 // pred_check_branch
          %9525 = sbr.rel (%p9523) target = $region52
        $region51: #{tpu_custom_call.1} parent=47 // pred_region
          %s9526 = sand.u32 %s110, 1
          %s9527 = scalar_lea.sflag [#allocation4], %s9526
          %s9528 = sand.u32 %s110, 1
          %s9529 = smul.addr %s9528, 144
          %s9530 = scalar_lea.vmem [#allocation7], %s9529
          %9531 = dma.done %s9527, 2304
        $region52: #{tpu_custom_call.1} parent=47 // pred_fallthru
          _
      $region48: #{tpu_custom_call.1} parent=5 // pred_fallthru
        _
    $region6: #{tpu_custom_call.1} parent=1 // loop_footer
      %s18 = sadd.s32 1, %s14
    $region7: #{tpu_custom_call.1} parent=1 // loop_footer_branch
      %13 = sbr.rel target = $region3
    $region8: #{tpu_custom_call.1} parent=1 // loop_exit
      _
    %9532 = vsyncpa [#allocation3], 1
    %s9533 = scalar_lea.sflag [#allocation3], 1
    %9534 = vsyncpa %s9533, 1
    %9535 = vsyncpa [#allocation6], 1
    %9536 = vsyncpa [#allocation4], 1
    %s9537 = scalar_lea.sflag [#allocation4], 1
    %9538 = vsyncpa %s9537, 1

</llo_original>
